<compile_context>
chip_gen: v6e
topology: v6e:2x2x1
jax: 0.10.0
libtpu: 0.0.40
codegen_flags: <defaults>
</compile_context>

<pallas_src>
import functools

import jax
import jax.numpy as jnp
import numpy as np
from jax.experimental import pallas as pl
from jax.experimental.pallas import tpu as pltpu

LATENT_DIM = 30
CATEGORICAL_DIM = 10
FLAT = LATENT_DIM * CATEGORICAL_DIM  # 300


def _round_up(n, m):
    return ((n + m - 1) // m) * m


# ------------------------------- Pallas kernel ------------------------------ #

def vae_kernel(invt_ref, x_ref, g_ref,
               w1_ref, b1_ref, w2_ref, b2_ref, w3_ref, b3_ref,
               w4_ref, b4_ref, w5_ref, b5_ref, w6_ref, b6_ref,
               recon_ref, qy_ref, *, hard):
    f32 = jnp.float32
    bf16 = jnp.bfloat16
    inv_t = invt_ref[0]

    # ---------------- encoder: fc1 -> relu -> fc2 -> relu -> fc3 -> relu -----
    x = x_ref[...].astype(bf16)                                     # (tm, 784)
    h1 = jnp.maximum(
        jnp.dot(x, w1_ref[...], preferred_element_type=f32) + b1_ref[...], 0.0)
    h2 = jnp.maximum(
        jnp.dot(h1.astype(bf16), w2_ref[...], preferred_element_type=f32)
        + b2_ref[...], 0.0)
    h2b = h2.astype(bf16)

    # fc3 split per categorical class: q[c] has shape (tm, LATENT_DIM)
    q = []
    for c in range(CATEGORICAL_DIM):
        qc = jnp.dot(h2b, w3_ref[c], preferred_element_type=f32) + b3_ref[c]
        q.append(jnp.maximum(qc, 0.0))

    # ---------------- qy = softmax over the categorical classes --------------
    qmax = functools.reduce(jnp.maximum, q)
    qexp = [jnp.exp(qc - qmax) for qc in q]
    qinv = pl.reciprocal(functools.reduce(jnp.add, qexp), approx=True)
    for c in range(CATEGORICAL_DIM):
        qy_ref[c] = qexp[c] * qinv                                   # (tm, 30)

    # ---------------- gumbel-softmax sample ----------------------------------
    y = [(q[c] + g_ref[c]) * inv_t for c in range(CATEGORICAL_DIM)]
    ymax = functools.reduce(jnp.maximum, y)
    yexp = [jnp.exp(yc - ymax) for yc in y]
    yinv = pl.reciprocal(functools.reduce(jnp.add, yexp), approx=True)
    y_soft = [ye * yinv for ye in yexp]

    if hard:
        # straight-through one-hot of the first argmax over classes
        smax = functools.reduce(jnp.maximum, y_soft)
        first = functools.reduce(
            jnp.minimum,
            [jnp.where(y_soft[c] == smax, jnp.int32(c), jnp.int32(CATEGORICAL_DIM))
             for c in range(CATEGORICAL_DIM)])
        # forward value of (y_hard - y).detach() + y
        z = [((first == c).astype(f32) - y_soft[c]) + y_soft[c]
             for c in range(CATEGORICAL_DIM)]
    else:
        z = y_soft

    # ---------------- decoder: fc4 -> relu -> fc5 -> relu -> fc6 -> sigmoid --
    acc = jnp.dot(z[0].astype(bf16), w4_ref[0], preferred_element_type=f32)
    for c in range(1, CATEGORICAL_DIM):
        acc = acc + jnp.dot(z[c].astype(bf16), w4_ref[c],
                            preferred_element_type=f32)
    h4 = jnp.maximum(acc + b4_ref[...], 0.0)
    h5 = jnp.maximum(
        jnp.dot(h4.astype(bf16), w5_ref[...], preferred_element_type=f32)
        + b5_ref[...], 0.0)
    logits = (jnp.dot(h5.astype(bf16), w6_ref[...], preferred_element_type=f32)
              + b6_ref[...])
    recon_ref[...] = jax.nn.sigmoid(logits)


# ------------------------------ JAX wrapper --------------------------------- #

def prepare_params(params):
    """One-time: cast matmul weights to bf16 and split fc3/fc4 per class."""
    (w1, b1, w2, b2, w3, b3, w4, b4, w5, b5, w6, b6) = params
    bf = jnp.bfloat16
    # q column index j = l*10 + c  ->  class-c slice is [:, c::10]
    w3r = jnp.transpose(w3.reshape(256, LATENT_DIM, CATEGORICAL_DIM),
                        (2, 0, 1)).astype(bf)                 # (10, 256, 30)
    b3r = jnp.transpose(b3.reshape(1, LATENT_DIM, CATEGORICAL_DIM),
                        (2, 0, 1)).astype(jnp.float32)        # (10, 1, 30)
    w4r = jnp.transpose(w4.reshape(LATENT_DIM, CATEGORICAL_DIM, 256),
                        (1, 0, 2)).astype(bf)                 # (10, 30, 256)
    return (w1.astype(bf), b1, w2.astype(bf), b2, w3r, b3r,
            w4r, b4, w5.astype(bf), b5, w6.astype(bf), b6)


@functools.partial(jax.jit, static_argnames=("hard",))
def vae_gumbel_forward(x, prep_params, gumbel_noise, temp, *, hard):
    (w1, b1, w2, b2, w3r, b3r, w4r, b4, w5, b5, w6, b6) = prep_params
    B = x.shape[0]
    x2 = x.reshape(B, 784)                                    # x.view(-1, 784)
    # gumbel noise in class-major layout: (10, B, 30)
    g = jnp.transpose(gumbel_noise.reshape(B, LATENT_DIM, CATEGORICAL_DIM),
                      (2, 0, 1))

    tm = min(256, _round_up(B, 8))                            # batch tile
    Bp = _round_up(B, tm)
    if Bp != B:
        x2 = jnp.pad(x2, ((0, Bp - B), (0, 0)))
        g = jnp.pad(g, ((0, 0), (0, Bp - B), (0, 0)))

    inv_t = (jnp.float32(1.0) / jnp.asarray(temp, jnp.float32)).reshape(1)

    const2 = lambda i: (0, 0)
    const3 = lambda i: (0, 0, 0)
    recon_p, qy3 = pl.pallas_call(
        functools.partial(vae_kernel, hard=hard),
        grid=(Bp // tm,),
        in_specs=[
            pl.BlockSpec(memory_space=pltpu.MemorySpace.SMEM),            # 1/temp
            pl.BlockSpec((tm, 784), lambda i: (i, 0)),                    # x
            pl.BlockSpec((CATEGORICAL_DIM, tm, LATENT_DIM),
                         lambda i: (0, i, 0)),                            # gumbel
            pl.BlockSpec((784, 512), const2),                             # w1
            pl.BlockSpec((1, 512), const2),                               # b1
            pl.BlockSpec((512, 256), const2),                             # w2
            pl.BlockSpec((1, 256), const2),                               # b2
            pl.BlockSpec((CATEGORICAL_DIM, 256, LATENT_DIM), const3),     # w3r
            pl.BlockSpec((CATEGORICAL_DIM, 1, LATENT_DIM), const3),       # b3r
            pl.BlockSpec((CATEGORICAL_DIM, LATENT_DIM, 256), const3),     # w4r
            pl.BlockSpec((1, 256), const2),                               # b4
            pl.BlockSpec((256, 512), const2),                             # w5
            pl.BlockSpec((1, 512), const2),                               # b5
            pl.BlockSpec((512, 784), const2),                             # w6
            pl.BlockSpec((1, 784), const2),                               # b6
        ],
        out_specs=(
            pl.BlockSpec((tm, 784), lambda i: (i, 0)),                    # recon
            pl.BlockSpec((CATEGORICAL_DIM, tm, LATENT_DIM),
                         lambda i: (0, i, 0)),                            # qy
        ),
        out_shape=(
            jax.ShapeDtypeStruct((Bp, 784), jnp.float32),
            jax.ShapeDtypeStruct((CATEGORICAL_DIM, Bp, LATENT_DIM), jnp.float32),
        ),
        compiler_params=pltpu.CompilerParams(
            dimension_semantics=("parallel",),
            vmem_limit_bytes=48 * 1024 * 1024,
        ),
    )(inv_t, x2, g, w1, b1, w2, b2, w3r, b3r, w4r, b4, w5, b5, w6, b6)

    recon = recon_p[:B]
    qy = jnp.transpose(qy3, (1, 2, 0))[:B].reshape(B, FLAT)   # (B, 30, 10)->(B,300)
    return recon, qy


# ---------------------- deterministic params / reference -------------------- #

def init_params(key):
    dims = [(784, 512), (512, 256), (256, FLAT),
            (FLAT, 256), (256, 512), (512, 784)]
    params = []
    for din, dout in dims:
        kw, kb, key = jax.random.split(key, 3)
        bound = 1.0 / np.sqrt(din)
        params.append(jax.random.uniform(kw, (din, dout), jnp.float32, -bound, bound))
        params.append(jax.random.uniform(kb, (1, dout), jnp.float32, -bound, bound))
    return tuple(params)


def reference_forward(x, params, gumbel_noise, temp, hard):
    (w1, b1, w2, b2, w3, b3, w4, b4, w5, b5, w6, b6) = params
    x2 = x.reshape(-1, 784)
    h1 = jax.nn.relu(x2 @ w1 + b1)
    h2 = jax.nn.relu(h1 @ w2 + b2)
    q = jax.nn.relu(h2 @ w3 + b3)
    q_y = q.reshape(-1, LATENT_DIM, CATEGORICAL_DIM)
    y = jax.nn.softmax((q_y + gumbel_noise) / temp, axis=-1)
    if hard:
        ind = jnp.argmax(y, axis=-1)
        y_hard = jax.nn.one_hot(ind, CATEGORICAL_DIM, dtype=y.dtype)
        z = (y_hard - y) + y
    else:
        z = y
    z = z.reshape(-1, FLAT)
    h4 = jax.nn.relu(z @ w4 + b4)
    h5 = jax.nn.relu(h4 @ w5 + b5)
    recon = jax.nn.sigmoid(h5 @ w6 + b6)
    qy_soft = jax.nn.softmax(q_y, axis=-1).reshape(q.shape)
    return recon, qy_soft


if __name__ == "__main__":
    key = jax.random.PRNGKey(0)
    kp, kx, kg = jax.random.split(key, 3)

    params = init_params(kp)
    prep = prepare_params(params)

    B = 8
    x = jax.random.uniform(kx, (B, 1, 28, 28), jnp.float32)   # MNIST-like NCHW input

    # sample_gumbel: -log(-log(U + eps) + eps)
    eps = 1e-20
    U = jax.random.uniform(kg, (B, LATENT_DIM, CATEGORICAL_DIM), jnp.float32)
    gumbel_noise = -jnp.log(-jnp.log(U + eps) + eps)
    temp = 1.0

    # --- soft (hard=False): compare against the pure-JAX f32 reference ---
    recon, qy = vae_gumbel_forward(x, prep, gumbel_noise, temp, hard=False)
    recon, qy = jax.block_until_ready((recon, qy))
    recon_ref, qy_ref = reference_forward(x, params, gumbel_noise, temp, False)
    assert recon.shape == (B, 784) and qy.shape == (B, FLAT)
    np.testing.assert_allclose(np.asarray(recon), np.asarray(recon_ref),
                               atol=2e-2, rtol=2e-2)
    np.testing.assert_allclose(np.asarray(qy), np.asarray(qy_ref),
                               atol=2e-2, rtol=2e-2)

    # --- hard (straight-through): structural check (argmax is tie-sensitive) ---
    recon_h, qy_h = vae_gumbel_forward(x, prep, gumbel_noise, temp, hard=True)
    recon_h, qy_h = jax.block_until_ready((recon_h, qy_h))
    assert recon_h.shape == (B, 784) and qy_h.shape == (B, FLAT)
    assert bool(jnp.all(jnp.isfinite(recon_h))) and bool(jnp.all(jnp.isfinite(qy_h)))
    # qy does not depend on `hard`
    np.testing.assert_allclose(np.asarray(qy_h), np.asarray(qy), atol=1e-5, rtol=1e-5)

    print("KERNEL_OK")
</pallas_src>

<mosaic_0001>
module attributes {stable_mosaic.version = 11 : i64} {
  func.func @vae_kernel(%arg0: i32, %arg1: memref<1xf32, #tpu.memory_space<smem>>, %arg2: memref<8x784xf32, #tpu.memory_space<vmem>>, %arg3: memref<10x8x30xf32, #tpu.memory_space<vmem>>, %arg4: memref<784x512xbf16, #tpu.memory_space<vmem>>, %arg5: memref<1x512xf32, #tpu.memory_space<vmem>>, %arg6: memref<512x256xbf16, #tpu.memory_space<vmem>>, %arg7: memref<1x256xf32, #tpu.memory_space<vmem>>, %arg8: memref<10x256x30xbf16, #tpu.memory_space<vmem>>, %arg9: memref<10x1x30xf32, #tpu.memory_space<vmem>>, %arg10: memref<10x30x256xbf16, #tpu.memory_space<vmem>>, %arg11: memref<1x256xf32, #tpu.memory_space<vmem>>, %arg12: memref<256x512xbf16, #tpu.memory_space<vmem>>, %arg13: memref<1x512xf32, #tpu.memory_space<vmem>>, %arg14: memref<512x784xbf16, #tpu.memory_space<vmem>>, %arg15: memref<1x784xf32, #tpu.memory_space<vmem>>, %arg16: memref<8x784xf32, #tpu.memory_space<vmem>>, %arg17: memref<10x8x30xf32, #tpu.memory_space<vmem>>) attributes {dimension_semantics = [#tpu.dimension_semantics<parallel>], iteration_bounds = array<i64: 1>, scalar_prefetch = 0 : i64, scratch_operands = 0 : i64, tpu.core_type = #tpu.core_type<tc>, window_params = [{transform_indices = @transform_0, window_bounds = array<i64: 1>}, {transform_indices = @transform_1, window_bounds = array<i64: 8, 784>}, {transform_indices = @transform_2, window_bounds = array<i64: 10, 8, 30>}, {pipeline_mode = #tpu.pipeline_mode<synchronous>, transform_indices = @transform_3, window_bounds = array<i64: 784, 512>}, {pipeline_mode = #tpu.pipeline_mode<synchronous>, transform_indices = @transform_4, window_bounds = array<i64: 1, 512>}, {pipeline_mode = #tpu.pipeline_mode<synchronous>, transform_indices = @transform_5, window_bounds = array<i64: 512, 256>}, {pipeline_mode = #tpu.pipeline_mode<synchronous>, transform_indices = @transform_6, window_bounds = array<i64: 1, 256>}, {pipeline_mode = #tpu.pipeline_mode<synchronous>, transform_indices = @transform_7, window_bounds = array<i64: 10, 256, 30>}, {pipeline_mode = #tpu.pipeline_mode<synchronous>, transform_indices = @transform_8, window_bounds = array<i64: 10, 1, 30>}, {pipeline_mode = #tpu.pipeline_mode<synchronous>, transform_indices = @transform_9, window_bounds = array<i64: 10, 30, 256>}, {pipeline_mode = #tpu.pipeline_mode<synchronous>, transform_indices = @transform_10, window_bounds = array<i64: 1, 256>}, {pipeline_mode = #tpu.pipeline_mode<synchronous>, transform_indices = @transform_11, window_bounds = array<i64: 256, 512>}, {pipeline_mode = #tpu.pipeline_mode<synchronous>, transform_indices = @transform_12, window_bounds = array<i64: 1, 512>}, {pipeline_mode = #tpu.pipeline_mode<synchronous>, transform_indices = @transform_13, window_bounds = array<i64: 512, 784>}, {pipeline_mode = #tpu.pipeline_mode<synchronous>, transform_indices = @transform_14, window_bounds = array<i64: 1, 784>}, {transform_indices = @transform_15, window_bounds = array<i64: 8, 784>}, {transform_indices = @transform_16, window_bounds = array<i64: 10, 8, 30>}]} {
    %c0 = arith.constant 0 : index
    %0 = memref.load %arg1[%c0] : memref<1xf32, #tpu.memory_space<smem>>
    %c0_0 = arith.constant 0 : index
    %c0_1 = arith.constant 0 : index
    %1 = vector.load %arg2[%c0_0, %c0_1] : memref<8x784xf32, #tpu.memory_space<vmem>>, vector<8x784xf32>
    %2 = arith.truncf %1 : vector<8x784xf32> to vector<8x784xbf16>
    %c0_2 = arith.constant 0 : index
    %c0_3 = arith.constant 0 : index
    %3 = vector.load %arg4[%c0_2, %c0_3] : memref<784x512xbf16, #tpu.memory_space<vmem>>, vector<784x512xbf16>
    %cst = arith.constant dense<0.000000e+00> : vector<8x512xf32>
    %4 = tpu.matmul %2, %3, %cst {dimension_numbers = #tpu.dot_dimension_numbers<[1], [0], [0], [1], [0, 0, 1, 1], [], []>} : vector<8x784xbf16>, vector<784x512xbf16>, vector<8x512xf32> -> vector<8x512xf32>
    %c0_4 = arith.constant 0 : index
    %c0_5 = arith.constant 0 : index
    %5 = vector.load %arg5[%c0_4, %c0_5] : memref<1x512xf32, #tpu.memory_space<vmem>>, vector<1x512xf32>
    %6 = vector.broadcast %5 : vector<1x512xf32> to vector<8x512xf32>
    %7 = arith.addf %4, %6 : vector<8x512xf32>
    %cst_6 = arith.constant 0.000000e+00 : f32
    %8 = vector.broadcast %cst_6 : f32 to vector<8x512xf32>
    %9 = arith.maximumf %7, %8 : vector<8x512xf32>
    %10 = arith.truncf %9 : vector<8x512xf32> to vector<8x512xbf16>
    %c0_7 = arith.constant 0 : index
    %c0_8 = arith.constant 0 : index
    %11 = vector.load %arg6[%c0_7, %c0_8] : memref<512x256xbf16, #tpu.memory_space<vmem>>, vector<512x256xbf16>
    %cst_9 = arith.constant dense<0.000000e+00> : vector<8x256xf32>
    %12 = tpu.matmul %10, %11, %cst_9 {dimension_numbers = #tpu.dot_dimension_numbers<[1], [0], [0], [1], [0, 0, 1, 1], [], []>} : vector<8x512xbf16>, vector<512x256xbf16>, vector<8x256xf32> -> vector<8x256xf32>
    %c0_10 = arith.constant 0 : index
    %c0_11 = arith.constant 0 : index
    %13 = vector.load %arg7[%c0_10, %c0_11] : memref<1x256xf32, #tpu.memory_space<vmem>>, vector<1x256xf32>
    %14 = vector.broadcast %13 : vector<1x256xf32> to vector<8x256xf32>
    %15 = arith.addf %12, %14 : vector<8x256xf32>
    %cst_12 = arith.constant 0.000000e+00 : f32
    %16 = vector.broadcast %cst_12 : f32 to vector<8x256xf32>
    %17 = arith.maximumf %15, %16 : vector<8x256xf32>
    %18 = arith.truncf %17 : vector<8x256xf32> to vector<8x256xbf16>
    %c0_13 = arith.constant 0 : index
    %c0_14 = arith.constant 0 : index
    %c0_15 = arith.constant 0 : index
    %19 = vector.load %arg8[%c0_13, %c0_14, %c0_15] : memref<10x256x30xbf16, #tpu.memory_space<vmem>>, vector<1x256x30xbf16>
    %20 = vector.shape_cast %19 : vector<1x256x30xbf16> to vector<256x30xbf16>
    %cst_16 = arith.constant dense<0.000000e+00> : vector<8x30xf32>
    %21 = tpu.matmul %18, %20, %cst_16 {dimension_numbers = #tpu.dot_dimension_numbers<[1], [0], [0], [1], [0, 0, 1, 1], [], []>} : vector<8x256xbf16>, vector<256x30xbf16>, vector<8x30xf32> -> vector<8x30xf32>
    %c0_17 = arith.constant 0 : index
    %c0_18 = arith.constant 0 : index
    %c0_19 = arith.constant 0 : index
    %22 = vector.load %arg9[%c0_17, %c0_18, %c0_19] : memref<10x1x30xf32, #tpu.memory_space<vmem>>, vector<1x1x30xf32>
    %23 = vector.shape_cast %22 : vector<1x1x30xf32> to vector<1x30xf32>
    %24 = vector.broadcast %23 : vector<1x30xf32> to vector<8x30xf32>
    %25 = arith.addf %21, %24 : vector<8x30xf32>
    %cst_20 = arith.constant 0.000000e+00 : f32
    %26 = vector.broadcast %cst_20 : f32 to vector<8x30xf32>
    %27 = arith.maximumf %25, %26 : vector<8x30xf32>
    %c1 = arith.constant 1 : index
    %c0_21 = arith.constant 0 : index
    %c0_22 = arith.constant 0 : index
    %28 = vector.load %arg8[%c1, %c0_21, %c0_22] : memref<10x256x30xbf16, #tpu.memory_space<vmem>>, vector<1x256x30xbf16>
    %29 = vector.shape_cast %28 : vector<1x256x30xbf16> to vector<256x30xbf16>
    %cst_23 = arith.constant dense<0.000000e+00> : vector<8x30xf32>
    %30 = tpu.matmul %18, %29, %cst_23 {dimension_numbers = #tpu.dot_dimension_numbers<[1], [0], [0], [1], [0, 0, 1, 1], [], []>} : vector<8x256xbf16>, vector<256x30xbf16>, vector<8x30xf32> -> vector<8x30xf32>
    %c1_24 = arith.constant 1 : index
    %c0_25 = arith.constant 0 : index
    %c0_26 = arith.constant 0 : index
    %31 = vector.load %arg9[%c1_24, %c0_25, %c0_26] : memref<10x1x30xf32, #tpu.memory_space<vmem>>, vector<1x1x30xf32>
    %32 = vector.shape_cast %31 : vector<1x1x30xf32> to vector<1x30xf32>
    %33 = vector.broadcast %32 : vector<1x30xf32> to vector<8x30xf32>
    %34 = arith.addf %30, %33 : vector<8x30xf32>
    %cst_27 = arith.constant 0.000000e+00 : f32
    %35 = vector.broadcast %cst_27 : f32 to vector<8x30xf32>
    %36 = arith.maximumf %34, %35 : vector<8x30xf32>
    %c2 = arith.constant 2 : index
    %c0_28 = arith.constant 0 : index
    %c0_29 = arith.constant 0 : index
    %37 = vector.load %arg8[%c2, %c0_28, %c0_29] : memref<10x256x30xbf16, #tpu.memory_space<vmem>>, vector<1x256x30xbf16>
    %38 = vector.shape_cast %37 : vector<1x256x30xbf16> to vector<256x30xbf16>
    %cst_30 = arith.constant dense<0.000000e+00> : vector<8x30xf32>
    %39 = tpu.matmul %18, %38, %cst_30 {dimension_numbers = #tpu.dot_dimension_numbers<[1], [0], [0], [1], [0, 0, 1, 1], [], []>} : vector<8x256xbf16>, vector<256x30xbf16>, vector<8x30xf32> -> vector<8x30xf32>
    %c2_31 = arith.constant 2 : index
    %c0_32 = arith.constant 0 : index
    %c0_33 = arith.constant 0 : index
    %40 = vector.load %arg9[%c2_31, %c0_32, %c0_33] : memref<10x1x30xf32, #tpu.memory_space<vmem>>, vector<1x1x30xf32>
    %41 = vector.shape_cast %40 : vector<1x1x30xf32> to vector<1x30xf32>
    %42 = vector.broadcast %41 : vector<1x30xf32> to vector<8x30xf32>
    %43 = arith.addf %39, %42 : vector<8x30xf32>
    %cst_34 = arith.constant 0.000000e+00 : f32
    %44 = vector.broadcast %cst_34 : f32 to vector<8x30xf32>
    %45 = arith.maximumf %43, %44 : vector<8x30xf32>
    %c3 = arith.constant 3 : index
    %c0_35 = arith.constant 0 : index
    %c0_36 = arith.constant 0 : index
    %46 = vector.load %arg8[%c3, %c0_35, %c0_36] : memref<10x256x30xbf16, #tpu.memory_space<vmem>>, vector<1x256x30xbf16>
    %47 = vector.shape_cast %46 : vector<1x256x30xbf16> to vector<256x30xbf16>
    %cst_37 = arith.constant dense<0.000000e+00> : vector<8x30xf32>
    %48 = tpu.matmul %18, %47, %cst_37 {dimension_numbers = #tpu.dot_dimension_numbers<[1], [0], [0], [1], [0, 0, 1, 1], [], []>} : vector<8x256xbf16>, vector<256x30xbf16>, vector<8x30xf32> -> vector<8x30xf32>
    %c3_38 = arith.constant 3 : index
    %c0_39 = arith.constant 0 : index
    %c0_40 = arith.constant 0 : index
    %49 = vector.load %arg9[%c3_38, %c0_39, %c0_40] : memref<10x1x30xf32, #tpu.memory_space<vmem>>, vector<1x1x30xf32>
    %50 = vector.shape_cast %49 : vector<1x1x30xf32> to vector<1x30xf32>
    %51 = vector.broadcast %50 : vector<1x30xf32> to vector<8x30xf32>
    %52 = arith.addf %48, %51 : vector<8x30xf32>
    %cst_41 = arith.constant 0.000000e+00 : f32
    %53 = vector.broadcast %cst_41 : f32 to vector<8x30xf32>
    %54 = arith.maximumf %52, %53 : vector<8x30xf32>
    %c4 = arith.constant 4 : index
    %c0_42 = arith.constant 0 : index
    %c0_43 = arith.constant 0 : index
    %55 = vector.load %arg8[%c4, %c0_42, %c0_43] : memref<10x256x30xbf16, #tpu.memory_space<vmem>>, vector<1x256x30xbf16>
    %56 = vector.shape_cast %55 : vector<1x256x30xbf16> to vector<256x30xbf16>
    %cst_44 = arith.constant dense<0.000000e+00> : vector<8x30xf32>
    %57 = tpu.matmul %18, %56, %cst_44 {dimension_numbers = #tpu.dot_dimension_numbers<[1], [0], [0], [1], [0, 0, 1, 1], [], []>} : vector<8x256xbf16>, vector<256x30xbf16>, vector<8x30xf32> -> vector<8x30xf32>
    %c4_45 = arith.constant 4 : index
    %c0_46 = arith.constant 0 : index
    %c0_47 = arith.constant 0 : index
    %58 = vector.load %arg9[%c4_45, %c0_46, %c0_47] : memref<10x1x30xf32, #tpu.memory_space<vmem>>, vector<1x1x30xf32>
    %59 = vector.shape_cast %58 : vector<1x1x30xf32> to vector<1x30xf32>
    %60 = vector.broadcast %59 : vector<1x30xf32> to vector<8x30xf32>
    %61 = arith.addf %57, %60 : vector<8x30xf32>
    %cst_48 = arith.constant 0.000000e+00 : f32
    %62 = vector.broadcast %cst_48 : f32 to vector<8x30xf32>
    %63 = arith.maximumf %61, %62 : vector<8x30xf32>
    %c5 = arith.constant 5 : index
    %c0_49 = arith.constant 0 : index
    %c0_50 = arith.constant 0 : index
    %64 = vector.load %arg8[%c5, %c0_49, %c0_50] : memref<10x256x30xbf16, #tpu.memory_space<vmem>>, vector<1x256x30xbf16>
    %65 = vector.shape_cast %64 : vector<1x256x30xbf16> to vector<256x30xbf16>
    %cst_51 = arith.constant dense<0.000000e+00> : vector<8x30xf32>
    %66 = tpu.matmul %18, %65, %cst_51 {dimension_numbers = #tpu.dot_dimension_numbers<[1], [0], [0], [1], [0, 0, 1, 1], [], []>} : vector<8x256xbf16>, vector<256x30xbf16>, vector<8x30xf32> -> vector<8x30xf32>
    %c5_52 = arith.constant 5 : index
    %c0_53 = arith.constant 0 : index
    %c0_54 = arith.constant 0 : index
    %67 = vector.load %arg9[%c5_52, %c0_53, %c0_54] : memref<10x1x30xf32, #tpu.memory_space<vmem>>, vector<1x1x30xf32>
    %68 = vector.shape_cast %67 : vector<1x1x30xf32> to vector<1x30xf32>
    %69 = vector.broadcast %68 : vector<1x30xf32> to vector<8x30xf32>
    %70 = arith.addf %66, %69 : vector<8x30xf32>
    %cst_55 = arith.constant 0.000000e+00 : f32
    %71 = vector.broadcast %cst_55 : f32 to vector<8x30xf32>
    %72 = arith.maximumf %70, %71 : vector<8x30xf32>
    %c6 = arith.constant 6 : index
    %c0_56 = arith.constant 0 : index
    %c0_57 = arith.constant 0 : index
    %73 = vector.load %arg8[%c6, %c0_56, %c0_57] : memref<10x256x30xbf16, #tpu.memory_space<vmem>>, vector<1x256x30xbf16>
    %74 = vector.shape_cast %73 : vector<1x256x30xbf16> to vector<256x30xbf16>
    %cst_58 = arith.constant dense<0.000000e+00> : vector<8x30xf32>
    %75 = tpu.matmul %18, %74, %cst_58 {dimension_numbers = #tpu.dot_dimension_numbers<[1], [0], [0], [1], [0, 0, 1, 1], [], []>} : vector<8x256xbf16>, vector<256x30xbf16>, vector<8x30xf32> -> vector<8x30xf32>
    %c6_59 = arith.constant 6 : index
    %c0_60 = arith.constant 0 : index
    %c0_61 = arith.constant 0 : index
    %76 = vector.load %arg9[%c6_59, %c0_60, %c0_61] : memref<10x1x30xf32, #tpu.memory_space<vmem>>, vector<1x1x30xf32>
    %77 = vector.shape_cast %76 : vector<1x1x30xf32> to vector<1x30xf32>
    %78 = vector.broadcast %77 : vector<1x30xf32> to vector<8x30xf32>
    %79 = arith.addf %75, %78 : vector<8x30xf32>
    %cst_62 = arith.constant 0.000000e+00 : f32
    %80 = vector.broadcast %cst_62 : f32 to vector<8x30xf32>
    %81 = arith.maximumf %79, %80 : vector<8x30xf32>
    %c7 = arith.constant 7 : index
    %c0_63 = arith.constant 0 : index
    %c0_64 = arith.constant 0 : index
    %82 = vector.load %arg8[%c7, %c0_63, %c0_64] : memref<10x256x30xbf16, #tpu.memory_space<vmem>>, vector<1x256x30xbf16>
    %83 = vector.shape_cast %82 : vector<1x256x30xbf16> to vector<256x30xbf16>
    %cst_65 = arith.constant dense<0.000000e+00> : vector<8x30xf32>
    %84 = tpu.matmul %18, %83, %cst_65 {dimension_numbers = #tpu.dot_dimension_numbers<[1], [0], [0], [1], [0, 0, 1, 1], [], []>} : vector<8x256xbf16>, vector<256x30xbf16>, vector<8x30xf32> -> vector<8x30xf32>
    %c7_66 = arith.constant 7 : index
    %c0_67 = arith.constant 0 : index
    %c0_68 = arith.constant 0 : index
    %85 = vector.load %arg9[%c7_66, %c0_67, %c0_68] : memref<10x1x30xf32, #tpu.memory_space<vmem>>, vector<1x1x30xf32>
    %86 = vector.shape_cast %85 : vector<1x1x30xf32> to vector<1x30xf32>
    %87 = vector.broadcast %86 : vector<1x30xf32> to vector<8x30xf32>
    %88 = arith.addf %84, %87 : vector<8x30xf32>
    %cst_69 = arith.constant 0.000000e+00 : f32
    %89 = vector.broadcast %cst_69 : f32 to vector<8x30xf32>
    %90 = arith.maximumf %88, %89 : vector<8x30xf32>
    %c8 = arith.constant 8 : index
    %c0_70 = arith.constant 0 : index
    %c0_71 = arith.constant 0 : index
    %91 = vector.load %arg8[%c8, %c0_70, %c0_71] : memref<10x256x30xbf16, #tpu.memory_space<vmem>>, vector<1x256x30xbf16>
    %92 = vector.shape_cast %91 : vector<1x256x30xbf16> to vector<256x30xbf16>
    %cst_72 = arith.constant dense<0.000000e+00> : vector<8x30xf32>
    %93 = tpu.matmul %18, %92, %cst_72 {dimension_numbers = #tpu.dot_dimension_numbers<[1], [0], [0], [1], [0, 0, 1, 1], [], []>} : vector<8x256xbf16>, vector<256x30xbf16>, vector<8x30xf32> -> vector<8x30xf32>
    %c8_73 = arith.constant 8 : index
    %c0_74 = arith.constant 0 : index
    %c0_75 = arith.constant 0 : index
    %94 = vector.load %arg9[%c8_73, %c0_74, %c0_75] : memref<10x1x30xf32, #tpu.memory_space<vmem>>, vector<1x1x30xf32>
    %95 = vector.shape_cast %94 : vector<1x1x30xf32> to vector<1x30xf32>
    %96 = vector.broadcast %95 : vector<1x30xf32> to vector<8x30xf32>
    %97 = arith.addf %93, %96 : vector<8x30xf32>
    %cst_76 = arith.constant 0.000000e+00 : f32
    %98 = vector.broadcast %cst_76 : f32 to vector<8x30xf32>
    %99 = arith.maximumf %97, %98 : vector<8x30xf32>
    %c9 = arith.constant 9 : index
    %c0_77 = arith.constant 0 : index
    %c0_78 = arith.constant 0 : index
    %100 = vector.load %arg8[%c9, %c0_77, %c0_78] : memref<10x256x30xbf16, #tpu.memory_space<vmem>>, vector<1x256x30xbf16>
    %101 = vector.shape_cast %100 : vector<1x256x30xbf16> to vector<256x30xbf16>
    %cst_79 = arith.constant dense<0.000000e+00> : vector<8x30xf32>
    %102 = tpu.matmul %18, %101, %cst_79 {dimension_numbers = #tpu.dot_dimension_numbers<[1], [0], [0], [1], [0, 0, 1, 1], [], []>} : vector<8x256xbf16>, vector<256x30xbf16>, vector<8x30xf32> -> vector<8x30xf32>
    %c9_80 = arith.constant 9 : index
    %c0_81 = arith.constant 0 : index
    %c0_82 = arith.constant 0 : index
    %103 = vector.load %arg9[%c9_80, %c0_81, %c0_82] : memref<10x1x30xf32, #tpu.memory_space<vmem>>, vector<1x1x30xf32>
    %104 = vector.shape_cast %103 : vector<1x1x30xf32> to vector<1x30xf32>
    %105 = vector.broadcast %104 : vector<1x30xf32> to vector<8x30xf32>
    %106 = arith.addf %102, %105 : vector<8x30xf32>
    %cst_83 = arith.constant 0.000000e+00 : f32
    %107 = vector.broadcast %cst_83 : f32 to vector<8x30xf32>
    %108 = arith.maximumf %106, %107 : vector<8x30xf32>
    %109 = arith.maximumf %27, %36 : vector<8x30xf32>
    %110 = arith.maximumf %109, %45 : vector<8x30xf32>
    %111 = arith.maximumf %110, %54 : vector<8x30xf32>
    %112 = arith.maximumf %111, %63 : vector<8x30xf32>
    %113 = arith.maximumf %112, %72 : vector<8x30xf32>
    %114 = arith.maximumf %113, %81 : vector<8x30xf32>
    %115 = arith.maximumf %114, %90 : vector<8x30xf32>
    %116 = arith.maximumf %115, %99 : vector<8x30xf32>
    %117 = arith.maximumf %116, %108 : vector<8x30xf32>
    %118 = arith.subf %27, %117 : vector<8x30xf32>
    %119 = math.exp %118 : vector<8x30xf32>
    %120 = arith.subf %36, %117 : vector<8x30xf32>
    %121 = math.exp %120 : vector<8x30xf32>
    %122 = arith.subf %45, %117 : vector<8x30xf32>
    %123 = math.exp %122 : vector<8x30xf32>
    %124 = arith.subf %54, %117 : vector<8x30xf32>
    %125 = math.exp %124 : vector<8x30xf32>
    %126 = arith.subf %63, %117 : vector<8x30xf32>
    %127 = math.exp %126 : vector<8x30xf32>
    %128 = arith.subf %72, %117 : vector<8x30xf32>
    %129 = math.exp %128 : vector<8x30xf32>
    %130 = arith.subf %81, %117 : vector<8x30xf32>
    %131 = math.exp %130 : vector<8x30xf32>
    %132 = arith.subf %90, %117 : vector<8x30xf32>
    %133 = math.exp %132 : vector<8x30xf32>
    %134 = arith.subf %99, %117 : vector<8x30xf32>
    %135 = math.exp %134 : vector<8x30xf32>
    %136 = arith.subf %108, %117 : vector<8x30xf32>
    %137 = math.exp %136 : vector<8x30xf32>
    %138 = arith.addf %119, %121 : vector<8x30xf32>
    %139 = arith.addf %138, %123 : vector<8x30xf32>
    %140 = arith.addf %139, %125 : vector<8x30xf32>
    %141 = arith.addf %140, %127 : vector<8x30xf32>
    %142 = arith.addf %141, %129 : vector<8x30xf32>
    %143 = arith.addf %142, %131 : vector<8x30xf32>
    %144 = arith.addf %143, %133 : vector<8x30xf32>
    %145 = arith.addf %144, %135 : vector<8x30xf32>
    %146 = arith.addf %145, %137 : vector<8x30xf32>
    %147 = tpu.reciprocal %146 {approx = true} : vector<8x30xf32> -> vector<8x30xf32>
    %148 = arith.mulf %119, %147 : vector<8x30xf32>
    %c0_84 = arith.constant 0 : index
    %c0_85 = arith.constant 0 : index
    %c0_86 = arith.constant 0 : index
    %149 = vector.load %arg17[%c0_84, %c0_85, %c0_86] : memref<10x8x30xf32, #tpu.memory_space<vmem>>, vector<1x8x30xf32>
    %150 = vector.shape_cast %149 : vector<1x8x30xf32> to vector<8x30xf32>
    %151 = vector.shape_cast %148 : vector<8x30xf32> to vector<1x8x30xf32>
    tpu.vector_store %arg17[%c0_84, %c0_85, %c0_86], %151 {strides = array<i32>} : memref<10x8x30xf32, #tpu.memory_space<vmem>>, vector<1x8x30xf32>,
    %152 = arith.mulf %121, %147 : vector<8x30xf32>
    %c1_87 = arith.constant 1 : index
    %c0_88 = arith.constant 0 : index
    %c0_89 = arith.constant 0 : index
    %153 = vector.load %arg17[%c1_87, %c0_88, %c0_89] : memref<10x8x30xf32, #tpu.memory_space<vmem>>, vector<1x8x30xf32>
    %154 = vector.shape_cast %153 : vector<1x8x30xf32> to vector<8x30xf32>
    %155 = vector.shape_cast %152 : vector<8x30xf32> to vector<1x8x30xf32>
    tpu.vector_store %arg17[%c1_87, %c0_88, %c0_89], %155 {strides = array<i32>} : memref<10x8x30xf32, #tpu.memory_space<vmem>>, vector<1x8x30xf32>,
    %156 = arith.mulf %123, %147 : vector<8x30xf32>
    %c2_90 = arith.constant 2 : index
    %c0_91 = arith.constant 0 : index
    %c0_92 = arith.constant 0 : index
    %157 = vector.load %arg17[%c2_90, %c0_91, %c0_92] : memref<10x8x30xf32, #tpu.memory_space<vmem>>, vector<1x8x30xf32>
    %158 = vector.shape_cast %157 : vector<1x8x30xf32> to vector<8x30xf32>
    %159 = vector.shape_cast %156 : vector<8x30xf32> to vector<1x8x30xf32>
    tpu.vector_store %arg17[%c2_90, %c0_91, %c0_92], %159 {strides = array<i32>} : memref<10x8x30xf32, #tpu.memory_space<vmem>>, vector<1x8x30xf32>,
    %160 = arith.mulf %125, %147 : vector<8x30xf32>
    %c3_93 = arith.constant 3 : index
    %c0_94 = arith.constant 0 : index
    %c0_95 = arith.constant 0 : index
    %161 = vector.load %arg17[%c3_93, %c0_94, %c0_95] : memref<10x8x30xf32, #tpu.memory_space<vmem>>, vector<1x8x30xf32>
    %162 = vector.shape_cast %161 : vector<1x8x30xf32> to vector<8x30xf32>
    %163 = vector.shape_cast %160 : vector<8x30xf32> to vector<1x8x30xf32>
    tpu.vector_store %arg17[%c3_93, %c0_94, %c0_95], %163 {strides = array<i32>} : memref<10x8x30xf32, #tpu.memory_space<vmem>>, vector<1x8x30xf32>,
    %164 = arith.mulf %127, %147 : vector<8x30xf32>
    %c4_96 = arith.constant 4 : index
    %c0_97 = arith.constant 0 : index
    %c0_98 = arith.constant 0 : index
    %165 = vector.load %arg17[%c4_96, %c0_97, %c0_98] : memref<10x8x30xf32, #tpu.memory_space<vmem>>, vector<1x8x30xf32>
    %166 = vector.shape_cast %165 : vector<1x8x30xf32> to vector<8x30xf32>
    %167 = vector.shape_cast %164 : vector<8x30xf32> to vector<1x8x30xf32>
    tpu.vector_store %arg17[%c4_96, %c0_97, %c0_98], %167 {strides = array<i32>} : memref<10x8x30xf32, #tpu.memory_space<vmem>>, vector<1x8x30xf32>,
    %168 = arith.mulf %129, %147 : vector<8x30xf32>
    %c5_99 = arith.constant 5 : index
    %c0_100 = arith.constant 0 : index
    %c0_101 = arith.constant 0 : index
    %169 = vector.load %arg17[%c5_99, %c0_100, %c0_101] : memref<10x8x30xf32, #tpu.memory_space<vmem>>, vector<1x8x30xf32>
    %170 = vector.shape_cast %169 : vector<1x8x30xf32> to vector<8x30xf32>
    %171 = vector.shape_cast %168 : vector<8x30xf32> to vector<1x8x30xf32>
    tpu.vector_store %arg17[%c5_99, %c0_100, %c0_101], %171 {strides = array<i32>} : memref<10x8x30xf32, #tpu.memory_space<vmem>>, vector<1x8x30xf32>,
    %172 = arith.mulf %131, %147 : vector<8x30xf32>
    %c6_102 = arith.constant 6 : index
    %c0_103 = arith.constant 0 : index
    %c0_104 = arith.constant 0 : index
    %173 = vector.load %arg17[%c6_102, %c0_103, %c0_104] : memref<10x8x30xf32, #tpu.memory_space<vmem>>, vector<1x8x30xf32>
    %174 = vector.shape_cast %173 : vector<1x8x30xf32> to vector<8x30xf32>
    %175 = vector.shape_cast %172 : vector<8x30xf32> to vector<1x8x30xf32>
    tpu.vector_store %arg17[%c6_102, %c0_103, %c0_104], %175 {strides = array<i32>} : memref<10x8x30xf32, #tpu.memory_space<vmem>>, vector<1x8x30xf32>,
    %176 = arith.mulf %133, %147 : vector<8x30xf32>
    %c7_105 = arith.constant 7 : index
    %c0_106 = arith.constant 0 : index
    %c0_107 = arith.constant 0 : index
    %177 = vector.load %arg17[%c7_105, %c0_106, %c0_107] : memref<10x8x30xf32, #tpu.memory_space<vmem>>, vector<1x8x30xf32>
    %178 = vector.shape_cast %177 : vector<1x8x30xf32> to vector<8x30xf32>
    %179 = vector.shape_cast %176 : vector<8x30xf32> to vector<1x8x30xf32>
    tpu.vector_store %arg17[%c7_105, %c0_106, %c0_107], %179 {strides = array<i32>} : memref<10x8x30xf32, #tpu.memory_space<vmem>>, vector<1x8x30xf32>,
    %180 = arith.mulf %135, %147 : vector<8x30xf32>
    %c8_108 = arith.constant 8 : index
    %c0_109 = arith.constant 0 : index
    %c0_110 = arith.constant 0 : index
    %181 = vector.load %arg17[%c8_108, %c0_109, %c0_110] : memref<10x8x30xf32, #tpu.memory_space<vmem>>, vector<1x8x30xf32>
    %182 = vector.shape_cast %181 : vector<1x8x30xf32> to vector<8x30xf32>
    %183 = vector.shape_cast %180 : vector<8x30xf32> to vector<1x8x30xf32>
    tpu.vector_store %arg17[%c8_108, %c0_109, %c0_110], %183 {strides = array<i32>} : memref<10x8x30xf32, #tpu.memory_space<vmem>>, vector<1x8x30xf32>,
    %184 = arith.mulf %137, %147 : vector<8x30xf32>
    %c9_111 = arith.constant 9 : index
    %c0_112 = arith.constant 0 : index
    %c0_113 = arith.constant 0 : index
    %185 = vector.load %arg17[%c9_111, %c0_112, %c0_113] : memref<10x8x30xf32, #tpu.memory_space<vmem>>, vector<1x8x30xf32>
    %186 = vector.shape_cast %185 : vector<1x8x30xf32> to vector<8x30xf32>
    %187 = vector.shape_cast %184 : vector<8x30xf32> to vector<1x8x30xf32>
    tpu.vector_store %arg17[%c9_111, %c0_112, %c0_113], %187 {strides = array<i32>} : memref<10x8x30xf32, #tpu.memory_space<vmem>>, vector<1x8x30xf32>,
    %c0_114 = arith.constant 0 : index
    %c0_115 = arith.constant 0 : index
    %c0_116 = arith.constant 0 : index
    %188 = vector.load %arg3[%c0_114, %c0_115, %c0_116] : memref<10x8x30xf32, #tpu.memory_space<vmem>>, vector<1x8x30xf32>
    %189 = vector.shape_cast %188 : vector<1x8x30xf32> to vector<8x30xf32>
    %190 = arith.addf %27, %189 : vector<8x30xf32>
    %191 = vector.broadcast %0 : f32 to vector<8x30xf32>
    %192 = arith.mulf %190, %191 : vector<8x30xf32>
    %c1_117 = arith.constant 1 : index
    %c0_118 = arith.constant 0 : index
    %c0_119 = arith.constant 0 : index
    %193 = vector.load %arg3[%c1_117, %c0_118, %c0_119] : memref<10x8x30xf32, #tpu.memory_space<vmem>>, vector<1x8x30xf32>
    %194 = vector.shape_cast %193 : vector<1x8x30xf32> to vector<8x30xf32>
    %195 = arith.addf %36, %194 : vector<8x30xf32>
    %196 = vector.broadcast %0 : f32 to vector<8x30xf32>
    %197 = arith.mulf %195, %196 : vector<8x30xf32>
    %c2_120 = arith.constant 2 : index
    %c0_121 = arith.constant 0 : index
    %c0_122 = arith.constant 0 : index
    %198 = vector.load %arg3[%c2_120, %c0_121, %c0_122] : memref<10x8x30xf32, #tpu.memory_space<vmem>>, vector<1x8x30xf32>
    %199 = vector.shape_cast %198 : vector<1x8x30xf32> to vector<8x30xf32>
    %200 = arith.addf %45, %199 : vector<8x30xf32>
    %201 = vector.broadcast %0 : f32 to vector<8x30xf32>
    %202 = arith.mulf %200, %201 : vector<8x30xf32>
    %c3_123 = arith.constant 3 : index
    %c0_124 = arith.constant 0 : index
    %c0_125 = arith.constant 0 : index
    %203 = vector.load %arg3[%c3_123, %c0_124, %c0_125] : memref<10x8x30xf32, #tpu.memory_space<vmem>>, vector<1x8x30xf32>
    %204 = vector.shape_cast %203 : vector<1x8x30xf32> to vector<8x30xf32>
    %205 = arith.addf %54, %204 : vector<8x30xf32>
    %206 = vector.broadcast %0 : f32 to vector<8x30xf32>
    %207 = arith.mulf %205, %206 : vector<8x30xf32>
    %c4_126 = arith.constant 4 : index
    %c0_127 = arith.constant 0 : index
    %c0_128 = arith.constant 0 : index
    %208 = vector.load %arg3[%c4_126, %c0_127, %c0_128] : memref<10x8x30xf32, #tpu.memory_space<vmem>>, vector<1x8x30xf32>
    %209 = vector.shape_cast %208 : vector<1x8x30xf32> to vector<8x30xf32>
    %210 = arith.addf %63, %209 : vector<8x30xf32>
    %211 = vector.broadcast %0 : f32 to vector<8x30xf32>
    %212 = arith.mulf %210, %211 : vector<8x30xf32>
    %c5_129 = arith.constant 5 : index
    %c0_130 = arith.constant 0 : index
    %c0_131 = arith.constant 0 : index
    %213 = vector.load %arg3[%c5_129, %c0_130, %c0_131] : memref<10x8x30xf32, #tpu.memory_space<vmem>>, vector<1x8x30xf32>
    %214 = vector.shape_cast %213 : vector<1x8x30xf32> to vector<8x30xf32>
    %215 = arith.addf %72, %214 : vector<8x30xf32>
    %216 = vector.broadcast %0 : f32 to vector<8x30xf32>
    %217 = arith.mulf %215, %216 : vector<8x30xf32>
    %c6_132 = arith.constant 6 : index
    %c0_133 = arith.constant 0 : index
    %c0_134 = arith.constant 0 : index
    %218 = vector.load %arg3[%c6_132, %c0_133, %c0_134] : memref<10x8x30xf32, #tpu.memory_space<vmem>>, vector<1x8x30xf32>
    %219 = vector.shape_cast %218 : vector<1x8x30xf32> to vector<8x30xf32>
    %220 = arith.addf %81, %219 : vector<8x30xf32>
    %221 = vector.broadcast %0 : f32 to vector<8x30xf32>
    %222 = arith.mulf %220, %221 : vector<8x30xf32>
    %c7_135 = arith.constant 7 : index
    %c0_136 = arith.constant 0 : index
    %c0_137 = arith.constant 0 : index
    %223 = vector.load %arg3[%c7_135, %c0_136, %c0_137] : memref<10x8x30xf32, #tpu.memory_space<vmem>>, vector<1x8x30xf32>
    %224 = vector.shape_cast %223 : vector<1x8x30xf32> to vector<8x30xf32>
    %225 = arith.addf %90, %224 : vector<8x30xf32>
    %226 = vector.broadcast %0 : f32 to vector<8x30xf32>
    %227 = arith.mulf %225, %226 : vector<8x30xf32>
    %c8_138 = arith.constant 8 : index
    %c0_139 = arith.constant 0 : index
    %c0_140 = arith.constant 0 : index
    %228 = vector.load %arg3[%c8_138, %c0_139, %c0_140] : memref<10x8x30xf32, #tpu.memory_space<vmem>>, vector<1x8x30xf32>
    %229 = vector.shape_cast %228 : vector<1x8x30xf32> to vector<8x30xf32>
    %230 = arith.addf %99, %229 : vector<8x30xf32>
    %231 = vector.broadcast %0 : f32 to vector<8x30xf32>
    %232 = arith.mulf %230, %231 : vector<8x30xf32>
    %c9_141 = arith.constant 9 : index
    %c0_142 = arith.constant 0 : index
    %c0_143 = arith.constant 0 : index
    %233 = vector.load %arg3[%c9_141, %c0_142, %c0_143] : memref<10x8x30xf32, #tpu.memory_space<vmem>>, vector<1x8x30xf32>
    %234 = vector.shape_cast %233 : vector<1x8x30xf32> to vector<8x30xf32>
    %235 = arith.addf %108, %234 : vector<8x30xf32>
    %236 = vector.broadcast %0 : f32 to vector<8x30xf32>
    %237 = arith.mulf %235, %236 : vector<8x30xf32>
    %238 = arith.maximumf %192, %197 : vector<8x30xf32>
    %239 = arith.maximumf %238, %202 : vector<8x30xf32>
    %240 = arith.maximumf %239, %207 : vector<8x30xf32>
    %241 = arith.maximumf %240, %212 : vector<8x30xf32>
    %242 = arith.maximumf %241, %217 : vector<8x30xf32>
    %243 = arith.maximumf %242, %222 : vector<8x30xf32>
    %244 = arith.maximumf %243, %227 : vector<8x30xf32>
    %245 = arith.maximumf %244, %232 : vector<8x30xf32>
    %246 = arith.maximumf %245, %237 : vector<8x30xf32>
    %247 = arith.subf %192, %246 : vector<8x30xf32>
    %248 = math.exp %247 : vector<8x30xf32>
    %249 = arith.subf %197, %246 : vector<8x30xf32>
    %250 = math.exp %249 : vector<8x30xf32>
    %251 = arith.subf %202, %246 : vector<8x30xf32>
    %252 = math.exp %251 : vector<8x30xf32>
    %253 = arith.subf %207, %246 : vector<8x30xf32>
    %254 = math.exp %253 : vector<8x30xf32>
    %255 = arith.subf %212, %246 : vector<8x30xf32>
    %256 = math.exp %255 : vector<8x30xf32>
    %257 = arith.subf %217, %246 : vector<8x30xf32>
    %258 = math.exp %257 : vector<8x30xf32>
    %259 = arith.subf %222, %246 : vector<8x30xf32>
    %260 = math.exp %259 : vector<8x30xf32>
    %261 = arith.subf %227, %246 : vector<8x30xf32>
    %262 = math.exp %261 : vector<8x30xf32>
    %263 = arith.subf %232, %246 : vector<8x30xf32>
    %264 = math.exp %263 : vector<8x30xf32>
    %265 = arith.subf %237, %246 : vector<8x30xf32>
    %266 = math.exp %265 : vector<8x30xf32>
    %267 = arith.addf %248, %250 : vector<8x30xf32>
    %268 = arith.addf %267, %252 : vector<8x30xf32>
    %269 = arith.addf %268, %254 : vector<8x30xf32>
    %270 = arith.addf %269, %256 : vector<8x30xf32>
    %271 = arith.addf %270, %258 : vector<8x30xf32>
    %272 = arith.addf %271, %260 : vector<8x30xf32>
    %273 = arith.addf %272, %262 : vector<8x30xf32>
    %274 = arith.addf %273, %264 : vector<8x30xf32>
    %275 = arith.addf %274, %266 : vector<8x30xf32>
    %276 = tpu.reciprocal %275 {approx = true} : vector<8x30xf32> -> vector<8x30xf32>
    %277 = arith.mulf %248, %276 : vector<8x30xf32>
    %278 = arith.mulf %250, %276 : vector<8x30xf32>
    %279 = arith.mulf %252, %276 : vector<8x30xf32>
    %280 = arith.mulf %254, %276 : vector<8x30xf32>
    %281 = arith.mulf %256, %276 : vector<8x30xf32>
    %282 = arith.mulf %258, %276 : vector<8x30xf32>
    %283 = arith.mulf %260, %276 : vector<8x30xf32>
    %284 = arith.mulf %262, %276 : vector<8x30xf32>
    %285 = arith.mulf %264, %276 : vector<8x30xf32>
    %286 = arith.mulf %266, %276 : vector<8x30xf32>
    %287 = arith.truncf %277 : vector<8x30xf32> to vector<8x30xbf16>
    %c0_144 = arith.constant 0 : index
    %c0_145 = arith.constant 0 : index
    %c0_146 = arith.constant 0 : index
    %288 = vector.load %arg10[%c0_144, %c0_145, %c0_146] : memref<10x30x256xbf16, #tpu.memory_space<vmem>>, vector<1x30x256xbf16>
    %289 = vector.shape_cast %288 : vector<1x30x256xbf16> to vector<30x256xbf16>
    %cst_147 = arith.constant dense<0.000000e+00> : vector<8x256xf32>
    %290 = tpu.matmul %287, %289, %cst_147 {dimension_numbers = #tpu.dot_dimension_numbers<[1], [0], [0], [1], [0, 0, 1, 1], [], []>} : vector<8x30xbf16>, vector<30x256xbf16>, vector<8x256xf32> -> vector<8x256xf32>
    %291 = arith.truncf %278 : vector<8x30xf32> to vector<8x30xbf16>
    %c1_148 = arith.constant 1 : index
    %c0_149 = arith.constant 0 : index
    %c0_150 = arith.constant 0 : index
    %292 = vector.load %arg10[%c1_148, %c0_149, %c0_150] : memref<10x30x256xbf16, #tpu.memory_space<vmem>>, vector<1x30x256xbf16>
    %293 = vector.shape_cast %292 : vector<1x30x256xbf16> to vector<30x256xbf16>
    %cst_151 = arith.constant dense<0.000000e+00> : vector<8x256xf32>
    %294 = tpu.matmul %291, %293, %cst_151 {dimension_numbers = #tpu.dot_dimension_numbers<[1], [0], [0], [1], [0, 0, 1, 1], [], []>} : vector<8x30xbf16>, vector<30x256xbf16>, vector<8x256xf32> -> vector<8x256xf32>
    %295 = arith.addf %290, %294 : vector<8x256xf32>
    %296 = arith.truncf %279 : vector<8x30xf32> to vector<8x30xbf16>
    %c2_152 = arith.constant 2 : index
    %c0_153 = arith.constant 0 : index
    %c0_154 = arith.constant 0 : index
    %297 = vector.load %arg10[%c2_152, %c0_153, %c0_154] : memref<10x30x256xbf16, #tpu.memory_space<vmem>>, vector<1x30x256xbf16>
    %298 = vector.shape_cast %297 : vector<1x30x256xbf16> to vector<30x256xbf16>
    %cst_155 = arith.constant dense<0.000000e+00> : vector<8x256xf32>
    %299 = tpu.matmul %296, %298, %cst_155 {dimension_numbers = #tpu.dot_dimension_numbers<[1], [0], [0], [1], [0, 0, 1, 1], [], []>} : vector<8x30xbf16>, vector<30x256xbf16>, vector<8x256xf32> -> vector<8x256xf32>
    %300 = arith.addf %295, %299 : vector<8x256xf32>
    %301 = arith.truncf %280 : vector<8x30xf32> to vector<8x30xbf16>
    %c3_156 = arith.constant 3 : index
    %c0_157 = arith.constant 0 : index
    %c0_158 = arith.constant 0 : index
    %302 = vector.load %arg10[%c3_156, %c0_157, %c0_158] : memref<10x30x256xbf16, #tpu.memory_space<vmem>>, vector<1x30x256xbf16>
    %303 = vector.shape_cast %302 : vector<1x30x256xbf16> to vector<30x256xbf16>
    %cst_159 = arith.constant dense<0.000000e+00> : vector<8x256xf32>
    %304 = tpu.matmul %301, %303, %cst_159 {dimension_numbers = #tpu.dot_dimension_numbers<[1], [0], [0], [1], [0, 0, 1, 1], [], []>} : vector<8x30xbf16>, vector<30x256xbf16>, vector<8x256xf32> -> vector<8x256xf32>
    %305 = arith.addf %300, %304 : vector<8x256xf32>
    %306 = arith.truncf %281 : vector<8x30xf32> to vector<8x30xbf16>
    %c4_160 = arith.constant 4 : index
    %c0_161 = arith.constant 0 : index
    %c0_162 = arith.constant 0 : index
    %307 = vector.load %arg10[%c4_160, %c0_161, %c0_162] : memref<10x30x256xbf16, #tpu.memory_space<vmem>>, vector<1x30x256xbf16>
    %308 = vector.shape_cast %307 : vector<1x30x256xbf16> to vector<30x256xbf16>
    %cst_163 = arith.constant dense<0.000000e+00> : vector<8x256xf32>
    %309 = tpu.matmul %306, %308, %cst_163 {dimension_numbers = #tpu.dot_dimension_numbers<[1], [0], [0], [1], [0, 0, 1, 1], [], []>} : vector<8x30xbf16>, vector<30x256xbf16>, vector<8x256xf32> -> vector<8x256xf32>
    %310 = arith.addf %305, %309 : vector<8x256xf32>
    %311 = arith.truncf %282 : vector<8x30xf32> to vector<8x30xbf16>
    %c5_164 = arith.constant 5 : index
    %c0_165 = arith.constant 0 : index
    %c0_166 = arith.constant 0 : index
    %312 = vector.load %arg10[%c5_164, %c0_165, %c0_166] : memref<10x30x256xbf16, #tpu.memory_space<vmem>>, vector<1x30x256xbf16>
    %313 = vector.shape_cast %312 : vector<1x30x256xbf16> to vector<30x256xbf16>
    %cst_167 = arith.constant dense<0.000000e+00> : vector<8x256xf32>
    %314 = tpu.matmul %311, %313, %cst_167 {dimension_numbers = #tpu.dot_dimension_numbers<[1], [0], [0], [1], [0, 0, 1, 1], [], []>} : vector<8x30xbf16>, vector<30x256xbf16>, vector<8x256xf32> -> vector<8x256xf32>
    %315 = arith.addf %310, %314 : vector<8x256xf32>
    %316 = arith.truncf %283 : vector<8x30xf32> to vector<8x30xbf16>
    %c6_168 = arith.constant 6 : index
    %c0_169 = arith.constant 0 : index
    %c0_170 = arith.constant 0 : index
    %317 = vector.load %arg10[%c6_168, %c0_169, %c0_170] : memref<10x30x256xbf16, #tpu.memory_space<vmem>>, vector<1x30x256xbf16>
    %318 = vector.shape_cast %317 : vector<1x30x256xbf16> to vector<30x256xbf16>
    %cst_171 = arith.constant dense<0.000000e+00> : vector<8x256xf32>
    %319 = tpu.matmul %316, %318, %cst_171 {dimension_numbers = #tpu.dot_dimension_numbers<[1], [0], [0], [1], [0, 0, 1, 1], [], []>} : vector<8x30xbf16>, vector<30x256xbf16>, vector<8x256xf32> -> vector<8x256xf32>
    %320 = arith.addf %315, %319 : vector<8x256xf32>
    %321 = arith.truncf %284 : vector<8x30xf32> to vector<8x30xbf16>
    %c7_172 = arith.constant 7 : index
    %c0_173 = arith.constant 0 : index
    %c0_174 = arith.constant 0 : index
    %322 = vector.load %arg10[%c7_172, %c0_173, %c0_174] : memref<10x30x256xbf16, #tpu.memory_space<vmem>>, vector<1x30x256xbf16>
    %323 = vector.shape_cast %322 : vector<1x30x256xbf16> to vector<30x256xbf16>
    %cst_175 = arith.constant dense<0.000000e+00> : vector<8x256xf32>
    %324 = tpu.matmul %321, %323, %cst_175 {dimension_numbers = #tpu.dot_dimension_numbers<[1], [0], [0], [1], [0, 0, 1, 1], [], []>} : vector<8x30xbf16>, vector<30x256xbf16>, vector<8x256xf32> -> vector<8x256xf32>
    %325 = arith.addf %320, %324 : vector<8x256xf32>
    %326 = arith.truncf %285 : vector<8x30xf32> to vector<8x30xbf16>
    %c8_176 = arith.constant 8 : index
    %c0_177 = arith.constant 0 : index
    %c0_178 = arith.constant 0 : index
    %327 = vector.load %arg10[%c8_176, %c0_177, %c0_178] : memref<10x30x256xbf16, #tpu.memory_space<vmem>>, vector<1x30x256xbf16>
    %328 = vector.shape_cast %327 : vector<1x30x256xbf16> to vector<30x256xbf16>
    %cst_179 = arith.constant dense<0.000000e+00> : vector<8x256xf32>
    %329 = tpu.matmul %326, %328, %cst_179 {dimension_numbers = #tpu.dot_dimension_numbers<[1], [0], [0], [1], [0, 0, 1, 1], [], []>} : vector<8x30xbf16>, vector<30x256xbf16>, vector<8x256xf32> -> vector<8x256xf32>
    %330 = arith.addf %325, %329 : vector<8x256xf32>
    %331 = arith.truncf %286 : vector<8x30xf32> to vector<8x30xbf16>
    %c9_180 = arith.constant 9 : index
    %c0_181 = arith.constant 0 : index
    %c0_182 = arith.constant 0 : index
    %332 = vector.load %arg10[%c9_180, %c0_181, %c0_182] : memref<10x30x256xbf16, #tpu.memory_space<vmem>>, vector<1x30x256xbf16>
    %333 = vector.shape_cast %332 : vector<1x30x256xbf16> to vector<30x256xbf16>
    %cst_183 = arith.constant dense<0.000000e+00> : vector<8x256xf32>
    %334 = tpu.matmul %331, %333, %cst_183 {dimension_numbers = #tpu.dot_dimension_numbers<[1], [0], [0], [1], [0, 0, 1, 1], [], []>} : vector<8x30xbf16>, vector<30x256xbf16>, vector<8x256xf32> -> vector<8x256xf32>
    %335 = arith.addf %330, %334 : vector<8x256xf32>
    %c0_184 = arith.constant 0 : index
    %c0_185 = arith.constant 0 : index
    %336 = vector.load %arg11[%c0_184, %c0_185] : memref<1x256xf32, #tpu.memory_space<vmem>>, vector<1x256xf32>
    %337 = vector.broadcast %336 : vector<1x256xf32> to vector<8x256xf32>
    %338 = arith.addf %335, %337 : vector<8x256xf32>
    %cst_186 = arith.constant 0.000000e+00 : f32
    %339 = vector.broadcast %cst_186 : f32 to vector<8x256xf32>
    %340 = arith.maximumf %338, %339 : vector<8x256xf32>
    %341 = arith.truncf %340 : vector<8x256xf32> to vector<8x256xbf16>
    %c0_187 = arith.constant 0 : index
    %c0_188 = arith.constant 0 : index
    %342 = vector.load %arg12[%c0_187, %c0_188] : memref<256x512xbf16, #tpu.memory_space<vmem>>, vector<256x512xbf16>
    %cst_189 = arith.constant dense<0.000000e+00> : vector<8x512xf32>
    %343 = tpu.matmul %341, %342, %cst_189 {dimension_numbers = #tpu.dot_dimension_numbers<[1], [0], [0], [1], [0, 0, 1, 1], [], []>} : vector<8x256xbf16>, vector<256x512xbf16>, vector<8x512xf32> -> vector<8x512xf32>
    %c0_190 = arith.constant 0 : index
    %c0_191 = arith.constant 0 : index
    %344 = vector.load %arg13[%c0_190, %c0_191] : memref<1x512xf32, #tpu.memory_space<vmem>>, vector<1x512xf32>
    %345 = vector.broadcast %344 : vector<1x512xf32> to vector<8x512xf32>
    %346 = arith.addf %343, %345 : vector<8x512xf32>
    %cst_192 = arith.constant 0.000000e+00 : f32
    %347 = vector.broadcast %cst_192 : f32 to vector<8x512xf32>
    %348 = arith.maximumf %346, %347 : vector<8x512xf32>
    %349 = arith.truncf %348 : vector<8x512xf32> to vector<8x512xbf16>
    %c0_193 = arith.constant 0 : index
    %c0_194 = arith.constant 0 : index
    %350 = vector.load %arg14[%c0_193, %c0_194] : memref<512x784xbf16, #tpu.memory_space<vmem>>, vector<512x784xbf16>
    %cst_195 = arith.constant dense<0.000000e+00> : vector<8x784xf32>
    %351 = tpu.matmul %349, %350, %cst_195 {dimension_numbers = #tpu.dot_dimension_numbers<[1], [0], [0], [1], [0, 0, 1, 1], [], []>} : vector<8x512xbf16>, vector<512x784xbf16>, vector<8x784xf32> -> vector<8x784xf32>
    %c0_196 = arith.constant 0 : index
    %c0_197 = arith.constant 0 : index
    %352 = vector.load %arg15[%c0_196, %c0_197] : memref<1x784xf32, #tpu.memory_space<vmem>>, vector<1x784xf32>
    %353 = vector.broadcast %352 : vector<1x784xf32> to vector<8x784xf32>
    %354 = arith.addf %351, %353 : vector<8x784xf32>
    %355 = arith.negf %354 : vector<8x784xf32>
    %356 = math.exp %355 : vector<8x784xf32>
    %cst_198 = arith.constant 1.000000e+00 : f32
    %357 = vector.broadcast %cst_198 : f32 to vector<8x784xf32>
    %358 = arith.addf %357, %356 : vector<8x784xf32>
    %359 = arith.divf %357, %358 : vector<8x784xf32>
    %c0_199 = arith.constant 0 : index
    %c0_200 = arith.constant 0 : index
    %360 = vector.load %arg16[%c0_199, %c0_200] : memref<8x784xf32, #tpu.memory_space<vmem>>, vector<8x784xf32>
    tpu.vector_store %arg16[%c0_199, %c0_200], %359 {strides = array<i32>} : memref<8x784xf32, #tpu.memory_space<vmem>>, vector<8x784xf32>,
    return
  }
  func.func @transform_0(%arg0: i32) -> i32 {
    %c0_i32 = arith.constant 0 : i32
    %c0_i32_0 = arith.constant 0 : i32
    return %c0_i32 : i32
  }
  func.func @transform_1(%arg0: i32) -> (i32, i32) {
    %c0_i32 = arith.constant 0 : i32
    %c0_i32_0 = arith.constant 0 : i32
    return %arg0, %c0_i32 : i32, i32
  }
  func.func @transform_2(%arg0: i32) -> (i32, i32, i32) {
    %c0_i32 = arith.constant 0 : i32
    %c0_i32_0 = arith.constant 0 : i32
    %c0_i32_1 = arith.constant 0 : i32
    return %c0_i32, %arg0, %c0_i32_0 : i32, i32, i32
  }
  func.func @transform_3(%arg0: i32) -> (i32, i32) {
    %c0_i32 = arith.constant 0 : i32
    %c0_i32_0 = arith.constant 0 : i32
    %c0_i32_1 = arith.constant 0 : i32
    return %c0_i32, %c0_i32_0 : i32, i32
  }
  func.func @transform_4(%arg0: i32) -> (i32, i32) {
    %c0_i32 = arith.constant 0 : i32
    %c0_i32_0 = arith.constant 0 : i32
    %c0_i32_1 = arith.constant 0 : i32
    return %c0_i32, %c0_i32_0 : i32, i32
  }
  func.func @transform_5(%arg0: i32) -> (i32, i32) {
    %c0_i32 = arith.constant 0 : i32
    %c0_i32_0 = arith.constant 0 : i32
    %c0_i32_1 = arith.constant 0 : i32
    return %c0_i32, %c0_i32_0 : i32, i32
  }
  func.func @transform_6(%arg0: i32) -> (i32, i32) {
    %c0_i32 = arith.constant 0 : i32
    %c0_i32_0 = arith.constant 0 : i32
    %c0_i32_1 = arith.constant 0 : i32
    return %c0_i32, %c0_i32_0 : i32, i32
  }
  func.func @transform_7(%arg0: i32) -> (i32, i32, i32) {
    %c0_i32 = arith.constant 0 : i32
    %c0_i32_0 = arith.constant 0 : i32
    %c0_i32_1 = arith.constant 0 : i32
    %c0_i32_2 = arith.constant 0 : i32
    return %c0_i32, %c0_i32_0, %c0_i32_1 : i32, i32, i32
  }
  func.func @transform_8(%arg0: i32) -> (i32, i32, i32) {
    %c0_i32 = arith.constant 0 : i32
    %c0_i32_0 = arith.constant 0 : i32
    %c0_i32_1 = arith.constant 0 : i32
    %c0_i32_2 = arith.constant 0 : i32
    return %c0_i32, %c0_i32_0, %c0_i32_1 : i32, i32, i32
  }
  func.func @transform_9(%arg0: i32) -> (i32, i32, i32) {
    %c0_i32 = arith.constant 0 : i32
    %c0_i32_0 = arith.constant 0 : i32
    %c0_i32_1 = arith.constant 0 : i32
    %c0_i32_2 = arith.constant 0 : i32
    return %c0_i32, %c0_i32_0, %c0_i32_1 : i32, i32, i32
  }
  func.func @transform_10(%arg0: i32) -> (i32, i32) {
    %c0_i32 = arith.constant 0 : i32
    %c0_i32_0 = arith.constant 0 : i32
    %c0_i32_1 = arith.constant 0 : i32
    return %c0_i32, %c0_i32_0 : i32, i32
  }
  func.func @transform_11(%arg0: i32) -> (i32, i32) {
    %c0_i32 = arith.constant 0 : i32
    %c0_i32_0 = arith.constant 0 : i32
    %c0_i32_1 = arith.constant 0 : i32
    return %c0_i32, %c0_i32_0 : i32, i32
  }
  func.func @transform_12(%arg0: i32) -> (i32, i32) {
    %c0_i32 = arith.constant 0 : i32
    %c0_i32_0 = arith.constant 0 : i32
    %c0_i32_1 = arith.constant 0 : i32
    return %c0_i32, %c0_i32_0 : i32, i32
  }
  func.func @transform_13(%arg0: i32) -> (i32, i32) {
    %c0_i32 = arith.constant 0 : i32
    %c0_i32_0 = arith.constant 0 : i32
    %c0_i32_1 = arith.constant 0 : i32
    return %c0_i32, %c0_i32_0 : i32, i32
  }
  func.func @transform_14(%arg0: i32) -> (i32, i32) {
    %c0_i32 = arith.constant 0 : i32
    %c0_i32_0 = arith.constant 0 : i32
    %c0_i32_1 = arith.constant 0 : i32
    return %c0_i32, %c0_i32_0 : i32, i32
  }
  func.func @transform_15(%arg0: i32) -> (i32, i32) {
    %c0_i32 = arith.constant 0 : i32
    %c0_i32_0 = arith.constant 0 : i32
    return %arg0, %c0_i32 : i32, i32
  }
  func.func @transform_16(%arg0: i32) -> (i32, i32, i32) {
    %c0_i32 = arith.constant 0 : i32
    %c0_i32_0 = arith.constant 0 : i32
    %c0_i32_1 = arith.constant 0 : i32
    return %c0_i32, %arg0, %c0_i32_0 : i32, i32, i32
  }
}

</mosaic_0001>

<llo_original>
// kernel: vae_gumbel_forward.1
$region0: #{vae_gumbel_forward.1}
  #allocation0 [shape = 'u32[]', space=smem, size = 0x4, offset = 0x4, fixed_abs, tag = 'smem constant byte address 0x4 - core index']
  #allocation1 [shape = 'u32[144,128]{1,0:T(1,128)}', space=vmem, size = 0x12000, scoped, tag = 'internal scratch']
  #allocation2 [shape = 'f32[1]{0:T(128)S(6)}', space=smem, size = 0x200, scoped, tag = 'scoped memory for vae_gumbel_forward.1']
  %s0 = inlined_call_operand.<no memory space> [shape: f32[1], index: 0, kind: input, shape index: {}]
  %s1 = inlined_call_operand.vmem [shape: f32[8,784], index: 1, kind: input, shape index: {}]
  %s2 = inlined_call_operand.vmem [shape: f32[10,8,30], index: 2, kind: input, shape index: {}]
  %s3 = inlined_call_operand.vmem [shape: bf16[784,512], index: 3, kind: input, shape index: {}]
  %s4 = inlined_call_operand.vmem [shape: f32[1,512], index: 4, kind: input, shape index: {}]
  %s5 = inlined_call_operand.vmem [shape: bf16[512,256], index: 5, kind: input, shape index: {}]
  %s6 = inlined_call_operand.vmem [shape: f32[1,256], index: 6, kind: input, shape index: {}]
  %s7 = inlined_call_operand.vmem [shape: bf16[10,256,30], index: 7, kind: input, shape index: {}]
  %s8 = inlined_call_operand.vmem [shape: f32[10,1,30], index: 8, kind: input, shape index: {}]
  %s9 = inlined_call_operand.vmem [shape: bf16[10,30,256], index: 9, kind: input, shape index: {}]
  %s10 = inlined_call_operand.vmem [shape: f32[1,256], index: 10, kind: input, shape index: {}]
  %s11 = inlined_call_operand.vmem [shape: bf16[256,512], index: 11, kind: input, shape index: {}]
  %s12 = inlined_call_operand.vmem [shape: f32[1,512], index: 12, kind: input, shape index: {}]
  %s13 = inlined_call_operand.vmem [shape: bf16[512,784], index: 13, kind: input, shape index: {}]
  %s14 = inlined_call_operand.vmem [shape: f32[1,784], index: 14, kind: input, shape index: {}]
  %s15 = inlined_call_operand.hbm [shape: f32[8,784], index: 15, kind: output, shape index: {0}]
  %s16 = inlined_call_operand.vmem [shape: f32[10,8,30], index: 16, kind: output, shape index: {1}]
  %17 = xla_tuple %s15, %s16
  %s18 = sld [smem:[#allocation0]]
  $region78: #{vae_gumbel_forward.1} parent=0
    _
  %s20 = ssub.s32 1, %s18
  %s21 = scalar_select 0, %s20, %s18
  %22 = sst [smem:[#allocation2]] %s0
  $region1: #{vae_gumbel_forward.1} parent=0
    #allocation3 [shape = 'u8[28672]{0}', space=vmem, size = 0x7000, scoped, tag = 'output window, operand 0, single buffered']
    #allocation4 [shape = 's32[1]{0}', space=sflag, size = 0x4, scoped, tag = 'scoped memory for vae_gumbel_forward.1']
    %23 = vsyncpa [#allocation4], 0
    // Predicated region
    $region2: #{vae_gumbel_forward.1} parent=1 // pred_check
      _
    $region3: #{vae_gumbel_forward.1} parent=1 // pred_check_branch
      %25 = sbr.rel (0) target = $region5
    $region4: #{vae_gumbel_forward.1} parent=1 // pred_region
      _
    $region5: #{vae_gumbel_forward.1} parent=1 // pred_fallthru
      _
    // Predicated region
    $region6: #{vae_gumbel_forward.1} parent=1 // pred_check
      _
    $region7: #{vae_gumbel_forward.1} parent=1 // pred_check_branch
      %27 = sbr.rel (0) target = $region9
    $region8: #{vae_gumbel_forward.1} parent=1 // pred_region
      _
    $region9: #{vae_gumbel_forward.1} parent=1 // pred_fallthru
      _
    // Predicated region
    $region10: #{vae_gumbel_forward.1} parent=1 // pred_check
      _
    $region11: #{vae_gumbel_forward.1} parent=1 // pred_check_branch
      %29 = sbr.rel (0) target = $region13
    $region12: #{vae_gumbel_forward.1} parent=1 // pred_region
      _
    $region13: #{vae_gumbel_forward.1} parent=1 // pred_fallthru
      _
    // Predicated region
    $region14: #{vae_gumbel_forward.1} parent=1 // pred_check
      _
    $region15: #{vae_gumbel_forward.1} parent=1 // pred_check_branch
      %31 = sbr.rel (0) target = $region17
    $region16: #{vae_gumbel_forward.1} parent=1 // pred_region
      _
    $region17: #{vae_gumbel_forward.1} parent=1 // pred_fallthru
      _
    // Predicated region
    $region18: #{vae_gumbel_forward.1} parent=1 // pred_check
      _
    $region19: #{vae_gumbel_forward.1} parent=1 // pred_check_branch
      %33 = sbr.rel (0) target = $region21
    $region20: #{vae_gumbel_forward.1} parent=1 // pred_region
      _
    $region21: #{vae_gumbel_forward.1} parent=1 // pred_fallthru
      _
    // Predicated region
    $region22: #{vae_gumbel_forward.1} parent=1 // pred_check
      _
    $region23: #{vae_gumbel_forward.1} parent=1 // pred_check_branch
      %35 = sbr.rel (0) target = $region25
    $region24: #{vae_gumbel_forward.1} parent=1 // pred_region
      _
    $region25: #{vae_gumbel_forward.1} parent=1 // pred_fallthru
      _
    // Predicated region
    $region26: #{vae_gumbel_forward.1} parent=1 // pred_check
      _
    $region27: #{vae_gumbel_forward.1} parent=1 // pred_check_branch
      %37 = sbr.rel (0) target = $region29
    $region28: #{vae_gumbel_forward.1} parent=1 // pred_region
      _
    $region29: #{vae_gumbel_forward.1} parent=1 // pred_fallthru
      _
    // Predicated region
    $region30: #{vae_gumbel_forward.1} parent=1 // pred_check
      _
    $region31: #{vae_gumbel_forward.1} parent=1 // pred_check_branch
      %39 = sbr.rel (0) target = $region33
    $region32: #{vae_gumbel_forward.1} parent=1 // pred_region
      _
    $region33: #{vae_gumbel_forward.1} parent=1 // pred_fallthru
      _
    // Predicated region
    $region34: #{vae_gumbel_forward.1} parent=1 // pred_check
      _
    $region35: #{vae_gumbel_forward.1} parent=1 // pred_check_branch
      %41 = sbr.rel (0) target = $region37
    $region36: #{vae_gumbel_forward.1} parent=1 // pred_region
      _
    $region37: #{vae_gumbel_forward.1} parent=1 // pred_fallthru
      _
    // Predicated region
    $region38: #{vae_gumbel_forward.1} parent=1 // pred_check
      _
    $region39: #{vae_gumbel_forward.1} parent=1 // pred_check_branch
      %43 = sbr.rel (0) target = $region41
    $region40: #{vae_gumbel_forward.1} parent=1 // pred_region
      _
    $region41: #{vae_gumbel_forward.1} parent=1 // pred_fallthru
      _
    // Predicated region
    $region42: #{vae_gumbel_forward.1} parent=1 // pred_check
      _
    $region43: #{vae_gumbel_forward.1} parent=1 // pred_check_branch
      %45 = sbr.rel (0) target = $region45
    $region44: #{vae_gumbel_forward.1} parent=1 // pred_region
      _
    $region45: #{vae_gumbel_forward.1} parent=1 // pred_fallthru
      _
    // Predicated region
    $region46: #{vae_gumbel_forward.1} parent=1 // pred_check
      _
    $region47: #{vae_gumbel_forward.1} parent=1 // pred_check_branch
      %47 = sbr.rel (0) target = $region49
    $region48: #{vae_gumbel_forward.1} parent=1 // pred_region
      _
    $region49: #{vae_gumbel_forward.1} parent=1 // pred_fallthru
      _
    // Predicated region
    $region50: #{vae_gumbel_forward.1} parent=1 // pred_check
      _
    $region51: #{vae_gumbel_forward.1} parent=1 // pred_check_branch
      %49 = sbr.rel (0) target = $region53
    $region52: #{vae_gumbel_forward.1} parent=1 // pred_region
      _
    $region53: #{vae_gumbel_forward.1} parent=1 // pred_fallthru
      _
    // Predicated region
    $region54: #{vae_gumbel_forward.1} parent=1 // pred_check
      _
    $region55: #{vae_gumbel_forward.1} parent=1 // pred_check_branch
      %51 = sbr.rel (0) target = $region57
    $region56: #{vae_gumbel_forward.1} parent=1 // pred_region
      _
    $region57: #{vae_gumbel_forward.1} parent=1 // pred_fallthru
      _
    // Predicated region
    $region58: #{vae_gumbel_forward.1} parent=1 // pred_check
      _
    $region59: #{vae_gumbel_forward.1} parent=1 // pred_check_branch
      %53 = sbr.rel (0) target = $region61
    $region60: #{vae_gumbel_forward.1} parent=1 // pred_region
      _
    $region61: #{vae_gumbel_forward.1} parent=1 // pred_fallthru
      _
    %s55 = sld [smem:[#allocation2]]
    %v56 = vld [vmem:[%s1] sm:$0xff]
    %v57 = vld [vmem:[%s1 + $0x8] sm:$0xff]
    %v58 = vld [vmem:[%s1 + $0x10] sm:$0xff]
    %v59 = vld [vmem:[%s1 + $0x18] sm:$0xff]
    %v60 = vld [vmem:[%s1 + $0x20] sm:$0xff]
    %v61 = vld [vmem:[%s1 + $0x28] sm:$0xff]
    %v62 = vld [vmem:[%s1 + $0x30] sm:$0xff]
    %v63 = vpack.c.bf16 %v56, %v56
    %v64 = vpack.c.bf16 %v57, %v57
    %v65 = vpack.c.bf16 %v58, %v58
    %v66 = vpack.c.bf16 %v59, %v59
    %v67 = vpack.c.bf16 %v60, %v60
    %v68 = vpack.c.bf16 %v61, %v61
    %v69 = vpack.c.bf16 %v62, %v62
    %v70 = vld [vmem:[%s3] sm:$0xff]
    %v71 = vld [vmem:[%s3 + $0x8] sm:$0xff]
    %v72 = vld [vmem:[%s3 + $0x10] sm:$0xff]
    %v73 = vld [vmem:[%s3 + $0x18] sm:$0xff]
    %v74 = vld [vmem:[%s3 + $0x20] sm:$0xff]
    %v75 = vld [vmem:[%s3 + $0x28] sm:$0xff]
    %v76 = vld [vmem:[%s3 + $0x30] sm:$0xff]
    %v77 = vld [vmem:[%s3 + $0x38] sm:$0xff]
    %v78 = vld [vmem:[%s3 + $0x40] sm:$0xff]
    %v79 = vld [vmem:[%s3 + $0x48] sm:$0xff]
    %v80 = vld [vmem:[%s3 + $0x50] sm:$0xff]
    %v81 = vld [vmem:[%s3 + $0x58] sm:$0xff]
    %v82 = vld [vmem:[%s3 + $0x60] sm:$0xff]
    %v83 = vld [vmem:[%s3 + $0x68] sm:$0xff]
    %v84 = vld [vmem:[%s3 + $0x70] sm:$0xff]
    %v85 = vld [vmem:[%s3 + $0x78] sm:$0xff]
    %v86 = vld [vmem:[%s3 + $0x80] sm:$0xff]
    %v87 = vld [vmem:[%s3 + $0x88] sm:$0xff]
    %v88 = vld [vmem:[%s3 + $0x90] sm:$0xff]
    %v89 = vld [vmem:[%s3 + $0x98] sm:$0xff]
    %v90 = vld [vmem:[%s3 + $0xa0] sm:$0xff]
    %v91 = vld [vmem:[%s3 + $0xa8] sm:$0xff]
    %v92 = vld [vmem:[%s3 + $0xb0] sm:$0xff]
    %v93 = vld [vmem:[%s3 + $0xb8] sm:$0xff]
    %v94 = vld [vmem:[%s3 + $0xc0] sm:$0xff]
    %v95 = vld [vmem:[%s3 + $0xc8] sm:$0xff]
    %v96 = vld [vmem:[%s3 + $0xd0] sm:$0xff]
    %v97 = vld [vmem:[%s3 + $0xd8] sm:$0xff]
    %v98 = vld [vmem:[%s3 + $0xe0] sm:$0xff]
    %v99 = vld [vmem:[%s3 + $0xe8] sm:$0xff]
    %v100 = vld [vmem:[%s3 + $0xf0] sm:$0xff]
    %v101 = vld [vmem:[%s3 + $0xf8] sm:$0xff]
    %v102 = vld [vmem:[%s3 + $0x100] sm:$0xff]
    %v103 = vld [vmem:[%s3 + $0x108] sm:$0xff]
    %v104 = vld [vmem:[%s3 + $0x110] sm:$0xff]
    %v105 = vld [vmem:[%s3 + $0x118] sm:$0xff]
    %v106 = vld [vmem:[%s3 + $0x120] sm:$0xff]
    %v107 = vld [vmem:[%s3 + $0x128] sm:$0xff]
    %v108 = vld [vmem:[%s3 + $0x130] sm:$0xff]
    %v109 = vld [vmem:[%s3 + $0x138] sm:$0xff]
    %v110 = vld [vmem:[%s3 + $0x140] sm:$0xff]
    %v111 = vld [vmem:[%s3 + $0x148] sm:$0xff]
    %v112 = vld [vmem:[%s3 + $0x150] sm:$0xff]
    %v113 = vld [vmem:[%s3 + $0x158] sm:$0xff]
    %v114 = vld [vmem:[%s3 + $0x160] sm:$0xff]
    %v115 = vld [vmem:[%s3 + $0x168] sm:$0xff]
    %v116 = vld [vmem:[%s3 + $0x170] sm:$0xff]
    %v117 = vld [vmem:[%s3 + $0x178] sm:$0xff]
    %v118 = vld [vmem:[%s3 + $0x180] sm:$0xff]
    %v119 = vld [vmem:[%s3 + $0x188] sm:$0xff]
    %v120 = vld [vmem:[%s3 + $0x190] sm:$0xff]
    %v121 = vld [vmem:[%s3 + $0x198] sm:$0xff]
    %v122 = vld [vmem:[%s3 + $0x1a0] sm:$0xff]
    %v123 = vld [vmem:[%s3 + $0x1a8] sm:$0xff]
    %v124 = vld [vmem:[%s3 + $0x1b0] sm:$0xff]
    %v125 = vld [vmem:[%s3 + $0x1b8] sm:$0xff]
    %v126 = vld [vmem:[%s3 + $0x1c0] sm:$0xff]
    %v127 = vld [vmem:[%s3 + $0x1c8] sm:$0xff]
    %v128 = vld [vmem:[%s3 + $0x1d0] sm:$0xff]
    %v129 = vld [vmem:[%s3 + $0x1d8] sm:$0xff]
    %v130 = vld [vmem:[%s3 + $0x1e0] sm:$0xff]
    %v131 = vld [vmem:[%s3 + $0x1e8] sm:$0xff]
    %v132 = vld [vmem:[%s3 + $0x1f0] sm:$0xff]
    %v133 = vld [vmem:[%s3 + $0x1f8] sm:$0xff]
    %v134 = vld [vmem:[%s3 + $0x200] sm:$0xff]
    %v135 = vld [vmem:[%s3 + $0x208] sm:$0xff]
    %v136 = vld [vmem:[%s3 + $0x210] sm:$0xff]
    %v137 = vld [vmem:[%s3 + $0x218] sm:$0xff]
    %v138 = vld [vmem:[%s3 + $0x220] sm:$0xff]
    %v139 = vld [vmem:[%s3 + $0x228] sm:$0xff]
    %v140 = vld [vmem:[%s3 + $0x230] sm:$0xff]
    %v141 = vld [vmem:[%s3 + $0x238] sm:$0xff]
    %v142 = vld [vmem:[%s3 + $0x240] sm:$0xff]
    %v143 = vld [vmem:[%s3 + $0x248] sm:$0xff]
    %v144 = vld [vmem:[%s3 + $0x250] sm:$0xff]
    %v145 = vld [vmem:[%s3 + $0x258] sm:$0xff]
    %v146 = vld [vmem:[%s3 + $0x260] sm:$0xff]
    %v147 = vld [vmem:[%s3 + $0x268] sm:$0xff]
    %v148 = vld [vmem:[%s3 + $0x270] sm:$0xff]
    %v149 = vld [vmem:[%s3 + $0x278] sm:$0xff]
    %v150 = vld [vmem:[%s3 + $0x280] sm:$0xff]
    %v151 = vld [vmem:[%s3 + $0x288] sm:$0xff]
    %v152 = vld [vmem:[%s3 + $0x290] sm:$0xff]
    %v153 = vld [vmem:[%s3 + $0x298] sm:$0xff]
    %v154 = vld [vmem:[%s3 + $0x2a0] sm:$0xff]
    %v155 = vld [vmem:[%s3 + $0x2a8] sm:$0xff]
    %v156 = vld [vmem:[%s3 + $0x2b0] sm:$0xff]
    %v157 = vld [vmem:[%s3 + $0x2b8] sm:$0xff]
    %v158 = vld [vmem:[%s3 + $0x2c0] sm:$0xff]
    %v159 = vld [vmem:[%s3 + $0x2c8] sm:$0xff]
    %v160 = vld [vmem:[%s3 + $0x2d0] sm:$0xff]
    %v161 = vld [vmem:[%s3 + $0x2d8] sm:$0xff]
    %v162 = vld [vmem:[%s3 + $0x2e0] sm:$0xff]
    %v163 = vld [vmem:[%s3 + $0x2e8] sm:$0xff]
    %v164 = vld [vmem:[%s3 + $0x2f0] sm:$0xff]
    %v165 = vld [vmem:[%s3 + $0x2f8] sm:$0xff]
    %v166 = vld [vmem:[%s3 + $0x300] sm:$0xff]
    %v167 = vld [vmem:[%s3 + $0x308] sm:$0xff]
    %v168 = vld [vmem:[%s3 + $0x310] sm:$0xff]
    %v169 = vld [vmem:[%s3 + $0x318] sm:$0xff]
    %v170 = vld [vmem:[%s3 + $0x320] sm:$0xff]
    %v171 = vld [vmem:[%s3 + $0x328] sm:$0xff]
    %v172 = vld [vmem:[%s3 + $0x330] sm:$0xff]
    %v173 = vld [vmem:[%s3 + $0x338] sm:$0xff]
    %v174 = vld [vmem:[%s3 + $0x340] sm:$0xff]
    %v175 = vld [vmem:[%s3 + $0x348] sm:$0xff]
    %v176 = vld [vmem:[%s3 + $0x350] sm:$0xff]
    %v177 = vld [vmem:[%s3 + $0x358] sm:$0xff]
    %v178 = vld [vmem:[%s3 + $0x360] sm:$0xff]
    %v179 = vld [vmem:[%s3 + $0x368] sm:$0xff]
    %v180 = vld [vmem:[%s3 + $0x370] sm:$0xff]
    %v181 = vld [vmem:[%s3 + $0x378] sm:$0xff]
    %v182 = vld [vmem:[%s3 + $0x380] sm:$0xff]
    %v183 = vld [vmem:[%s3 + $0x388] sm:$0xff]
    %v184 = vld [vmem:[%s3 + $0x390] sm:$0xff]
    %v185 = vld [vmem:[%s3 + $0x398] sm:$0xff]
    %v186 = vld [vmem:[%s3 + $0x3a0] sm:$0xff]
    %v187 = vld [vmem:[%s3 + $0x3a8] sm:$0xff]
    %v188 = vld [vmem:[%s3 + $0x3b0] sm:$0xff]
    %v189 = vld [vmem:[%s3 + $0x3b8] sm:$0xff]
    %v190 = vld [vmem:[%s3 + $0x3c0] sm:$0xff]
    %v191 = vld [vmem:[%s3 + $0x3c8] sm:$0xff]
    %v192 = vld [vmem:[%s3 + $0x3d0] sm:$0xff]
    %v193 = vld [vmem:[%s3 + $0x3d8] sm:$0xff]
    %v194 = vld [vmem:[%s3 + $0x3e0] sm:$0xff]
    %v195 = vld [vmem:[%s3 + $0x3e8] sm:$0xff]
    %v196 = vld [vmem:[%s3 + $0x3f0] sm:$0xff]
    %v197 = vld [vmem:[%s3 + $0x3f8] sm:$0xff]
    %v198 = vld [vmem:[%s3 + $0x400] sm:$0xff]
    %v199 = vld [vmem:[%s3 + $0x408] sm:$0xff]
    %v200 = vld [vmem:[%s3 + $0x410] sm:$0xff]
    %v201 = vld [vmem:[%s3 + $0x418] sm:$0xff]
    %v202 = vld [vmem:[%s3 + $0x420] sm:$0xff]
    %v203 = vld [vmem:[%s3 + $0x428] sm:$0xff]
    %v204 = vld [vmem:[%s3 + $0x430] sm:$0xff]
    %v205 = vld [vmem:[%s3 + $0x438] sm:$0xff]
    %v206 = vld [vmem:[%s3 + $0x440] sm:$0xff]
    %v207 = vld [vmem:[%s3 + $0x448] sm:$0xff]
    %v208 = vld [vmem:[%s3 + $0x450] sm:$0xff]
    %v209 = vld [vmem:[%s3 + $0x458] sm:$0xff]
    %v210 = vld [vmem:[%s3 + $0x460] sm:$0xff]
    %v211 = vld [vmem:[%s3 + $0x468] sm:$0xff]
    %v212 = vld [vmem:[%s3 + $0x470] sm:$0xff]
    %v213 = vld [vmem:[%s3 + $0x478] sm:$0xff]
    %v214 = vld [vmem:[%s3 + $0x480] sm:$0xff]
    %v215 = vld [vmem:[%s3 + $0x488] sm:$0xff]
    %v216 = vld [vmem:[%s3 + $0x490] sm:$0xff]
    %v217 = vld [vmem:[%s3 + $0x498] sm:$0xff]
    %v218 = vld [vmem:[%s3 + $0x4a0] sm:$0xff]
    %v219 = vld [vmem:[%s3 + $0x4a8] sm:$0xff]
    %v220 = vld [vmem:[%s3 + $0x4b0] sm:$0xff]
    %v221 = vld [vmem:[%s3 + $0x4b8] sm:$0xff]
    %v222 = vld [vmem:[%s3 + $0x4c0] sm:$0xff]
    %v223 = vld [vmem:[%s3 + $0x4c8] sm:$0xff]
    %v224 = vld [vmem:[%s3 + $0x4d0] sm:$0xff]
    %v225 = vld [vmem:[%s3 + $0x4d8] sm:$0xff]
    %v226 = vld [vmem:[%s3 + $0x4e0] sm:$0xff]
    %v227 = vld [vmem:[%s3 + $0x4e8] sm:$0xff]
    %v228 = vld [vmem:[%s3 + $0x4f0] sm:$0xff]
    %v229 = vld [vmem:[%s3 + $0x4f8] sm:$0xff]
    %v230 = vld [vmem:[%s3 + $0x500] sm:$0xff]
    %v231 = vld [vmem:[%s3 + $0x508] sm:$0xff]
    %v232 = vld [vmem:[%s3 + $0x510] sm:$0xff]
    %v233 = vld [vmem:[%s3 + $0x518] sm:$0xff]
    %v234 = vld [vmem:[%s3 + $0x520] sm:$0xff]
    %v235 = vld [vmem:[%s3 + $0x528] sm:$0xff]
    %v236 = vld [vmem:[%s3 + $0x530] sm:$0xff]
    %v237 = vld [vmem:[%s3 + $0x538] sm:$0xff]
    %v238 = vld [vmem:[%s3 + $0x540] sm:$0xff]
    %v239 = vld [vmem:[%s3 + $0x548] sm:$0xff]
    %v240 = vld [vmem:[%s3 + $0x550] sm:$0xff]
    %v241 = vld [vmem:[%s3 + $0x558] sm:$0xff]
    %v242 = vld [vmem:[%s3 + $0x560] sm:$0xff]
    %v243 = vld [vmem:[%s3 + $0x568] sm:$0xff]
    %v244 = vld [vmem:[%s3 + $0x570] sm:$0xff]
    %v245 = vld [vmem:[%s3 + $0x578] sm:$0xff]
    %v246 = vld [vmem:[%s3 + $0x580] sm:$0xff]
    %v247 = vld [vmem:[%s3 + $0x588] sm:$0xff]
    %v248 = vld [vmem:[%s3 + $0x590] sm:$0xff]
    %v249 = vld [vmem:[%s3 + $0x598] sm:$0xff]
    %v250 = vld [vmem:[%s3 + $0x5a0] sm:$0xff]
    %v251 = vld [vmem:[%s3 + $0x5a8] sm:$0xff]
    %v252 = vld [vmem:[%s3 + $0x5b0] sm:$0xff]
    %v253 = vld [vmem:[%s3 + $0x5b8] sm:$0xff]
    %v254 = vld [vmem:[%s3 + $0x5c0] sm:$0xff]
    %v255 = vld [vmem:[%s3 + $0x5c8] sm:$0xff]
    %v256 = vld [vmem:[%s3 + $0x5d0] sm:$0xff]
    %v257 = vld [vmem:[%s3 + $0x5d8] sm:$0xff]
    %v258 = vld [vmem:[%s3 + $0x5e0] sm:$0xff]
    %v259 = vld [vmem:[%s3 + $0x5e8] sm:$0xff]
    %v260 = vld [vmem:[%s3 + $0x5f0] sm:$0xff]
    %v261 = vld [vmem:[%s3 + $0x5f8] sm:$0xff]
    %v262 = vld [vmem:[%s3 + $0x600] sm:$0xff]
    %v263 = vld [vmem:[%s3 + $0x608] sm:$0xff]
    %v264 = vld [vmem:[%s3 + $0x610] sm:$0xff]
    %v265 = vld [vmem:[%s3 + $0x618] sm:$0xff]
    %v266 = vld [vmem:[%s4] sm:$0xf]
    %v268 = vlaneseq
    %v269 = vshrl.u32 %v268, 7
    %v270 = vsub.s32 0, %v269
    %v271 = vrot.slane %v266, %v270
    %v272 = vlaneseq
    %v273 = vshrl.u32 %v272, 7
    %v274 = vsub.s32 1, %v273
    %v275 = vrot.slane %v266, %v274
    %v276 = vlaneseq
    %v277 = vshrl.u32 %v276, 7
    %v278 = vsub.s32 2, %v277
    %v279 = vrot.slane %v266, %v278
    %v280 = vlaneseq
    %v281 = vshrl.u32 %v280, 7
    %v282 = vsub.s32 3, %v281
    %v283 = vrot.slane %v266, %v282
    %v484 = vunpack.c.l.b16 %v70
    %v485 = vunpack.c.h.b16 %v70
    %v486 = vunpack.c.l.b16 %v71
    %v487 = vunpack.c.h.b16 %v71
    %v488 = vunpack.c.l.b16 %v72
    %v489 = vunpack.c.h.b16 %v72
    %v490 = vunpack.c.l.b16 %v73
    %v491 = vunpack.c.h.b16 %v73
    %v492 = vunpack.c.l.b16 %v74
    %v493 = vunpack.c.h.b16 %v74
    %v494 = vunpack.c.l.b16 %v75
    %v495 = vunpack.c.h.b16 %v75
    %v496 = vunpack.c.l.b16 %v76
    %v497 = vunpack.c.h.b16 %v76
    %v498 = vunpack.c.l.b16 %v77
    %v499 = vunpack.c.h.b16 %v77
    %v500 = vunpack.c.l.b16 %v78
    %v501 = vunpack.c.h.b16 %v78
    %v502 = vunpack.c.l.b16 %v79
    %v503 = vunpack.c.h.b16 %v79
    %v504 = vunpack.c.l.b16 %v80
    %v505 = vunpack.c.h.b16 %v80
    %v506 = vunpack.c.l.b16 %v81
    %v507 = vunpack.c.h.b16 %v81
    %v508 = vunpack.c.l.b16 %v82
    %v509 = vunpack.c.h.b16 %v82
    %v510 = vunpack.c.l.b16 %v83
    %v511 = vunpack.c.h.b16 %v83
    %v512 = vunpack.c.l.b16 %v84
    %v513 = vunpack.c.h.b16 %v84
    %v514 = vunpack.c.l.b16 %v85
    %v515 = vunpack.c.h.b16 %v85
    %v516 = vunpack.c.l.b16 %v86
    %v517 = vunpack.c.h.b16 %v86
    %v518 = vunpack.c.l.b16 %v87
    %v519 = vunpack.c.h.b16 %v87
    %v520 = vunpack.c.l.b16 %v88
    %v521 = vunpack.c.h.b16 %v88
    %v522 = vunpack.c.l.b16 %v89
    %v523 = vunpack.c.h.b16 %v89
    %v524 = vunpack.c.l.b16 %v90
    %v525 = vunpack.c.h.b16 %v90
    %v526 = vunpack.c.l.b16 %v91
    %v527 = vunpack.c.h.b16 %v91
    %v528 = vunpack.c.l.b16 %v92
    %v529 = vunpack.c.h.b16 %v92
    %v530 = vunpack.c.l.b16 %v93
    %v531 = vunpack.c.h.b16 %v93
    %v532 = vunpack.c.l.b16 %v94
    %v533 = vunpack.c.h.b16 %v94
    %v534 = vunpack.c.l.b16 %v95
    %v535 = vunpack.c.h.b16 %v95
    %v536 = vunpack.c.l.b16 %v96
    %v537 = vunpack.c.h.b16 %v96
    %v538 = vunpack.c.l.b16 %v97
    %v539 = vunpack.c.h.b16 %v97
    %v540 = vunpack.c.l.b16 %v98
    %v541 = vunpack.c.h.b16 %v98
    %v542 = vunpack.c.l.b16 %v99
    %v543 = vunpack.c.h.b16 %v99
    %v544 = vunpack.c.l.b16 %v100
    %v545 = vunpack.c.h.b16 %v100
    %v546 = vunpack.c.l.b16 %v101
    %v547 = vunpack.c.h.b16 %v101
    %v548 = vunpack.c.l.b16 %v102
    %v549 = vunpack.c.h.b16 %v102
    %v550 = vunpack.c.l.b16 %v103
    %v551 = vunpack.c.h.b16 %v103
    %v552 = vunpack.c.l.b16 %v104
    %v553 = vunpack.c.h.b16 %v104
    %v554 = vunpack.c.l.b16 %v105
    %v555 = vunpack.c.h.b16 %v105
    %v556 = vunpack.c.l.b16 %v106
    %v557 = vunpack.c.h.b16 %v106
    %v558 = vunpack.c.l.b16 %v107
    %v559 = vunpack.c.h.b16 %v107
    %v560 = vunpack.c.l.b16 %v108
    %v561 = vunpack.c.h.b16 %v108
    %v562 = vunpack.c.l.b16 %v109
    %v563 = vunpack.c.h.b16 %v109
    %v564 = vunpack.c.l.b16 %v110
    %v565 = vunpack.c.h.b16 %v110
    %v566 = vunpack.c.l.b16 %v111
    %v567 = vunpack.c.h.b16 %v111
    %v568 = vunpack.c.l.b16 %v112
    %v569 = vunpack.c.h.b16 %v112
    %v570 = vunpack.c.l.b16 %v113
    %v571 = vunpack.c.h.b16 %v113
    %v572 = vunpack.c.l.b16 %v114
    %v573 = vunpack.c.h.b16 %v114
    %v574 = vunpack.c.l.b16 %v115
    %v575 = vunpack.c.h.b16 %v115
    %v576 = vunpack.c.l.b16 %v116
    %v577 = vunpack.c.h.b16 %v116
    %v578 = vunpack.c.l.b16 %v117
    %v579 = vunpack.c.h.b16 %v117
    %v580 = vunpack.c.l.b16 %v118
    %v581 = vunpack.c.h.b16 %v118
    %v582 = vunpack.c.l.b16 %v119
    %v583 = vunpack.c.h.b16 %v119
    %v584 = vunpack.c.l.b16 %v120
    %v585 = vunpack.c.h.b16 %v120
    %v586 = vunpack.c.l.b16 %v121
    %v587 = vunpack.c.h.b16 %v121
    %v588 = vunpack.c.l.b16 %v122
    %v589 = vunpack.c.h.b16 %v122
    %v590 = vunpack.c.l.b16 %v123
    %v591 = vunpack.c.h.b16 %v123
    %v592 = vunpack.c.l.b16 %v124
    %v593 = vunpack.c.h.b16 %v124
    %v594 = vunpack.c.l.b16 %v125
    %v595 = vunpack.c.h.b16 %v125
    %v596 = vunpack.c.l.b16 %v126
    %v597 = vunpack.c.h.b16 %v126
    %v598 = vunpack.c.l.b16 %v127
    %v599 = vunpack.c.h.b16 %v127
    %v600 = vunpack.c.l.b16 %v128
    %v601 = vunpack.c.h.b16 %v128
    %v602 = vunpack.c.l.b16 %v129
    %v603 = vunpack.c.h.b16 %v129
    %v604 = vunpack.c.l.b16 %v130
    %v605 = vunpack.c.h.b16 %v130
    %v606 = vunpack.c.l.b16 %v131
    %v607 = vunpack.c.h.b16 %v131
    %v608 = vunpack.c.l.b16 %v132
    %v609 = vunpack.c.h.b16 %v132
    %v610 = vunpack.c.l.b16 %v133
    %v611 = vunpack.c.h.b16 %v133
    %v612 = vunpack.c.l.b16 %v134
    %v613 = vunpack.c.h.b16 %v134
    %v614 = vunpack.c.l.b16 %v135
    %v615 = vunpack.c.h.b16 %v135
    %v616 = vunpack.c.l.b16 %v136
    %v617 = vunpack.c.h.b16 %v136
    %v618 = vunpack.c.l.b16 %v137
    %v619 = vunpack.c.h.b16 %v137
    %v620 = vunpack.c.l.b16 %v138
    %v621 = vunpack.c.h.b16 %v138
    %v622 = vunpack.c.l.b16 %v139
    %v623 = vunpack.c.h.b16 %v139
    %v624 = vunpack.c.l.b16 %v140
    %v625 = vunpack.c.h.b16 %v140
    %v626 = vunpack.c.l.b16 %v141
    %v627 = vunpack.c.h.b16 %v141
    %v628 = vunpack.c.l.b16 %v142
    %v629 = vunpack.c.h.b16 %v142
    %v630 = vunpack.c.l.b16 %v143
    %v631 = vunpack.c.h.b16 %v143
    %v632 = vunpack.c.l.b16 %v144
    %v633 = vunpack.c.h.b16 %v144
    %v634 = vunpack.c.l.b16 %v145
    %v635 = vunpack.c.h.b16 %v145
    %v636 = vunpack.c.l.b16 %v146
    %v637 = vunpack.c.h.b16 %v146
    %v638 = vunpack.c.l.b16 %v147
    %v639 = vunpack.c.h.b16 %v147
    %v640 = vunpack.c.l.b16 %v148
    %v641 = vunpack.c.h.b16 %v148
    %v642 = vunpack.c.l.b16 %v149
    %v643 = vunpack.c.h.b16 %v149
    %v644 = vunpack.c.l.b16 %v150
    %v645 = vunpack.c.h.b16 %v150
    %v646 = vunpack.c.l.b16 %v151
    %v647 = vunpack.c.h.b16 %v151
    %v648 = vunpack.c.l.b16 %v152
    %v649 = vunpack.c.h.b16 %v152
    %v650 = vunpack.c.l.b16 %v153
    %v651 = vunpack.c.h.b16 %v153
    %v652 = vunpack.c.l.b16 %v154
    %v653 = vunpack.c.h.b16 %v154
    %v654 = vunpack.c.l.b16 %v155
    %v655 = vunpack.c.h.b16 %v155
    %v656 = vunpack.c.l.b16 %v156
    %v657 = vunpack.c.h.b16 %v156
    %v658 = vunpack.c.l.b16 %v157
    %v659 = vunpack.c.h.b16 %v157
    %v660 = vunpack.c.l.b16 %v158
    %v661 = vunpack.c.h.b16 %v158
    %v662 = vunpack.c.l.b16 %v159
    %v663 = vunpack.c.h.b16 %v159
    %v664 = vunpack.c.l.b16 %v160
    %v665 = vunpack.c.h.b16 %v160
    %v666 = vunpack.c.l.b16 %v161
    %v667 = vunpack.c.h.b16 %v161
    %v668 = vunpack.c.l.b16 %v162
    %v669 = vunpack.c.h.b16 %v162
    %v670 = vunpack.c.l.b16 %v163
    %v671 = vunpack.c.h.b16 %v163
    %v672 = vunpack.c.l.b16 %v164
    %v673 = vunpack.c.h.b16 %v164
    %v674 = vunpack.c.l.b16 %v165
    %v675 = vunpack.c.h.b16 %v165
    %v676 = vunpack.c.l.b16 %v166
    %v677 = vunpack.c.h.b16 %v166
    %v678 = vunpack.c.l.b16 %v167
    %v679 = vunpack.c.h.b16 %v167
    %v680 = vunpack.c.l.b16 %v168
    %v681 = vunpack.c.h.b16 %v168
    %v682 = vunpack.c.l.b16 %v169
    %v683 = vunpack.c.h.b16 %v169
    %v684 = vunpack.c.l.b16 %v170
    %v685 = vunpack.c.h.b16 %v170
    %v686 = vunpack.c.l.b16 %v171
    %v687 = vunpack.c.h.b16 %v171
    %v688 = vunpack.c.l.b16 %v172
    %v689 = vunpack.c.h.b16 %v172
    %v690 = vunpack.c.l.b16 %v173
    %v691 = vunpack.c.h.b16 %v173
    %v692 = vunpack.c.l.b16 %v174
    %v693 = vunpack.c.h.b16 %v174
    %v694 = vunpack.c.l.b16 %v175
    %v695 = vunpack.c.h.b16 %v175
    %v696 = vunpack.c.l.b16 %v176
    %v697 = vunpack.c.h.b16 %v176
    %v698 = vunpack.c.l.b16 %v177
    %v699 = vunpack.c.h.b16 %v177
    %v700 = vunpack.c.l.b16 %v178
    %v701 = vunpack.c.h.b16 %v178
    %v702 = vunpack.c.l.b16 %v179
    %v703 = vunpack.c.h.b16 %v179
    %v704 = vunpack.c.l.b16 %v180
    %v705 = vunpack.c.h.b16 %v180
    %v706 = vunpack.c.l.b16 %v181
    %v707 = vunpack.c.h.b16 %v181
    %v708 = vunpack.c.l.b16 %v182
    %v709 = vunpack.c.h.b16 %v182
    %v710 = vunpack.c.l.b16 %v183
    %v711 = vunpack.c.h.b16 %v183
    %v712 = vunpack.c.l.b16 %v184
    %v713 = vunpack.c.h.b16 %v184
    %v714 = vunpack.c.l.b16 %v185
    %v715 = vunpack.c.h.b16 %v185
    %v716 = vunpack.c.l.b16 %v186
    %v717 = vunpack.c.h.b16 %v186
    %v718 = vunpack.c.l.b16 %v187
    %v719 = vunpack.c.h.b16 %v187
    %v720 = vunpack.c.l.b16 %v188
    %v721 = vunpack.c.h.b16 %v188
    %v722 = vunpack.c.l.b16 %v189
    %v723 = vunpack.c.h.b16 %v189
    %v724 = vunpack.c.l.b16 %v190
    %v725 = vunpack.c.h.b16 %v190
    %v726 = vunpack.c.l.b16 %v191
    %v727 = vunpack.c.h.b16 %v191
    %v728 = vunpack.c.l.b16 %v192
    %v729 = vunpack.c.h.b16 %v192
    %v730 = vunpack.c.l.b16 %v193
    %v731 = vunpack.c.h.b16 %v193
    %v732 = vunpack.c.l.b16 %v194
    %v733 = vunpack.c.h.b16 %v194
    %v734 = vunpack.c.l.b16 %v195
    %v735 = vunpack.c.h.b16 %v195
    %v736 = vunpack.c.l.b16 %v196
    %v737 = vunpack.c.h.b16 %v196
    %v738 = vunpack.c.l.b16 %v197
    %v739 = vunpack.c.h.b16 %v197
    %v740 = vunpack.c.l.b16 %v198
    %v741 = vunpack.c.h.b16 %v198
    %v742 = vunpack.c.l.b16 %v199
    %v743 = vunpack.c.h.b16 %v199
    %v744 = vunpack.c.l.b16 %v200
    %v745 = vunpack.c.h.b16 %v200
    %v746 = vunpack.c.l.b16 %v201
    %v747 = vunpack.c.h.b16 %v201
    %v748 = vunpack.c.l.b16 %v202
    %v749 = vunpack.c.h.b16 %v202
    %v750 = vunpack.c.l.b16 %v203
    %v751 = vunpack.c.h.b16 %v203
    %v752 = vunpack.c.l.b16 %v204
    %v753 = vunpack.c.h.b16 %v204
    %v754 = vunpack.c.l.b16 %v205
    %v755 = vunpack.c.h.b16 %v205
    %v756 = vunpack.c.l.b16 %v206
    %v757 = vunpack.c.h.b16 %v206
    %v758 = vunpack.c.l.b16 %v207
    %v759 = vunpack.c.h.b16 %v207
    %v760 = vunpack.c.l.b16 %v208
    %v761 = vunpack.c.h.b16 %v208
    %v762 = vunpack.c.l.b16 %v209
    %v763 = vunpack.c.h.b16 %v209
    %v764 = vunpack.c.l.b16 %v210
    %v765 = vunpack.c.h.b16 %v210
    %v766 = vunpack.c.l.b16 %v211
    %v767 = vunpack.c.h.b16 %v211
    %v768 = vunpack.c.l.b16 %v212
    %v769 = vunpack.c.h.b16 %v212
    %v770 = vunpack.c.l.b16 %v213
    %v771 = vunpack.c.h.b16 %v213
    %v772 = vunpack.c.l.b16 %v214
    %v773 = vunpack.c.h.b16 %v214
    %v774 = vunpack.c.l.b16 %v215
    %v775 = vunpack.c.h.b16 %v215
    %v776 = vunpack.c.l.b16 %v216
    %v777 = vunpack.c.h.b16 %v216
    %v778 = vunpack.c.l.b16 %v217
    %v779 = vunpack.c.h.b16 %v217
    %v780 = vunpack.c.l.b16 %v218
    %v781 = vunpack.c.h.b16 %v218
    %v782 = vunpack.c.l.b16 %v219
    %v783 = vunpack.c.h.b16 %v219
    %v784 = vunpack.c.l.b16 %v220
    %v785 = vunpack.c.h.b16 %v220
    %v786 = vunpack.c.l.b16 %v221
    %v787 = vunpack.c.h.b16 %v221
    %v788 = vunpack.c.l.b16 %v222
    %v789 = vunpack.c.h.b16 %v222
    %v790 = vunpack.c.l.b16 %v223
    %v791 = vunpack.c.h.b16 %v223
    %v792 = vunpack.c.l.b16 %v224
    %v793 = vunpack.c.h.b16 %v224
    %v794 = vunpack.c.l.b16 %v225
    %v795 = vunpack.c.h.b16 %v225
    %v796 = vunpack.c.l.b16 %v226
    %v797 = vunpack.c.h.b16 %v226
    %v798 = vunpack.c.l.b16 %v227
    %v799 = vunpack.c.h.b16 %v227
    %v800 = vunpack.c.l.b16 %v228
    %v801 = vunpack.c.h.b16 %v228
    %v802 = vunpack.c.l.b16 %v229
    %v803 = vunpack.c.h.b16 %v229
    %v804 = vunpack.c.l.b16 %v230
    %v805 = vunpack.c.h.b16 %v230
    %v806 = vunpack.c.l.b16 %v231
    %v807 = vunpack.c.h.b16 %v231
    %v808 = vunpack.c.l.b16 %v232
    %v809 = vunpack.c.h.b16 %v232
    %v810 = vunpack.c.l.b16 %v233
    %v811 = vunpack.c.h.b16 %v233
    %v812 = vunpack.c.l.b16 %v234
    %v813 = vunpack.c.h.b16 %v234
    %v814 = vunpack.c.l.b16 %v235
    %v815 = vunpack.c.h.b16 %v235
    %v816 = vunpack.c.l.b16 %v236
    %v817 = vunpack.c.h.b16 %v236
    %v818 = vunpack.c.l.b16 %v237
    %v819 = vunpack.c.h.b16 %v237
    %v820 = vunpack.c.l.b16 %v238
    %v821 = vunpack.c.h.b16 %v238
    %v822 = vunpack.c.l.b16 %v239
    %v823 = vunpack.c.h.b16 %v239
    %v824 = vunpack.c.l.b16 %v240
    %v825 = vunpack.c.h.b16 %v240
    %v826 = vunpack.c.l.b16 %v241
    %v827 = vunpack.c.h.b16 %v241
    %v828 = vunpack.c.l.b16 %v242
    %v829 = vunpack.c.h.b16 %v242
    %v830 = vunpack.c.l.b16 %v243
    %v831 = vunpack.c.h.b16 %v243
    %v832 = vunpack.c.l.b16 %v244
    %v833 = vunpack.c.h.b16 %v244
    %v834 = vunpack.c.l.b16 %v245
    %v835 = vunpack.c.h.b16 %v245
    %v836 = vunpack.c.l.b16 %v246
    %v837 = vunpack.c.h.b16 %v246
    %v838 = vunpack.c.l.b16 %v247
    %v839 = vunpack.c.h.b16 %v247
    %v840 = vunpack.c.l.b16 %v248
    %v841 = vunpack.c.h.b16 %v248
    %v842 = vunpack.c.l.b16 %v249
    %v843 = vunpack.c.h.b16 %v249
    %v844 = vunpack.c.l.b16 %v250
    %v845 = vunpack.c.h.b16 %v250
    %v846 = vunpack.c.l.b16 %v251
    %v847 = vunpack.c.h.b16 %v251
    %v848 = vunpack.c.l.b16 %v252
    %v849 = vunpack.c.h.b16 %v252
    %v850 = vunpack.c.l.b16 %v253
    %v851 = vunpack.c.h.b16 %v253
    %v852 = vunpack.c.l.b16 %v254
    %v853 = vunpack.c.h.b16 %v254
    %v854 = vunpack.c.l.b16 %v255
    %v855 = vunpack.c.h.b16 %v255
    %v856 = vunpack.c.l.b16 %v256
    %v857 = vunpack.c.h.b16 %v256
    %v858 = vunpack.c.l.b16 %v257
    %v859 = vunpack.c.h.b16 %v257
    %v860 = vunpack.c.l.b16 %v258
    %v861 = vunpack.c.h.b16 %v258
    %v862 = vunpack.c.l.b16 %v259
    %v863 = vunpack.c.h.b16 %v259
    %v864 = vunpack.c.l.b16 %v260
    %v865 = vunpack.c.h.b16 %v260
    %v866 = vunpack.c.l.b16 %v261
    %v867 = vunpack.c.h.b16 %v261
    %v868 = vunpack.c.l.b16 %v262
    %v869 = vunpack.c.h.b16 %v262
    %v870 = vunpack.c.l.b16 %v263
    %v871 = vunpack.c.h.b16 %v263
    %v872 = vunpack.c.l.b16 %v264
    %v873 = vunpack.c.h.b16 %v264
    %v874 = vunpack.c.l.b16 %v265
    %v875 = vunpack.c.h.b16 %v265
    %v876 = vpack.c.b16 %v488, %v484
    %v877 = vpack.c.b16 %v489, %v485
    %v878 = vpack.c.b16 %v490, %v486
    %v879 = vpack.c.b16 %v491, %v487
    %v880 = vpack.c.b16 %v496, %v492
    %v881 = vpack.c.b16 %v497, %v493
    %v882 = vpack.c.b16 %v498, %v494
    %v883 = vpack.c.b16 %v499, %v495
    %v884 = vpack.c.b16 %v504, %v500
    %v885 = vpack.c.b16 %v505, %v501
    %v886 = vpack.c.b16 %v506, %v502
    %v887 = vpack.c.b16 %v507, %v503
    %v888 = vpack.c.b16 %v512, %v508
    %v889 = vpack.c.b16 %v513, %v509
    %v890 = vpack.c.b16 %v514, %v510
    %v891 = vpack.c.b16 %v515, %v511
    %v892 = vpack.c.b16 %v520, %v516
    %v893 = vpack.c.b16 %v521, %v517
    %v894 = vpack.c.b16 %v522, %v518
    %v895 = vpack.c.b16 %v523, %v519
    %v896 = vpack.c.b16 %v528, %v524
    %v897 = vpack.c.b16 %v529, %v525
    %v898 = vpack.c.b16 %v530, %v526
    %v899 = vpack.c.b16 %v531, %v527
    %v900 = vpack.c.b16 %v536, %v532
    %v901 = vpack.c.b16 %v537, %v533
    %v902 = vpack.c.b16 %v538, %v534
    %v903 = vpack.c.b16 %v539, %v535
    %v904 = vpack.c.b16 %v544, %v540
    %v905 = vpack.c.b16 %v545, %v541
    %v906 = vpack.c.b16 %v546, %v542
    %v907 = vpack.c.b16 %v547, %v543
    %v908 = vpack.c.b16 %v552, %v548
    %v909 = vpack.c.b16 %v553, %v549
    %v910 = vpack.c.b16 %v554, %v550
    %v911 = vpack.c.b16 %v555, %v551
    %v912 = vpack.c.b16 %v560, %v556
    %v913 = vpack.c.b16 %v561, %v557
    %v914 = vpack.c.b16 %v562, %v558
    %v915 = vpack.c.b16 %v563, %v559
    %v916 = vpack.c.b16 %v568, %v564
    %v917 = vpack.c.b16 %v569, %v565
    %v918 = vpack.c.b16 %v570, %v566
    %v919 = vpack.c.b16 %v571, %v567
    %v920 = vpack.c.b16 %v576, %v572
    %v921 = vpack.c.b16 %v577, %v573
    %v922 = vpack.c.b16 %v578, %v574
    %v923 = vpack.c.b16 %v579, %v575
    %v924 = vpack.c.b16 %v584, %v580
    %v925 = vpack.c.b16 %v585, %v581
    %v926 = vpack.c.b16 %v586, %v582
    %v927 = vpack.c.b16 %v587, %v583
    %v928 = vpack.c.b16 %v592, %v588
    %v929 = vpack.c.b16 %v593, %v589
    %v930 = vpack.c.b16 %v594, %v590
    %v931 = vpack.c.b16 %v595, %v591
    %v932 = vpack.c.b16 %v600, %v596
    %v933 = vpack.c.b16 %v601, %v597
    %v934 = vpack.c.b16 %v602, %v598
    %v935 = vpack.c.b16 %v603, %v599
    %v936 = vpack.c.b16 %v608, %v604
    %v937 = vpack.c.b16 %v609, %v605
    %v938 = vpack.c.b16 %v610, %v606
    %v939 = vpack.c.b16 %v611, %v607
    %v940 = vpack.c.b16 %v616, %v612
    %v941 = vpack.c.b16 %v617, %v613
    %v942 = vpack.c.b16 %v618, %v614
    %v943 = vpack.c.b16 %v619, %v615
    %v944 = vpack.c.b16 %v624, %v620
    %v945 = vpack.c.b16 %v625, %v621
    %v946 = vpack.c.b16 %v626, %v622
    %v947 = vpack.c.b16 %v627, %v623
    %v948 = vpack.c.b16 %v632, %v628
    %v949 = vpack.c.b16 %v633, %v629
    %v950 = vpack.c.b16 %v634, %v630
    %v951 = vpack.c.b16 %v635, %v631
    %v952 = vpack.c.b16 %v640, %v636
    %v953 = vpack.c.b16 %v641, %v637
    %v954 = vpack.c.b16 %v642, %v638
    %v955 = vpack.c.b16 %v643, %v639
    %v956 = vpack.c.b16 %v648, %v644
    %v957 = vpack.c.b16 %v649, %v645
    %v958 = vpack.c.b16 %v650, %v646
    %v959 = vpack.c.b16 %v651, %v647
    %v960 = vpack.c.b16 %v656, %v652
    %v961 = vpack.c.b16 %v657, %v653
    %v962 = vpack.c.b16 %v658, %v654
    %v963 = vpack.c.b16 %v659, %v655
    %v964 = vpack.c.b16 %v664, %v660
    %v965 = vpack.c.b16 %v665, %v661
    %v966 = vpack.c.b16 %v666, %v662
    %v967 = vpack.c.b16 %v667, %v663
    %v968 = vpack.c.b16 %v672, %v668
    %v969 = vpack.c.b16 %v673, %v669
    %v970 = vpack.c.b16 %v674, %v670
    %v971 = vpack.c.b16 %v675, %v671
    %v972 = vpack.c.b16 %v680, %v676
    %v973 = vpack.c.b16 %v681, %v677
    %v974 = vpack.c.b16 %v682, %v678
    %v975 = vpack.c.b16 %v683, %v679
    %v976 = vpack.c.b16 %v688, %v684
    %v977 = vpack.c.b16 %v689, %v685
    %v978 = vpack.c.b16 %v690, %v686
    %v979 = vpack.c.b16 %v691, %v687
    %v980 = vpack.c.b16 %v696, %v692
    %v981 = vpack.c.b16 %v697, %v693
    %v982 = vpack.c.b16 %v698, %v694
    %v983 = vpack.c.b16 %v699, %v695
    %v984 = vpack.c.b16 %v704, %v700
    %v985 = vpack.c.b16 %v705, %v701
    %v986 = vpack.c.b16 %v706, %v702
    %v987 = vpack.c.b16 %v707, %v703
    %v988 = vpack.c.b16 %v712, %v708
    %v989 = vpack.c.b16 %v713, %v709
    %v990 = vpack.c.b16 %v714, %v710
    %v991 = vpack.c.b16 %v715, %v711
    %v992 = vpack.c.b16 %v720, %v716
    %v993 = vpack.c.b16 %v721, %v717
    %v994 = vpack.c.b16 %v722, %v718
    %v995 = vpack.c.b16 %v723, %v719
    %v996 = vpack.c.b16 %v728, %v724
    %v997 = vpack.c.b16 %v729, %v725
    %v998 = vpack.c.b16 %v730, %v726
    %v999 = vpack.c.b16 %v731, %v727
    %v1000 = vpack.c.b16 %v736, %v732
    %v1001 = vpack.c.b16 %v737, %v733
    %v1002 = vpack.c.b16 %v738, %v734
    %v1003 = vpack.c.b16 %v739, %v735
    %v1004 = vpack.c.b16 %v744, %v740
    %v1005 = vpack.c.b16 %v745, %v741
    %v1006 = vpack.c.b16 %v746, %v742
    %v1007 = vpack.c.b16 %v747, %v743
    %v1008 = vpack.c.b16 %v752, %v748
    %v1009 = vpack.c.b16 %v753, %v749
    %v1010 = vpack.c.b16 %v754, %v750
    %v1011 = vpack.c.b16 %v755, %v751
    %v1012 = vpack.c.b16 %v760, %v756
    %v1013 = vpack.c.b16 %v761, %v757
    %v1014 = vpack.c.b16 %v762, %v758
    %v1015 = vpack.c.b16 %v763, %v759
    %v1016 = vpack.c.b16 %v768, %v764
    %v1017 = vpack.c.b16 %v769, %v765
    %v1018 = vpack.c.b16 %v770, %v766
    %v1019 = vpack.c.b16 %v771, %v767
    %v1020 = vpack.c.b16 %v776, %v772
    %v1021 = vpack.c.b16 %v777, %v773
    %v1022 = vpack.c.b16 %v778, %v774
    %v1023 = vpack.c.b16 %v779, %v775
    %v1024 = vpack.c.b16 %v784, %v780
    %v1025 = vpack.c.b16 %v785, %v781
    %v1026 = vpack.c.b16 %v786, %v782
    %v1027 = vpack.c.b16 %v787, %v783
    %v1028 = vpack.c.b16 %v792, %v788
    %v1029 = vpack.c.b16 %v793, %v789
    %v1030 = vpack.c.b16 %v794, %v790
    %v1031 = vpack.c.b16 %v795, %v791
    %v1032 = vpack.c.b16 %v800, %v796
    %v1033 = vpack.c.b16 %v801, %v797
    %v1034 = vpack.c.b16 %v802, %v798
    %v1035 = vpack.c.b16 %v803, %v799
    %v1036 = vpack.c.b16 %v808, %v804
    %v1037 = vpack.c.b16 %v809, %v805
    %v1038 = vpack.c.b16 %v810, %v806
    %v1039 = vpack.c.b16 %v811, %v807
    %v1040 = vpack.c.b16 %v816, %v812
    %v1041 = vpack.c.b16 %v817, %v813
    %v1042 = vpack.c.b16 %v818, %v814
    %v1043 = vpack.c.b16 %v819, %v815
    %v1044 = vpack.c.b16 %v824, %v820
    %v1045 = vpack.c.b16 %v825, %v821
    %v1046 = vpack.c.b16 %v826, %v822
    %v1047 = vpack.c.b16 %v827, %v823
    %v1048 = vpack.c.b16 %v832, %v828
    %v1049 = vpack.c.b16 %v833, %v829
    %v1050 = vpack.c.b16 %v834, %v830
    %v1051 = vpack.c.b16 %v835, %v831
    %v1052 = vpack.c.b16 %v840, %v836
    %v1053 = vpack.c.b16 %v841, %v837
    %v1054 = vpack.c.b16 %v842, %v838
    %v1055 = vpack.c.b16 %v843, %v839
    %v1056 = vpack.c.b16 %v848, %v844
    %v1057 = vpack.c.b16 %v849, %v845
    %v1058 = vpack.c.b16 %v850, %v846
    %v1059 = vpack.c.b16 %v851, %v847
    %v1060 = vpack.c.b16 %v856, %v852
    %v1061 = vpack.c.b16 %v857, %v853
    %v1062 = vpack.c.b16 %v858, %v854
    %v1063 = vpack.c.b16 %v859, %v855
    %v1064 = vpack.c.b16 %v864, %v860
    %v1065 = vpack.c.b16 %v865, %v861
    %v1066 = vpack.c.b16 %v866, %v862
    %v1067 = vpack.c.b16 %v867, %v863
    %v1068 = vpack.c.b16 %v872, %v868
    %v1069 = vpack.c.b16 %v873, %v869
    %v1070 = vpack.c.b16 %v874, %v870
    %v1071 = vpack.c.b16 %v875, %v871
    %vm1268 = vcmask 130048
    %v1270 = vsel %vm1268, %v69, 0
    %1272 = vmatprep.subr.bf16.mxu0 %v905
    %1273 = vmatpush1.bf16.msra.mxu0 %v904
    %1274 = vmatprep.subr.bf16.mxu0 %v901
    %1275 = vmatpush1.bf16.msra.mxu0 %v900
    %1276 = vmatprep.subr.bf16.mxu0 %v897
    %1277 = vmatpush1.bf16.msra.mxu0 %v896
    %1278 = vmatprep.subr.bf16.mxu0 %v893
    %1279 = vmatpush1.bf16.msra.mxu0 %v892
    %1280 = vmatprep.subr.bf16.mxu0 %v889
    %1281 = vmatpush1.bf16.msra.mxu0 %v888
    %1282 = vmatprep.subr.bf16.mxu0 %v885
    %1283 = vmatpush1.bf16.msra.mxu0 %v884
    %1284 = vmatprep.subr.bf16.mxu0 %v881
    %1285 = vmatpush1.bf16.msra.mxu0 %v880
    %1286 = vmatprep.subr.bf16.mxu0 %v877
    %1287 = vmatpush1.bf16.msra.mxu0 %v876
    %1288 = vmatprep.subr.bf16.mxu0 %v937
    %1289 = vmatpush2.bf16.msra.mxu0 %v936
    %1290 = vmatprep.subr.bf16.mxu0 %v933
    %1291 = vmatpush2.bf16.msra.mxu0 %v932
    %1292 = vmatprep.subr.bf16.mxu0 %v929
    %1293 = vmatpush2.bf16.msra.mxu0 %v928
    %1294 = vmatprep.subr.bf16.mxu0 %v925
    %1295 = vmatpush2.bf16.msra.mxu0 %v924
    %1296 = vmatprep.subr.bf16.mxu0 %v921
    %1297 = vmatpush2.bf16.msra.mxu0 %v920
    %1298 = vmatprep.subr.bf16.mxu0 %v917
    %1299 = vmatpush2.bf16.msra.mxu0 %v916
    %1300 = vmatprep.subr.bf16.mxu0 %v913
    %1301 = vmatpush2.bf16.msra.mxu0 %v912
    %1302 = vmatprep.subr.bf16.mxu0 %v909
    %1303 = vmatpush2.bf16.msra.mxu0 %v908
    %1304 = vmatprep.mubr.bf16.mxu0 %v64
    %1305 = vmatmul.mubr.bf16.gmra.mxu0 %v63
    %v1306 = vpop.f32.mrf.mxu0
    %v1307 = vadd.f32 %v271, %v1306
    %v1308 = vpop.f32.mrf.mxu0
    %v1309 = vadd.f32 %v275, %v1308
    %v1310 = vpop.f32.mrf.mxu0
    %v1311 = vpop.f32.mrf.mxu0
    %1312 = vdwg.mxu0
    %1313 = vmatprep.subr.bf16.mxu0 %v969
    %1314 = vmatpush1.bf16.msra.mxu0 %v968
    %1315 = vmatprep.subr.bf16.mxu0 %v965
    %1316 = vmatpush1.bf16.msra.mxu0 %v964
    %1317 = vmatprep.subr.bf16.mxu0 %v961
    %1318 = vmatpush1.bf16.msra.mxu0 %v960
    %1319 = vmatprep.subr.bf16.mxu0 %v957
    %1320 = vmatpush1.bf16.msra.mxu0 %v956
    %1321 = vmatprep.subr.bf16.mxu0 %v953
    %1322 = vmatpush1.bf16.msra.mxu0 %v952
    %1323 = vmatprep.subr.bf16.mxu0 %v949
    %1324 = vmatpush1.bf16.msra.mxu0 %v948
    %1325 = vmatprep.subr.bf16.mxu0 %v945
    %1326 = vmatpush1.bf16.msra.mxu0 %v944
    %1327 = vmatprep.subr.bf16.mxu0 %v941
    %1328 = vmatpush1.bf16.msra.mxu0 %v940
    %1329 = vmatprep.subr.bf16.mxu0 %v1001
    %1330 = vmatpush2.bf16.msra.mxu0 %v1000
    %1331 = vmatprep.subr.bf16.mxu0 %v997
    %1332 = vmatpush2.bf16.msra.mxu0 %v996
    %1333 = vmatprep.subr.bf16.mxu0 %v993
    %1334 = vmatpush2.bf16.msra.mxu0 %v992
    %1335 = vmatprep.subr.bf16.mxu0 %v989
    %1336 = vmatpush2.bf16.msra.mxu0 %v988
    %1337 = vmatprep.subr.bf16.mxu0 %v985
    %1338 = vmatpush2.bf16.msra.mxu0 %v984
    %1339 = vmatprep.subr.bf16.mxu0 %v981
    %1340 = vmatpush2.bf16.msra.mxu0 %v980
    %1341 = vmatprep.subr.bf16.mxu0 %v977
    %1342 = vmatpush2.bf16.msra.mxu0 %v976
    %1343 = vmatprep.subr.bf16.mxu0 %v973
    %1344 = vmatpush2.bf16.msra.mxu0 %v972
    %1345 = vmatprep.mubr.bf16.mxu0 %v66
    %1346 = vmatmul.mubr.bf16.gmra.mxu0 %v65
    %v1347 = vpop.f32.mrf.mxu0
    %v1348 = vadd.f32 %v1307, %v1347
    %v1349 = vpop.f32.mrf.mxu0
    %v1350 = vadd.f32 %v1309, %v1349
    %v1351 = vpop.f32.mrf.mxu0
    %v1352 = vpop.f32.mrf.mxu0
    %1353 = vdwg.mxu0
    %1354 = vmatprep.subr.bf16.mxu0 %v1033
    %1355 = vmatpush1.bf16.msra.mxu0 %v1032
    %1356 = vmatprep.subr.bf16.mxu0 %v1029
    %1357 = vmatpush1.bf16.msra.mxu0 %v1028
    %1358 = vmatprep.subr.bf16.mxu0 %v1025
    %1359 = vmatpush1.bf16.msra.mxu0 %v1024
    %1360 = vmatprep.subr.bf16.mxu0 %v1021
    %1361 = vmatpush1.bf16.msra.mxu0 %v1020
    %1362 = vmatprep.subr.bf16.mxu0 %v1017
    %1363 = vmatpush1.bf16.msra.mxu0 %v1016
    %1364 = vmatprep.subr.bf16.mxu0 %v1013
    %1365 = vmatpush1.bf16.msra.mxu0 %v1012
    %1366 = vmatprep.subr.bf16.mxu0 %v1009
    %1367 = vmatpush1.bf16.msra.mxu0 %v1008
    %1368 = vmatprep.subr.bf16.mxu0 %v1005
    %1369 = vmatpush1.bf16.msra.mxu0 %v1004
    %1370 = vmatprep.subr.bf16.mxu0 %v1065
    %1371 = vmatpush2.bf16.msra.mxu0 %v1064
    %1372 = vmatprep.subr.bf16.mxu0 %v1061
    %1373 = vmatpush2.bf16.msra.mxu0 %v1060
    %1374 = vmatprep.subr.bf16.mxu0 %v1057
    %1375 = vmatpush2.bf16.msra.mxu0 %v1056
    %1376 = vmatprep.subr.bf16.mxu0 %v1053
    %1377 = vmatpush2.bf16.msra.mxu0 %v1052
    %1378 = vmatprep.subr.bf16.mxu0 %v1049
    %1379 = vmatpush2.bf16.msra.mxu0 %v1048
    %1380 = vmatprep.subr.bf16.mxu0 %v1045
    %1381 = vmatpush2.bf16.msra.mxu0 %v1044
    %1382 = vmatprep.subr.bf16.mxu0 %v1041
    %1383 = vmatpush2.bf16.msra.mxu0 %v1040
    %1384 = vmatprep.subr.bf16.mxu0 %v1037
    %1385 = vmatpush2.bf16.msra.mxu0 %v1036
    %1386 = vmatprep.mubr.bf16.mxu0 %v68
    %1387 = vmatmul.mubr.bf16.gmra.mxu0 %v67
    %v1388 = vpop.f32.mrf.mxu0
    %v1389 = vadd.f32 %v1348, %v1388
    %v1390 = vpop.f32.mrf.mxu0
    %v1391 = vadd.f32 %v1350, %v1390
    %v1392 = vpop.f32.mrf.mxu0
    %v1393 = vpop.f32.mrf.mxu0
    %1394 = vdwg.mxu0
    %1395 = vmatprep.subr.bf16.mxu0 0
    %1396 = vmatpush1.bf16.msra.mxu0 0
    %1397 = vmatprep.subr.bf16.mxu0 0
    %1398 = vmatpush1.bf16.msra.mxu0 0
    %1399 = vmatprep.subr.bf16.mxu0 0
    %1400 = vmatpush1.bf16.msra.mxu0 0
    %1401 = vmatprep.subr.bf16.mxu0 0
    %1402 = vmatpush1.bf16.msra.mxu0 0
    %1403 = vmatprep.subr.bf16.mxu0 0
    %1404 = vmatpush1.bf16.msra.mxu0 0
    %1405 = vmatprep.subr.bf16.mxu0 0
    %1406 = vmatpush1.bf16.msra.mxu0 0
    %1407 = vmatprep.subr.bf16.mxu0 0
    %1408 = vmatpush1.bf16.msra.mxu0 0
    %1409 = vmatprep.subr.bf16.mxu0 %v1069
    %1410 = vmatpush1.bf16.msra.mxu0 %v1068
    %1411 = vmatprep.subr.bf16.mxu0 0
    %1412 = vmatpush2.bf16.msra.mxu0 0
    %1413 = vmatprep.subr.bf16.mxu0 0
    %1414 = vmatpush2.bf16.msra.mxu0 0
    %1415 = vmatprep.subr.bf16.mxu0 0
    %1416 = vmatpush2.bf16.msra.mxu0 0
    %1417 = vmatprep.subr.bf16.mxu0 0
    %1418 = vmatpush2.bf16.msra.mxu0 0
    %1419 = vmatprep.subr.bf16.mxu0 0
    %1420 = vmatpush2.bf16.msra.mxu0 0
    %1421 = vmatprep.subr.bf16.mxu0 0
    %1422 = vmatpush2.bf16.msra.mxu0 0
    %1423 = vmatprep.subr.bf16.mxu0 0
    %1424 = vmatpush2.bf16.msra.mxu0 0
    %1425 = vmatprep.subr.bf16.mxu0 0
    %1426 = vmatpush2.bf16.msra.mxu0 0
    %1427 = vmatprep.mubr.bf16.mxu0 0
    %1428 = vmatmul.mubr.bf16.gmra.mxu0 %v1270
    %v1429 = vpop.f32.mrf.mxu0
    %v1430 = vadd.f32 %v1389, %v1429
    %v1431 = vpop.f32.mrf.mxu0
    %v1432 = vadd.f32 %v1391, %v1431
    %v1433 = vpop.f32.mrf.mxu0
    %v1434 = vpop.f32.mrf.mxu0
    %1435 = vdwg.mxu0
    %1436 = vmatprep.subr.bf16.mxu0 %v907
    %1437 = vmatpush1.bf16.msra.mxu0 %v906
    %1438 = vmatprep.subr.bf16.mxu0 %v903
    %1439 = vmatpush1.bf16.msra.mxu0 %v902
    %1440 = vmatprep.subr.bf16.mxu0 %v899
    %1441 = vmatpush1.bf16.msra.mxu0 %v898
    %1442 = vmatprep.subr.bf16.mxu0 %v895
    %1443 = vmatpush1.bf16.msra.mxu0 %v894
    %1444 = vmatprep.subr.bf16.mxu0 %v891
    %1445 = vmatpush1.bf16.msra.mxu0 %v890
    %1446 = vmatprep.subr.bf16.mxu0 %v887
    %1447 = vmatpush1.bf16.msra.mxu0 %v886
    %1448 = vmatprep.subr.bf16.mxu0 %v883
    %1449 = vmatpush1.bf16.msra.mxu0 %v882
    %1450 = vmatprep.subr.bf16.mxu0 %v879
    %1451 = vmatpush1.bf16.msra.mxu0 %v878
    %1452 = vmatprep.subr.bf16.mxu0 %v939
    %1453 = vmatpush2.bf16.msra.mxu0 %v938
    %1454 = vmatprep.subr.bf16.mxu0 %v935
    %1455 = vmatpush2.bf16.msra.mxu0 %v934
    %1456 = vmatprep.subr.bf16.mxu0 %v931
    %1457 = vmatpush2.bf16.msra.mxu0 %v930
    %1458 = vmatprep.subr.bf16.mxu0 %v927
    %1459 = vmatpush2.bf16.msra.mxu0 %v926
    %1460 = vmatprep.subr.bf16.mxu0 %v923
    %1461 = vmatpush2.bf16.msra.mxu0 %v922
    %1462 = vmatprep.subr.bf16.mxu0 %v919
    %1463 = vmatpush2.bf16.msra.mxu0 %v918
    %1464 = vmatprep.subr.bf16.mxu0 %v915
    %1465 = vmatpush2.bf16.msra.mxu0 %v914
    %1466 = vmatprep.subr.bf16.mxu0 %v911
    %1467 = vmatpush2.bf16.msra.mxu0 %v910
    %1468 = vmatprep.mubr.bf16.mxu0 %v64
    %1469 = vmatmul.mubr.bf16.gmra.mxu0 %v63
    %v1470 = vpop.f32.mrf.mxu0
    %v1471 = vadd.f32 %v279, %v1470
    %v1472 = vpop.f32.mrf.mxu0
    %v1473 = vadd.f32 %v283, %v1472
    %v1474 = vpop.f32.mrf.mxu0
    %v1475 = vpop.f32.mrf.mxu0
    %1476 = vdwg.mxu0
    %1477 = vmatprep.subr.bf16.mxu0 %v971
    %1478 = vmatpush1.bf16.msra.mxu0 %v970
    %1479 = vmatprep.subr.bf16.mxu0 %v967
    %1480 = vmatpush1.bf16.msra.mxu0 %v966
    %1481 = vmatprep.subr.bf16.mxu0 %v963
    %1482 = vmatpush1.bf16.msra.mxu0 %v962
    %1483 = vmatprep.subr.bf16.mxu0 %v959
    %1484 = vmatpush1.bf16.msra.mxu0 %v958
    %1485 = vmatprep.subr.bf16.mxu0 %v955
    %1486 = vmatpush1.bf16.msra.mxu0 %v954
    %1487 = vmatprep.subr.bf16.mxu0 %v951
    %1488 = vmatpush1.bf16.msra.mxu0 %v950
    %1489 = vmatprep.subr.bf16.mxu0 %v947
    %1490 = vmatpush1.bf16.msra.mxu0 %v946
    %1491 = vmatprep.subr.bf16.mxu0 %v943
    %1492 = vmatpush1.bf16.msra.mxu0 %v942
    %1493 = vmatprep.subr.bf16.mxu0 %v1003
    %1494 = vmatpush2.bf16.msra.mxu0 %v1002
    %1495 = vmatprep.subr.bf16.mxu0 %v999
    %1496 = vmatpush2.bf16.msra.mxu0 %v998
    %1497 = vmatprep.subr.bf16.mxu0 %v995
    %1498 = vmatpush2.bf16.msra.mxu0 %v994
    %1499 = vmatprep.subr.bf16.mxu0 %v991
    %1500 = vmatpush2.bf16.msra.mxu0 %v990
    %1501 = vmatprep.subr.bf16.mxu0 %v987
    %1502 = vmatpush2.bf16.msra.mxu0 %v986
    %1503 = vmatprep.subr.bf16.mxu0 %v983
    %1504 = vmatpush2.bf16.msra.mxu0 %v982
    %1505 = vmatprep.subr.bf16.mxu0 %v979
    %1506 = vmatpush2.bf16.msra.mxu0 %v978
    %1507 = vmatprep.subr.bf16.mxu0 %v975
    %1508 = vmatpush2.bf16.msra.mxu0 %v974
    %1509 = vmatprep.mubr.bf16.mxu0 %v66
    %1510 = vmatmul.mubr.bf16.gmra.mxu0 %v65
    %v1511 = vpop.f32.mrf.mxu0
    %v1512 = vadd.f32 %v1471, %v1511
    %v1513 = vpop.f32.mrf.mxu0
    %v1514 = vadd.f32 %v1473, %v1513
    %v1515 = vpop.f32.mrf.mxu0
    %v1516 = vpop.f32.mrf.mxu0
    %1517 = vdwg.mxu0
    %1518 = vmatprep.subr.bf16.mxu0 %v1035
    %1519 = vmatpush1.bf16.msra.mxu0 %v1034
    %1520 = vmatprep.subr.bf16.mxu0 %v1031
    %1521 = vmatpush1.bf16.msra.mxu0 %v1030
    %1522 = vmatprep.subr.bf16.mxu0 %v1027
    %1523 = vmatpush1.bf16.msra.mxu0 %v1026
    %1524 = vmatprep.subr.bf16.mxu0 %v1023
    %1525 = vmatpush1.bf16.msra.mxu0 %v1022
    %1526 = vmatprep.subr.bf16.mxu0 %v1019
    %1527 = vmatpush1.bf16.msra.mxu0 %v1018
    %1528 = vmatprep.subr.bf16.mxu0 %v1015
    %1529 = vmatpush1.bf16.msra.mxu0 %v1014
    %1530 = vmatprep.subr.bf16.mxu0 %v1011
    %1531 = vmatpush1.bf16.msra.mxu0 %v1010
    %1532 = vmatprep.subr.bf16.mxu0 %v1007
    %1533 = vmatpush1.bf16.msra.mxu0 %v1006
    %1534 = vmatprep.subr.bf16.mxu0 %v1067
    %1535 = vmatpush2.bf16.msra.mxu0 %v1066
    %1536 = vmatprep.subr.bf16.mxu0 %v1063
    %1537 = vmatpush2.bf16.msra.mxu0 %v1062
    %1538 = vmatprep.subr.bf16.mxu0 %v1059
    %1539 = vmatpush2.bf16.msra.mxu0 %v1058
    %1540 = vmatprep.subr.bf16.mxu0 %v1055
    %1541 = vmatpush2.bf16.msra.mxu0 %v1054
    %1542 = vmatprep.subr.bf16.mxu0 %v1051
    %1543 = vmatpush2.bf16.msra.mxu0 %v1050
    %1544 = vmatprep.subr.bf16.mxu0 %v1047
    %1545 = vmatpush2.bf16.msra.mxu0 %v1046
    %1546 = vmatprep.subr.bf16.mxu0 %v1043
    %1547 = vmatpush2.bf16.msra.mxu0 %v1042
    %1548 = vmatprep.subr.bf16.mxu0 %v1039
    %1549 = vmatpush2.bf16.msra.mxu0 %v1038
    %1550 = vmatprep.mubr.bf16.mxu0 %v68
    %1551 = vmatmul.mubr.bf16.gmra.mxu0 %v67
    %v1552 = vpop.f32.mrf.mxu0
    %v1553 = vadd.f32 %v1512, %v1552
    %v1554 = vpop.f32.mrf.mxu0
    %v1555 = vadd.f32 %v1514, %v1554
    %v1556 = vpop.f32.mrf.mxu0
    %v1557 = vpop.f32.mrf.mxu0
    %1558 = vdwg.mxu0
    %1559 = vmatprep.subr.bf16.mxu0 0
    %1560 = vmatpush1.bf16.msra.mxu0 0
    %1561 = vmatprep.subr.bf16.mxu0 0
    %1562 = vmatpush1.bf16.msra.mxu0 0
    %1563 = vmatprep.subr.bf16.mxu0 0
    %1564 = vmatpush1.bf16.msra.mxu0 0
    %1565 = vmatprep.subr.bf16.mxu0 0
    %1566 = vmatpush1.bf16.msra.mxu0 0
    %1567 = vmatprep.subr.bf16.mxu0 0
    %1568 = vmatpush1.bf16.msra.mxu0 0
    %1569 = vmatprep.subr.bf16.mxu0 0
    %1570 = vmatpush1.bf16.msra.mxu0 0
    %1571 = vmatprep.subr.bf16.mxu0 0
    %1572 = vmatpush1.bf16.msra.mxu0 0
    %1573 = vmatprep.subr.bf16.mxu0 %v1071
    %1574 = vmatpush1.bf16.msra.mxu0 %v1070
    %1575 = vmatprep.subr.bf16.mxu0 0
    %1576 = vmatpush2.bf16.msra.mxu0 0
    %1577 = vmatprep.subr.bf16.mxu0 0
    %1578 = vmatpush2.bf16.msra.mxu0 0
    %1579 = vmatprep.subr.bf16.mxu0 0
    %1580 = vmatpush2.bf16.msra.mxu0 0
    %1581 = vmatprep.subr.bf16.mxu0 0
    %1582 = vmatpush2.bf16.msra.mxu0 0
    %1583 = vmatprep.subr.bf16.mxu0 0
    %1584 = vmatpush2.bf16.msra.mxu0 0
    %1585 = vmatprep.subr.bf16.mxu0 0
    %1586 = vmatpush2.bf16.msra.mxu0 0
    %1587 = vmatprep.subr.bf16.mxu0 0
    %1588 = vmatpush2.bf16.msra.mxu0 0
    %1589 = vmatprep.subr.bf16.mxu0 0
    %1590 = vmatpush2.bf16.msra.mxu0 0
    %1591 = vmatprep.mubr.bf16.mxu0 0
    %1592 = vmatmul.mubr.bf16.gmra.mxu0 %v1270
    %v1593 = vpop.f32.mrf.mxu0
    %v1594 = vadd.f32 %v1553, %v1593
    %v1595 = vpop.f32.mrf.mxu0
    %v1596 = vadd.f32 %v1555, %v1595
    %v1597 = vpop.f32.mrf.mxu0
    %v1598 = vpop.f32.mrf.mxu0
    %1599 = vdwg.mxu0
    %v1600 = vmax.f32 %v1430, 0.0
    %v1601 = vmax.f32 %v1432, 0.0
    %v1602 = vmax.f32 %v1594, 0.0
    %v1603 = vmax.f32 %v1596, 0.0
    %v1604 = vpack.c.bf16 %v1600, %v1600
    %v1605 = vpack.c.bf16 %v1601, %v1601
    %v1606 = vpack.c.bf16 %v1602, %v1602
    %v1607 = vpack.c.bf16 %v1603, %v1603
    %v1608 = vld [vmem:[%s5] sm:$0xff]
    %v1609 = vld [vmem:[%s5 + $0x8] sm:$0xff]
    %v1610 = vld [vmem:[%s5 + $0x10] sm:$0xff]
    %v1611 = vld [vmem:[%s5 + $0x18] sm:$0xff]
    %v1612 = vld [vmem:[%s5 + $0x20] sm:$0xff]
    %v1613 = vld [vmem:[%s5 + $0x28] sm:$0xff]
    %v1614 = vld [vmem:[%s5 + $0x30] sm:$0xff]
    %v1615 = vld [vmem:[%s5 + $0x38] sm:$0xff]
    %v1616 = vld [vmem:[%s5 + $0x40] sm:$0xff]
    %v1617 = vld [vmem:[%s5 + $0x48] sm:$0xff]
    %v1618 = vld [vmem:[%s5 + $0x50] sm:$0xff]
    %v1619 = vld [vmem:[%s5 + $0x58] sm:$0xff]
    %v1620 = vld [vmem:[%s5 + $0x60] sm:$0xff]
    %v1621 = vld [vmem:[%s5 + $0x68] sm:$0xff]
    %v1622 = vld [vmem:[%s5 + $0x70] sm:$0xff]
    %v1623 = vld [vmem:[%s5 + $0x78] sm:$0xff]
    %v1624 = vld [vmem:[%s5 + $0x80] sm:$0xff]
    %v1625 = vld [vmem:[%s5 + $0x88] sm:$0xff]
    %v1626 = vld [vmem:[%s5 + $0x90] sm:$0xff]
    %v1627 = vld [vmem:[%s5 + $0x98] sm:$0xff]
    %v1628 = vld [vmem:[%s5 + $0xa0] sm:$0xff]
    %v1629 = vld [vmem:[%s5 + $0xa8] sm:$0xff]
    %v1630 = vld [vmem:[%s5 + $0xb0] sm:$0xff]
    %v1631 = vld [vmem:[%s5 + $0xb8] sm:$0xff]
    %v1632 = vld [vmem:[%s5 + $0xc0] sm:$0xff]
    %v1633 = vld [vmem:[%s5 + $0xc8] sm:$0xff]
    %v1634 = vld [vmem:[%s5 + $0xd0] sm:$0xff]
    %v1635 = vld [vmem:[%s5 + $0xd8] sm:$0xff]
    %v1636 = vld [vmem:[%s5 + $0xe0] sm:$0xff]
    %v1637 = vld [vmem:[%s5 + $0xe8] sm:$0xff]
    %v1638 = vld [vmem:[%s5 + $0xf0] sm:$0xff]
    %v1639 = vld [vmem:[%s5 + $0xf8] sm:$0xff]
    %v1640 = vld [vmem:[%s5 + $0x100] sm:$0xff]
    %v1641 = vld [vmem:[%s5 + $0x108] sm:$0xff]
    %v1642 = vld [vmem:[%s5 + $0x110] sm:$0xff]
    %v1643 = vld [vmem:[%s5 + $0x118] sm:$0xff]
    %v1644 = vld [vmem:[%s5 + $0x120] sm:$0xff]
    %v1645 = vld [vmem:[%s5 + $0x128] sm:$0xff]
    %v1646 = vld [vmem:[%s5 + $0x130] sm:$0xff]
    %v1647 = vld [vmem:[%s5 + $0x138] sm:$0xff]
    %v1648 = vld [vmem:[%s5 + $0x140] sm:$0xff]
    %v1649 = vld [vmem:[%s5 + $0x148] sm:$0xff]
    %v1650 = vld [vmem:[%s5 + $0x150] sm:$0xff]
    %v1651 = vld [vmem:[%s5 + $0x158] sm:$0xff]
    %v1652 = vld [vmem:[%s5 + $0x160] sm:$0xff]
    %v1653 = vld [vmem:[%s5 + $0x168] sm:$0xff]
    %v1654 = vld [vmem:[%s5 + $0x170] sm:$0xff]
    %v1655 = vld [vmem:[%s5 + $0x178] sm:$0xff]
    %v1656 = vld [vmem:[%s5 + $0x180] sm:$0xff]
    %v1657 = vld [vmem:[%s5 + $0x188] sm:$0xff]
    %v1658 = vld [vmem:[%s5 + $0x190] sm:$0xff]
    %v1659 = vld [vmem:[%s5 + $0x198] sm:$0xff]
    %v1660 = vld [vmem:[%s5 + $0x1a0] sm:$0xff]
    %v1661 = vld [vmem:[%s5 + $0x1a8] sm:$0xff]
    %v1662 = vld [vmem:[%s5 + $0x1b0] sm:$0xff]
    %v1663 = vld [vmem:[%s5 + $0x1b8] sm:$0xff]
    %v1664 = vld [vmem:[%s5 + $0x1c0] sm:$0xff]
    %v1665 = vld [vmem:[%s5 + $0x1c8] sm:$0xff]
    %v1666 = vld [vmem:[%s5 + $0x1d0] sm:$0xff]
    %v1667 = vld [vmem:[%s5 + $0x1d8] sm:$0xff]
    %v1668 = vld [vmem:[%s5 + $0x1e0] sm:$0xff]
    %v1669 = vld [vmem:[%s5 + $0x1e8] sm:$0xff]
    %v1670 = vld [vmem:[%s5 + $0x1f0] sm:$0xff]
    %v1671 = vld [vmem:[%s5 + $0x1f8] sm:$0xff]
    %v1672 = vld [vmem:[%s6] sm:$0x3]
    %v1674 = vlaneseq
    %v1675 = vshrl.u32 %v1674, 7
    %v1676 = vsub.s32 0, %v1675
    %v1677 = vrot.slane %v1672, %v1676
    %v1678 = vlaneseq
    %v1679 = vshrl.u32 %v1678, 7
    %v1680 = vsub.s32 1, %v1679
    %v1681 = vrot.slane %v1672, %v1680
    %v1748 = vunpack.c.l.b16 %v1608
    %v1749 = vunpack.c.h.b16 %v1608
    %v1750 = vunpack.c.l.b16 %v1609
    %v1751 = vunpack.c.h.b16 %v1609
    %v1752 = vunpack.c.l.b16 %v1610
    %v1753 = vunpack.c.h.b16 %v1610
    %v1754 = vunpack.c.l.b16 %v1611
    %v1755 = vunpack.c.h.b16 %v1611
    %v1756 = vunpack.c.l.b16 %v1612
    %v1757 = vunpack.c.h.b16 %v1612
    %v1758 = vunpack.c.l.b16 %v1613
    %v1759 = vunpack.c.h.b16 %v1613
    %v1760 = vunpack.c.l.b16 %v1614
    %v1761 = vunpack.c.h.b16 %v1614
    %v1762 = vunpack.c.l.b16 %v1615
    %v1763 = vunpack.c.h.b16 %v1615
    %v1764 = vunpack.c.l.b16 %v1616
    %v1765 = vunpack.c.h.b16 %v1616
    %v1766 = vunpack.c.l.b16 %v1617
    %v1767 = vunpack.c.h.b16 %v1617
    %v1768 = vunpack.c.l.b16 %v1618
    %v1769 = vunpack.c.h.b16 %v1618
    %v1770 = vunpack.c.l.b16 %v1619
    %v1771 = vunpack.c.h.b16 %v1619
    %v1772 = vunpack.c.l.b16 %v1620
    %v1773 = vunpack.c.h.b16 %v1620
    %v1774 = vunpack.c.l.b16 %v1621
    %v1775 = vunpack.c.h.b16 %v1621
    %v1776 = vunpack.c.l.b16 %v1622
    %v1777 = vunpack.c.h.b16 %v1622
    %v1778 = vunpack.c.l.b16 %v1623
    %v1779 = vunpack.c.h.b16 %v1623
    %v1780 = vunpack.c.l.b16 %v1624
    %v1781 = vunpack.c.h.b16 %v1624
    %v1782 = vunpack.c.l.b16 %v1625
    %v1783 = vunpack.c.h.b16 %v1625
    %v1784 = vunpack.c.l.b16 %v1626
    %v1785 = vunpack.c.h.b16 %v1626
    %v1786 = vunpack.c.l.b16 %v1627
    %v1787 = vunpack.c.h.b16 %v1627
    %v1788 = vunpack.c.l.b16 %v1628
    %v1789 = vunpack.c.h.b16 %v1628
    %v1790 = vunpack.c.l.b16 %v1629
    %v1791 = vunpack.c.h.b16 %v1629
    %v1792 = vunpack.c.l.b16 %v1630
    %v1793 = vunpack.c.h.b16 %v1630
    %v1794 = vunpack.c.l.b16 %v1631
    %v1795 = vunpack.c.h.b16 %v1631
    %v1796 = vunpack.c.l.b16 %v1632
    %v1797 = vunpack.c.h.b16 %v1632
    %v1798 = vunpack.c.l.b16 %v1633
    %v1799 = vunpack.c.h.b16 %v1633
    %v1800 = vunpack.c.l.b16 %v1634
    %v1801 = vunpack.c.h.b16 %v1634
    %v1802 = vunpack.c.l.b16 %v1635
    %v1803 = vunpack.c.h.b16 %v1635
    %v1804 = vunpack.c.l.b16 %v1636
    %v1805 = vunpack.c.h.b16 %v1636
    %v1806 = vunpack.c.l.b16 %v1637
    %v1807 = vunpack.c.h.b16 %v1637
    %v1808 = vunpack.c.l.b16 %v1638
    %v1809 = vunpack.c.h.b16 %v1638
    %v1810 = vunpack.c.l.b16 %v1639
    %v1811 = vunpack.c.h.b16 %v1639
    %v1812 = vunpack.c.l.b16 %v1640
    %v1813 = vunpack.c.h.b16 %v1640
    %v1814 = vunpack.c.l.b16 %v1641
    %v1815 = vunpack.c.h.b16 %v1641
    %v1816 = vunpack.c.l.b16 %v1642
    %v1817 = vunpack.c.h.b16 %v1642
    %v1818 = vunpack.c.l.b16 %v1643
    %v1819 = vunpack.c.h.b16 %v1643
    %v1820 = vunpack.c.l.b16 %v1644
    %v1821 = vunpack.c.h.b16 %v1644
    %v1822 = vunpack.c.l.b16 %v1645
    %v1823 = vunpack.c.h.b16 %v1645
    %v1824 = vunpack.c.l.b16 %v1646
    %v1825 = vunpack.c.h.b16 %v1646
    %v1826 = vunpack.c.l.b16 %v1647
    %v1827 = vunpack.c.h.b16 %v1647
    %v1828 = vunpack.c.l.b16 %v1648
    %v1829 = vunpack.c.h.b16 %v1648
    %v1830 = vunpack.c.l.b16 %v1649
    %v1831 = vunpack.c.h.b16 %v1649
    %v1832 = vunpack.c.l.b16 %v1650
    %v1833 = vunpack.c.h.b16 %v1650
    %v1834 = vunpack.c.l.b16 %v1651
    %v1835 = vunpack.c.h.b16 %v1651
    %v1836 = vunpack.c.l.b16 %v1652
    %v1837 = vunpack.c.h.b16 %v1652
    %v1838 = vunpack.c.l.b16 %v1653
    %v1839 = vunpack.c.h.b16 %v1653
    %v1840 = vunpack.c.l.b16 %v1654
    %v1841 = vunpack.c.h.b16 %v1654
    %v1842 = vunpack.c.l.b16 %v1655
    %v1843 = vunpack.c.h.b16 %v1655
    %v1844 = vunpack.c.l.b16 %v1656
    %v1845 = vunpack.c.h.b16 %v1656
    %v1846 = vunpack.c.l.b16 %v1657
    %v1847 = vunpack.c.h.b16 %v1657
    %v1848 = vunpack.c.l.b16 %v1658
    %v1849 = vunpack.c.h.b16 %v1658
    %v1850 = vunpack.c.l.b16 %v1659
    %v1851 = vunpack.c.h.b16 %v1659
    %v1852 = vunpack.c.l.b16 %v1660
    %v1853 = vunpack.c.h.b16 %v1660
    %v1854 = vunpack.c.l.b16 %v1661
    %v1855 = vunpack.c.h.b16 %v1661
    %v1856 = vunpack.c.l.b16 %v1662
    %v1857 = vunpack.c.h.b16 %v1662
    %v1858 = vunpack.c.l.b16 %v1663
    %v1859 = vunpack.c.h.b16 %v1663
    %v1860 = vunpack.c.l.b16 %v1664
    %v1861 = vunpack.c.h.b16 %v1664
    %v1862 = vunpack.c.l.b16 %v1665
    %v1863 = vunpack.c.h.b16 %v1665
    %v1864 = vunpack.c.l.b16 %v1666
    %v1865 = vunpack.c.h.b16 %v1666
    %v1866 = vunpack.c.l.b16 %v1667
    %v1867 = vunpack.c.h.b16 %v1667
    %v1868 = vunpack.c.l.b16 %v1668
    %v1869 = vunpack.c.h.b16 %v1668
    %v1870 = vunpack.c.l.b16 %v1669
    %v1871 = vunpack.c.h.b16 %v1669
    %v1872 = vunpack.c.l.b16 %v1670
    %v1873 = vunpack.c.h.b16 %v1670
    %v1874 = vunpack.c.l.b16 %v1671
    %v1875 = vunpack.c.h.b16 %v1671
    %v1876 = vpack.c.b16 %v1750, %v1748
    %v1877 = vpack.c.b16 %v1751, %v1749
    %v1878 = vpack.c.b16 %v1754, %v1752
    %v1879 = vpack.c.b16 %v1755, %v1753
    %v1880 = vpack.c.b16 %v1758, %v1756
    %v1881 = vpack.c.b16 %v1759, %v1757
    %v1882 = vpack.c.b16 %v1762, %v1760
    %v1883 = vpack.c.b16 %v1763, %v1761
    %v1884 = vpack.c.b16 %v1766, %v1764
    %v1885 = vpack.c.b16 %v1767, %v1765
    %v1886 = vpack.c.b16 %v1770, %v1768
    %v1887 = vpack.c.b16 %v1771, %v1769
    %v1888 = vpack.c.b16 %v1774, %v1772
    %v1889 = vpack.c.b16 %v1775, %v1773
    %v1890 = vpack.c.b16 %v1778, %v1776
    %v1891 = vpack.c.b16 %v1779, %v1777
    %v1892 = vpack.c.b16 %v1782, %v1780
    %v1893 = vpack.c.b16 %v1783, %v1781
    %v1894 = vpack.c.b16 %v1786, %v1784
    %v1895 = vpack.c.b16 %v1787, %v1785
    %v1896 = vpack.c.b16 %v1790, %v1788
    %v1897 = vpack.c.b16 %v1791, %v1789
    %v1898 = vpack.c.b16 %v1794, %v1792
    %v1899 = vpack.c.b16 %v1795, %v1793
    %v1900 = vpack.c.b16 %v1798, %v1796
    %v1901 = vpack.c.b16 %v1799, %v1797
    %v1902 = vpack.c.b16 %v1802, %v1800
    %v1903 = vpack.c.b16 %v1803, %v1801
    %v1904 = vpack.c.b16 %v1806, %v1804
    %v1905 = vpack.c.b16 %v1807, %v1805
    %v1906 = vpack.c.b16 %v1810, %v1808
    %v1907 = vpack.c.b16 %v1811, %v1809
    %v1908 = vpack.c.b16 %v1814, %v1812
    %v1909 = vpack.c.b16 %v1815, %v1813
    %v1910 = vpack.c.b16 %v1818, %v1816
    %v1911 = vpack.c.b16 %v1819, %v1817
    %v1912 = vpack.c.b16 %v1822, %v1820
    %v1913 = vpack.c.b16 %v1823, %v1821
    %v1914 = vpack.c.b16 %v1826, %v1824
    %v1915 = vpack.c.b16 %v1827, %v1825
    %v1916 = vpack.c.b16 %v1830, %v1828
    %v1917 = vpack.c.b16 %v1831, %v1829
    %v1918 = vpack.c.b16 %v1834, %v1832
    %v1919 = vpack.c.b16 %v1835, %v1833
    %v1920 = vpack.c.b16 %v1838, %v1836
    %v1921 = vpack.c.b16 %v1839, %v1837
    %v1922 = vpack.c.b16 %v1842, %v1840
    %v1923 = vpack.c.b16 %v1843, %v1841
    %v1924 = vpack.c.b16 %v1846, %v1844
    %v1925 = vpack.c.b16 %v1847, %v1845
    %v1926 = vpack.c.b16 %v1850, %v1848
    %v1927 = vpack.c.b16 %v1851, %v1849
    %v1928 = vpack.c.b16 %v1854, %v1852
    %v1929 = vpack.c.b16 %v1855, %v1853
    %v1930 = vpack.c.b16 %v1858, %v1856
    %v1931 = vpack.c.b16 %v1859, %v1857
    %v1932 = vpack.c.b16 %v1862, %v1860
    %v1933 = vpack.c.b16 %v1863, %v1861
    %v1934 = vpack.c.b16 %v1866, %v1864
    %v1935 = vpack.c.b16 %v1867, %v1865
    %v1936 = vpack.c.b16 %v1870, %v1868
    %v1937 = vpack.c.b16 %v1871, %v1869
    %v1938 = vpack.c.b16 %v1874, %v1872
    %v1939 = vpack.c.b16 %v1875, %v1873
    %2004 = vmatprep.subr.bf16.mxu0 %v1891
    %2005 = vmatpush1.bf16.msra.mxu0 %v1890
    %2006 = vmatprep.subr.bf16.mxu0 %v1889
    %2007 = vmatpush1.bf16.msra.mxu0 %v1888
    %2008 = vmatprep.subr.bf16.mxu0 %v1887
    %2009 = vmatpush1.bf16.msra.mxu0 %v1886
    %2010 = vmatprep.subr.bf16.mxu0 %v1885
    %2011 = vmatpush1.bf16.msra.mxu0 %v1884
    %2012 = vmatprep.subr.bf16.mxu0 %v1883
    %2013 = vmatpush1.bf16.msra.mxu0 %v1882
    %2014 = vmatprep.subr.bf16.mxu0 %v1881
    %2015 = vmatpush1.bf16.msra.mxu0 %v1880
    %2016 = vmatprep.subr.bf16.mxu0 %v1879
    %2017 = vmatpush1.bf16.msra.mxu0 %v1878
    %2018 = vmatprep.subr.bf16.mxu0 %v1877
    %2019 = vmatpush1.bf16.msra.mxu0 %v1876
    %2020 = vmatprep.subr.bf16.mxu0 %v1907
    %2021 = vmatpush2.bf16.msra.mxu0 %v1906
    %2022 = vmatprep.subr.bf16.mxu0 %v1905
    %2023 = vmatpush2.bf16.msra.mxu0 %v1904
    %2024 = vmatprep.subr.bf16.mxu0 %v1903
    %2025 = vmatpush2.bf16.msra.mxu0 %v1902
    %2026 = vmatprep.subr.bf16.mxu0 %v1901
    %2027 = vmatpush2.bf16.msra.mxu0 %v1900
    %2028 = vmatprep.subr.bf16.mxu0 %v1899
    %2029 = vmatpush2.bf16.msra.mxu0 %v1898
    %2030 = vmatprep.subr.bf16.mxu0 %v1897
    %2031 = vmatpush2.bf16.msra.mxu0 %v1896
    %2032 = vmatprep.subr.bf16.mxu0 %v1895
    %2033 = vmatpush2.bf16.msra.mxu0 %v1894
    %2034 = vmatprep.subr.bf16.mxu0 %v1893
    %2035 = vmatpush2.bf16.msra.mxu0 %v1892
    %2036 = vmatprep.mubr.bf16.mxu0 %v1605
    %2037 = vmatmul.mubr.bf16.gmra.mxu0 %v1604
    %v2038 = vpop.f32.mrf.mxu0
    %v2039 = vadd.f32 %v1677, %v2038
    %v2040 = vpop.f32.mrf.mxu0
    %v2041 = vadd.f32 %v1681, %v2040
    %v2042 = vpop.f32.mrf.mxu0
    %v2043 = vpop.f32.mrf.mxu0
    %2044 = vdwg.mxu0
    %2045 = vmatprep.subr.bf16.mxu0 %v1923
    %2046 = vmatpush1.bf16.msra.mxu0 %v1922
    %2047 = vmatprep.subr.bf16.mxu0 %v1921
    %2048 = vmatpush1.bf16.msra.mxu0 %v1920
    %2049 = vmatprep.subr.bf16.mxu0 %v1919
    %2050 = vmatpush1.bf16.msra.mxu0 %v1918
    %2051 = vmatprep.subr.bf16.mxu0 %v1917
    %2052 = vmatpush1.bf16.msra.mxu0 %v1916
    %2053 = vmatprep.subr.bf16.mxu0 %v1915
    %2054 = vmatpush1.bf16.msra.mxu0 %v1914
    %2055 = vmatprep.subr.bf16.mxu0 %v1913
    %2056 = vmatpush1.bf16.msra.mxu0 %v1912
    %2057 = vmatprep.subr.bf16.mxu0 %v1911
    %2058 = vmatpush1.bf16.msra.mxu0 %v1910
    %2059 = vmatprep.subr.bf16.mxu0 %v1909
    %2060 = vmatpush1.bf16.msra.mxu0 %v1908
    %2061 = vmatprep.subr.bf16.mxu0 %v1939
    %2062 = vmatpush2.bf16.msra.mxu0 %v1938
    %2063 = vmatprep.subr.bf16.mxu0 %v1937
    %2064 = vmatpush2.bf16.msra.mxu0 %v1936
    %2065 = vmatprep.subr.bf16.mxu0 %v1935
    %2066 = vmatpush2.bf16.msra.mxu0 %v1934
    %2067 = vmatprep.subr.bf16.mxu0 %v1933
    %2068 = vmatpush2.bf16.msra.mxu0 %v1932
    %2069 = vmatprep.subr.bf16.mxu0 %v1931
    %2070 = vmatpush2.bf16.msra.mxu0 %v1930
    %2071 = vmatprep.subr.bf16.mxu0 %v1929
    %2072 = vmatpush2.bf16.msra.mxu0 %v1928
    %2073 = vmatprep.subr.bf16.mxu0 %v1927
    %2074 = vmatpush2.bf16.msra.mxu0 %v1926
    %2075 = vmatprep.subr.bf16.mxu0 %v1925
    %2076 = vmatpush2.bf16.msra.mxu0 %v1924
    %2077 = vmatprep.mubr.bf16.mxu0 %v1607
    %2078 = vmatmul.mubr.bf16.gmra.mxu0 %v1606
    %v2079 = vpop.f32.mrf.mxu0
    %v2080 = vadd.f32 %v2039, %v2079
    %v2081 = vpop.f32.mrf.mxu0
    %v2082 = vadd.f32 %v2041, %v2081
    %v2083 = vpop.f32.mrf.mxu0
    %v2084 = vpop.f32.mrf.mxu0
    %2085 = vdwg.mxu0
    %v2086 = vmax.f32 %v2080, 0.0
    %v2087 = vmax.f32 %v2082, 0.0
    %v2088 = vpack.c.bf16 %v2086, %v2086
    %v2089 = vpack.c.bf16 %v2087, %v2087
    %v2090 = vld [vmem:[%s7] sm:$0xf]
    %v2091 = vld [vmem:[%s7 + $0x4] sm:$0xf]
    %v2092 = vld [vmem:[%s7 + $0x8] sm:$0xf]
    %v2093 = vld [vmem:[%s7 + $0xc] sm:$0xf]
    %v2094 = vld [vmem:[%s7 + $0x10] sm:$0xf]
    %v2095 = vld [vmem:[%s7 + $0x14] sm:$0xf]
    %v2096 = vld [vmem:[%s7 + $0x18] sm:$0xf]
    %v2097 = vld [vmem:[%s7 + $0x1c] sm:$0xf]
    %v2098 = vld [vmem:[%s7 + $0x20] sm:$0xf]
    %v2099 = vld [vmem:[%s7 + $0x24] sm:$0xf]
    %v2100 = vld [vmem:[%s7 + $0x28] sm:$0xf]
    %v2101 = vld [vmem:[%s7 + $0x2c] sm:$0xf]
    %v2102 = vld [vmem:[%s7 + $0x30] sm:$0xf]
    %v2103 = vld [vmem:[%s7 + $0x34] sm:$0xf]
    %v2104 = vld [vmem:[%s7 + $0x38] sm:$0xf]
    %v2105 = vld [vmem:[%s7 + $0x3c] sm:$0xf]
    %v2106 = vld [vmem:[%s7 + $0x40] sm:$0xf]
    %v2107 = vld [vmem:[%s7 + $0x44] sm:$0xf]
    %v2108 = vld [vmem:[%s7 + $0x48] sm:$0xf]
    %v2109 = vld [vmem:[%s7 + $0x4c] sm:$0xf]
    %v2110 = vld [vmem:[%s7 + $0x50] sm:$0xf]
    %v2111 = vld [vmem:[%s7 + $0x54] sm:$0xf]
    %v2112 = vld [vmem:[%s7 + $0x58] sm:$0xf]
    %v2113 = vld [vmem:[%s7 + $0x5c] sm:$0xf]
    %v2114 = vld [vmem:[%s7 + $0x60] sm:$0xf]
    %v2115 = vld [vmem:[%s7 + $0x64] sm:$0xf]
    %v2116 = vld [vmem:[%s7 + $0x68] sm:$0xf]
    %v2117 = vld [vmem:[%s7 + $0x6c] sm:$0xf]
    %v2118 = vld [vmem:[%s7 + $0x70] sm:$0xf]
    %v2119 = vld [vmem:[%s7 + $0x74] sm:$0xf]
    %v2120 = vld [vmem:[%s7 + $0x78] sm:$0xf]
    %v2121 = vld [vmem:[%s7 + $0x7c] sm:$0xf]
    %v2122 = vld [vmem:[%s8] sm:$0x1]
    %v2124 = vlaneseq
    %v2125 = vshrl.u32 %v2124, 7
    %v2126 = vsub.s32 0, %v2125
    %v2127 = vrot.slane %v2122, %v2126
    %v2161 = vunpack.c.l.b16 %v2090
    %v2162 = vunpack.c.l.b16 %v2091
    %v2163 = vunpack.c.l.b16 %v2092
    %v2164 = vunpack.c.l.b16 %v2093
    %v2165 = vunpack.c.l.b16 %v2094
    %v2166 = vunpack.c.l.b16 %v2095
    %v2167 = vunpack.c.l.b16 %v2096
    %v2168 = vunpack.c.l.b16 %v2097
    %v2169 = vunpack.c.l.b16 %v2098
    %v2170 = vunpack.c.l.b16 %v2099
    %v2171 = vunpack.c.l.b16 %v2100
    %v2172 = vunpack.c.l.b16 %v2101
    %v2173 = vunpack.c.l.b16 %v2102
    %v2174 = vunpack.c.l.b16 %v2103
    %v2175 = vunpack.c.l.b16 %v2104
    %v2176 = vunpack.c.l.b16 %v2105
    %v2177 = vunpack.c.l.b16 %v2106
    %v2178 = vunpack.c.l.b16 %v2107
    %v2179 = vunpack.c.l.b16 %v2108
    %v2180 = vunpack.c.l.b16 %v2109
    %v2181 = vunpack.c.l.b16 %v2110
    %v2182 = vunpack.c.l.b16 %v2111
    %v2183 = vunpack.c.l.b16 %v2112
    %v2184 = vunpack.c.l.b16 %v2113
    %v2185 = vunpack.c.l.b16 %v2114
    %v2186 = vunpack.c.l.b16 %v2115
    %v2187 = vunpack.c.l.b16 %v2116
    %v2188 = vunpack.c.l.b16 %v2117
    %v2189 = vunpack.c.l.b16 %v2118
    %v2190 = vunpack.c.l.b16 %v2119
    %v2191 = vunpack.c.l.b16 %v2120
    %v2192 = vunpack.c.l.b16 %v2121
    %v2193 = vpack.c.b16 %v2162, %v2161
    %v2194 = vpack.c.b16 %v2164, %v2163
    %v2195 = vpack.c.b16 %v2166, %v2165
    %v2196 = vpack.c.b16 %v2168, %v2167
    %v2197 = vpack.c.b16 %v2170, %v2169
    %v2198 = vpack.c.b16 %v2172, %v2171
    %v2199 = vpack.c.b16 %v2174, %v2173
    %v2200 = vpack.c.b16 %v2176, %v2175
    %v2201 = vpack.c.b16 %v2178, %v2177
    %v2202 = vpack.c.b16 %v2180, %v2179
    %v2203 = vpack.c.b16 %v2182, %v2181
    %v2204 = vpack.c.b16 %v2184, %v2183
    %v2205 = vpack.c.b16 %v2186, %v2185
    %v2206 = vpack.c.b16 %v2188, %v2187
    %v2207 = vpack.c.b16 %v2190, %v2189
    %v2208 = vpack.c.b16 %v2192, %v2191
    %2225 = vmatprep.subr.bf16.mxu0 0
    %2226 = vmatpush1.bf16.msra.mxu0 %v2200
    %2227 = vmatprep.subr.bf16.mxu0 0
    %2228 = vmatpush1.bf16.msra.mxu0 %v2199
    %2229 = vmatprep.subr.bf16.mxu0 0
    %2230 = vmatpush1.bf16.msra.mxu0 %v2198
    %2231 = vmatprep.subr.bf16.mxu0 0
    %2232 = vmatpush1.bf16.msra.mxu0 %v2197
    %2233 = vmatprep.subr.bf16.mxu0 0
    %2234 = vmatpush1.bf16.msra.mxu0 %v2196
    %2235 = vmatprep.subr.bf16.mxu0 0
    %2236 = vmatpush1.bf16.msra.mxu0 %v2195
    %2237 = vmatprep.subr.bf16.mxu0 0
    %2238 = vmatpush1.bf16.msra.mxu0 %v2194
    %2239 = vmatprep.subr.bf16.mxu0 0
    %2240 = vmatpush1.bf16.msra.mxu0 %v2193
    %2241 = vmatprep.subr.bf16.mxu0 0
    %2242 = vmatpush2.bf16.msra.mxu0 %v2208
    %2243 = vmatprep.subr.bf16.mxu0 0
    %2244 = vmatpush2.bf16.msra.mxu0 %v2207
    %2245 = vmatprep.subr.bf16.mxu0 0
    %2246 = vmatpush2.bf16.msra.mxu0 %v2206
    %2247 = vmatprep.subr.bf16.mxu0 0
    %2248 = vmatpush2.bf16.msra.mxu0 %v2205
    %2249 = vmatprep.subr.bf16.mxu0 0
    %2250 = vmatpush2.bf16.msra.mxu0 %v2204
    %2251 = vmatprep.subr.bf16.mxu0 0
    %2252 = vmatpush2.bf16.msra.mxu0 %v2203
    %2253 = vmatprep.subr.bf16.mxu0 0
    %2254 = vmatpush2.bf16.msra.mxu0 %v2202
    %2255 = vmatprep.subr.bf16.mxu0 0
    %2256 = vmatpush2.bf16.msra.mxu0 %v2201
    %2257 = vmatprep.mubr.bf16.mxu0 %v2089
    %2258 = vmatmul.mubr.bf16.gmra.mxu0 %v2088
    %v2259 = vpop.f32.mrf.mxu0
    %v2260 = vadd.f32 %v2127, %v2259
    %v2261 = vpop.f32.mrf.mxu0
    %v2262 = vpop.f32.mrf.mxu0
    %v2263 = vpop.f32.mrf.mxu0
    %2264 = vdwg.mxu0
    %v2265 = vmax.f32 %v2260, 0.0
    %s2266 = scalar_lea.vmem %s7, 128
    %v2267 = vld [vmem:[%s2266] sm:$0xf]
    %v2268 = vld [vmem:[%s2266 + $0x4] sm:$0xf]
    %v2269 = vld [vmem:[%s2266 + $0x8] sm:$0xf]
    %v2270 = vld [vmem:[%s2266 + $0xc] sm:$0xf]
    %v2271 = vld [vmem:[%s2266 + $0x10] sm:$0xf]
    %v2272 = vld [vmem:[%s2266 + $0x14] sm:$0xf]
    %v2273 = vld [vmem:[%s2266 + $0x18] sm:$0xf]
    %v2274 = vld [vmem:[%s2266 + $0x1c] sm:$0xf]
    %v2275 = vld [vmem:[%s2266 + $0x20] sm:$0xf]
    %v2276 = vld [vmem:[%s2266 + $0x24] sm:$0xf]
    %v2277 = vld [vmem:[%s2266 + $0x28] sm:$0xf]
    %v2278 = vld [vmem:[%s2266 + $0x2c] sm:$0xf]
    %v2279 = vld [vmem:[%s2266 + $0x30] sm:$0xf]
    %v2280 = vld [vmem:[%s2266 + $0x34] sm:$0xf]
    %v2281 = vld [vmem:[%s2266 + $0x38] sm:$0xf]
    %v2282 = vld [vmem:[%s2266 + $0x3c] sm:$0xf]
    %v2283 = vld [vmem:[%s2266 + $0x40] sm:$0xf]
    %v2284 = vld [vmem:[%s2266 + $0x44] sm:$0xf]
    %v2285 = vld [vmem:[%s2266 + $0x48] sm:$0xf]
    %v2286 = vld [vmem:[%s2266 + $0x4c] sm:$0xf]
    %v2287 = vld [vmem:[%s2266 + $0x50] sm:$0xf]
    %v2288 = vld [vmem:[%s2266 + $0x54] sm:$0xf]
    %v2289 = vld [vmem:[%s2266 + $0x58] sm:$0xf]
    %v2290 = vld [vmem:[%s2266 + $0x5c] sm:$0xf]
    %v2291 = vld [vmem:[%s2266 + $0x60] sm:$0xf]
    %v2292 = vld [vmem:[%s2266 + $0x64] sm:$0xf]
    %v2293 = vld [vmem:[%s2266 + $0x68] sm:$0xf]
    %v2294 = vld [vmem:[%s2266 + $0x6c] sm:$0xf]
    %v2295 = vld [vmem:[%s2266 + $0x70] sm:$0xf]
    %v2296 = vld [vmem:[%s2266 + $0x74] sm:$0xf]
    %v2297 = vld [vmem:[%s2266 + $0x78] sm:$0xf]
    %v2298 = vld [vmem:[%s2266 + $0x7c] sm:$0xf]
    %s2299 = scalar_lea.vmem %s8, 1
    %v2300 = vld [vmem:[%s2299] sm:$0x1]
    %v2302 = vlaneseq
    %v2303 = vshrl.u32 %v2302, 7
    %v2304 = vsub.s32 0, %v2303
    %v2305 = vrot.slane %v2300, %v2304
    %v2339 = vunpack.c.l.b16 %v2267
    %v2340 = vunpack.c.l.b16 %v2268
    %v2341 = vunpack.c.l.b16 %v2269
    %v2342 = vunpack.c.l.b16 %v2270
    %v2343 = vunpack.c.l.b16 %v2271
    %v2344 = vunpack.c.l.b16 %v2272
    %v2345 = vunpack.c.l.b16 %v2273
    %v2346 = vunpack.c.l.b16 %v2274
    %v2347 = vunpack.c.l.b16 %v2275
    %v2348 = vunpack.c.l.b16 %v2276
    %v2349 = vunpack.c.l.b16 %v2277
    %v2350 = vunpack.c.l.b16 %v2278
    %v2351 = vunpack.c.l.b16 %v2279
    %v2352 = vunpack.c.l.b16 %v2280
    %v2353 = vunpack.c.l.b16 %v2281
    %v2354 = vunpack.c.l.b16 %v2282
    %v2355 = vunpack.c.l.b16 %v2283
    %v2356 = vunpack.c.l.b16 %v2284
    %v2357 = vunpack.c.l.b16 %v2285
    %v2358 = vunpack.c.l.b16 %v2286
    %v2359 = vunpack.c.l.b16 %v2287
    %v2360 = vunpack.c.l.b16 %v2288
    %v2361 = vunpack.c.l.b16 %v2289
    %v2362 = vunpack.c.l.b16 %v2290
    %v2363 = vunpack.c.l.b16 %v2291
    %v2364 = vunpack.c.l.b16 %v2292
    %v2365 = vunpack.c.l.b16 %v2293
    %v2366 = vunpack.c.l.b16 %v2294
    %v2367 = vunpack.c.l.b16 %v2295
    %v2368 = vunpack.c.l.b16 %v2296
    %v2369 = vunpack.c.l.b16 %v2297
    %v2370 = vunpack.c.l.b16 %v2298
    %v2371 = vpack.c.b16 %v2340, %v2339
    %v2372 = vpack.c.b16 %v2342, %v2341
    %v2373 = vpack.c.b16 %v2344, %v2343
    %v2374 = vpack.c.b16 %v2346, %v2345
    %v2375 = vpack.c.b16 %v2348, %v2347
    %v2376 = vpack.c.b16 %v2350, %v2349
    %v2377 = vpack.c.b16 %v2352, %v2351
    %v2378 = vpack.c.b16 %v2354, %v2353
    %v2379 = vpack.c.b16 %v2356, %v2355
    %v2380 = vpack.c.b16 %v2358, %v2357
    %v2381 = vpack.c.b16 %v2360, %v2359
    %v2382 = vpack.c.b16 %v2362, %v2361
    %v2383 = vpack.c.b16 %v2364, %v2363
    %v2384 = vpack.c.b16 %v2366, %v2365
    %v2385 = vpack.c.b16 %v2368, %v2367
    %v2386 = vpack.c.b16 %v2370, %v2369
    %2403 = vmatprep.subr.bf16.mxu0 0
    %2404 = vmatpush1.bf16.msra.mxu0 %v2378
    %2405 = vmatprep.subr.bf16.mxu0 0
    %2406 = vmatpush1.bf16.msra.mxu0 %v2377
    %2407 = vmatprep.subr.bf16.mxu0 0
    %2408 = vmatpush1.bf16.msra.mxu0 %v2376
    %2409 = vmatprep.subr.bf16.mxu0 0
    %2410 = vmatpush1.bf16.msra.mxu0 %v2375
    %2411 = vmatprep.subr.bf16.mxu0 0
    %2412 = vmatpush1.bf16.msra.mxu0 %v2374
    %2413 = vmatprep.subr.bf16.mxu0 0
    %2414 = vmatpush1.bf16.msra.mxu0 %v2373
    %2415 = vmatprep.subr.bf16.mxu0 0
    %2416 = vmatpush1.bf16.msra.mxu0 %v2372
    %2417 = vmatprep.subr.bf16.mxu0 0
    %2418 = vmatpush1.bf16.msra.mxu0 %v2371
    %2419 = vmatprep.subr.bf16.mxu0 0
    %2420 = vmatpush2.bf16.msra.mxu0 %v2386
    %2421 = vmatprep.subr.bf16.mxu0 0
    %2422 = vmatpush2.bf16.msra.mxu0 %v2385
    %2423 = vmatprep.subr.bf16.mxu0 0
    %2424 = vmatpush2.bf16.msra.mxu0 %v2384
    %2425 = vmatprep.subr.bf16.mxu0 0
    %2426 = vmatpush2.bf16.msra.mxu0 %v2383
    %2427 = vmatprep.subr.bf16.mxu0 0
    %2428 = vmatpush2.bf16.msra.mxu0 %v2382
    %2429 = vmatprep.subr.bf16.mxu0 0
    %2430 = vmatpush2.bf16.msra.mxu0 %v2381
    %2431 = vmatprep.subr.bf16.mxu0 0
    %2432 = vmatpush2.bf16.msra.mxu0 %v2380
    %2433 = vmatprep.subr.bf16.mxu0 0
    %2434 = vmatpush2.bf16.msra.mxu0 %v2379
    %2435 = vmatprep.mubr.bf16.mxu0 %v2089
    %2436 = vmatmul.mubr.bf16.gmra.mxu0 %v2088
    %v2437 = vpop.f32.mrf.mxu0
    %v2438 = vadd.f32 %v2305, %v2437
    %v2439 = vpop.f32.mrf.mxu0
    %v2440 = vpop.f32.mrf.mxu0
    %v2441 = vpop.f32.mrf.mxu0
    %2442 = vdwg.mxu0
    %v2443 = vmax.f32 %v2438, 0.0
    %s2444 = scalar_lea.vmem %s7, 256
    %v2445 = vld [vmem:[%s2444] sm:$0xf]
    %v2446 = vld [vmem:[%s2444 + $0x4] sm:$0xf]
    %v2447 = vld [vmem:[%s2444 + $0x8] sm:$0xf]
    %v2448 = vld [vmem:[%s2444 + $0xc] sm:$0xf]
    %v2449 = vld [vmem:[%s2444 + $0x10] sm:$0xf]
    %v2450 = vld [vmem:[%s2444 + $0x14] sm:$0xf]
    %v2451 = vld [vmem:[%s2444 + $0x18] sm:$0xf]
    %v2452 = vld [vmem:[%s2444 + $0x1c] sm:$0xf]
    %v2453 = vld [vmem:[%s2444 + $0x20] sm:$0xf]
    %v2454 = vld [vmem:[%s2444 + $0x24] sm:$0xf]
    %v2455 = vld [vmem:[%s2444 + $0x28] sm:$0xf]
    %v2456 = vld [vmem:[%s2444 + $0x2c] sm:$0xf]
    %v2457 = vld [vmem:[%s2444 + $0x30] sm:$0xf]
    %v2458 = vld [vmem:[%s2444 + $0x34] sm:$0xf]
    %v2459 = vld [vmem:[%s2444 + $0x38] sm:$0xf]
    %v2460 = vld [vmem:[%s2444 + $0x3c] sm:$0xf]
    %v2461 = vld [vmem:[%s2444 + $0x40] sm:$0xf]
    %v2462 = vld [vmem:[%s2444 + $0x44] sm:$0xf]
    %v2463 = vld [vmem:[%s2444 + $0x48] sm:$0xf]
    %v2464 = vld [vmem:[%s2444 + $0x4c] sm:$0xf]
    %v2465 = vld [vmem:[%s2444 + $0x50] sm:$0xf]
    %v2466 = vld [vmem:[%s2444 + $0x54] sm:$0xf]
    %v2467 = vld [vmem:[%s2444 + $0x58] sm:$0xf]
    %v2468 = vld [vmem:[%s2444 + $0x5c] sm:$0xf]
    %v2469 = vld [vmem:[%s2444 + $0x60] sm:$0xf]
    %v2470 = vld [vmem:[%s2444 + $0x64] sm:$0xf]
    %v2471 = vld [vmem:[%s2444 + $0x68] sm:$0xf]
    %v2472 = vld [vmem:[%s2444 + $0x6c] sm:$0xf]
    %v2473 = vld [vmem:[%s2444 + $0x70] sm:$0xf]
    %v2474 = vld [vmem:[%s2444 + $0x74] sm:$0xf]
    %v2475 = vld [vmem:[%s2444 + $0x78] sm:$0xf]
    %v2476 = vld [vmem:[%s2444 + $0x7c] sm:$0xf]
    %s2477 = scalar_lea.vmem %s8, 2
    %v2478 = vld [vmem:[%s2477] sm:$0x1]
    %v2480 = vlaneseq
    %v2481 = vshrl.u32 %v2480, 7
    %v2482 = vsub.s32 0, %v2481
    %v2483 = vrot.slane %v2478, %v2482
    %v2517 = vunpack.c.l.b16 %v2445
    %v2518 = vunpack.c.l.b16 %v2446
    %v2519 = vunpack.c.l.b16 %v2447
    %v2520 = vunpack.c.l.b16 %v2448
    %v2521 = vunpack.c.l.b16 %v2449
    %v2522 = vunpack.c.l.b16 %v2450
    %v2523 = vunpack.c.l.b16 %v2451
    %v2524 = vunpack.c.l.b16 %v2452
    %v2525 = vunpack.c.l.b16 %v2453
    %v2526 = vunpack.c.l.b16 %v2454
    %v2527 = vunpack.c.l.b16 %v2455
    %v2528 = vunpack.c.l.b16 %v2456
    %v2529 = vunpack.c.l.b16 %v2457
    %v2530 = vunpack.c.l.b16 %v2458
    %v2531 = vunpack.c.l.b16 %v2459
    %v2532 = vunpack.c.l.b16 %v2460
    %v2533 = vunpack.c.l.b16 %v2461
    %v2534 = vunpack.c.l.b16 %v2462
    %v2535 = vunpack.c.l.b16 %v2463
    %v2536 = vunpack.c.l.b16 %v2464
    %v2537 = vunpack.c.l.b16 %v2465
    %v2538 = vunpack.c.l.b16 %v2466
    %v2539 = vunpack.c.l.b16 %v2467
    %v2540 = vunpack.c.l.b16 %v2468
    %v2541 = vunpack.c.l.b16 %v2469
    %v2542 = vunpack.c.l.b16 %v2470
    %v2543 = vunpack.c.l.b16 %v2471
    %v2544 = vunpack.c.l.b16 %v2472
    %v2545 = vunpack.c.l.b16 %v2473
    %v2546 = vunpack.c.l.b16 %v2474
    %v2547 = vunpack.c.l.b16 %v2475
    %v2548 = vunpack.c.l.b16 %v2476
    %v2549 = vpack.c.b16 %v2518, %v2517
    %v2550 = vpack.c.b16 %v2520, %v2519
    %v2551 = vpack.c.b16 %v2522, %v2521
    %v2552 = vpack.c.b16 %v2524, %v2523
    %v2553 = vpack.c.b16 %v2526, %v2525
    %v2554 = vpack.c.b16 %v2528, %v2527
    %v2555 = vpack.c.b16 %v2530, %v2529
    %v2556 = vpack.c.b16 %v2532, %v2531
    %v2557 = vpack.c.b16 %v2534, %v2533
    %v2558 = vpack.c.b16 %v2536, %v2535
    %v2559 = vpack.c.b16 %v2538, %v2537
    %v2560 = vpack.c.b16 %v2540, %v2539
    %v2561 = vpack.c.b16 %v2542, %v2541
    %v2562 = vpack.c.b16 %v2544, %v2543
    %v2563 = vpack.c.b16 %v2546, %v2545
    %v2564 = vpack.c.b16 %v2548, %v2547
    %2581 = vmatprep.subr.bf16.mxu0 0
    %2582 = vmatpush1.bf16.msra.mxu0 %v2556
    %2583 = vmatprep.subr.bf16.mxu0 0
    %2584 = vmatpush1.bf16.msra.mxu0 %v2555
    %2585 = vmatprep.subr.bf16.mxu0 0
    %2586 = vmatpush1.bf16.msra.mxu0 %v2554
    %2587 = vmatprep.subr.bf16.mxu0 0
    %2588 = vmatpush1.bf16.msra.mxu0 %v2553
    %2589 = vmatprep.subr.bf16.mxu0 0
    %2590 = vmatpush1.bf16.msra.mxu0 %v2552
    %2591 = vmatprep.subr.bf16.mxu0 0
    %2592 = vmatpush1.bf16.msra.mxu0 %v2551
    %2593 = vmatprep.subr.bf16.mxu0 0
    %2594 = vmatpush1.bf16.msra.mxu0 %v2550
    %2595 = vmatprep.subr.bf16.mxu0 0
    %2596 = vmatpush1.bf16.msra.mxu0 %v2549
    %2597 = vmatprep.subr.bf16.mxu0 0
    %2598 = vmatpush2.bf16.msra.mxu0 %v2564
    %2599 = vmatprep.subr.bf16.mxu0 0
    %2600 = vmatpush2.bf16.msra.mxu0 %v2563
    %2601 = vmatprep.subr.bf16.mxu0 0
    %2602 = vmatpush2.bf16.msra.mxu0 %v2562
    %2603 = vmatprep.subr.bf16.mxu0 0
    %2604 = vmatpush2.bf16.msra.mxu0 %v2561
    %2605 = vmatprep.subr.bf16.mxu0 0
    %2606 = vmatpush2.bf16.msra.mxu0 %v2560
    %2607 = vmatprep.subr.bf16.mxu0 0
    %2608 = vmatpush2.bf16.msra.mxu0 %v2559
    %2609 = vmatprep.subr.bf16.mxu0 0
    %2610 = vmatpush2.bf16.msra.mxu0 %v2558
    %2611 = vmatprep.subr.bf16.mxu0 0
    %2612 = vmatpush2.bf16.msra.mxu0 %v2557
    %2613 = vmatprep.mubr.bf16.mxu0 %v2089
    %2614 = vmatmul.mubr.bf16.gmra.mxu0 %v2088
    %v2615 = vpop.f32.mrf.mxu0
    %v2616 = vadd.f32 %v2483, %v2615
    %v2617 = vpop.f32.mrf.mxu0
    %v2618 = vpop.f32.mrf.mxu0
    %v2619 = vpop.f32.mrf.mxu0
    %2620 = vdwg.mxu0
    %v2621 = vmax.f32 %v2616, 0.0
    %s2622 = scalar_lea.vmem %s7, 384
    %v2623 = vld [vmem:[%s2622] sm:$0xf]
    %v2624 = vld [vmem:[%s2622 + $0x4] sm:$0xf]
    %v2625 = vld [vmem:[%s2622 + $0x8] sm:$0xf]
    %v2626 = vld [vmem:[%s2622 + $0xc] sm:$0xf]
    %v2627 = vld [vmem:[%s2622 + $0x10] sm:$0xf]
    %v2628 = vld [vmem:[%s2622 + $0x14] sm:$0xf]
    %v2629 = vld [vmem:[%s2622 + $0x18] sm:$0xf]
    %v2630 = vld [vmem:[%s2622 + $0x1c] sm:$0xf]
    %v2631 = vld [vmem:[%s2622 + $0x20] sm:$0xf]
    %v2632 = vld [vmem:[%s2622 + $0x24] sm:$0xf]
    %v2633 = vld [vmem:[%s2622 + $0x28] sm:$0xf]
    %v2634 = vld [vmem:[%s2622 + $0x2c] sm:$0xf]
    %v2635 = vld [vmem:[%s2622 + $0x30] sm:$0xf]
    %v2636 = vld [vmem:[%s2622 + $0x34] sm:$0xf]
    %v2637 = vld [vmem:[%s2622 + $0x38] sm:$0xf]
    %v2638 = vld [vmem:[%s2622 + $0x3c] sm:$0xf]
    %v2639 = vld [vmem:[%s2622 + $0x40] sm:$0xf]
    %v2640 = vld [vmem:[%s2622 + $0x44] sm:$0xf]
    %v2641 = vld [vmem:[%s2622 + $0x48] sm:$0xf]
    %v2642 = vld [vmem:[%s2622 + $0x4c] sm:$0xf]
    %v2643 = vld [vmem:[%s2622 + $0x50] sm:$0xf]
    %v2644 = vld [vmem:[%s2622 + $0x54] sm:$0xf]
    %v2645 = vld [vmem:[%s2622 + $0x58] sm:$0xf]
    %v2646 = vld [vmem:[%s2622 + $0x5c] sm:$0xf]
    %v2647 = vld [vmem:[%s2622 + $0x60] sm:$0xf]
    %v2648 = vld [vmem:[%s2622 + $0x64] sm:$0xf]
    %v2649 = vld [vmem:[%s2622 + $0x68] sm:$0xf]
    %v2650 = vld [vmem:[%s2622 + $0x6c] sm:$0xf]
    %v2651 = vld [vmem:[%s2622 + $0x70] sm:$0xf]
    %v2652 = vld [vmem:[%s2622 + $0x74] sm:$0xf]
    %v2653 = vld [vmem:[%s2622 + $0x78] sm:$0xf]
    %v2654 = vld [vmem:[%s2622 + $0x7c] sm:$0xf]
    %s2655 = scalar_lea.vmem %s8, 3
    %v2656 = vld [vmem:[%s2655] sm:$0x1]
    %v2658 = vlaneseq
    %v2659 = vshrl.u32 %v2658, 7
    %v2660 = vsub.s32 0, %v2659
    %v2661 = vrot.slane %v2656, %v2660
    %v2695 = vunpack.c.l.b16 %v2623
    %v2696 = vunpack.c.l.b16 %v2624
    %v2697 = vunpack.c.l.b16 %v2625
    %v2698 = vunpack.c.l.b16 %v2626
    %v2699 = vunpack.c.l.b16 %v2627
    %v2700 = vunpack.c.l.b16 %v2628
    %v2701 = vunpack.c.l.b16 %v2629
    %v2702 = vunpack.c.l.b16 %v2630
    %v2703 = vunpack.c.l.b16 %v2631
    %v2704 = vunpack.c.l.b16 %v2632
    %v2705 = vunpack.c.l.b16 %v2633
    %v2706 = vunpack.c.l.b16 %v2634
    %v2707 = vunpack.c.l.b16 %v2635
    %v2708 = vunpack.c.l.b16 %v2636
    %v2709 = vunpack.c.l.b16 %v2637
    %v2710 = vunpack.c.l.b16 %v2638
    %v2711 = vunpack.c.l.b16 %v2639
    %v2712 = vunpack.c.l.b16 %v2640
    %v2713 = vunpack.c.l.b16 %v2641
    %v2714 = vunpack.c.l.b16 %v2642
    %v2715 = vunpack.c.l.b16 %v2643
    %v2716 = vunpack.c.l.b16 %v2644
    %v2717 = vunpack.c.l.b16 %v2645
    %v2718 = vunpack.c.l.b16 %v2646
    %v2719 = vunpack.c.l.b16 %v2647
    %v2720 = vunpack.c.l.b16 %v2648
    %v2721 = vunpack.c.l.b16 %v2649
    %v2722 = vunpack.c.l.b16 %v2650
    %v2723 = vunpack.c.l.b16 %v2651
    %v2724 = vunpack.c.l.b16 %v2652
    %v2725 = vunpack.c.l.b16 %v2653
    %v2726 = vunpack.c.l.b16 %v2654
    %v2727 = vpack.c.b16 %v2696, %v2695
    %v2728 = vpack.c.b16 %v2698, %v2697
    %v2729 = vpack.c.b16 %v2700, %v2699
    %v2730 = vpack.c.b16 %v2702, %v2701
    %v2731 = vpack.c.b16 %v2704, %v2703
    %v2732 = vpack.c.b16 %v2706, %v2705
    %v2733 = vpack.c.b16 %v2708, %v2707
    %v2734 = vpack.c.b16 %v2710, %v2709
    %v2735 = vpack.c.b16 %v2712, %v2711
    %v2736 = vpack.c.b16 %v2714, %v2713
    %v2737 = vpack.c.b16 %v2716, %v2715
    %v2738 = vpack.c.b16 %v2718, %v2717
    %v2739 = vpack.c.b16 %v2720, %v2719
    %v2740 = vpack.c.b16 %v2722, %v2721
    %v2741 = vpack.c.b16 %v2724, %v2723
    %v2742 = vpack.c.b16 %v2726, %v2725
    %2759 = vmatprep.subr.bf16.mxu0 0
    %2760 = vmatpush1.bf16.msra.mxu0 %v2734
    %2761 = vmatprep.subr.bf16.mxu0 0
    %2762 = vmatpush1.bf16.msra.mxu0 %v2733
    %2763 = vmatprep.subr.bf16.mxu0 0
    %2764 = vmatpush1.bf16.msra.mxu0 %v2732
    %2765 = vmatprep.subr.bf16.mxu0 0
    %2766 = vmatpush1.bf16.msra.mxu0 %v2731
    %2767 = vmatprep.subr.bf16.mxu0 0
    %2768 = vmatpush1.bf16.msra.mxu0 %v2730
    %2769 = vmatprep.subr.bf16.mxu0 0
    %2770 = vmatpush1.bf16.msra.mxu0 %v2729
    %2771 = vmatprep.subr.bf16.mxu0 0
    %2772 = vmatpush1.bf16.msra.mxu0 %v2728
    %2773 = vmatprep.subr.bf16.mxu0 0
    %2774 = vmatpush1.bf16.msra.mxu0 %v2727
    %2775 = vmatprep.subr.bf16.mxu0 0
    %2776 = vmatpush2.bf16.msra.mxu0 %v2742
    %2777 = vmatprep.subr.bf16.mxu0 0
    %2778 = vmatpush2.bf16.msra.mxu0 %v2741
    %2779 = vmatprep.subr.bf16.mxu0 0
    %2780 = vmatpush2.bf16.msra.mxu0 %v2740
    %2781 = vmatprep.subr.bf16.mxu0 0
    %2782 = vmatpush2.bf16.msra.mxu0 %v2739
    %2783 = vmatprep.subr.bf16.mxu0 0
    %2784 = vmatpush2.bf16.msra.mxu0 %v2738
    %2785 = vmatprep.subr.bf16.mxu0 0
    %2786 = vmatpush2.bf16.msra.mxu0 %v2737
    %2787 = vmatprep.subr.bf16.mxu0 0
    %2788 = vmatpush2.bf16.msra.mxu0 %v2736
    %2789 = vmatprep.subr.bf16.mxu0 0
    %2790 = vmatpush2.bf16.msra.mxu0 %v2735
    %2791 = vmatprep.mubr.bf16.mxu0 %v2089
    %2792 = vmatmul.mubr.bf16.gmra.mxu0 %v2088
    %v2793 = vpop.f32.mrf.mxu0
    %v2794 = vadd.f32 %v2661, %v2793
    %v2795 = vpop.f32.mrf.mxu0
    %v2796 = vpop.f32.mrf.mxu0
    %v2797 = vpop.f32.mrf.mxu0
    %2798 = vdwg.mxu0
    %v2799 = vmax.f32 %v2794, 0.0
    %s2800 = scalar_lea.vmem %s7, 512
    %v2801 = vld [vmem:[%s2800] sm:$0xf]
    %v2802 = vld [vmem:[%s2800 + $0x4] sm:$0xf]
    %v2803 = vld [vmem:[%s2800 + $0x8] sm:$0xf]
    %v2804 = vld [vmem:[%s2800 + $0xc] sm:$0xf]
    %v2805 = vld [vmem:[%s2800 + $0x10] sm:$0xf]
    %v2806 = vld [vmem:[%s2800 + $0x14] sm:$0xf]
    %v2807 = vld [vmem:[%s2800 + $0x18] sm:$0xf]
    %v2808 = vld [vmem:[%s2800 + $0x1c] sm:$0xf]
    %v2809 = vld [vmem:[%s2800 + $0x20] sm:$0xf]
    %v2810 = vld [vmem:[%s2800 + $0x24] sm:$0xf]
    %v2811 = vld [vmem:[%s2800 + $0x28] sm:$0xf]
    %v2812 = vld [vmem:[%s2800 + $0x2c] sm:$0xf]
    %v2813 = vld [vmem:[%s2800 + $0x30] sm:$0xf]
    %v2814 = vld [vmem:[%s2800 + $0x34] sm:$0xf]
    %v2815 = vld [vmem:[%s2800 + $0x38] sm:$0xf]
    %v2816 = vld [vmem:[%s2800 + $0x3c] sm:$0xf]
    %v2817 = vld [vmem:[%s2800 + $0x40] sm:$0xf]
    %v2818 = vld [vmem:[%s2800 + $0x44] sm:$0xf]
    %v2819 = vld [vmem:[%s2800 + $0x48] sm:$0xf]
    %v2820 = vld [vmem:[%s2800 + $0x4c] sm:$0xf]
    %v2821 = vld [vmem:[%s2800 + $0x50] sm:$0xf]
    %v2822 = vld [vmem:[%s2800 + $0x54] sm:$0xf]
    %v2823 = vld [vmem:[%s2800 + $0x58] sm:$0xf]
    %v2824 = vld [vmem:[%s2800 + $0x5c] sm:$0xf]
    %v2825 = vld [vmem:[%s2800 + $0x60] sm:$0xf]
    %v2826 = vld [vmem:[%s2800 + $0x64] sm:$0xf]
    %v2827 = vld [vmem:[%s2800 + $0x68] sm:$0xf]
    %v2828 = vld [vmem:[%s2800 + $0x6c] sm:$0xf]
    %v2829 = vld [vmem:[%s2800 + $0x70] sm:$0xf]
    %v2830 = vld [vmem:[%s2800 + $0x74] sm:$0xf]
    %v2831 = vld [vmem:[%s2800 + $0x78] sm:$0xf]
    %v2832 = vld [vmem:[%s2800 + $0x7c] sm:$0xf]
    %s2833 = scalar_lea.vmem %s8, 4
    %v2834 = vld [vmem:[%s2833] sm:$0x1]
    %v2836 = vlaneseq
    %v2837 = vshrl.u32 %v2836, 7
    %v2838 = vsub.s32 0, %v2837
    %v2839 = vrot.slane %v2834, %v2838
    %v2873 = vunpack.c.l.b16 %v2801
    %v2874 = vunpack.c.l.b16 %v2802
    %v2875 = vunpack.c.l.b16 %v2803
    %v2876 = vunpack.c.l.b16 %v2804
    %v2877 = vunpack.c.l.b16 %v2805
    %v2878 = vunpack.c.l.b16 %v2806
    %v2879 = vunpack.c.l.b16 %v2807
    %v2880 = vunpack.c.l.b16 %v2808
    %v2881 = vunpack.c.l.b16 %v2809
    %v2882 = vunpack.c.l.b16 %v2810
    %v2883 = vunpack.c.l.b16 %v2811
    %v2884 = vunpack.c.l.b16 %v2812
    %v2885 = vunpack.c.l.b16 %v2813
    %v2886 = vunpack.c.l.b16 %v2814
    %v2887 = vunpack.c.l.b16 %v2815
    %v2888 = vunpack.c.l.b16 %v2816
    %v2889 = vunpack.c.l.b16 %v2817
    %v2890 = vunpack.c.l.b16 %v2818
    %v2891 = vunpack.c.l.b16 %v2819
    %v2892 = vunpack.c.l.b16 %v2820
    %v2893 = vunpack.c.l.b16 %v2821
    %v2894 = vunpack.c.l.b16 %v2822
    %v2895 = vunpack.c.l.b16 %v2823
    %v2896 = vunpack.c.l.b16 %v2824
    %v2897 = vunpack.c.l.b16 %v2825
    %v2898 = vunpack.c.l.b16 %v2826
    %v2899 = vunpack.c.l.b16 %v2827
    %v2900 = vunpack.c.l.b16 %v2828
    %v2901 = vunpack.c.l.b16 %v2829
    %v2902 = vunpack.c.l.b16 %v2830
    %v2903 = vunpack.c.l.b16 %v2831
    %v2904 = vunpack.c.l.b16 %v2832
    %v2905 = vpack.c.b16 %v2874, %v2873
    %v2906 = vpack.c.b16 %v2876, %v2875
    %v2907 = vpack.c.b16 %v2878, %v2877
    %v2908 = vpack.c.b16 %v2880, %v2879
    %v2909 = vpack.c.b16 %v2882, %v2881
    %v2910 = vpack.c.b16 %v2884, %v2883
    %v2911 = vpack.c.b16 %v2886, %v2885
    %v2912 = vpack.c.b16 %v2888, %v2887
    %v2913 = vpack.c.b16 %v2890, %v2889
    %v2914 = vpack.c.b16 %v2892, %v2891
    %v2915 = vpack.c.b16 %v2894, %v2893
    %v2916 = vpack.c.b16 %v2896, %v2895
    %v2917 = vpack.c.b16 %v2898, %v2897
    %v2918 = vpack.c.b16 %v2900, %v2899
    %v2919 = vpack.c.b16 %v2902, %v2901
    %v2920 = vpack.c.b16 %v2904, %v2903
    %2937 = vmatprep.subr.bf16.mxu0 0
    %2938 = vmatpush1.bf16.msra.mxu0 %v2912
    %2939 = vmatprep.subr.bf16.mxu0 0
    %2940 = vmatpush1.bf16.msra.mxu0 %v2911
    %2941 = vmatprep.subr.bf16.mxu0 0
    %2942 = vmatpush1.bf16.msra.mxu0 %v2910
    %2943 = vmatprep.subr.bf16.mxu0 0
    %2944 = vmatpush1.bf16.msra.mxu0 %v2909
    %2945 = vmatprep.subr.bf16.mxu0 0
    %2946 = vmatpush1.bf16.msra.mxu0 %v2908
    %2947 = vmatprep.subr.bf16.mxu0 0
    %2948 = vmatpush1.bf16.msra.mxu0 %v2907
    %2949 = vmatprep.subr.bf16.mxu0 0
    %2950 = vmatpush1.bf16.msra.mxu0 %v2906
    %2951 = vmatprep.subr.bf16.mxu0 0
    %2952 = vmatpush1.bf16.msra.mxu0 %v2905
    %2953 = vmatprep.subr.bf16.mxu0 0
    %2954 = vmatpush2.bf16.msra.mxu0 %v2920
    %2955 = vmatprep.subr.bf16.mxu0 0
    %2956 = vmatpush2.bf16.msra.mxu0 %v2919
    %2957 = vmatprep.subr.bf16.mxu0 0
    %2958 = vmatpush2.bf16.msra.mxu0 %v2918
    %2959 = vmatprep.subr.bf16.mxu0 0
    %2960 = vmatpush2.bf16.msra.mxu0 %v2917
    %2961 = vmatprep.subr.bf16.mxu0 0
    %2962 = vmatpush2.bf16.msra.mxu0 %v2916
    %2963 = vmatprep.subr.bf16.mxu0 0
    %2964 = vmatpush2.bf16.msra.mxu0 %v2915
    %2965 = vmatprep.subr.bf16.mxu0 0
    %2966 = vmatpush2.bf16.msra.mxu0 %v2914
    %2967 = vmatprep.subr.bf16.mxu0 0
    %2968 = vmatpush2.bf16.msra.mxu0 %v2913
    %2969 = vmatprep.mubr.bf16.mxu0 %v2089
    %2970 = vmatmul.mubr.bf16.gmra.mxu0 %v2088
    %v2971 = vpop.f32.mrf.mxu0
    %v2972 = vadd.f32 %v2839, %v2971
    %v2973 = vpop.f32.mrf.mxu0
    %v2974 = vpop.f32.mrf.mxu0
    %v2975 = vpop.f32.mrf.mxu0
    %2976 = vdwg.mxu0
    %v2977 = vmax.f32 %v2972, 0.0
    %s2978 = scalar_lea.vmem %s7, 640
    %v2979 = vld [vmem:[%s2978] sm:$0xf]
    %v2980 = vld [vmem:[%s2978 + $0x4] sm:$0xf]
    %v2981 = vld [vmem:[%s2978 + $0x8] sm:$0xf]
    %v2982 = vld [vmem:[%s2978 + $0xc] sm:$0xf]
    %v2983 = vld [vmem:[%s2978 + $0x10] sm:$0xf]
    %v2984 = vld [vmem:[%s2978 + $0x14] sm:$0xf]
    %v2985 = vld [vmem:[%s2978 + $0x18] sm:$0xf]
    %v2986 = vld [vmem:[%s2978 + $0x1c] sm:$0xf]
    %v2987 = vld [vmem:[%s2978 + $0x20] sm:$0xf]
    %v2988 = vld [vmem:[%s2978 + $0x24] sm:$0xf]
    %v2989 = vld [vmem:[%s2978 + $0x28] sm:$0xf]
    %v2990 = vld [vmem:[%s2978 + $0x2c] sm:$0xf]
    %v2991 = vld [vmem:[%s2978 + $0x30] sm:$0xf]
    %v2992 = vld [vmem:[%s2978 + $0x34] sm:$0xf]
    %v2993 = vld [vmem:[%s2978 + $0x38] sm:$0xf]
    %v2994 = vld [vmem:[%s2978 + $0x3c] sm:$0xf]
    %v2995 = vld [vmem:[%s2978 + $0x40] sm:$0xf]
    %v2996 = vld [vmem:[%s2978 + $0x44] sm:$0xf]
    %v2997 = vld [vmem:[%s2978 + $0x48] sm:$0xf]
    %v2998 = vld [vmem:[%s2978 + $0x4c] sm:$0xf]
    %v2999 = vld [vmem:[%s2978 + $0x50] sm:$0xf]
    %v3000 = vld [vmem:[%s2978 + $0x54] sm:$0xf]
    %v3001 = vld [vmem:[%s2978 + $0x58] sm:$0xf]
    %v3002 = vld [vmem:[%s2978 + $0x5c] sm:$0xf]
    %v3003 = vld [vmem:[%s2978 + $0x60] sm:$0xf]
    %v3004 = vld [vmem:[%s2978 + $0x64] sm:$0xf]
    %v3005 = vld [vmem:[%s2978 + $0x68] sm:$0xf]
    %v3006 = vld [vmem:[%s2978 + $0x6c] sm:$0xf]
    %v3007 = vld [vmem:[%s2978 + $0x70] sm:$0xf]
    %v3008 = vld [vmem:[%s2978 + $0x74] sm:$0xf]
    %v3009 = vld [vmem:[%s2978 + $0x78] sm:$0xf]
    %v3010 = vld [vmem:[%s2978 + $0x7c] sm:$0xf]
    %s3011 = scalar_lea.vmem %s8, 5
    %v3012 = vld [vmem:[%s3011] sm:$0x1]
    %v3014 = vlaneseq
    %v3015 = vshrl.u32 %v3014, 7
    %v3016 = vsub.s32 0, %v3015
    %v3017 = vrot.slane %v3012, %v3016
    %v3051 = vunpack.c.l.b16 %v2979
    %v3052 = vunpack.c.l.b16 %v2980
    %v3053 = vunpack.c.l.b16 %v2981
    %v3054 = vunpack.c.l.b16 %v2982
    %v3055 = vunpack.c.l.b16 %v2983
    %v3056 = vunpack.c.l.b16 %v2984
    %v3057 = vunpack.c.l.b16 %v2985
    %v3058 = vunpack.c.l.b16 %v2986
    %v3059 = vunpack.c.l.b16 %v2987
    %v3060 = vunpack.c.l.b16 %v2988
    %v3061 = vunpack.c.l.b16 %v2989
    %v3062 = vunpack.c.l.b16 %v2990
    %v3063 = vunpack.c.l.b16 %v2991
    %v3064 = vunpack.c.l.b16 %v2992
    %v3065 = vunpack.c.l.b16 %v2993
    %v3066 = vunpack.c.l.b16 %v2994
    %v3067 = vunpack.c.l.b16 %v2995
    %v3068 = vunpack.c.l.b16 %v2996
    %v3069 = vunpack.c.l.b16 %v2997
    %v3070 = vunpack.c.l.b16 %v2998
    %v3071 = vunpack.c.l.b16 %v2999
    %v3072 = vunpack.c.l.b16 %v3000
    %v3073 = vunpack.c.l.b16 %v3001
    %v3074 = vunpack.c.l.b16 %v3002
    %v3075 = vunpack.c.l.b16 %v3003
    %v3076 = vunpack.c.l.b16 %v3004
    %v3077 = vunpack.c.l.b16 %v3005
    %v3078 = vunpack.c.l.b16 %v3006
    %v3079 = vunpack.c.l.b16 %v3007
    %v3080 = vunpack.c.l.b16 %v3008
    %v3081 = vunpack.c.l.b16 %v3009
    %v3082 = vunpack.c.l.b16 %v3010
    %v3083 = vpack.c.b16 %v3052, %v3051
    %v3084 = vpack.c.b16 %v3054, %v3053
    %v3085 = vpack.c.b16 %v3056, %v3055
    %v3086 = vpack.c.b16 %v3058, %v3057
    %v3087 = vpack.c.b16 %v3060, %v3059
    %v3088 = vpack.c.b16 %v3062, %v3061
    %v3089 = vpack.c.b16 %v3064, %v3063
    %v3090 = vpack.c.b16 %v3066, %v3065
    %v3091 = vpack.c.b16 %v3068, %v3067
    %v3092 = vpack.c.b16 %v3070, %v3069
    %v3093 = vpack.c.b16 %v3072, %v3071
    %v3094 = vpack.c.b16 %v3074, %v3073
    %v3095 = vpack.c.b16 %v3076, %v3075
    %v3096 = vpack.c.b16 %v3078, %v3077
    %v3097 = vpack.c.b16 %v3080, %v3079
    %v3098 = vpack.c.b16 %v3082, %v3081
    %3115 = vmatprep.subr.bf16.mxu0 0
    %3116 = vmatpush1.bf16.msra.mxu0 %v3090
    %3117 = vmatprep.subr.bf16.mxu0 0
    %3118 = vmatpush1.bf16.msra.mxu0 %v3089
    %3119 = vmatprep.subr.bf16.mxu0 0
    %3120 = vmatpush1.bf16.msra.mxu0 %v3088
    %3121 = vmatprep.subr.bf16.mxu0 0
    %3122 = vmatpush1.bf16.msra.mxu0 %v3087
    %3123 = vmatprep.subr.bf16.mxu0 0
    %3124 = vmatpush1.bf16.msra.mxu0 %v3086
    %3125 = vmatprep.subr.bf16.mxu0 0
    %3126 = vmatpush1.bf16.msra.mxu0 %v3085
    %3127 = vmatprep.subr.bf16.mxu0 0
    %3128 = vmatpush1.bf16.msra.mxu0 %v3084
    %3129 = vmatprep.subr.bf16.mxu0 0
    %3130 = vmatpush1.bf16.msra.mxu0 %v3083
    %3131 = vmatprep.subr.bf16.mxu0 0
    %3132 = vmatpush2.bf16.msra.mxu0 %v3098
    %3133 = vmatprep.subr.bf16.mxu0 0
    %3134 = vmatpush2.bf16.msra.mxu0 %v3097
    %3135 = vmatprep.subr.bf16.mxu0 0
    %3136 = vmatpush2.bf16.msra.mxu0 %v3096
    %3137 = vmatprep.subr.bf16.mxu0 0
    %3138 = vmatpush2.bf16.msra.mxu0 %v3095
    %3139 = vmatprep.subr.bf16.mxu0 0
    %3140 = vmatpush2.bf16.msra.mxu0 %v3094
    %3141 = vmatprep.subr.bf16.mxu0 0
    %3142 = vmatpush2.bf16.msra.mxu0 %v3093
    %3143 = vmatprep.subr.bf16.mxu0 0
    %3144 = vmatpush2.bf16.msra.mxu0 %v3092
    %3145 = vmatprep.subr.bf16.mxu0 0
    %3146 = vmatpush2.bf16.msra.mxu0 %v3091
    %3147 = vmatprep.mubr.bf16.mxu0 %v2089
    %3148 = vmatmul.mubr.bf16.gmra.mxu0 %v2088
    %v3149 = vpop.f32.mrf.mxu0
    %v3150 = vadd.f32 %v3017, %v3149
    %v3151 = vpop.f32.mrf.mxu0
    %v3152 = vpop.f32.mrf.mxu0
    %v3153 = vpop.f32.mrf.mxu0
    %3154 = vdwg.mxu0
    %v3155 = vmax.f32 %v3150, 0.0
    %s3156 = scalar_lea.vmem %s7, 768
    %v3157 = vld [vmem:[%s3156] sm:$0xf]
    %v3158 = vld [vmem:[%s3156 + $0x4] sm:$0xf]
    %v3159 = vld [vmem:[%s3156 + $0x8] sm:$0xf]
    %v3160 = vld [vmem:[%s3156 + $0xc] sm:$0xf]
    %v3161 = vld [vmem:[%s3156 + $0x10] sm:$0xf]
    %v3162 = vld [vmem:[%s3156 + $0x14] sm:$0xf]
    %v3163 = vld [vmem:[%s3156 + $0x18] sm:$0xf]
    %v3164 = vld [vmem:[%s3156 + $0x1c] sm:$0xf]
    %v3165 = vld [vmem:[%s3156 + $0x20] sm:$0xf]
    %v3166 = vld [vmem:[%s3156 + $0x24] sm:$0xf]
    %v3167 = vld [vmem:[%s3156 + $0x28] sm:$0xf]
    %v3168 = vld [vmem:[%s3156 + $0x2c] sm:$0xf]
    %v3169 = vld [vmem:[%s3156 + $0x30] sm:$0xf]
    %v3170 = vld [vmem:[%s3156 + $0x34] sm:$0xf]
    %v3171 = vld [vmem:[%s3156 + $0x38] sm:$0xf]
    %v3172 = vld [vmem:[%s3156 + $0x3c] sm:$0xf]
    %v3173 = vld [vmem:[%s3156 + $0x40] sm:$0xf]
    %v3174 = vld [vmem:[%s3156 + $0x44] sm:$0xf]
    %v3175 = vld [vmem:[%s3156 + $0x48] sm:$0xf]
    %v3176 = vld [vmem:[%s3156 + $0x4c] sm:$0xf]
    %v3177 = vld [vmem:[%s3156 + $0x50] sm:$0xf]
    %v3178 = vld [vmem:[%s3156 + $0x54] sm:$0xf]
    %v3179 = vld [vmem:[%s3156 + $0x58] sm:$0xf]
    %v3180 = vld [vmem:[%s3156 + $0x5c] sm:$0xf]
    %v3181 = vld [vmem:[%s3156 + $0x60] sm:$0xf]
    %v3182 = vld [vmem:[%s3156 + $0x64] sm:$0xf]
    %v3183 = vld [vmem:[%s3156 + $0x68] sm:$0xf]
    %v3184 = vld [vmem:[%s3156 + $0x6c] sm:$0xf]
    %v3185 = vld [vmem:[%s3156 + $0x70] sm:$0xf]
    %v3186 = vld [vmem:[%s3156 + $0x74] sm:$0xf]
    %v3187 = vld [vmem:[%s3156 + $0x78] sm:$0xf]
    %v3188 = vld [vmem:[%s3156 + $0x7c] sm:$0xf]
    %s3189 = scalar_lea.vmem %s8, 6
    %v3190 = vld [vmem:[%s3189] sm:$0x1]
    %v3192 = vlaneseq
    %v3193 = vshrl.u32 %v3192, 7
    %v3194 = vsub.s32 0, %v3193
    %v3195 = vrot.slane %v3190, %v3194
    %v3229 = vunpack.c.l.b16 %v3157
    %v3230 = vunpack.c.l.b16 %v3158
    %v3231 = vunpack.c.l.b16 %v3159
    %v3232 = vunpack.c.l.b16 %v3160
    %v3233 = vunpack.c.l.b16 %v3161
    %v3234 = vunpack.c.l.b16 %v3162
    %v3235 = vunpack.c.l.b16 %v3163
    %v3236 = vunpack.c.l.b16 %v3164
    %v3237 = vunpack.c.l.b16 %v3165
    %v3238 = vunpack.c.l.b16 %v3166
    %v3239 = vunpack.c.l.b16 %v3167
    %v3240 = vunpack.c.l.b16 %v3168
    %v3241 = vunpack.c.l.b16 %v3169
    %v3242 = vunpack.c.l.b16 %v3170
    %v3243 = vunpack.c.l.b16 %v3171
    %v3244 = vunpack.c.l.b16 %v3172
    %v3245 = vunpack.c.l.b16 %v3173
    %v3246 = vunpack.c.l.b16 %v3174
    %v3247 = vunpack.c.l.b16 %v3175
    %v3248 = vunpack.c.l.b16 %v3176
    %v3249 = vunpack.c.l.b16 %v3177
    %v3250 = vunpack.c.l.b16 %v3178
    %v3251 = vunpack.c.l.b16 %v3179
    %v3252 = vunpack.c.l.b16 %v3180
    %v3253 = vunpack.c.l.b16 %v3181
    %v3254 = vunpack.c.l.b16 %v3182
    %v3255 = vunpack.c.l.b16 %v3183
    %v3256 = vunpack.c.l.b16 %v3184
    %v3257 = vunpack.c.l.b16 %v3185
    %v3258 = vunpack.c.l.b16 %v3186
    %v3259 = vunpack.c.l.b16 %v3187
    %v3260 = vunpack.c.l.b16 %v3188
    %v3261 = vpack.c.b16 %v3230, %v3229
    %v3262 = vpack.c.b16 %v3232, %v3231
    %v3263 = vpack.c.b16 %v3234, %v3233
    %v3264 = vpack.c.b16 %v3236, %v3235
    %v3265 = vpack.c.b16 %v3238, %v3237
    %v3266 = vpack.c.b16 %v3240, %v3239
    %v3267 = vpack.c.b16 %v3242, %v3241
    %v3268 = vpack.c.b16 %v3244, %v3243
    %v3269 = vpack.c.b16 %v3246, %v3245
    %v3270 = vpack.c.b16 %v3248, %v3247
    %v3271 = vpack.c.b16 %v3250, %v3249
    %v3272 = vpack.c.b16 %v3252, %v3251
    %v3273 = vpack.c.b16 %v3254, %v3253
    %v3274 = vpack.c.b16 %v3256, %v3255
    %v3275 = vpack.c.b16 %v3258, %v3257
    %v3276 = vpack.c.b16 %v3260, %v3259
    %3293 = vmatprep.subr.bf16.mxu0 0
    %3294 = vmatpush1.bf16.msra.mxu0 %v3268
    %3295 = vmatprep.subr.bf16.mxu0 0
    %3296 = vmatpush1.bf16.msra.mxu0 %v3267
    %3297 = vmatprep.subr.bf16.mxu0 0
    %3298 = vmatpush1.bf16.msra.mxu0 %v3266
    %3299 = vmatprep.subr.bf16.mxu0 0
    %3300 = vmatpush1.bf16.msra.mxu0 %v3265
    %3301 = vmatprep.subr.bf16.mxu0 0
    %3302 = vmatpush1.bf16.msra.mxu0 %v3264
    %3303 = vmatprep.subr.bf16.mxu0 0
    %3304 = vmatpush1.bf16.msra.mxu0 %v3263
    %3305 = vmatprep.subr.bf16.mxu0 0
    %3306 = vmatpush1.bf16.msra.mxu0 %v3262
    %3307 = vmatprep.subr.bf16.mxu0 0
    %3308 = vmatpush1.bf16.msra.mxu0 %v3261
    %3309 = vmatprep.subr.bf16.mxu0 0
    %3310 = vmatpush2.bf16.msra.mxu0 %v3276
    %3311 = vmatprep.subr.bf16.mxu0 0
    %3312 = vmatpush2.bf16.msra.mxu0 %v3275
    %3313 = vmatprep.subr.bf16.mxu0 0
    %3314 = vmatpush2.bf16.msra.mxu0 %v3274
    %3315 = vmatprep.subr.bf16.mxu0 0
    %3316 = vmatpush2.bf16.msra.mxu0 %v3273
    %3317 = vmatprep.subr.bf16.mxu0 0
    %3318 = vmatpush2.bf16.msra.mxu0 %v3272
    %3319 = vmatprep.subr.bf16.mxu0 0
    %3320 = vmatpush2.bf16.msra.mxu0 %v3271
    %3321 = vmatprep.subr.bf16.mxu0 0
    %3322 = vmatpush2.bf16.msra.mxu0 %v3270
    %3323 = vmatprep.subr.bf16.mxu0 0
    %3324 = vmatpush2.bf16.msra.mxu0 %v3269
    %3325 = vmatprep.mubr.bf16.mxu0 %v2089
    %3326 = vmatmul.mubr.bf16.gmra.mxu0 %v2088
    %v3327 = vpop.f32.mrf.mxu0
    %v3328 = vadd.f32 %v3195, %v3327
    %v3329 = vpop.f32.mrf.mxu0
    %v3330 = vpop.f32.mrf.mxu0
    %v3331 = vpop.f32.mrf.mxu0
    %3332 = vdwg.mxu0
    %v3333 = vmax.f32 %v3328, 0.0
    %s3334 = scalar_lea.vmem %s7, 896
    %v3335 = vld [vmem:[%s3334] sm:$0xf]
    %v3336 = vld [vmem:[%s3334 + $0x4] sm:$0xf]
    %v3337 = vld [vmem:[%s3334 + $0x8] sm:$0xf]
    %v3338 = vld [vmem:[%s3334 + $0xc] sm:$0xf]
    %v3339 = vld [vmem:[%s3334 + $0x10] sm:$0xf]
    %v3340 = vld [vmem:[%s3334 + $0x14] sm:$0xf]
    %v3341 = vld [vmem:[%s3334 + $0x18] sm:$0xf]
    %v3342 = vld [vmem:[%s3334 + $0x1c] sm:$0xf]
    %v3343 = vld [vmem:[%s3334 + $0x20] sm:$0xf]
    %v3344 = vld [vmem:[%s3334 + $0x24] sm:$0xf]
    %v3345 = vld [vmem:[%s3334 + $0x28] sm:$0xf]
    %v3346 = vld [vmem:[%s3334 + $0x2c] sm:$0xf]
    %v3347 = vld [vmem:[%s3334 + $0x30] sm:$0xf]
    %v3348 = vld [vmem:[%s3334 + $0x34] sm:$0xf]
    %v3349 = vld [vmem:[%s3334 + $0x38] sm:$0xf]
    %v3350 = vld [vmem:[%s3334 + $0x3c] sm:$0xf]
    %v3351 = vld [vmem:[%s3334 + $0x40] sm:$0xf]
    %v3352 = vld [vmem:[%s3334 + $0x44] sm:$0xf]
    %v3353 = vld [vmem:[%s3334 + $0x48] sm:$0xf]
    %v3354 = vld [vmem:[%s3334 + $0x4c] sm:$0xf]
    %v3355 = vld [vmem:[%s3334 + $0x50] sm:$0xf]
    %v3356 = vld [vmem:[%s3334 + $0x54] sm:$0xf]
    %v3357 = vld [vmem:[%s3334 + $0x58] sm:$0xf]
    %v3358 = vld [vmem:[%s3334 + $0x5c] sm:$0xf]
    %v3359 = vld [vmem:[%s3334 + $0x60] sm:$0xf]
    %v3360 = vld [vmem:[%s3334 + $0x64] sm:$0xf]
    %v3361 = vld [vmem:[%s3334 + $0x68] sm:$0xf]
    %v3362 = vld [vmem:[%s3334 + $0x6c] sm:$0xf]
    %v3363 = vld [vmem:[%s3334 + $0x70] sm:$0xf]
    %v3364 = vld [vmem:[%s3334 + $0x74] sm:$0xf]
    %v3365 = vld [vmem:[%s3334 + $0x78] sm:$0xf]
    %v3366 = vld [vmem:[%s3334 + $0x7c] sm:$0xf]
    %s3367 = scalar_lea.vmem %s8, 7
    %v3368 = vld [vmem:[%s3367] sm:$0x1]
    %v3370 = vlaneseq
    %v3371 = vshrl.u32 %v3370, 7
    %v3372 = vsub.s32 0, %v3371
    %v3373 = vrot.slane %v3368, %v3372
    %v3407 = vunpack.c.l.b16 %v3335
    %v3408 = vunpack.c.l.b16 %v3336
    %v3409 = vunpack.c.l.b16 %v3337
    %v3410 = vunpack.c.l.b16 %v3338
    %v3411 = vunpack.c.l.b16 %v3339
    %v3412 = vunpack.c.l.b16 %v3340
    %v3413 = vunpack.c.l.b16 %v3341
    %v3414 = vunpack.c.l.b16 %v3342
    %v3415 = vunpack.c.l.b16 %v3343
    %v3416 = vunpack.c.l.b16 %v3344
    %v3417 = vunpack.c.l.b16 %v3345
    %v3418 = vunpack.c.l.b16 %v3346
    %v3419 = vunpack.c.l.b16 %v3347
    %v3420 = vunpack.c.l.b16 %v3348
    %v3421 = vunpack.c.l.b16 %v3349
    %v3422 = vunpack.c.l.b16 %v3350
    %v3423 = vunpack.c.l.b16 %v3351
    %v3424 = vunpack.c.l.b16 %v3352
    %v3425 = vunpack.c.l.b16 %v3353
    %v3426 = vunpack.c.l.b16 %v3354
    %v3427 = vunpack.c.l.b16 %v3355
    %v3428 = vunpack.c.l.b16 %v3356
    %v3429 = vunpack.c.l.b16 %v3357
    %v3430 = vunpack.c.l.b16 %v3358
    %v3431 = vunpack.c.l.b16 %v3359
    %v3432 = vunpack.c.l.b16 %v3360
    %v3433 = vunpack.c.l.b16 %v3361
    %v3434 = vunpack.c.l.b16 %v3362
    %v3435 = vunpack.c.l.b16 %v3363
    %v3436 = vunpack.c.l.b16 %v3364
    %v3437 = vunpack.c.l.b16 %v3365
    %v3438 = vunpack.c.l.b16 %v3366
    %v3439 = vpack.c.b16 %v3408, %v3407
    %v3440 = vpack.c.b16 %v3410, %v3409
    %v3441 = vpack.c.b16 %v3412, %v3411
    %v3442 = vpack.c.b16 %v3414, %v3413
    %v3443 = vpack.c.b16 %v3416, %v3415
    %v3444 = vpack.c.b16 %v3418, %v3417
    %v3445 = vpack.c.b16 %v3420, %v3419
    %v3446 = vpack.c.b16 %v3422, %v3421
    %v3447 = vpack.c.b16 %v3424, %v3423
    %v3448 = vpack.c.b16 %v3426, %v3425
    %v3449 = vpack.c.b16 %v3428, %v3427
    %v3450 = vpack.c.b16 %v3430, %v3429
    %v3451 = vpack.c.b16 %v3432, %v3431
    %v3452 = vpack.c.b16 %v3434, %v3433
    %v3453 = vpack.c.b16 %v3436, %v3435
    %v3454 = vpack.c.b16 %v3438, %v3437
    %3471 = vmatprep.subr.bf16.mxu0 0
    %3472 = vmatpush1.bf16.msra.mxu0 %v3446
    %3473 = vmatprep.subr.bf16.mxu0 0
    %3474 = vmatpush1.bf16.msra.mxu0 %v3445
    %3475 = vmatprep.subr.bf16.mxu0 0
    %3476 = vmatpush1.bf16.msra.mxu0 %v3444
    %3477 = vmatprep.subr.bf16.mxu0 0
    %3478 = vmatpush1.bf16.msra.mxu0 %v3443
    %3479 = vmatprep.subr.bf16.mxu0 0
    %3480 = vmatpush1.bf16.msra.mxu0 %v3442
    %3481 = vmatprep.subr.bf16.mxu0 0
    %3482 = vmatpush1.bf16.msra.mxu0 %v3441
    %3483 = vmatprep.subr.bf16.mxu0 0
    %3484 = vmatpush1.bf16.msra.mxu0 %v3440
    %3485 = vmatprep.subr.bf16.mxu0 0
    %3486 = vmatpush1.bf16.msra.mxu0 %v3439
    %3487 = vmatprep.subr.bf16.mxu0 0
    %3488 = vmatpush2.bf16.msra.mxu0 %v3454
    %3489 = vmatprep.subr.bf16.mxu0 0
    %3490 = vmatpush2.bf16.msra.mxu0 %v3453
    %3491 = vmatprep.subr.bf16.mxu0 0
    %3492 = vmatpush2.bf16.msra.mxu0 %v3452
    %3493 = vmatprep.subr.bf16.mxu0 0
    %3494 = vmatpush2.bf16.msra.mxu0 %v3451
    %3495 = vmatprep.subr.bf16.mxu0 0
    %3496 = vmatpush2.bf16.msra.mxu0 %v3450
    %3497 = vmatprep.subr.bf16.mxu0 0
    %3498 = vmatpush2.bf16.msra.mxu0 %v3449
    %3499 = vmatprep.subr.bf16.mxu0 0
    %3500 = vmatpush2.bf16.msra.mxu0 %v3448
    %3501 = vmatprep.subr.bf16.mxu0 0
    %3502 = vmatpush2.bf16.msra.mxu0 %v3447
    %3503 = vmatprep.mubr.bf16.mxu0 %v2089
    %3504 = vmatmul.mubr.bf16.gmra.mxu0 %v2088
    %v3505 = vpop.f32.mrf.mxu0
    %v3506 = vadd.f32 %v3373, %v3505
    %v3507 = vpop.f32.mrf.mxu0
    %v3508 = vpop.f32.mrf.mxu0
    %v3509 = vpop.f32.mrf.mxu0
    %3510 = vdwg.mxu0
    %v3511 = vmax.f32 %v3506, 0.0
    %s3512 = scalar_lea.vmem %s7, 1024
    %v3513 = vld [vmem:[%s3512] sm:$0xf]
    %v3514 = vld [vmem:[%s3512 + $0x4] sm:$0xf]
    %v3515 = vld [vmem:[%s3512 + $0x8] sm:$0xf]
    %v3516 = vld [vmem:[%s3512 + $0xc] sm:$0xf]
    %v3517 = vld [vmem:[%s3512 + $0x10] sm:$0xf]
    %v3518 = vld [vmem:[%s3512 + $0x14] sm:$0xf]
    %v3519 = vld [vmem:[%s3512 + $0x18] sm:$0xf]
    %v3520 = vld [vmem:[%s3512 + $0x1c] sm:$0xf]
    %v3521 = vld [vmem:[%s3512 + $0x20] sm:$0xf]
    %v3522 = vld [vmem:[%s3512 + $0x24] sm:$0xf]
    %v3523 = vld [vmem:[%s3512 + $0x28] sm:$0xf]
    %v3524 = vld [vmem:[%s3512 + $0x2c] sm:$0xf]
    %v3525 = vld [vmem:[%s3512 + $0x30] sm:$0xf]
    %v3526 = vld [vmem:[%s3512 + $0x34] sm:$0xf]
    %v3527 = vld [vmem:[%s3512 + $0x38] sm:$0xf]
    %v3528 = vld [vmem:[%s3512 + $0x3c] sm:$0xf]
    %v3529 = vld [vmem:[%s3512 + $0x40] sm:$0xf]
    %v3530 = vld [vmem:[%s3512 + $0x44] sm:$0xf]
    %v3531 = vld [vmem:[%s3512 + $0x48] sm:$0xf]
    %v3532 = vld [vmem:[%s3512 + $0x4c] sm:$0xf]
    %v3533 = vld [vmem:[%s3512 + $0x50] sm:$0xf]
    %v3534 = vld [vmem:[%s3512 + $0x54] sm:$0xf]
    %v3535 = vld [vmem:[%s3512 + $0x58] sm:$0xf]
    %v3536 = vld [vmem:[%s3512 + $0x5c] sm:$0xf]
    %v3537 = vld [vmem:[%s3512 + $0x60] sm:$0xf]
    %v3538 = vld [vmem:[%s3512 + $0x64] sm:$0xf]
    %v3539 = vld [vmem:[%s3512 + $0x68] sm:$0xf]
    %v3540 = vld [vmem:[%s3512 + $0x6c] sm:$0xf]
    %v3541 = vld [vmem:[%s3512 + $0x70] sm:$0xf]
    %v3542 = vld [vmem:[%s3512 + $0x74] sm:$0xf]
    %v3543 = vld [vmem:[%s3512 + $0x78] sm:$0xf]
    %v3544 = vld [vmem:[%s3512 + $0x7c] sm:$0xf]
    %s3545 = scalar_lea.vmem %s8, 8
    %v3546 = vld [vmem:[%s3545] sm:$0x1]
    %v3548 = vlaneseq
    %v3549 = vshrl.u32 %v3548, 7
    %v3550 = vsub.s32 0, %v3549
    %v3551 = vrot.slane %v3546, %v3550
    %v3585 = vunpack.c.l.b16 %v3513
    %v3586 = vunpack.c.l.b16 %v3514
    %v3587 = vunpack.c.l.b16 %v3515
    %v3588 = vunpack.c.l.b16 %v3516
    %v3589 = vunpack.c.l.b16 %v3517
    %v3590 = vunpack.c.l.b16 %v3518
    %v3591 = vunpack.c.l.b16 %v3519
    %v3592 = vunpack.c.l.b16 %v3520
    %v3593 = vunpack.c.l.b16 %v3521
    %v3594 = vunpack.c.l.b16 %v3522
    %v3595 = vunpack.c.l.b16 %v3523
    %v3596 = vunpack.c.l.b16 %v3524
    %v3597 = vunpack.c.l.b16 %v3525
    %v3598 = vunpack.c.l.b16 %v3526
    %v3599 = vunpack.c.l.b16 %v3527
    %v3600 = vunpack.c.l.b16 %v3528
    %v3601 = vunpack.c.l.b16 %v3529
    %v3602 = vunpack.c.l.b16 %v3530
    %v3603 = vunpack.c.l.b16 %v3531
    %v3604 = vunpack.c.l.b16 %v3532
    %v3605 = vunpack.c.l.b16 %v3533
    %v3606 = vunpack.c.l.b16 %v3534
    %v3607 = vunpack.c.l.b16 %v3535
    %v3608 = vunpack.c.l.b16 %v3536
    %v3609 = vunpack.c.l.b16 %v3537
    %v3610 = vunpack.c.l.b16 %v3538
    %v3611 = vunpack.c.l.b16 %v3539
    %v3612 = vunpack.c.l.b16 %v3540
    %v3613 = vunpack.c.l.b16 %v3541
    %v3614 = vunpack.c.l.b16 %v3542
    %v3615 = vunpack.c.l.b16 %v3543
    %v3616 = vunpack.c.l.b16 %v3544
    %v3617 = vpack.c.b16 %v3586, %v3585
    %v3618 = vpack.c.b16 %v3588, %v3587
    %v3619 = vpack.c.b16 %v3590, %v3589
    %v3620 = vpack.c.b16 %v3592, %v3591
    %v3621 = vpack.c.b16 %v3594, %v3593
    %v3622 = vpack.c.b16 %v3596, %v3595
    %v3623 = vpack.c.b16 %v3598, %v3597
    %v3624 = vpack.c.b16 %v3600, %v3599
    %v3625 = vpack.c.b16 %v3602, %v3601
    %v3626 = vpack.c.b16 %v3604, %v3603
    %v3627 = vpack.c.b16 %v3606, %v3605
    %v3628 = vpack.c.b16 %v3608, %v3607
    %v3629 = vpack.c.b16 %v3610, %v3609
    %v3630 = vpack.c.b16 %v3612, %v3611
    %v3631 = vpack.c.b16 %v3614, %v3613
    %v3632 = vpack.c.b16 %v3616, %v3615
    %3649 = vmatprep.subr.bf16.mxu0 0
    %3650 = vmatpush1.bf16.msra.mxu0 %v3624
    %3651 = vmatprep.subr.bf16.mxu0 0
    %3652 = vmatpush1.bf16.msra.mxu0 %v3623
    %3653 = vmatprep.subr.bf16.mxu0 0
    %3654 = vmatpush1.bf16.msra.mxu0 %v3622
    %3655 = vmatprep.subr.bf16.mxu0 0
    %3656 = vmatpush1.bf16.msra.mxu0 %v3621
    %3657 = vmatprep.subr.bf16.mxu0 0
    %3658 = vmatpush1.bf16.msra.mxu0 %v3620
    %3659 = vmatprep.subr.bf16.mxu0 0
    %3660 = vmatpush1.bf16.msra.mxu0 %v3619
    %3661 = vmatprep.subr.bf16.mxu0 0
    %3662 = vmatpush1.bf16.msra.mxu0 %v3618
    %3663 = vmatprep.subr.bf16.mxu0 0
    %3664 = vmatpush1.bf16.msra.mxu0 %v3617
    %3665 = vmatprep.subr.bf16.mxu0 0
    %3666 = vmatpush2.bf16.msra.mxu0 %v3632
    %3667 = vmatprep.subr.bf16.mxu0 0
    %3668 = vmatpush2.bf16.msra.mxu0 %v3631
    %3669 = vmatprep.subr.bf16.mxu0 0
    %3670 = vmatpush2.bf16.msra.mxu0 %v3630
    %3671 = vmatprep.subr.bf16.mxu0 0
    %3672 = vmatpush2.bf16.msra.mxu0 %v3629
    %3673 = vmatprep.subr.bf16.mxu0 0
    %3674 = vmatpush2.bf16.msra.mxu0 %v3628
    %3675 = vmatprep.subr.bf16.mxu0 0
    %3676 = vmatpush2.bf16.msra.mxu0 %v3627
    %3677 = vmatprep.subr.bf16.mxu0 0
    %3678 = vmatpush2.bf16.msra.mxu0 %v3626
    %3679 = vmatprep.subr.bf16.mxu0 0
    %3680 = vmatpush2.bf16.msra.mxu0 %v3625
    %3681 = vmatprep.mubr.bf16.mxu0 %v2089
    %3682 = vmatmul.mubr.bf16.gmra.mxu0 %v2088
    %v3683 = vpop.f32.mrf.mxu0
    %v3684 = vadd.f32 %v3551, %v3683
    %v3685 = vpop.f32.mrf.mxu0
    %v3686 = vpop.f32.mrf.mxu0
    %v3687 = vpop.f32.mrf.mxu0
    %3688 = vdwg.mxu0
    %v3689 = vmax.f32 %v3684, 0.0
    %s3690 = scalar_lea.vmem %s7, 1152
    %v3691 = vld [vmem:[%s3690] sm:$0xf]
    %v3692 = vld [vmem:[%s3690 + $0x4] sm:$0xf]
    %v3693 = vld [vmem:[%s3690 + $0x8] sm:$0xf]
    %v3694 = vld [vmem:[%s3690 + $0xc] sm:$0xf]
    %v3695 = vld [vmem:[%s3690 + $0x10] sm:$0xf]
    %v3696 = vld [vmem:[%s3690 + $0x14] sm:$0xf]
    %v3697 = vld [vmem:[%s3690 + $0x18] sm:$0xf]
    %v3698 = vld [vmem:[%s3690 + $0x1c] sm:$0xf]
    %v3699 = vld [vmem:[%s3690 + $0x20] sm:$0xf]
    %v3700 = vld [vmem:[%s3690 + $0x24] sm:$0xf]
    %v3701 = vld [vmem:[%s3690 + $0x28] sm:$0xf]
    %v3702 = vld [vmem:[%s3690 + $0x2c] sm:$0xf]
    %v3703 = vld [vmem:[%s3690 + $0x30] sm:$0xf]
    %v3704 = vld [vmem:[%s3690 + $0x34] sm:$0xf]
    %v3705 = vld [vmem:[%s3690 + $0x38] sm:$0xf]
    %v3706 = vld [vmem:[%s3690 + $0x3c] sm:$0xf]
    %v3707 = vld [vmem:[%s3690 + $0x40] sm:$0xf]
    %v3708 = vld [vmem:[%s3690 + $0x44] sm:$0xf]
    %v3709 = vld [vmem:[%s3690 + $0x48] sm:$0xf]
    %v3710 = vld [vmem:[%s3690 + $0x4c] sm:$0xf]
    %v3711 = vld [vmem:[%s3690 + $0x50] sm:$0xf]
    %v3712 = vld [vmem:[%s3690 + $0x54] sm:$0xf]
    %v3713 = vld [vmem:[%s3690 + $0x58] sm:$0xf]
    %v3714 = vld [vmem:[%s3690 + $0x5c] sm:$0xf]
    %v3715 = vld [vmem:[%s3690 + $0x60] sm:$0xf]
    %v3716 = vld [vmem:[%s3690 + $0x64] sm:$0xf]
    %v3717 = vld [vmem:[%s3690 + $0x68] sm:$0xf]
    %v3718 = vld [vmem:[%s3690 + $0x6c] sm:$0xf]
    %v3719 = vld [vmem:[%s3690 + $0x70] sm:$0xf]
    %v3720 = vld [vmem:[%s3690 + $0x74] sm:$0xf]
    %v3721 = vld [vmem:[%s3690 + $0x78] sm:$0xf]
    %v3722 = vld [vmem:[%s3690 + $0x7c] sm:$0xf]
    %s3723 = scalar_lea.vmem %s8, 9
    %v3724 = vld [vmem:[%s3723] sm:$0x1]
    %v3726 = vlaneseq
    %v3727 = vshrl.u32 %v3726, 7
    %v3728 = vsub.s32 0, %v3727
    %v3729 = vrot.slane %v3724, %v3728
    %v3763 = vunpack.c.l.b16 %v3691
    %v3764 = vunpack.c.l.b16 %v3692
    %v3765 = vunpack.c.l.b16 %v3693
    %v3766 = vunpack.c.l.b16 %v3694
    %v3767 = vunpack.c.l.b16 %v3695
    %v3768 = vunpack.c.l.b16 %v3696
    %v3769 = vunpack.c.l.b16 %v3697
    %v3770 = vunpack.c.l.b16 %v3698
    %v3771 = vunpack.c.l.b16 %v3699
    %v3772 = vunpack.c.l.b16 %v3700
    %v3773 = vunpack.c.l.b16 %v3701
    %v3774 = vunpack.c.l.b16 %v3702
    %v3775 = vunpack.c.l.b16 %v3703
    %v3776 = vunpack.c.l.b16 %v3704
    %v3777 = vunpack.c.l.b16 %v3705
    %v3778 = vunpack.c.l.b16 %v3706
    %v3779 = vunpack.c.l.b16 %v3707
    %v3780 = vunpack.c.l.b16 %v3708
    %v3781 = vunpack.c.l.b16 %v3709
    %v3782 = vunpack.c.l.b16 %v3710
    %v3783 = vunpack.c.l.b16 %v3711
    %v3784 = vunpack.c.l.b16 %v3712
    %v3785 = vunpack.c.l.b16 %v3713
    %v3786 = vunpack.c.l.b16 %v3714
    %v3787 = vunpack.c.l.b16 %v3715
    %v3788 = vunpack.c.l.b16 %v3716
    %v3789 = vunpack.c.l.b16 %v3717
    %v3790 = vunpack.c.l.b16 %v3718
    %v3791 = vunpack.c.l.b16 %v3719
    %v3792 = vunpack.c.l.b16 %v3720
    %v3793 = vunpack.c.l.b16 %v3721
    %v3794 = vunpack.c.l.b16 %v3722
    %v3795 = vpack.c.b16 %v3764, %v3763
    %v3796 = vpack.c.b16 %v3766, %v3765
    %v3797 = vpack.c.b16 %v3768, %v3767
    %v3798 = vpack.c.b16 %v3770, %v3769
    %v3799 = vpack.c.b16 %v3772, %v3771
    %v3800 = vpack.c.b16 %v3774, %v3773
    %v3801 = vpack.c.b16 %v3776, %v3775
    %v3802 = vpack.c.b16 %v3778, %v3777
    %v3803 = vpack.c.b16 %v3780, %v3779
    %v3804 = vpack.c.b16 %v3782, %v3781
    %v3805 = vpack.c.b16 %v3784, %v3783
    %v3806 = vpack.c.b16 %v3786, %v3785
    %v3807 = vpack.c.b16 %v3788, %v3787
    %v3808 = vpack.c.b16 %v3790, %v3789
    %v3809 = vpack.c.b16 %v3792, %v3791
    %v3810 = vpack.c.b16 %v3794, %v3793
    %3827 = vmatprep.subr.bf16.mxu0 0
    %3828 = vmatpush1.bf16.msra.mxu0 %v3802
    %3829 = vmatprep.subr.bf16.mxu0 0
    %3830 = vmatpush1.bf16.msra.mxu0 %v3801
    %3831 = vmatprep.subr.bf16.mxu0 0
    %3832 = vmatpush1.bf16.msra.mxu0 %v3800
    %3833 = vmatprep.subr.bf16.mxu0 0
    %3834 = vmatpush1.bf16.msra.mxu0 %v3799
    %3835 = vmatprep.subr.bf16.mxu0 0
    %3836 = vmatpush1.bf16.msra.mxu0 %v3798
    %3837 = vmatprep.subr.bf16.mxu0 0
    %3838 = vmatpush1.bf16.msra.mxu0 %v3797
    %3839 = vmatprep.subr.bf16.mxu0 0
    %3840 = vmatpush1.bf16.msra.mxu0 %v3796
    %3841 = vmatprep.subr.bf16.mxu0 0
    %3842 = vmatpush1.bf16.msra.mxu0 %v3795
    %3843 = vmatprep.subr.bf16.mxu0 0
    %3844 = vmatpush2.bf16.msra.mxu0 %v3810
    %3845 = vmatprep.subr.bf16.mxu0 0
    %3846 = vmatpush2.bf16.msra.mxu0 %v3809
    %3847 = vmatprep.subr.bf16.mxu0 0
    %3848 = vmatpush2.bf16.msra.mxu0 %v3808
    %3849 = vmatprep.subr.bf16.mxu0 0
    %3850 = vmatpush2.bf16.msra.mxu0 %v3807
    %3851 = vmatprep.subr.bf16.mxu0 0
    %3852 = vmatpush2.bf16.msra.mxu0 %v3806
    %3853 = vmatprep.subr.bf16.mxu0 0
    %3854 = vmatpush2.bf16.msra.mxu0 %v3805
    %3855 = vmatprep.subr.bf16.mxu0 0
    %3856 = vmatpush2.bf16.msra.mxu0 %v3804
    %3857 = vmatprep.subr.bf16.mxu0 0
    %3858 = vmatpush2.bf16.msra.mxu0 %v3803
    %3859 = vmatprep.mubr.bf16.mxu0 %v2089
    %3860 = vmatmul.mubr.bf16.gmra.mxu0 %v2088
    %v3861 = vpop.f32.mrf.mxu0
    %v3862 = vadd.f32 %v3729, %v3861
    %v3863 = vpop.f32.mrf.mxu0
    %v3864 = vpop.f32.mrf.mxu0
    %v3865 = vpop.f32.mrf.mxu0
    %3866 = vdwg.mxu0
    %v3867 = vmax.f32 %v3862, 0.0
    %v3868 = vmax.f32 %v2265, %v2443
    %v3869 = vmax.f32 %v3868, %v2621
    %v3870 = vmax.f32 %v3869, %v2799
    %v3871 = vmax.f32 %v3870, %v2977
    %v3872 = vmax.f32 %v3871, %v3155
    %v3873 = vmax.f32 %v3872, %v3333
    %v3874 = vmax.f32 %v3873, %v3511
    %v3875 = vmax.f32 %v3874, %v3689
    %v3876 = vmax.f32 %v3875, %v3867
    %v3877 = vsub.f32 %v2265, %v3876
    %v3878 = vmul.f32 %v3877, 1.442695
    %v3879 = vpow.pop %v3878
    %v3880 = vsub.f32 %v2443, %v3876
    %v3881 = vmul.f32 %v3880, 1.442695
    %v3882 = vpow.pop %v3881
    %v3883 = vsub.f32 %v2621, %v3876
    %v3884 = vmul.f32 %v3883, 1.442695
    %v3885 = vpow.pop %v3884
    %v3886 = vsub.f32 %v2799, %v3876
    %v3887 = vmul.f32 %v3886, 1.442695
    %v3888 = vpow.pop %v3887
    %v3889 = vsub.f32 %v2977, %v3876
    %v3890 = vmul.f32 %v3889, 1.442695
    %v3891 = vpow.pop %v3890
    %v3892 = vsub.f32 %v3155, %v3876
    %v3893 = vmul.f32 %v3892, 1.442695
    %v3894 = vpow.pop %v3893
    %v3895 = vsub.f32 %v3333, %v3876
    %v3896 = vmul.f32 %v3895, 1.442695
    %v3897 = vpow.pop %v3896
    %v3898 = vsub.f32 %v3511, %v3876
    %v3899 = vmul.f32 %v3898, 1.442695
    %v3900 = vpow.pop %v3899
    %v3901 = vsub.f32 %v3689, %v3876
    %v3902 = vmul.f32 %v3901, 1.442695
    %v3903 = vpow.pop %v3902
    %v3904 = vsub.f32 %v3867, %v3876
    %v3905 = vmul.f32 %v3904, 1.442695
    %v3906 = vpow.pop %v3905
    %v3907 = vadd.f32 %v3879, %v3882
    %v3908 = vadd.f32 %v3907, %v3885
    %v3909 = vadd.f32 %v3908, %v3888
    %v3910 = vadd.f32 %v3909, %v3891
    %v3911 = vadd.f32 %v3910, %v3894
    %v3912 = vadd.f32 %v3911, %v3897
    %v3913 = vadd.f32 %v3912, %v3900
    %v3914 = vadd.f32 %v3913, %v3903
    %v3915 = vadd.f32 %v3914, %v3906
    %v3916 = vrcp.pop %v3915
    %v3917 = vmul.f32 %v3879, %v3916
    %vm3918 = vcmask 244736
    %3919 = vst.msk [vmem:[%s16] sm:$0xff] %vm3918, %v3917
    %v3920 = vmul.f32 %v3882, %v3916
    %s3921 = scalar_lea.vmem %s16, 8
    %3922 = vst.msk [vmem:[%s3921] sm:$0xff] %vm3918, %v3920
    %v3923 = vmul.f32 %v3885, %v3916
    %s3924 = scalar_lea.vmem %s16, 16
    %3925 = vst.msk [vmem:[%s3924] sm:$0xff] %vm3918, %v3923
    %v3926 = vmul.f32 %v3888, %v3916
    %s3927 = scalar_lea.vmem %s16, 24
    %3928 = vst.msk [vmem:[%s3927] sm:$0xff] %vm3918, %v3926
    %v3929 = vmul.f32 %v3891, %v3916
    %s3930 = scalar_lea.vmem %s16, 32
    %3931 = vst.msk [vmem:[%s3930] sm:$0xff] %vm3918, %v3929
    %v3932 = vmul.f32 %v3894, %v3916
    %s3933 = scalar_lea.vmem %s16, 40
    %3934 = vst.msk [vmem:[%s3933] sm:$0xff] %vm3918, %v3932
    %v3935 = vmul.f32 %v3897, %v3916
    %s3936 = scalar_lea.vmem %s16, 48
    %3937 = vst.msk [vmem:[%s3936] sm:$0xff] %vm3918, %v3935
    %v3938 = vmul.f32 %v3900, %v3916
    %s3939 = scalar_lea.vmem %s16, 56
    %3940 = vst.msk [vmem:[%s3939] sm:$0xff] %vm3918, %v3938
    %v3941 = vmul.f32 %v3903, %v3916
    %s3942 = scalar_lea.vmem %s16, 64
    %3943 = vst.msk [vmem:[%s3942] sm:$0xff] %vm3918, %v3941
    %v3944 = vmul.f32 %v3906, %v3916
    %s3945 = scalar_lea.vmem %s16, 72
    %3946 = vst.msk [vmem:[%s3945] sm:$0xff] %vm3918, %v3944
    %v3947 = vld [vmem:[%s2] sm:$0xff]
    %v3948 = vadd.f32 %v2265, %v3947
    %v3949 = vstv %s55
    %v3950 = vmul.f32 %v3948, %v3949
    %s3951 = scalar_lea.vmem %s2, 8
    %v3952 = vld [vmem:[%s3951] sm:$0xff]
    %v3953 = vadd.f32 %v2443, %v3952
    %v3954 = vmul.f32 %v3953, %v3949
    %s3955 = scalar_lea.vmem %s2, 16
    %v3956 = vld [vmem:[%s3955] sm:$0xff]
    %v3957 = vadd.f32 %v2621, %v3956
    %v3958 = vmul.f32 %v3957, %v3949
    %s3959 = scalar_lea.vmem %s2, 24
    %v3960 = vld [vmem:[%s3959] sm:$0xff]
    %v3961 = vadd.f32 %v2799, %v3960
    %v3962 = vmul.f32 %v3961, %v3949
    %s3963 = scalar_lea.vmem %s2, 32
    %v3964 = vld [vmem:[%s3963] sm:$0xff]
    %v3965 = vadd.f32 %v2977, %v3964
    %v3966 = vmul.f32 %v3965, %v3949
    %s3967 = scalar_lea.vmem %s2, 40
    %v3968 = vld [vmem:[%s3967] sm:$0xff]
    %v3969 = vadd.f32 %v3155, %v3968
    %v3970 = vmul.f32 %v3969, %v3949
    %s3971 = scalar_lea.vmem %s2, 48
    %v3972 = vld [vmem:[%s3971] sm:$0xff]
    %v3973 = vadd.f32 %v3333, %v3972
    %v3974 = vmul.f32 %v3973, %v3949
    %s3975 = scalar_lea.vmem %s2, 56
    %v3976 = vld [vmem:[%s3975] sm:$0xff]
    %v3977 = vadd.f32 %v3511, %v3976
    %v3978 = vmul.f32 %v3977, %v3949
    %s3979 = scalar_lea.vmem %s2, 64
    %v3980 = vld [vmem:[%s3979] sm:$0xff]
    %v3981 = vadd.f32 %v3689, %v3980
    %v3982 = vmul.f32 %v3981, %v3949
    %s3983 = scalar_lea.vmem %s2, 72
    %v3984 = vld [vmem:[%s3983] sm:$0xff]
    %v3985 = vadd.f32 %v3867, %v3984
    %v3986 = vmul.f32 %v3985, %v3949
    %v3987 = vmax.f32 %v3950, %v3954
    %v3988 = vmax.f32 %v3987, %v3958
    %v3989 = vmax.f32 %v3988, %v3962
    %v3990 = vmax.f32 %v3989, %v3966
    %v3991 = vmax.f32 %v3990, %v3970
    %v3992 = vmax.f32 %v3991, %v3974
    %v3993 = vmax.f32 %v3992, %v3978
    %v3994 = vmax.f32 %v3993, %v3982
    %v3995 = vmax.f32 %v3994, %v3986
    %v3996 = vsub.f32 %v3950, %v3995
    %v3997 = vmul.f32 %v3996, 1.442695
    %v3998 = vpow.pop %v3997
    %v3999 = vsub.f32 %v3954, %v3995
    %v4000 = vmul.f32 %v3999, 1.442695
    %v4001 = vpow.pop %v4000
    %v4002 = vsub.f32 %v3958, %v3995
    %v4003 = vmul.f32 %v4002, 1.442695
    %v4004 = vpow.pop %v4003
    %v4005 = vsub.f32 %v3962, %v3995
    %v4006 = vmul.f32 %v4005, 1.442695
    %v4007 = vpow.pop %v4006
    %v4008 = vsub.f32 %v3966, %v3995
    %v4009 = vmul.f32 %v4008, 1.442695
    %v4010 = vpow.pop %v4009
    %v4011 = vsub.f32 %v3970, %v3995
    %v4012 = vmul.f32 %v4011, 1.442695
    %v4013 = vpow.pop %v4012
    %v4014 = vsub.f32 %v3974, %v3995
    %v4015 = vmul.f32 %v4014, 1.442695
    %v4016 = vpow.pop %v4015
    %v4017 = vsub.f32 %v3978, %v3995
    %v4018 = vmul.f32 %v4017, 1.442695
    %v4019 = vpow.pop %v4018
    %v4020 = vsub.f32 %v3982, %v3995
    %v4021 = vmul.f32 %v4020, 1.442695
    %v4022 = vpow.pop %v4021
    %v4023 = vsub.f32 %v3986, %v3995
    %v4024 = vmul.f32 %v4023, 1.442695
    %v4025 = vpow.pop %v4024
    %v4026 = vadd.f32 %v3998, %v4001
    %v4027 = vadd.f32 %v4026, %v4004
    %v4028 = vadd.f32 %v4027, %v4007
    %v4029 = vadd.f32 %v4028, %v4010
    %v4030 = vadd.f32 %v4029, %v4013
    %v4031 = vadd.f32 %v4030, %v4016
    %v4032 = vadd.f32 %v4031, %v4019
    %v4033 = vadd.f32 %v4032, %v4022
    %v4034 = vadd.f32 %v4033, %v4025
    %v4035 = vrcp.pop %v4034
    %v4036 = vmul.f32 %v3998, %v4035
    %v4037 = vmul.f32 %v4001, %v4035
    %v4038 = vmul.f32 %v4004, %v4035
    %v4039 = vmul.f32 %v4007, %v4035
    %v4040 = vmul.f32 %v4010, %v4035
    %v4041 = vmul.f32 %v4013, %v4035
    %v4042 = vmul.f32 %v4016, %v4035
    %v4043 = vmul.f32 %v4019, %v4035
    %v4044 = vmul.f32 %v4022, %v4035
    %v4045 = vmul.f32 %v4025, %v4035
    %v4046 = vpack.c.bf16 %v4036, %v4036
    %v4047 = vld [vmem:[%s9] sm:$0xff]
    %v4048 = vld [vmem:[%s9 + $0x8] sm:$0xff]
    %v4049 = vld [vmem:[%s9 + $0x10] sm:$0xff]
    %v4050 = vld [vmem:[%s9 + $0x18] sm:$0x77]
    %v4051 = vpack.c.bf16 %v4037, %v4037
    %s4052 = scalar_lea.vmem %s9, 32
    %v4053 = vld [vmem:[%s4052] sm:$0xff]
    %v4054 = vld [vmem:[%s4052 + $0x8] sm:$0xff]
    %v4055 = vld [vmem:[%s4052 + $0x10] sm:$0xff]
    %v4056 = vld [vmem:[%s4052 + $0x18] sm:$0x77]
    %v4061 = vunpack.c.l.b16 %v4053
    %v4062 = vunpack.c.h.b16 %v4053
    %v4063 = vunpack.c.l.b16 %v4054
    %v4064 = vunpack.c.h.b16 %v4054
    %v4065 = vunpack.c.l.b16 %v4055
    %v4066 = vunpack.c.h.b16 %v4055
    %v4067 = vunpack.c.l.b16 %v4056
    %v4068 = vunpack.c.h.b16 %v4056
    %v4069 = vpack.c.b16 %v4063, %v4061
    %v4070 = vpack.c.b16 %v4064, %v4062
    %v4071 = vpack.c.b16 %v4067, %v4065
    %v4072 = vpack.c.b16 %v4068, %v4066
    %v4076 = vsel %vm3918, %v4051, 0
    %vm4078 = vcmask 1046528
    %v4080 = vsel %vm4078, %v4071, 0
    %v4083 = vsel %vm4078, %v4072, 0
    %4085 = vmatprep.subr.bf16.mxu0 0
    %4086 = vmatpush1.bf16.msra.mxu0 0
    %4087 = vmatprep.subr.bf16.mxu0 0
    %4088 = vmatpush1.bf16.msra.mxu0 0
    %4089 = vmatprep.subr.bf16.mxu0 0
    %4090 = vmatpush1.bf16.msra.mxu0 0
    %4091 = vmatprep.subr.bf16.mxu0 0
    %4092 = vmatpush1.bf16.msra.mxu0 0
    %4093 = vmatprep.subr.bf16.mxu0 0
    %4094 = vmatpush1.bf16.msra.mxu0 0
    %4095 = vmatprep.subr.bf16.mxu0 0
    %4096 = vmatpush1.bf16.msra.mxu0 0
    %4097 = vmatprep.subr.bf16.mxu0 %v4083
    %4098 = vmatpush1.bf16.msra.mxu0 %v4080
    %4099 = vmatprep.subr.bf16.mxu0 %v4070
    %4100 = vmatpush1.bf16.msra.mxu0 %v4069
    %4101 = vmatprep.subr.bf16.mxu0 0
    %4102 = vmatpush2.bf16.msra.mxu0 0
    %4103 = vmatprep.subr.bf16.mxu0 0
    %4104 = vmatpush2.bf16.msra.mxu0 0
    %4105 = vmatprep.subr.bf16.mxu0 0
    %4106 = vmatpush2.bf16.msra.mxu0 0
    %4107 = vmatprep.subr.bf16.mxu0 0
    %4108 = vmatpush2.bf16.msra.mxu0 0
    %4109 = vmatprep.subr.bf16.mxu0 0
    %4110 = vmatpush2.bf16.msra.mxu0 0
    %4111 = vmatprep.subr.bf16.mxu0 0
    %4112 = vmatpush2.bf16.msra.mxu0 0
    %4113 = vmatprep.subr.bf16.mxu0 0
    %4114 = vmatpush2.bf16.msra.mxu0 0
    %4115 = vmatprep.subr.bf16.mxu0 0
    %4116 = vmatpush2.bf16.msra.mxu0 0
    %4117 = vmatprep.mubr.bf16.mxu0 0
    %4118 = vmatmul.mubr.bf16.gmra.mxu0 %v4076
    %v4119 = vpop.f32.mrf.mxu0
    %v4120 = vadd.f32 0.0, %v4119
    %v4121 = vpop.f32.mrf.mxu0
    %v4122 = vadd.f32 0.0, %v4121
    %v4123 = vpop.f32.mrf.mxu0
    %v4124 = vpop.f32.mrf.mxu0
    %4125 = vdwg.mxu0
    %v4130 = vunpack.c.l.b16 %v4047
    %v4131 = vunpack.c.h.b16 %v4047
    %v4132 = vunpack.c.l.b16 %v4048
    %v4133 = vunpack.c.h.b16 %v4048
    %v4134 = vunpack.c.l.b16 %v4049
    %v4135 = vunpack.c.h.b16 %v4049
    %v4136 = vunpack.c.l.b16 %v4050
    %v4137 = vunpack.c.h.b16 %v4050
    %v4138 = vpack.c.b16 %v4132, %v4130
    %v4139 = vpack.c.b16 %v4133, %v4131
    %v4140 = vpack.c.b16 %v4136, %v4134
    %v4141 = vpack.c.b16 %v4137, %v4135
    %v4145 = vsel %vm3918, %v4046, 0
    %v4148 = vsel %vm4078, %v4140, 0
    %v4151 = vsel %vm4078, %v4141, 0
    %4153 = vmatprep.subr.bf16.mxu0 0
    %4154 = vmatpush1.bf16.msra.mxu0 0
    %4155 = vmatprep.subr.bf16.mxu0 0
    %4156 = vmatpush1.bf16.msra.mxu0 0
    %4157 = vmatprep.subr.bf16.mxu0 0
    %4158 = vmatpush1.bf16.msra.mxu0 0
    %4159 = vmatprep.subr.bf16.mxu0 0
    %4160 = vmatpush1.bf16.msra.mxu0 0
    %4161 = vmatprep.subr.bf16.mxu0 0
    %4162 = vmatpush1.bf16.msra.mxu0 0
    %4163 = vmatprep.subr.bf16.mxu0 0
    %4164 = vmatpush1.bf16.msra.mxu0 0
    %4165 = vmatprep.subr.bf16.mxu0 %v4151
    %4166 = vmatpush1.bf16.msra.mxu0 %v4148
    %4167 = vmatprep.subr.bf16.mxu0 %v4139
    %4168 = vmatpush1.bf16.msra.mxu0 %v4138
    %4169 = vmatprep.subr.bf16.mxu0 0
    %4170 = vmatpush2.bf16.msra.mxu0 0
    %4171 = vmatprep.subr.bf16.mxu0 0
    %4172 = vmatpush2.bf16.msra.mxu0 0
    %4173 = vmatprep.subr.bf16.mxu0 0
    %4174 = vmatpush2.bf16.msra.mxu0 0
    %4175 = vmatprep.subr.bf16.mxu0 0
    %4176 = vmatpush2.bf16.msra.mxu0 0
    %4177 = vmatprep.subr.bf16.mxu0 0
    %4178 = vmatpush2.bf16.msra.mxu0 0
    %4179 = vmatprep.subr.bf16.mxu0 0
    %4180 = vmatpush2.bf16.msra.mxu0 0
    %4181 = vmatprep.subr.bf16.mxu0 0
    %4182 = vmatpush2.bf16.msra.mxu0 0
    %4183 = vmatprep.subr.bf16.mxu0 0
    %4184 = vmatpush2.bf16.msra.mxu0 0
    %4185 = vmatprep.mubr.bf16.mxu0 0
    %4186 = vmatmul.mubr.bf16.gmra.mxu0 %v4145
    %v4187 = vpop.f32.mrf.mxu0
    %v4188 = vadd.f32 %v4120, %v4187
    %v4189 = vpop.f32.mrf.mxu0
    %v4190 = vadd.f32 %v4122, %v4189
    %v4191 = vpop.f32.mrf.mxu0
    %v4192 = vpop.f32.mrf.mxu0
    %4193 = vdwg.mxu0
    %v4194 = vpack.c.bf16 %v4038, %v4038
    %s4195 = scalar_lea.vmem %s9, 64
    %v4196 = vld [vmem:[%s4195] sm:$0xff]
    %v4197 = vld [vmem:[%s4195 + $0x8] sm:$0xff]
    %v4198 = vld [vmem:[%s4195 + $0x10] sm:$0xff]
    %v4199 = vld [vmem:[%s4195 + $0x18] sm:$0x77]
    %v4204 = vunpack.c.l.b16 %v4196
    %v4205 = vunpack.c.h.b16 %v4196
    %v4206 = vunpack.c.l.b16 %v4197
    %v4207 = vunpack.c.h.b16 %v4197
    %v4208 = vunpack.c.l.b16 %v4198
    %v4209 = vunpack.c.h.b16 %v4198
    %v4210 = vunpack.c.l.b16 %v4199
    %v4211 = vunpack.c.h.b16 %v4199
    %v4212 = vpack.c.b16 %v4206, %v4204
    %v4213 = vpack.c.b16 %v4207, %v4205
    %v4214 = vpack.c.b16 %v4210, %v4208
    %v4215 = vpack.c.b16 %v4211, %v4209
    %v4219 = vsel %vm3918, %v4194, 0
    %v4222 = vsel %vm4078, %v4214, 0
    %v4225 = vsel %vm4078, %v4215, 0
    %4227 = vmatprep.subr.bf16.mxu0 0
    %4228 = vmatpush1.bf16.msra.mxu0 0
    %4229 = vmatprep.subr.bf16.mxu0 0
    %4230 = vmatpush1.bf16.msra.mxu0 0
    %4231 = vmatprep.subr.bf16.mxu0 0
    %4232 = vmatpush1.bf16.msra.mxu0 0
    %4233 = vmatprep.subr.bf16.mxu0 0
    %4234 = vmatpush1.bf16.msra.mxu0 0
    %4235 = vmatprep.subr.bf16.mxu0 0
    %4236 = vmatpush1.bf16.msra.mxu0 0
    %4237 = vmatprep.subr.bf16.mxu0 0
    %4238 = vmatpush1.bf16.msra.mxu0 0
    %4239 = vmatprep.subr.bf16.mxu0 %v4225
    %4240 = vmatpush1.bf16.msra.mxu0 %v4222
    %4241 = vmatprep.subr.bf16.mxu0 %v4213
    %4242 = vmatpush1.bf16.msra.mxu0 %v4212
    %4243 = vmatprep.subr.bf16.mxu0 0
    %4244 = vmatpush2.bf16.msra.mxu0 0
    %4245 = vmatprep.subr.bf16.mxu0 0
    %4246 = vmatpush2.bf16.msra.mxu0 0
    %4247 = vmatprep.subr.bf16.mxu0 0
    %4248 = vmatpush2.bf16.msra.mxu0 0
    %4249 = vmatprep.subr.bf16.mxu0 0
    %4250 = vmatpush2.bf16.msra.mxu0 0
    %4251 = vmatprep.subr.bf16.mxu0 0
    %4252 = vmatpush2.bf16.msra.mxu0 0
    %4253 = vmatprep.subr.bf16.mxu0 0
    %4254 = vmatpush2.bf16.msra.mxu0 0
    %4255 = vmatprep.subr.bf16.mxu0 0
    %4256 = vmatpush2.bf16.msra.mxu0 0
    %4257 = vmatprep.subr.bf16.mxu0 0
    %4258 = vmatpush2.bf16.msra.mxu0 0
    %4259 = vmatprep.mubr.bf16.mxu0 0
    %4260 = vmatmul.mubr.bf16.gmra.mxu0 %v4219
    %v4261 = vpop.f32.mrf.mxu0
    %v4262 = vadd.f32 0.0, %v4261
    %v4263 = vpop.f32.mrf.mxu0
    %v4264 = vadd.f32 0.0, %v4263
    %v4265 = vpop.f32.mrf.mxu0
    %v4266 = vpop.f32.mrf.mxu0
    %4267 = vdwg.mxu0
    %v4268 = vadd.f32 %v4188, %v4262
    %v4269 = vadd.f32 %v4190, %v4264
    %v4270 = vpack.c.bf16 %v4039, %v4039
    %s4271 = scalar_lea.vmem %s9, 96
    %v4272 = vld [vmem:[%s4271] sm:$0xff]
    %v4273 = vld [vmem:[%s4271 + $0x8] sm:$0xff]
    %v4274 = vld [vmem:[%s4271 + $0x10] sm:$0xff]
    %v4275 = vld [vmem:[%s4271 + $0x18] sm:$0x77]
    %v4280 = vunpack.c.l.b16 %v4272
    %v4281 = vunpack.c.h.b16 %v4272
    %v4282 = vunpack.c.l.b16 %v4273
    %v4283 = vunpack.c.h.b16 %v4273
    %v4284 = vunpack.c.l.b16 %v4274
    %v4285 = vunpack.c.h.b16 %v4274
    %v4286 = vunpack.c.l.b16 %v4275
    %v4287 = vunpack.c.h.b16 %v4275
    %v4288 = vpack.c.b16 %v4282, %v4280
    %v4289 = vpack.c.b16 %v4283, %v4281
    %v4290 = vpack.c.b16 %v4286, %v4284
    %v4291 = vpack.c.b16 %v4287, %v4285
    %v4295 = vsel %vm3918, %v4270, 0
    %v4298 = vsel %vm4078, %v4290, 0
    %v4301 = vsel %vm4078, %v4291, 0
    %4303 = vmatprep.subr.bf16.mxu0 0
    %4304 = vmatpush1.bf16.msra.mxu0 0
    %4305 = vmatprep.subr.bf16.mxu0 0
    %4306 = vmatpush1.bf16.msra.mxu0 0
    %4307 = vmatprep.subr.bf16.mxu0 0
    %4308 = vmatpush1.bf16.msra.mxu0 0
    %4309 = vmatprep.subr.bf16.mxu0 0
    %4310 = vmatpush1.bf16.msra.mxu0 0
    %4311 = vmatprep.subr.bf16.mxu0 0
    %4312 = vmatpush1.bf16.msra.mxu0 0
    %4313 = vmatprep.subr.bf16.mxu0 0
    %4314 = vmatpush1.bf16.msra.mxu0 0
    %4315 = vmatprep.subr.bf16.mxu0 %v4301
    %4316 = vmatpush1.bf16.msra.mxu0 %v4298
    %4317 = vmatprep.subr.bf16.mxu0 %v4289
    %4318 = vmatpush1.bf16.msra.mxu0 %v4288
    %4319 = vmatprep.subr.bf16.mxu0 0
    %4320 = vmatpush2.bf16.msra.mxu0 0
    %4321 = vmatprep.subr.bf16.mxu0 0
    %4322 = vmatpush2.bf16.msra.mxu0 0
    %4323 = vmatprep.subr.bf16.mxu0 0
    %4324 = vmatpush2.bf16.msra.mxu0 0
    %4325 = vmatprep.subr.bf16.mxu0 0
    %4326 = vmatpush2.bf16.msra.mxu0 0
    %4327 = vmatprep.subr.bf16.mxu0 0
    %4328 = vmatpush2.bf16.msra.mxu0 0
    %4329 = vmatprep.subr.bf16.mxu0 0
    %4330 = vmatpush2.bf16.msra.mxu0 0
    %4331 = vmatprep.subr.bf16.mxu0 0
    %4332 = vmatpush2.bf16.msra.mxu0 0
    %4333 = vmatprep.subr.bf16.mxu0 0
    %4334 = vmatpush2.bf16.msra.mxu0 0
    %4335 = vmatprep.mubr.bf16.mxu0 0
    %4336 = vmatmul.mubr.bf16.gmra.mxu0 %v4295
    %v4337 = vpop.f32.mrf.mxu0
    %v4338 = vadd.f32 0.0, %v4337
    %v4339 = vpop.f32.mrf.mxu0
    %v4340 = vadd.f32 0.0, %v4339
    %v4341 = vpop.f32.mrf.mxu0
    %v4342 = vpop.f32.mrf.mxu0
    %4343 = vdwg.mxu0
    %v4344 = vadd.f32 %v4268, %v4338
    %v4345 = vadd.f32 %v4269, %v4340
    %v4346 = vpack.c.bf16 %v4040, %v4040
    %s4347 = scalar_lea.vmem %s9, 128
    %v4348 = vld [vmem:[%s4347] sm:$0xff]
    %v4349 = vld [vmem:[%s4347 + $0x8] sm:$0xff]
    %v4350 = vld [vmem:[%s4347 + $0x10] sm:$0xff]
    %v4351 = vld [vmem:[%s4347 + $0x18] sm:$0x77]
    %v4356 = vunpack.c.l.b16 %v4348
    %v4357 = vunpack.c.h.b16 %v4348
    %v4358 = vunpack.c.l.b16 %v4349
    %v4359 = vunpack.c.h.b16 %v4349
    %v4360 = vunpack.c.l.b16 %v4350
    %v4361 = vunpack.c.h.b16 %v4350
    %v4362 = vunpack.c.l.b16 %v4351
    %v4363 = vunpack.c.h.b16 %v4351
    %v4364 = vpack.c.b16 %v4358, %v4356
    %v4365 = vpack.c.b16 %v4359, %v4357
    %v4366 = vpack.c.b16 %v4362, %v4360
    %v4367 = vpack.c.b16 %v4363, %v4361
    %v4371 = vsel %vm3918, %v4346, 0
    %v4374 = vsel %vm4078, %v4366, 0
    %v4377 = vsel %vm4078, %v4367, 0
    %4379 = vmatprep.subr.bf16.mxu0 0
    %4380 = vmatpush1.bf16.msra.mxu0 0
    %4381 = vmatprep.subr.bf16.mxu0 0
    %4382 = vmatpush1.bf16.msra.mxu0 0
    %4383 = vmatprep.subr.bf16.mxu0 0
    %4384 = vmatpush1.bf16.msra.mxu0 0
    %4385 = vmatprep.subr.bf16.mxu0 0
    %4386 = vmatpush1.bf16.msra.mxu0 0
    %4387 = vmatprep.subr.bf16.mxu0 0
    %4388 = vmatpush1.bf16.msra.mxu0 0
    %4389 = vmatprep.subr.bf16.mxu0 0
    %4390 = vmatpush1.bf16.msra.mxu0 0
    %4391 = vmatprep.subr.bf16.mxu0 %v4377
    %4392 = vmatpush1.bf16.msra.mxu0 %v4374
    %4393 = vmatprep.subr.bf16.mxu0 %v4365
    %4394 = vmatpush1.bf16.msra.mxu0 %v4364
    %4395 = vmatprep.subr.bf16.mxu0 0
    %4396 = vmatpush2.bf16.msra.mxu0 0
    %4397 = vmatprep.subr.bf16.mxu0 0
    %4398 = vmatpush2.bf16.msra.mxu0 0
    %4399 = vmatprep.subr.bf16.mxu0 0
    %4400 = vmatpush2.bf16.msra.mxu0 0
    %4401 = vmatprep.subr.bf16.mxu0 0
    %4402 = vmatpush2.bf16.msra.mxu0 0
    %4403 = vmatprep.subr.bf16.mxu0 0
    %4404 = vmatpush2.bf16.msra.mxu0 0
    %4405 = vmatprep.subr.bf16.mxu0 0
    %4406 = vmatpush2.bf16.msra.mxu0 0
    %4407 = vmatprep.subr.bf16.mxu0 0
    %4408 = vmatpush2.bf16.msra.mxu0 0
    %4409 = vmatprep.subr.bf16.mxu0 0
    %4410 = vmatpush2.bf16.msra.mxu0 0
    %4411 = vmatprep.mubr.bf16.mxu0 0
    %4412 = vmatmul.mubr.bf16.gmra.mxu0 %v4371
    %v4413 = vpop.f32.mrf.mxu0
    %v4414 = vadd.f32 0.0, %v4413
    %v4415 = vpop.f32.mrf.mxu0
    %v4416 = vadd.f32 0.0, %v4415
    %v4417 = vpop.f32.mrf.mxu0
    %v4418 = vpop.f32.mrf.mxu0
    %4419 = vdwg.mxu0
    %v4420 = vadd.f32 %v4344, %v4414
    %v4421 = vadd.f32 %v4345, %v4416
    %v4422 = vpack.c.bf16 %v4041, %v4041
    %s4423 = scalar_lea.vmem %s9, 160
    %v4424 = vld [vmem:[%s4423] sm:$0xff]
    %v4425 = vld [vmem:[%s4423 + $0x8] sm:$0xff]
    %v4426 = vld [vmem:[%s4423 + $0x10] sm:$0xff]
    %v4427 = vld [vmem:[%s4423 + $0x18] sm:$0x77]
    %v4432 = vunpack.c.l.b16 %v4424
    %v4433 = vunpack.c.h.b16 %v4424
    %v4434 = vunpack.c.l.b16 %v4425
    %v4435 = vunpack.c.h.b16 %v4425
    %v4436 = vunpack.c.l.b16 %v4426
    %v4437 = vunpack.c.h.b16 %v4426
    %v4438 = vunpack.c.l.b16 %v4427
    %v4439 = vunpack.c.h.b16 %v4427
    %v4440 = vpack.c.b16 %v4434, %v4432
    %v4441 = vpack.c.b16 %v4435, %v4433
    %v4442 = vpack.c.b16 %v4438, %v4436
    %v4443 = vpack.c.b16 %v4439, %v4437
    %v4447 = vsel %vm3918, %v4422, 0
    %v4450 = vsel %vm4078, %v4442, 0
    %v4453 = vsel %vm4078, %v4443, 0
    %4455 = vmatprep.subr.bf16.mxu0 0
    %4456 = vmatpush1.bf16.msra.mxu0 0
    %4457 = vmatprep.subr.bf16.mxu0 0
    %4458 = vmatpush1.bf16.msra.mxu0 0
    %4459 = vmatprep.subr.bf16.mxu0 0
    %4460 = vmatpush1.bf16.msra.mxu0 0
    %4461 = vmatprep.subr.bf16.mxu0 0
    %4462 = vmatpush1.bf16.msra.mxu0 0
    %4463 = vmatprep.subr.bf16.mxu0 0
    %4464 = vmatpush1.bf16.msra.mxu0 0
    %4465 = vmatprep.subr.bf16.mxu0 0
    %4466 = vmatpush1.bf16.msra.mxu0 0
    %4467 = vmatprep.subr.bf16.mxu0 %v4453
    %4468 = vmatpush1.bf16.msra.mxu0 %v4450
    %4469 = vmatprep.subr.bf16.mxu0 %v4441
    %4470 = vmatpush1.bf16.msra.mxu0 %v4440
    %4471 = vmatprep.subr.bf16.mxu0 0
    %4472 = vmatpush2.bf16.msra.mxu0 0
    %4473 = vmatprep.subr.bf16.mxu0 0
    %4474 = vmatpush2.bf16.msra.mxu0 0
    %4475 = vmatprep.subr.bf16.mxu0 0
    %4476 = vmatpush2.bf16.msra.mxu0 0
    %4477 = vmatprep.subr.bf16.mxu0 0
    %4478 = vmatpush2.bf16.msra.mxu0 0
    %4479 = vmatprep.subr.bf16.mxu0 0
    %4480 = vmatpush2.bf16.msra.mxu0 0
    %4481 = vmatprep.subr.bf16.mxu0 0
    %4482 = vmatpush2.bf16.msra.mxu0 0
    %4483 = vmatprep.subr.bf16.mxu0 0
    %4484 = vmatpush2.bf16.msra.mxu0 0
    %4485 = vmatprep.subr.bf16.mxu0 0
    %4486 = vmatpush2.bf16.msra.mxu0 0
    %4487 = vmatprep.mubr.bf16.mxu0 0
    %4488 = vmatmul.mubr.bf16.gmra.mxu0 %v4447
    %v4489 = vpop.f32.mrf.mxu0
    %v4490 = vadd.f32 0.0, %v4489
    %v4491 = vpop.f32.mrf.mxu0
    %v4492 = vadd.f32 0.0, %v4491
    %v4493 = vpop.f32.mrf.mxu0
    %v4494 = vpop.f32.mrf.mxu0
    %4495 = vdwg.mxu0
    %v4496 = vadd.f32 %v4420, %v4490
    %v4497 = vadd.f32 %v4421, %v4492
    %v4498 = vpack.c.bf16 %v4042, %v4042
    %s4499 = scalar_lea.vmem %s9, 192
    %v4500 = vld [vmem:[%s4499] sm:$0xff]
    %v4501 = vld [vmem:[%s4499 + $0x8] sm:$0xff]
    %v4502 = vld [vmem:[%s4499 + $0x10] sm:$0xff]
    %v4503 = vld [vmem:[%s4499 + $0x18] sm:$0x77]
    %v4508 = vunpack.c.l.b16 %v4500
    %v4509 = vunpack.c.h.b16 %v4500
    %v4510 = vunpack.c.l.b16 %v4501
    %v4511 = vunpack.c.h.b16 %v4501
    %v4512 = vunpack.c.l.b16 %v4502
    %v4513 = vunpack.c.h.b16 %v4502
    %v4514 = vunpack.c.l.b16 %v4503
    %v4515 = vunpack.c.h.b16 %v4503
    %v4516 = vpack.c.b16 %v4510, %v4508
    %v4517 = vpack.c.b16 %v4511, %v4509
    %v4518 = vpack.c.b16 %v4514, %v4512
    %v4519 = vpack.c.b16 %v4515, %v4513
    %v4523 = vsel %vm3918, %v4498, 0
    %v4526 = vsel %vm4078, %v4518, 0
    %v4529 = vsel %vm4078, %v4519, 0
    %4531 = vmatprep.subr.bf16.mxu0 0
    %4532 = vmatpush1.bf16.msra.mxu0 0
    %4533 = vmatprep.subr.bf16.mxu0 0
    %4534 = vmatpush1.bf16.msra.mxu0 0
    %4535 = vmatprep.subr.bf16.mxu0 0
    %4536 = vmatpush1.bf16.msra.mxu0 0
    %4537 = vmatprep.subr.bf16.mxu0 0
    %4538 = vmatpush1.bf16.msra.mxu0 0
    %4539 = vmatprep.subr.bf16.mxu0 0
    %4540 = vmatpush1.bf16.msra.mxu0 0
    %4541 = vmatprep.subr.bf16.mxu0 0
    %4542 = vmatpush1.bf16.msra.mxu0 0
    %4543 = vmatprep.subr.bf16.mxu0 %v4529
    %4544 = vmatpush1.bf16.msra.mxu0 %v4526
    %4545 = vmatprep.subr.bf16.mxu0 %v4517
    %4546 = vmatpush1.bf16.msra.mxu0 %v4516
    %4547 = vmatprep.subr.bf16.mxu0 0
    %4548 = vmatpush2.bf16.msra.mxu0 0
    %4549 = vmatprep.subr.bf16.mxu0 0
    %4550 = vmatpush2.bf16.msra.mxu0 0
    %4551 = vmatprep.subr.bf16.mxu0 0
    %4552 = vmatpush2.bf16.msra.mxu0 0
    %4553 = vmatprep.subr.bf16.mxu0 0
    %4554 = vmatpush2.bf16.msra.mxu0 0
    %4555 = vmatprep.subr.bf16.mxu0 0
    %4556 = vmatpush2.bf16.msra.mxu0 0
    %4557 = vmatprep.subr.bf16.mxu0 0
    %4558 = vmatpush2.bf16.msra.mxu0 0
    %4559 = vmatprep.subr.bf16.mxu0 0
    %4560 = vmatpush2.bf16.msra.mxu0 0
    %4561 = vmatprep.subr.bf16.mxu0 0
    %4562 = vmatpush2.bf16.msra.mxu0 0
    %4563 = vmatprep.mubr.bf16.mxu0 0
    %4564 = vmatmul.mubr.bf16.gmra.mxu0 %v4523
    %v4565 = vpop.f32.mrf.mxu0
    %v4566 = vadd.f32 0.0, %v4565
    %v4567 = vpop.f32.mrf.mxu0
    %v4568 = vadd.f32 0.0, %v4567
    %v4569 = vpop.f32.mrf.mxu0
    %v4570 = vpop.f32.mrf.mxu0
    %4571 = vdwg.mxu0
    %v4572 = vadd.f32 %v4496, %v4566
    %v4573 = vadd.f32 %v4497, %v4568
    %v4574 = vpack.c.bf16 %v4043, %v4043
    %s4575 = scalar_lea.vmem %s9, 224
    %v4576 = vld [vmem:[%s4575] sm:$0xff]
    %v4577 = vld [vmem:[%s4575 + $0x8] sm:$0xff]
    %v4578 = vld [vmem:[%s4575 + $0x10] sm:$0xff]
    %v4579 = vld [vmem:[%s4575 + $0x18] sm:$0x77]
    %v4584 = vunpack.c.l.b16 %v4576
    %v4585 = vunpack.c.h.b16 %v4576
    %v4586 = vunpack.c.l.b16 %v4577
    %v4587 = vunpack.c.h.b16 %v4577
    %v4588 = vunpack.c.l.b16 %v4578
    %v4589 = vunpack.c.h.b16 %v4578
    %v4590 = vunpack.c.l.b16 %v4579
    %v4591 = vunpack.c.h.b16 %v4579
    %v4592 = vpack.c.b16 %v4586, %v4584
    %v4593 = vpack.c.b16 %v4587, %v4585
    %v4594 = vpack.c.b16 %v4590, %v4588
    %v4595 = vpack.c.b16 %v4591, %v4589
    %v4599 = vsel %vm3918, %v4574, 0
    %v4602 = vsel %vm4078, %v4594, 0
    %v4605 = vsel %vm4078, %v4595, 0
    %4607 = vmatprep.subr.bf16.mxu0 0
    %4608 = vmatpush1.bf16.msra.mxu0 0
    %4609 = vmatprep.subr.bf16.mxu0 0
    %4610 = vmatpush1.bf16.msra.mxu0 0
    %4611 = vmatprep.subr.bf16.mxu0 0
    %4612 = vmatpush1.bf16.msra.mxu0 0
    %4613 = vmatprep.subr.bf16.mxu0 0
    %4614 = vmatpush1.bf16.msra.mxu0 0
    %4615 = vmatprep.subr.bf16.mxu0 0
    %4616 = vmatpush1.bf16.msra.mxu0 0
    %4617 = vmatprep.subr.bf16.mxu0 0
    %4618 = vmatpush1.bf16.msra.mxu0 0
    %4619 = vmatprep.subr.bf16.mxu0 %v4605
    %4620 = vmatpush1.bf16.msra.mxu0 %v4602
    %4621 = vmatprep.subr.bf16.mxu0 %v4593
    %4622 = vmatpush1.bf16.msra.mxu0 %v4592
    %4623 = vmatprep.subr.bf16.mxu0 0
    %4624 = vmatpush2.bf16.msra.mxu0 0
    %4625 = vmatprep.subr.bf16.mxu0 0
    %4626 = vmatpush2.bf16.msra.mxu0 0
    %4627 = vmatprep.subr.bf16.mxu0 0
    %4628 = vmatpush2.bf16.msra.mxu0 0
    %4629 = vmatprep.subr.bf16.mxu0 0
    %4630 = vmatpush2.bf16.msra.mxu0 0
    %4631 = vmatprep.subr.bf16.mxu0 0
    %4632 = vmatpush2.bf16.msra.mxu0 0
    %4633 = vmatprep.subr.bf16.mxu0 0
    %4634 = vmatpush2.bf16.msra.mxu0 0
    %4635 = vmatprep.subr.bf16.mxu0 0
    %4636 = vmatpush2.bf16.msra.mxu0 0
    %4637 = vmatprep.subr.bf16.mxu0 0
    %4638 = vmatpush2.bf16.msra.mxu0 0
    %4639 = vmatprep.mubr.bf16.mxu0 0
    %4640 = vmatmul.mubr.bf16.gmra.mxu0 %v4599
    %v4641 = vpop.f32.mrf.mxu0
    %v4642 = vadd.f32 0.0, %v4641
    %v4643 = vpop.f32.mrf.mxu0
    %v4644 = vadd.f32 0.0, %v4643
    %v4645 = vpop.f32.mrf.mxu0
    %v4646 = vpop.f32.mrf.mxu0
    %4647 = vdwg.mxu0
    %v4648 = vadd.f32 %v4572, %v4642
    %v4649 = vadd.f32 %v4573, %v4644
    %v4650 = vpack.c.bf16 %v4044, %v4044
    %s4651 = scalar_lea.vmem %s9, 256
    %v4652 = vld [vmem:[%s4651] sm:$0xff]
    %v4653 = vld [vmem:[%s4651 + $0x8] sm:$0xff]
    %v4654 = vld [vmem:[%s4651 + $0x10] sm:$0xff]
    %v4655 = vld [vmem:[%s4651 + $0x18] sm:$0x77]
    %v4660 = vunpack.c.l.b16 %v4652
    %v4661 = vunpack.c.h.b16 %v4652
    %v4662 = vunpack.c.l.b16 %v4653
    %v4663 = vunpack.c.h.b16 %v4653
    %v4664 = vunpack.c.l.b16 %v4654
    %v4665 = vunpack.c.h.b16 %v4654
    %v4666 = vunpack.c.l.b16 %v4655
    %v4667 = vunpack.c.h.b16 %v4655
    %v4668 = vpack.c.b16 %v4662, %v4660
    %v4669 = vpack.c.b16 %v4663, %v4661
    %v4670 = vpack.c.b16 %v4666, %v4664
    %v4671 = vpack.c.b16 %v4667, %v4665
    %v4675 = vsel %vm3918, %v4650, 0
    %v4678 = vsel %vm4078, %v4670, 0
    %v4681 = vsel %vm4078, %v4671, 0
    %4683 = vmatprep.subr.bf16.mxu0 0
    %4684 = vmatpush1.bf16.msra.mxu0 0
    %4685 = vmatprep.subr.bf16.mxu0 0
    %4686 = vmatpush1.bf16.msra.mxu0 0
    %4687 = vmatprep.subr.bf16.mxu0 0
    %4688 = vmatpush1.bf16.msra.mxu0 0
    %4689 = vmatprep.subr.bf16.mxu0 0
    %4690 = vmatpush1.bf16.msra.mxu0 0
    %4691 = vmatprep.subr.bf16.mxu0 0
    %4692 = vmatpush1.bf16.msra.mxu0 0
    %4693 = vmatprep.subr.bf16.mxu0 0
    %4694 = vmatpush1.bf16.msra.mxu0 0
    %4695 = vmatprep.subr.bf16.mxu0 %v4681
    %4696 = vmatpush1.bf16.msra.mxu0 %v4678
    %4697 = vmatprep.subr.bf16.mxu0 %v4669
    %4698 = vmatpush1.bf16.msra.mxu0 %v4668
    %4699 = vmatprep.subr.bf16.mxu0 0
    %4700 = vmatpush2.bf16.msra.mxu0 0
    %4701 = vmatprep.subr.bf16.mxu0 0
    %4702 = vmatpush2.bf16.msra.mxu0 0
    %4703 = vmatprep.subr.bf16.mxu0 0
    %4704 = vmatpush2.bf16.msra.mxu0 0
    %4705 = vmatprep.subr.bf16.mxu0 0
    %4706 = vmatpush2.bf16.msra.mxu0 0
    %4707 = vmatprep.subr.bf16.mxu0 0
    %4708 = vmatpush2.bf16.msra.mxu0 0
    %4709 = vmatprep.subr.bf16.mxu0 0
    %4710 = vmatpush2.bf16.msra.mxu0 0
    %4711 = vmatprep.subr.bf16.mxu0 0
    %4712 = vmatpush2.bf16.msra.mxu0 0
    %4713 = vmatprep.subr.bf16.mxu0 0
    %4714 = vmatpush2.bf16.msra.mxu0 0
    %4715 = vmatprep.mubr.bf16.mxu0 0
    %4716 = vmatmul.mubr.bf16.gmra.mxu0 %v4675
    %v4717 = vpop.f32.mrf.mxu0
    %v4718 = vadd.f32 0.0, %v4717
    %v4719 = vpop.f32.mrf.mxu0
    %v4720 = vadd.f32 0.0, %v4719
    %v4721 = vpop.f32.mrf.mxu0
    %v4722 = vpop.f32.mrf.mxu0
    %4723 = vdwg.mxu0
    %v4724 = vadd.f32 %v4648, %v4718
    %v4725 = vadd.f32 %v4649, %v4720
    %v4726 = vpack.c.bf16 %v4045, %v4045
    %s4727 = scalar_lea.vmem %s9, 288
    %v4728 = vld [vmem:[%s4727] sm:$0xff]
    %v4729 = vld [vmem:[%s4727 + $0x8] sm:$0xff]
    %v4730 = vld [vmem:[%s4727 + $0x10] sm:$0xff]
    %v4731 = vld [vmem:[%s4727 + $0x18] sm:$0x77]
    %v4736 = vunpack.c.l.b16 %v4728
    %v4737 = vunpack.c.h.b16 %v4728
    %v4738 = vunpack.c.l.b16 %v4729
    %v4739 = vunpack.c.h.b16 %v4729
    %v4740 = vunpack.c.l.b16 %v4730
    %v4741 = vunpack.c.h.b16 %v4730
    %v4742 = vunpack.c.l.b16 %v4731
    %v4743 = vunpack.c.h.b16 %v4731
    %v4744 = vpack.c.b16 %v4738, %v4736
    %v4745 = vpack.c.b16 %v4739, %v4737
    %v4746 = vpack.c.b16 %v4742, %v4740
    %v4747 = vpack.c.b16 %v4743, %v4741
    %v4751 = vsel %vm3918, %v4726, 0
    %v4754 = vsel %vm4078, %v4746, 0
    %v4757 = vsel %vm4078, %v4747, 0
    %4759 = vmatprep.subr.bf16.mxu0 0
    %4760 = vmatpush1.bf16.msra.mxu0 0
    %4761 = vmatprep.subr.bf16.mxu0 0
    %4762 = vmatpush1.bf16.msra.mxu0 0
    %4763 = vmatprep.subr.bf16.mxu0 0
    %4764 = vmatpush1.bf16.msra.mxu0 0
    %4765 = vmatprep.subr.bf16.mxu0 0
    %4766 = vmatpush1.bf16.msra.mxu0 0
    %4767 = vmatprep.subr.bf16.mxu0 0
    %4768 = vmatpush1.bf16.msra.mxu0 0
    %4769 = vmatprep.subr.bf16.mxu0 0
    %4770 = vmatpush1.bf16.msra.mxu0 0
    %4771 = vmatprep.subr.bf16.mxu0 %v4757
    %4772 = vmatpush1.bf16.msra.mxu0 %v4754
    %4773 = vmatprep.subr.bf16.mxu0 %v4745
    %4774 = vmatpush1.bf16.msra.mxu0 %v4744
    %4775 = vmatprep.subr.bf16.mxu0 0
    %4776 = vmatpush2.bf16.msra.mxu0 0
    %4777 = vmatprep.subr.bf16.mxu0 0
    %4778 = vmatpush2.bf16.msra.mxu0 0
    %4779 = vmatprep.subr.bf16.mxu0 0
    %4780 = vmatpush2.bf16.msra.mxu0 0
    %4781 = vmatprep.subr.bf16.mxu0 0
    %4782 = vmatpush2.bf16.msra.mxu0 0
    %4783 = vmatprep.subr.bf16.mxu0 0
    %4784 = vmatpush2.bf16.msra.mxu0 0
    %4785 = vmatprep.subr.bf16.mxu0 0
    %4786 = vmatpush2.bf16.msra.mxu0 0
    %4787 = vmatprep.subr.bf16.mxu0 0
    %4788 = vmatpush2.bf16.msra.mxu0 0
    %4789 = vmatprep.subr.bf16.mxu0 0
    %4790 = vmatpush2.bf16.msra.mxu0 0
    %4791 = vmatprep.mubr.bf16.mxu0 0
    %4792 = vmatmul.mubr.bf16.gmra.mxu0 %v4751
    %v4793 = vpop.f32.mrf.mxu0
    %v4794 = vadd.f32 0.0, %v4793
    %v4795 = vpop.f32.mrf.mxu0
    %v4796 = vadd.f32 0.0, %v4795
    %v4797 = vpop.f32.mrf.mxu0
    %v4798 = vpop.f32.mrf.mxu0
    %4799 = vdwg.mxu0
    %v4800 = vadd.f32 %v4724, %v4794
    %v4801 = vadd.f32 %v4725, %v4796
    %v4802 = vld [vmem:[%s10] sm:$0x3]
    %v4804 = vlaneseq
    %v4805 = vshrl.u32 %v4804, 7
    %v4806 = vsub.s32 0, %v4805
    %v4807 = vrot.slane %v4802, %v4806
    %v4808 = vlaneseq
    %v4809 = vshrl.u32 %v4808, 7
    %v4810 = vsub.s32 1, %v4809
    %v4811 = vrot.slane %v4802, %v4810
    %v4814 = vadd.f32 %v4800, %v4807
    %v4815 = vadd.f32 %v4801, %v4811
    %v4816 = vmax.f32 %v4814, 0.0
    %v4817 = vmax.f32 %v4815, 0.0
    %v4818 = vpack.c.bf16 %v4816, %v4816
    %v4819 = vpack.c.bf16 %v4817, %v4817
    %v4820 = vld [vmem:[%s11] sm:$0xff]
    %v4821 = vld [vmem:[%s11 + $0x8] sm:$0xff]
    %v4822 = vld [vmem:[%s11 + $0x10] sm:$0xff]
    %v4823 = vld [vmem:[%s11 + $0x18] sm:$0xff]
    %v4824 = vld [vmem:[%s11 + $0x20] sm:$0xff]
    %v4825 = vld [vmem:[%s11 + $0x28] sm:$0xff]
    %v4826 = vld [vmem:[%s11 + $0x30] sm:$0xff]
    %v4827 = vld [vmem:[%s11 + $0x38] sm:$0xff]
    %v4828 = vld [vmem:[%s11 + $0x40] sm:$0xff]
    %v4829 = vld [vmem:[%s11 + $0x48] sm:$0xff]
    %v4830 = vld [vmem:[%s11 + $0x50] sm:$0xff]
    %v4831 = vld [vmem:[%s11 + $0x58] sm:$0xff]
    %v4832 = vld [vmem:[%s11 + $0x60] sm:$0xff]
    %v4833 = vld [vmem:[%s11 + $0x68] sm:$0xff]
    %v4834 = vld [vmem:[%s11 + $0x70] sm:$0xff]
    %v4835 = vld [vmem:[%s11 + $0x78] sm:$0xff]
    %v4836 = vld [vmem:[%s11 + $0x80] sm:$0xff]
    %v4837 = vld [vmem:[%s11 + $0x88] sm:$0xff]
    %v4838 = vld [vmem:[%s11 + $0x90] sm:$0xff]
    %v4839 = vld [vmem:[%s11 + $0x98] sm:$0xff]
    %v4840 = vld [vmem:[%s11 + $0xa0] sm:$0xff]
    %v4841 = vld [vmem:[%s11 + $0xa8] sm:$0xff]
    %v4842 = vld [vmem:[%s11 + $0xb0] sm:$0xff]
    %v4843 = vld [vmem:[%s11 + $0xb8] sm:$0xff]
    %v4844 = vld [vmem:[%s11 + $0xc0] sm:$0xff]
    %v4845 = vld [vmem:[%s11 + $0xc8] sm:$0xff]
    %v4846 = vld [vmem:[%s11 + $0xd0] sm:$0xff]
    %v4847 = vld [vmem:[%s11 + $0xd8] sm:$0xff]
    %v4848 = vld [vmem:[%s11 + $0xe0] sm:$0xff]
    %v4849 = vld [vmem:[%s11 + $0xe8] sm:$0xff]
    %v4850 = vld [vmem:[%s11 + $0xf0] sm:$0xff]
    %v4851 = vld [vmem:[%s11 + $0xf8] sm:$0xff]
    %v4852 = vld [vmem:[%s11 + $0x100] sm:$0xff]
    %v4853 = vld [vmem:[%s11 + $0x108] sm:$0xff]
    %v4854 = vld [vmem:[%s11 + $0x110] sm:$0xff]
    %v4855 = vld [vmem:[%s11 + $0x118] sm:$0xff]
    %v4856 = vld [vmem:[%s11 + $0x120] sm:$0xff]
    %v4857 = vld [vmem:[%s11 + $0x128] sm:$0xff]
    %v4858 = vld [vmem:[%s11 + $0x130] sm:$0xff]
    %v4859 = vld [vmem:[%s11 + $0x138] sm:$0xff]
    %v4860 = vld [vmem:[%s11 + $0x140] sm:$0xff]
    %v4861 = vld [vmem:[%s11 + $0x148] sm:$0xff]
    %v4862 = vld [vmem:[%s11 + $0x150] sm:$0xff]
    %v4863 = vld [vmem:[%s11 + $0x158] sm:$0xff]
    %v4864 = vld [vmem:[%s11 + $0x160] sm:$0xff]
    %v4865 = vld [vmem:[%s11 + $0x168] sm:$0xff]
    %v4866 = vld [vmem:[%s11 + $0x170] sm:$0xff]
    %v4867 = vld [vmem:[%s11 + $0x178] sm:$0xff]
    %v4868 = vld [vmem:[%s11 + $0x180] sm:$0xff]
    %v4869 = vld [vmem:[%s11 + $0x188] sm:$0xff]
    %v4870 = vld [vmem:[%s11 + $0x190] sm:$0xff]
    %v4871 = vld [vmem:[%s11 + $0x198] sm:$0xff]
    %v4872 = vld [vmem:[%s11 + $0x1a0] sm:$0xff]
    %v4873 = vld [vmem:[%s11 + $0x1a8] sm:$0xff]
    %v4874 = vld [vmem:[%s11 + $0x1b0] sm:$0xff]
    %v4875 = vld [vmem:[%s11 + $0x1b8] sm:$0xff]
    %v4876 = vld [vmem:[%s11 + $0x1c0] sm:$0xff]
    %v4877 = vld [vmem:[%s11 + $0x1c8] sm:$0xff]
    %v4878 = vld [vmem:[%s11 + $0x1d0] sm:$0xff]
    %v4879 = vld [vmem:[%s11 + $0x1d8] sm:$0xff]
    %v4880 = vld [vmem:[%s11 + $0x1e0] sm:$0xff]
    %v4881 = vld [vmem:[%s11 + $0x1e8] sm:$0xff]
    %v4882 = vld [vmem:[%s11 + $0x1f0] sm:$0xff]
    %v4883 = vld [vmem:[%s11 + $0x1f8] sm:$0xff]
    %v4884 = vld [vmem:[%s12] sm:$0xf]
    %v4886 = vlaneseq
    %v4887 = vshrl.u32 %v4886, 7
    %v4888 = vsub.s32 0, %v4887
    %v4889 = vrot.slane %v4884, %v4888
    %v4890 = vlaneseq
    %v4891 = vshrl.u32 %v4890, 7
    %v4892 = vsub.s32 1, %v4891
    %v4893 = vrot.slane %v4884, %v4892
    %v4894 = vlaneseq
    %v4895 = vshrl.u32 %v4894, 7
    %v4896 = vsub.s32 2, %v4895
    %v4897 = vrot.slane %v4884, %v4896
    %v4898 = vlaneseq
    %v4899 = vshrl.u32 %v4898, 7
    %v4900 = vsub.s32 3, %v4899
    %v4901 = vrot.slane %v4884, %v4900
    %v4970 = vunpack.c.l.b16 %v4820
    %v4971 = vunpack.c.h.b16 %v4820
    %v4972 = vunpack.c.l.b16 %v4821
    %v4973 = vunpack.c.h.b16 %v4821
    %v4974 = vunpack.c.l.b16 %v4822
    %v4975 = vunpack.c.h.b16 %v4822
    %v4976 = vunpack.c.l.b16 %v4823
    %v4977 = vunpack.c.h.b16 %v4823
    %v4978 = vunpack.c.l.b16 %v4824
    %v4979 = vunpack.c.h.b16 %v4824
    %v4980 = vunpack.c.l.b16 %v4825
    %v4981 = vunpack.c.h.b16 %v4825
    %v4982 = vunpack.c.l.b16 %v4826
    %v4983 = vunpack.c.h.b16 %v4826
    %v4984 = vunpack.c.l.b16 %v4827
    %v4985 = vunpack.c.h.b16 %v4827
    %v4986 = vunpack.c.l.b16 %v4828
    %v4987 = vunpack.c.h.b16 %v4828
    %v4988 = vunpack.c.l.b16 %v4829
    %v4989 = vunpack.c.h.b16 %v4829
    %v4990 = vunpack.c.l.b16 %v4830
    %v4991 = vunpack.c.h.b16 %v4830
    %v4992 = vunpack.c.l.b16 %v4831
    %v4993 = vunpack.c.h.b16 %v4831
    %v4994 = vunpack.c.l.b16 %v4832
    %v4995 = vunpack.c.h.b16 %v4832
    %v4996 = vunpack.c.l.b16 %v4833
    %v4997 = vunpack.c.h.b16 %v4833
    %v4998 = vunpack.c.l.b16 %v4834
    %v4999 = vunpack.c.h.b16 %v4834
    %v5000 = vunpack.c.l.b16 %v4835
    %v5001 = vunpack.c.h.b16 %v4835
    %v5002 = vunpack.c.l.b16 %v4836
    %v5003 = vunpack.c.h.b16 %v4836
    %v5004 = vunpack.c.l.b16 %v4837
    %v5005 = vunpack.c.h.b16 %v4837
    %v5006 = vunpack.c.l.b16 %v4838
    %v5007 = vunpack.c.h.b16 %v4838
    %v5008 = vunpack.c.l.b16 %v4839
    %v5009 = vunpack.c.h.b16 %v4839
    %v5010 = vunpack.c.l.b16 %v4840
    %v5011 = vunpack.c.h.b16 %v4840
    %v5012 = vunpack.c.l.b16 %v4841
    %v5013 = vunpack.c.h.b16 %v4841
    %v5014 = vunpack.c.l.b16 %v4842
    %v5015 = vunpack.c.h.b16 %v4842
    %v5016 = vunpack.c.l.b16 %v4843
    %v5017 = vunpack.c.h.b16 %v4843
    %v5018 = vunpack.c.l.b16 %v4844
    %v5019 = vunpack.c.h.b16 %v4844
    %v5020 = vunpack.c.l.b16 %v4845
    %v5021 = vunpack.c.h.b16 %v4845
    %v5022 = vunpack.c.l.b16 %v4846
    %v5023 = vunpack.c.h.b16 %v4846
    %v5024 = vunpack.c.l.b16 %v4847
    %v5025 = vunpack.c.h.b16 %v4847
    %v5026 = vunpack.c.l.b16 %v4848
    %v5027 = vunpack.c.h.b16 %v4848
    %v5028 = vunpack.c.l.b16 %v4849
    %v5029 = vunpack.c.h.b16 %v4849
    %v5030 = vunpack.c.l.b16 %v4850
    %v5031 = vunpack.c.h.b16 %v4850
    %v5032 = vunpack.c.l.b16 %v4851
    %v5033 = vunpack.c.h.b16 %v4851
    %v5034 = vunpack.c.l.b16 %v4852
    %v5035 = vunpack.c.h.b16 %v4852
    %v5036 = vunpack.c.l.b16 %v4853
    %v5037 = vunpack.c.h.b16 %v4853
    %v5038 = vunpack.c.l.b16 %v4854
    %v5039 = vunpack.c.h.b16 %v4854
    %v5040 = vunpack.c.l.b16 %v4855
    %v5041 = vunpack.c.h.b16 %v4855
    %v5042 = vunpack.c.l.b16 %v4856
    %v5043 = vunpack.c.h.b16 %v4856
    %v5044 = vunpack.c.l.b16 %v4857
    %v5045 = vunpack.c.h.b16 %v4857
    %v5046 = vunpack.c.l.b16 %v4858
    %v5047 = vunpack.c.h.b16 %v4858
    %v5048 = vunpack.c.l.b16 %v4859
    %v5049 = vunpack.c.h.b16 %v4859
    %v5050 = vunpack.c.l.b16 %v4860
    %v5051 = vunpack.c.h.b16 %v4860
    %v5052 = vunpack.c.l.b16 %v4861
    %v5053 = vunpack.c.h.b16 %v4861
    %v5054 = vunpack.c.l.b16 %v4862
    %v5055 = vunpack.c.h.b16 %v4862
    %v5056 = vunpack.c.l.b16 %v4863
    %v5057 = vunpack.c.h.b16 %v4863
    %v5058 = vunpack.c.l.b16 %v4864
    %v5059 = vunpack.c.h.b16 %v4864
    %v5060 = vunpack.c.l.b16 %v4865
    %v5061 = vunpack.c.h.b16 %v4865
    %v5062 = vunpack.c.l.b16 %v4866
    %v5063 = vunpack.c.h.b16 %v4866
    %v5064 = vunpack.c.l.b16 %v4867
    %v5065 = vunpack.c.h.b16 %v4867
    %v5066 = vunpack.c.l.b16 %v4868
    %v5067 = vunpack.c.h.b16 %v4868
    %v5068 = vunpack.c.l.b16 %v4869
    %v5069 = vunpack.c.h.b16 %v4869
    %v5070 = vunpack.c.l.b16 %v4870
    %v5071 = vunpack.c.h.b16 %v4870
    %v5072 = vunpack.c.l.b16 %v4871
    %v5073 = vunpack.c.h.b16 %v4871
    %v5074 = vunpack.c.l.b16 %v4872
    %v5075 = vunpack.c.h.b16 %v4872
    %v5076 = vunpack.c.l.b16 %v4873
    %v5077 = vunpack.c.h.b16 %v4873
    %v5078 = vunpack.c.l.b16 %v4874
    %v5079 = vunpack.c.h.b16 %v4874
    %v5080 = vunpack.c.l.b16 %v4875
    %v5081 = vunpack.c.h.b16 %v4875
    %v5082 = vunpack.c.l.b16 %v4876
    %v5083 = vunpack.c.h.b16 %v4876
    %v5084 = vunpack.c.l.b16 %v4877
    %v5085 = vunpack.c.h.b16 %v4877
    %v5086 = vunpack.c.l.b16 %v4878
    %v5087 = vunpack.c.h.b16 %v4878
    %v5088 = vunpack.c.l.b16 %v4879
    %v5089 = vunpack.c.h.b16 %v4879
    %v5090 = vunpack.c.l.b16 %v4880
    %v5091 = vunpack.c.h.b16 %v4880
    %v5092 = vunpack.c.l.b16 %v4881
    %v5093 = vunpack.c.h.b16 %v4881
    %v5094 = vunpack.c.l.b16 %v4882
    %v5095 = vunpack.c.h.b16 %v4882
    %v5096 = vunpack.c.l.b16 %v4883
    %v5097 = vunpack.c.h.b16 %v4883
    %v5098 = vpack.c.b16 %v4974, %v4970
    %v5099 = vpack.c.b16 %v4975, %v4971
    %v5100 = vpack.c.b16 %v4976, %v4972
    %v5101 = vpack.c.b16 %v4977, %v4973
    %v5102 = vpack.c.b16 %v4982, %v4978
    %v5103 = vpack.c.b16 %v4983, %v4979
    %v5104 = vpack.c.b16 %v4984, %v4980
    %v5105 = vpack.c.b16 %v4985, %v4981
    %v5106 = vpack.c.b16 %v4990, %v4986
    %v5107 = vpack.c.b16 %v4991, %v4987
    %v5108 = vpack.c.b16 %v4992, %v4988
    %v5109 = vpack.c.b16 %v4993, %v4989
    %v5110 = vpack.c.b16 %v4998, %v4994
    %v5111 = vpack.c.b16 %v4999, %v4995
    %v5112 = vpack.c.b16 %v5000, %v4996
    %v5113 = vpack.c.b16 %v5001, %v4997
    %v5114 = vpack.c.b16 %v5006, %v5002
    %v5115 = vpack.c.b16 %v5007, %v5003
    %v5116 = vpack.c.b16 %v5008, %v5004
    %v5117 = vpack.c.b16 %v5009, %v5005
    %v5118 = vpack.c.b16 %v5014, %v5010
    %v5119 = vpack.c.b16 %v5015, %v5011
    %v5120 = vpack.c.b16 %v5016, %v5012
    %v5121 = vpack.c.b16 %v5017, %v5013
    %v5122 = vpack.c.b16 %v5022, %v5018
    %v5123 = vpack.c.b16 %v5023, %v5019
    %v5124 = vpack.c.b16 %v5024, %v5020
    %v5125 = vpack.c.b16 %v5025, %v5021
    %v5126 = vpack.c.b16 %v5030, %v5026
    %v5127 = vpack.c.b16 %v5031, %v5027
    %v5128 = vpack.c.b16 %v5032, %v5028
    %v5129 = vpack.c.b16 %v5033, %v5029
    %v5130 = vpack.c.b16 %v5038, %v5034
    %v5131 = vpack.c.b16 %v5039, %v5035
    %v5132 = vpack.c.b16 %v5040, %v5036
    %v5133 = vpack.c.b16 %v5041, %v5037
    %v5134 = vpack.c.b16 %v5046, %v5042
    %v5135 = vpack.c.b16 %v5047, %v5043
    %v5136 = vpack.c.b16 %v5048, %v5044
    %v5137 = vpack.c.b16 %v5049, %v5045
    %v5138 = vpack.c.b16 %v5054, %v5050
    %v5139 = vpack.c.b16 %v5055, %v5051
    %v5140 = vpack.c.b16 %v5056, %v5052
    %v5141 = vpack.c.b16 %v5057, %v5053
    %v5142 = vpack.c.b16 %v5062, %v5058
    %v5143 = vpack.c.b16 %v5063, %v5059
    %v5144 = vpack.c.b16 %v5064, %v5060
    %v5145 = vpack.c.b16 %v5065, %v5061
    %v5146 = vpack.c.b16 %v5070, %v5066
    %v5147 = vpack.c.b16 %v5071, %v5067
    %v5148 = vpack.c.b16 %v5072, %v5068
    %v5149 = vpack.c.b16 %v5073, %v5069
    %v5150 = vpack.c.b16 %v5078, %v5074
    %v5151 = vpack.c.b16 %v5079, %v5075
    %v5152 = vpack.c.b16 %v5080, %v5076
    %v5153 = vpack.c.b16 %v5081, %v5077
    %v5154 = vpack.c.b16 %v5086, %v5082
    %v5155 = vpack.c.b16 %v5087, %v5083
    %v5156 = vpack.c.b16 %v5088, %v5084
    %v5157 = vpack.c.b16 %v5089, %v5085
    %v5158 = vpack.c.b16 %v5094, %v5090
    %v5159 = vpack.c.b16 %v5095, %v5091
    %v5160 = vpack.c.b16 %v5096, %v5092
    %v5161 = vpack.c.b16 %v5097, %v5093
    %5226 = vmatprep.subr.bf16.mxu0 %v5127
    %5227 = vmatpush1.bf16.msra.mxu0 %v5126
    %5228 = vmatprep.subr.bf16.mxu0 %v5123
    %5229 = vmatpush1.bf16.msra.mxu0 %v5122
    %5230 = vmatprep.subr.bf16.mxu0 %v5119
    %5231 = vmatpush1.bf16.msra.mxu0 %v5118
    %5232 = vmatprep.subr.bf16.mxu0 %v5115
    %5233 = vmatpush1.bf16.msra.mxu0 %v5114
    %5234 = vmatprep.subr.bf16.mxu0 %v5111
    %5235 = vmatpush1.bf16.msra.mxu0 %v5110
    %5236 = vmatprep.subr.bf16.mxu0 %v5107
    %5237 = vmatpush1.bf16.msra.mxu0 %v5106
    %5238 = vmatprep.subr.bf16.mxu0 %v5103
    %5239 = vmatpush1.bf16.msra.mxu0 %v5102
    %5240 = vmatprep.subr.bf16.mxu0 %v5099
    %5241 = vmatpush1.bf16.msra.mxu0 %v5098
    %5242 = vmatprep.subr.bf16.mxu0 %v5159
    %5243 = vmatpush2.bf16.msra.mxu0 %v5158
    %5244 = vmatprep.subr.bf16.mxu0 %v5155
    %5245 = vmatpush2.bf16.msra.mxu0 %v5154
    %5246 = vmatprep.subr.bf16.mxu0 %v5151
    %5247 = vmatpush2.bf16.msra.mxu0 %v5150
    %5248 = vmatprep.subr.bf16.mxu0 %v5147
    %5249 = vmatpush2.bf16.msra.mxu0 %v5146
    %5250 = vmatprep.subr.bf16.mxu0 %v5143
    %5251 = vmatpush2.bf16.msra.mxu0 %v5142
    %5252 = vmatprep.subr.bf16.mxu0 %v5139
    %5253 = vmatpush2.bf16.msra.mxu0 %v5138
    %5254 = vmatprep.subr.bf16.mxu0 %v5135
    %5255 = vmatpush2.bf16.msra.mxu0 %v5134
    %5256 = vmatprep.subr.bf16.mxu0 %v5131
    %5257 = vmatpush2.bf16.msra.mxu0 %v5130
    %5258 = vmatprep.mubr.bf16.mxu0 %v4819
    %5259 = vmatmul.mubr.bf16.gmra.mxu0 %v4818
    %v5260 = vpop.f32.mrf.mxu0
    %v5261 = vadd.f32 %v4889, %v5260
    %v5262 = vpop.f32.mrf.mxu0
    %v5263 = vadd.f32 %v4893, %v5262
    %v5264 = vpop.f32.mrf.mxu0
    %v5265 = vpop.f32.mrf.mxu0
    %5266 = vdwg.mxu0
    %5267 = vmatprep.subr.bf16.mxu0 %v5129
    %5268 = vmatpush1.bf16.msra.mxu0 %v5128
    %5269 = vmatprep.subr.bf16.mxu0 %v5125
    %5270 = vmatpush1.bf16.msra.mxu0 %v5124
    %5271 = vmatprep.subr.bf16.mxu0 %v5121
    %5272 = vmatpush1.bf16.msra.mxu0 %v5120
    %5273 = vmatprep.subr.bf16.mxu0 %v5117
    %5274 = vmatpush1.bf16.msra.mxu0 %v5116
    %5275 = vmatprep.subr.bf16.mxu0 %v5113
    %5276 = vmatpush1.bf16.msra.mxu0 %v5112
    %5277 = vmatprep.subr.bf16.mxu0 %v5109
    %5278 = vmatpush1.bf16.msra.mxu0 %v5108
    %5279 = vmatprep.subr.bf16.mxu0 %v5105
    %5280 = vmatpush1.bf16.msra.mxu0 %v5104
    %5281 = vmatprep.subr.bf16.mxu0 %v5101
    %5282 = vmatpush1.bf16.msra.mxu0 %v5100
    %5283 = vmatprep.subr.bf16.mxu0 %v5161
    %5284 = vmatpush2.bf16.msra.mxu0 %v5160
    %5285 = vmatprep.subr.bf16.mxu0 %v5157
    %5286 = vmatpush2.bf16.msra.mxu0 %v5156
    %5287 = vmatprep.subr.bf16.mxu0 %v5153
    %5288 = vmatpush2.bf16.msra.mxu0 %v5152
    %5289 = vmatprep.subr.bf16.mxu0 %v5149
    %5290 = vmatpush2.bf16.msra.mxu0 %v5148
    %5291 = vmatprep.subr.bf16.mxu0 %v5145
    %5292 = vmatpush2.bf16.msra.mxu0 %v5144
    %5293 = vmatprep.subr.bf16.mxu0 %v5141
    %5294 = vmatpush2.bf16.msra.mxu0 %v5140
    %5295 = vmatprep.subr.bf16.mxu0 %v5137
    %5296 = vmatpush2.bf16.msra.mxu0 %v5136
    %5297 = vmatprep.subr.bf16.mxu0 %v5133
    %5298 = vmatpush2.bf16.msra.mxu0 %v5132
    %5299 = vmatprep.mubr.bf16.mxu0 %v4819
    %5300 = vmatmul.mubr.bf16.gmra.mxu0 %v4818
    %v5301 = vpop.f32.mrf.mxu0
    %v5302 = vadd.f32 %v4897, %v5301
    %v5303 = vpop.f32.mrf.mxu0
    %v5304 = vadd.f32 %v4901, %v5303
    %v5305 = vpop.f32.mrf.mxu0
    %v5306 = vpop.f32.mrf.mxu0
    %5307 = vdwg.mxu0
    %v5308 = vmax.f32 %v5261, 0.0
    %v5309 = vmax.f32 %v5263, 0.0
    %v5310 = vmax.f32 %v5302, 0.0
    %v5311 = vmax.f32 %v5304, 0.0
    %v5312 = vpack.c.bf16 %v5308, %v5308
    %v5313 = vpack.c.bf16 %v5309, %v5309
    %v5314 = vpack.c.bf16 %v5310, %v5310
    %v5315 = vpack.c.bf16 %v5311, %v5311
    %v5316 = vld [vmem:[%s13] sm:$0xff]
    %v5317 = vld [vmem:[%s13 + $0x8] sm:$0xff]
    %v5318 = vld [vmem:[%s13 + $0x10] sm:$0xff]
    %v5319 = vld [vmem:[%s13 + $0x18] sm:$0xf]
    %v5320 = vld [vmem:[%s13 + $0x1c] sm:$0xff]
    %v5321 = vld [vmem:[%s13 + $0x24] sm:$0xff]
    %v5322 = vld [vmem:[%s13 + $0x2c] sm:$0xff]
    %v5323 = vld [vmem:[%s13 + $0x34] sm:$0xf]
    %v5324 = vld [vmem:[%s13 + $0x38] sm:$0xff]
    %v5325 = vld [vmem:[%s13 + $0x40] sm:$0xff]
    %v5326 = vld [vmem:[%s13 + $0x48] sm:$0xff]
    %v5327 = vld [vmem:[%s13 + $0x50] sm:$0xf]
    %v5328 = vld [vmem:[%s13 + $0x54] sm:$0xff]
    %v5329 = vld [vmem:[%s13 + $0x5c] sm:$0xff]
    %v5330 = vld [vmem:[%s13 + $0x64] sm:$0xff]
    %v5331 = vld [vmem:[%s13 + $0x6c] sm:$0xf]
    %v5332 = vld [vmem:[%s13 + $0x70] sm:$0xff]
    %v5333 = vld [vmem:[%s13 + $0x78] sm:$0xff]
    %v5334 = vld [vmem:[%s13 + $0x80] sm:$0xff]
    %v5335 = vld [vmem:[%s13 + $0x88] sm:$0xf]
    %v5336 = vld [vmem:[%s13 + $0x8c] sm:$0xff]
    %v5337 = vld [vmem:[%s13 + $0x94] sm:$0xff]
    %v5338 = vld [vmem:[%s13 + $0x9c] sm:$0xff]
    %v5339 = vld [vmem:[%s13 + $0xa4] sm:$0xf]
    %v5340 = vld [vmem:[%s13 + $0xa8] sm:$0xff]
    %v5341 = vld [vmem:[%s13 + $0xb0] sm:$0xff]
    %v5342 = vld [vmem:[%s13 + $0xb8] sm:$0xff]
    %v5343 = vld [vmem:[%s13 + $0xc0] sm:$0xf]
    %v5344 = vld [vmem:[%s13 + $0xc4] sm:$0xff]
    %v5345 = vld [vmem:[%s13 + $0xcc] sm:$0xff]
    %v5346 = vld [vmem:[%s13 + $0xd4] sm:$0xff]
    %v5347 = vld [vmem:[%s13 + $0xdc] sm:$0xf]
    %v5348 = vld [vmem:[%s13 + $0xe0] sm:$0xff]
    %v5349 = vld [vmem:[%s13 + $0xe8] sm:$0xff]
    %v5350 = vld [vmem:[%s13 + $0xf0] sm:$0xff]
    %v5351 = vld [vmem:[%s13 + $0xf8] sm:$0xf]
    %v5352 = vld [vmem:[%s13 + $0xfc] sm:$0xff]
    %v5353 = vld [vmem:[%s13 + $0x104] sm:$0xff]
    %v5354 = vld [vmem:[%s13 + $0x10c] sm:$0xff]
    %v5355 = vld [vmem:[%s13 + $0x114] sm:$0xf]
    %v5356 = vld [vmem:[%s13 + $0x118] sm:$0xff]
    %v5357 = vld [vmem:[%s13 + $0x120] sm:$0xff]
    %v5358 = vld [vmem:[%s13 + $0x128] sm:$0xff]
    %v5359 = vld [vmem:[%s13 + $0x130] sm:$0xf]
    %v5360 = vld [vmem:[%s13 + $0x134] sm:$0xff]
    %v5361 = vld [vmem:[%s13 + $0x13c] sm:$0xff]
    %v5362 = vld [vmem:[%s13 + $0x144] sm:$0xff]
    %v5363 = vld [vmem:[%s13 + $0x14c] sm:$0xf]
    %v5364 = vld [vmem:[%s13 + $0x150] sm:$0xff]
    %v5365 = vld [vmem:[%s13 + $0x158] sm:$0xff]
    %v5366 = vld [vmem:[%s13 + $0x160] sm:$0xff]
    %v5367 = vld [vmem:[%s13 + $0x168] sm:$0xf]
    %v5368 = vld [vmem:[%s13 + $0x16c] sm:$0xff]
    %v5369 = vld [vmem:[%s13 + $0x174] sm:$0xff]
    %v5370 = vld [vmem:[%s13 + $0x17c] sm:$0xff]
    %v5371 = vld [vmem:[%s13 + $0x184] sm:$0xf]
    %v5372 = vld [vmem:[%s13 + $0x188] sm:$0xff]
    %v5373 = vld [vmem:[%s13 + $0x190] sm:$0xff]
    %v5374 = vld [vmem:[%s13 + $0x198] sm:$0xff]
    %v5375 = vld [vmem:[%s13 + $0x1a0] sm:$0xf]
    %v5376 = vld [vmem:[%s13 + $0x1a4] sm:$0xff]
    %v5377 = vld [vmem:[%s13 + $0x1ac] sm:$0xff]
    %v5378 = vld [vmem:[%s13 + $0x1b4] sm:$0xff]
    %v5379 = vld [vmem:[%s13 + $0x1bc] sm:$0xf]
    %v5380 = vld [vmem:[%s13 + $0x1c0] sm:$0xff]
    %v5381 = vld [vmem:[%s13 + $0x1c8] sm:$0xff]
    %v5382 = vld [vmem:[%s13 + $0x1d0] sm:$0xff]
    %v5383 = vld [vmem:[%s13 + $0x1d8] sm:$0xf]
    %v5384 = vld [vmem:[%s13 + $0x1dc] sm:$0xff]
    %v5385 = vld [vmem:[%s13 + $0x1e4] sm:$0xff]
    %v5386 = vld [vmem:[%s13 + $0x1ec] sm:$0xff]
    %v5387 = vld [vmem:[%s13 + $0x1f4] sm:$0xf]
    %v5388 = vld [vmem:[%s13 + $0x1f8] sm:$0xff]
    %v5389 = vld [vmem:[%s13 + $0x200] sm:$0xff]
    %v5390 = vld [vmem:[%s13 + $0x208] sm:$0xff]
    %v5391 = vld [vmem:[%s13 + $0x210] sm:$0xf]
    %v5392 = vld [vmem:[%s13 + $0x214] sm:$0xff]
    %v5393 = vld [vmem:[%s13 + $0x21c] sm:$0xff]
    %v5394 = vld [vmem:[%s13 + $0x224] sm:$0xff]
    %v5395 = vld [vmem:[%s13 + $0x22c] sm:$0xf]
    %v5396 = vld [vmem:[%s13 + $0x230] sm:$0xff]
    %v5397 = vld [vmem:[%s13 + $0x238] sm:$0xff]
    %v5398 = vld [vmem:[%s13 + $0x240] sm:$0xff]
    %v5399 = vld [vmem:[%s13 + $0x248] sm:$0xf]
    %v5400 = vld [vmem:[%s13 + $0x24c] sm:$0xff]
    %v5401 = vld [vmem:[%s13 + $0x254] sm:$0xff]
    %v5402 = vld [vmem:[%s13 + $0x25c] sm:$0xff]
    %v5403 = vld [vmem:[%s13 + $0x264] sm:$0xf]
    %v5404 = vld [vmem:[%s13 + $0x268] sm:$0xff]
    %v5405 = vld [vmem:[%s13 + $0x270] sm:$0xff]
    %v5406 = vld [vmem:[%s13 + $0x278] sm:$0xff]
    %v5407 = vld [vmem:[%s13 + $0x280] sm:$0xf]
    %v5408 = vld [vmem:[%s13 + $0x284] sm:$0xff]
    %v5409 = vld [vmem:[%s13 + $0x28c] sm:$0xff]
    %v5410 = vld [vmem:[%s13 + $0x294] sm:$0xff]
    %v5411 = vld [vmem:[%s13 + $0x29c] sm:$0xf]
    %v5412 = vld [vmem:[%s13 + $0x2a0] sm:$0xff]
    %v5413 = vld [vmem:[%s13 + $0x2a8] sm:$0xff]
    %v5414 = vld [vmem:[%s13 + $0x2b0] sm:$0xff]
    %v5415 = vld [vmem:[%s13 + $0x2b8] sm:$0xf]
    %v5416 = vld [vmem:[%s13 + $0x2bc] sm:$0xff]
    %v5417 = vld [vmem:[%s13 + $0x2c4] sm:$0xff]
    %v5418 = vld [vmem:[%s13 + $0x2cc] sm:$0xff]
    %v5419 = vld [vmem:[%s13 + $0x2d4] sm:$0xf]
    %v5420 = vld [vmem:[%s13 + $0x2d8] sm:$0xff]
    %v5421 = vld [vmem:[%s13 + $0x2e0] sm:$0xff]
    %v5422 = vld [vmem:[%s13 + $0x2e8] sm:$0xff]
    %v5423 = vld [vmem:[%s13 + $0x2f0] sm:$0xf]
    %v5424 = vld [vmem:[%s13 + $0x2f4] sm:$0xff]
    %v5425 = vld [vmem:[%s13 + $0x2fc] sm:$0xff]
    %v5426 = vld [vmem:[%s13 + $0x304] sm:$0xff]
    %v5427 = vld [vmem:[%s13 + $0x30c] sm:$0xf]
    %v5428 = vld [vmem:[%s13 + $0x310] sm:$0xff]
    %v5429 = vld [vmem:[%s13 + $0x318] sm:$0xff]
    %v5430 = vld [vmem:[%s13 + $0x320] sm:$0xff]
    %v5431 = vld [vmem:[%s13 + $0x328] sm:$0xf]
    %v5432 = vld [vmem:[%s13 + $0x32c] sm:$0xff]
    %v5433 = vld [vmem:[%s13 + $0x334] sm:$0xff]
    %v5434 = vld [vmem:[%s13 + $0x33c] sm:$0xff]
    %v5435 = vld [vmem:[%s13 + $0x344] sm:$0xf]
    %v5436 = vld [vmem:[%s13 + $0x348] sm:$0xff]
    %v5437 = vld [vmem:[%s13 + $0x350] sm:$0xff]
    %v5438 = vld [vmem:[%s13 + $0x358] sm:$0xff]
    %v5439 = vld [vmem:[%s13 + $0x360] sm:$0xf]
    %v5440 = vld [vmem:[%s13 + $0x364] sm:$0xff]
    %v5441 = vld [vmem:[%s13 + $0x36c] sm:$0xff]
    %v5442 = vld [vmem:[%s13 + $0x374] sm:$0xff]
    %v5443 = vld [vmem:[%s13 + $0x37c] sm:$0xf]
    %v5444 = vld [vmem:[%s13 + $0x380] sm:$0xff]
    %v5445 = vld [vmem:[%s13 + $0x388] sm:$0xff]
    %v5446 = vld [vmem:[%s13 + $0x390] sm:$0xff]
    %v5447 = vld [vmem:[%s13 + $0x398] sm:$0xf]
    %v5448 = vld [vmem:[%s13 + $0x39c] sm:$0xff]
    %v5449 = vld [vmem:[%s13 + $0x3a4] sm:$0xff]
    %v5450 = vld [vmem:[%s13 + $0x3ac] sm:$0xff]
    %v5451 = vld [vmem:[%s13 + $0x3b4] sm:$0xf]
    %v5452 = vld [vmem:[%s13 + $0x3b8] sm:$0xff]
    %v5453 = vld [vmem:[%s13 + $0x3c0] sm:$0xff]
    %v5454 = vld [vmem:[%s13 + $0x3c8] sm:$0xff]
    %v5455 = vld [vmem:[%s13 + $0x3d0] sm:$0xf]
    %v5456 = vld [vmem:[%s13 + $0x3d4] sm:$0xff]
    %v5457 = vld [vmem:[%s13 + $0x3dc] sm:$0xff]
    %v5458 = vld [vmem:[%s13 + $0x3e4] sm:$0xff]
    %v5459 = vld [vmem:[%s13 + $0x3ec] sm:$0xf]
    %v5460 = vld [vmem:[%s13 + $0x3f0] sm:$0xff]
    %v5461 = vld [vmem:[%s13 + $0x3f8] sm:$0xff]
    %v5462 = vld [vmem:[%s13 + $0x400] sm:$0xff]
    %v5463 = vld [vmem:[%s13 + $0x408] sm:$0xf]
    %v5464 = vld [vmem:[%s13 + $0x40c] sm:$0xff]
    %v5465 = vld [vmem:[%s13 + $0x414] sm:$0xff]
    %v5466 = vld [vmem:[%s13 + $0x41c] sm:$0xff]
    %v5467 = vld [vmem:[%s13 + $0x424] sm:$0xf]
    %v5468 = vld [vmem:[%s13 + $0x428] sm:$0xff]
    %v5469 = vld [vmem:[%s13 + $0x430] sm:$0xff]
    %v5470 = vld [vmem:[%s13 + $0x438] sm:$0xff]
    %v5471 = vld [vmem:[%s13 + $0x440] sm:$0xf]
    %v5472 = vld [vmem:[%s13 + $0x444] sm:$0xff]
    %v5473 = vld [vmem:[%s13 + $0x44c] sm:$0xff]
    %v5474 = vld [vmem:[%s13 + $0x454] sm:$0xff]
    %v5475 = vld [vmem:[%s13 + $0x45c] sm:$0xf]
    %v5476 = vld [vmem:[%s13 + $0x460] sm:$0xff]
    %v5477 = vld [vmem:[%s13 + $0x468] sm:$0xff]
    %v5478 = vld [vmem:[%s13 + $0x470] sm:$0xff]
    %v5479 = vld [vmem:[%s13 + $0x478] sm:$0xf]
    %v5480 = vld [vmem:[%s13 + $0x47c] sm:$0xff]
    %v5481 = vld [vmem:[%s13 + $0x484] sm:$0xff]
    %v5482 = vld [vmem:[%s13 + $0x48c] sm:$0xff]
    %v5483 = vld [vmem:[%s13 + $0x494] sm:$0xf]
    %v5484 = vld [vmem:[%s13 + $0x498] sm:$0xff]
    %v5485 = vld [vmem:[%s13 + $0x4a0] sm:$0xff]
    %v5486 = vld [vmem:[%s13 + $0x4a8] sm:$0xff]
    %v5487 = vld [vmem:[%s13 + $0x4b0] sm:$0xf]
    %v5488 = vld [vmem:[%s13 + $0x4b4] sm:$0xff]
    %v5489 = vld [vmem:[%s13 + $0x4bc] sm:$0xff]
    %v5490 = vld [vmem:[%s13 + $0x4c4] sm:$0xff]
    %v5491 = vld [vmem:[%s13 + $0x4cc] sm:$0xf]
    %v5492 = vld [vmem:[%s13 + $0x4d0] sm:$0xff]
    %v5493 = vld [vmem:[%s13 + $0x4d8] sm:$0xff]
    %v5494 = vld [vmem:[%s13 + $0x4e0] sm:$0xff]
    %v5495 = vld [vmem:[%s13 + $0x4e8] sm:$0xf]
    %v5496 = vld [vmem:[%s13 + $0x4ec] sm:$0xff]
    %v5497 = vld [vmem:[%s13 + $0x4f4] sm:$0xff]
    %v5498 = vld [vmem:[%s13 + $0x4fc] sm:$0xff]
    %v5499 = vld [vmem:[%s13 + $0x504] sm:$0xf]
    %v5500 = vld [vmem:[%s13 + $0x508] sm:$0xff]
    %v5501 = vld [vmem:[%s13 + $0x510] sm:$0xff]
    %v5502 = vld [vmem:[%s13 + $0x518] sm:$0xff]
    %v5503 = vld [vmem:[%s13 + $0x520] sm:$0xf]
    %v5504 = vld [vmem:[%s13 + $0x524] sm:$0xff]
    %v5505 = vld [vmem:[%s13 + $0x52c] sm:$0xff]
    %v5506 = vld [vmem:[%s13 + $0x534] sm:$0xff]
    %v5507 = vld [vmem:[%s13 + $0x53c] sm:$0xf]
    %v5508 = vld [vmem:[%s13 + $0x540] sm:$0xff]
    %v5509 = vld [vmem:[%s13 + $0x548] sm:$0xff]
    %v5510 = vld [vmem:[%s13 + $0x550] sm:$0xff]
    %v5511 = vld [vmem:[%s13 + $0x558] sm:$0xf]
    %v5512 = vld [vmem:[%s13 + $0x55c] sm:$0xff]
    %v5513 = vld [vmem:[%s13 + $0x564] sm:$0xff]
    %v5514 = vld [vmem:[%s13 + $0x56c] sm:$0xff]
    %v5515 = vld [vmem:[%s13 + $0x574] sm:$0xf]
    %v5516 = vld [vmem:[%s13 + $0x578] sm:$0xff]
    %v5517 = vld [vmem:[%s13 + $0x580] sm:$0xff]
    %v5518 = vld [vmem:[%s13 + $0x588] sm:$0xff]
    %v5519 = vld [vmem:[%s13 + $0x590] sm:$0xf]
    %v5520 = vld [vmem:[%s13 + $0x594] sm:$0xff]
    %v5521 = vld [vmem:[%s13 + $0x59c] sm:$0xff]
    %v5522 = vld [vmem:[%s13 + $0x5a4] sm:$0xff]
    %v5523 = vld [vmem:[%s13 + $0x5ac] sm:$0xf]
    %v5524 = vld [vmem:[%s13 + $0x5b0] sm:$0xff]
    %v5525 = vld [vmem:[%s13 + $0x5b8] sm:$0xff]
    %v5526 = vld [vmem:[%s13 + $0x5c0] sm:$0xff]
    %v5527 = vld [vmem:[%s13 + $0x5c8] sm:$0xf]
    %v5528 = vld [vmem:[%s13 + $0x5cc] sm:$0xff]
    %v5529 = vld [vmem:[%s13 + $0x5d4] sm:$0xff]
    %v5530 = vld [vmem:[%s13 + $0x5dc] sm:$0xff]
    %v5531 = vld [vmem:[%s13 + $0x5e4] sm:$0xf]
    %v5532 = vld [vmem:[%s13 + $0x5e8] sm:$0xff]
    %v5533 = vld [vmem:[%s13 + $0x5f0] sm:$0xff]
    %v5534 = vld [vmem:[%s13 + $0x5f8] sm:$0xff]
    %v5535 = vld [vmem:[%s13 + $0x600] sm:$0xf]
    %v5536 = vld [vmem:[%s13 + $0x604] sm:$0xff]
    %v5537 = vld [vmem:[%s13 + $0x60c] sm:$0xff]
    %v5538 = vld [vmem:[%s13 + $0x614] sm:$0xff]
    %v5539 = vld [vmem:[%s13 + $0x61c] sm:$0xf]
    %v5540 = vld [vmem:[%s13 + $0x620] sm:$0xff]
    %v5541 = vld [vmem:[%s13 + $0x628] sm:$0xff]
    %v5542 = vld [vmem:[%s13 + $0x630] sm:$0xff]
    %v5543 = vld [vmem:[%s13 + $0x638] sm:$0xf]
    %v5544 = vld [vmem:[%s13 + $0x63c] sm:$0xff]
    %v5545 = vld [vmem:[%s13 + $0x644] sm:$0xff]
    %v5546 = vld [vmem:[%s13 + $0x64c] sm:$0xff]
    %v5547 = vld [vmem:[%s13 + $0x654] sm:$0xf]
    %v5548 = vld [vmem:[%s13 + $0x658] sm:$0xff]
    %v5549 = vld [vmem:[%s13 + $0x660] sm:$0xff]
    %v5550 = vld [vmem:[%s13 + $0x668] sm:$0xff]
    %v5551 = vld [vmem:[%s13 + $0x670] sm:$0xf]
    %v5552 = vld [vmem:[%s13 + $0x674] sm:$0xff]
    %v5553 = vld [vmem:[%s13 + $0x67c] sm:$0xff]
    %v5554 = vld [vmem:[%s13 + $0x684] sm:$0xff]
    %v5555 = vld [vmem:[%s13 + $0x68c] sm:$0xf]
    %v5556 = vld [vmem:[%s13 + $0x690] sm:$0xff]
    %v5557 = vld [vmem:[%s13 + $0x698] sm:$0xff]
    %v5558 = vld [vmem:[%s13 + $0x6a0] sm:$0xff]
    %v5559 = vld [vmem:[%s13 + $0x6a8] sm:$0xf]
    %v5560 = vld [vmem:[%s13 + $0x6ac] sm:$0xff]
    %v5561 = vld [vmem:[%s13 + $0x6b4] sm:$0xff]
    %v5562 = vld [vmem:[%s13 + $0x6bc] sm:$0xff]
    %v5563 = vld [vmem:[%s13 + $0x6c4] sm:$0xf]
    %v5564 = vld [vmem:[%s13 + $0x6c8] sm:$0xff]
    %v5565 = vld [vmem:[%s13 + $0x6d0] sm:$0xff]
    %v5566 = vld [vmem:[%s13 + $0x6d8] sm:$0xff]
    %v5567 = vld [vmem:[%s13 + $0x6e0] sm:$0xf]
    %v5568 = vld [vmem:[%s13 + $0x6e4] sm:$0xff]
    %v5569 = vld [vmem:[%s13 + $0x6ec] sm:$0xff]
    %v5570 = vld [vmem:[%s13 + $0x6f4] sm:$0xff]
    %v5571 = vld [vmem:[%s13 + $0x6fc] sm:$0xf]
    %v5572 = vld [vmem:[%s14] sm:$0x7f]
    %v5574 = vlaneseq
    %v5575 = vshrl.u32 %v5574, 7
    %v5576 = vsub.s32 0, %v5575
    %v5577 = vrot.slane %v5572, %v5576
    %v5578 = vlaneseq
    %v5579 = vshrl.u32 %v5578, 7
    %v5580 = vsub.s32 1, %v5579
    %v5581 = vrot.slane %v5572, %v5580
    %v5582 = vlaneseq
    %v5583 = vshrl.u32 %v5582, 7
    %v5584 = vsub.s32 2, %v5583
    %v5585 = vrot.slane %v5572, %v5584
    %v5586 = vlaneseq
    %v5587 = vshrl.u32 %v5586, 7
    %v5588 = vsub.s32 3, %v5587
    %v5589 = vrot.slane %v5572, %v5588
    %v5590 = vlaneseq
    %v5591 = vshrl.u32 %v5590, 7
    %v5592 = vsub.s32 4, %v5591
    %v5593 = vrot.slane %v5572, %v5592
    %v5594 = vlaneseq
    %v5595 = vshrl.u32 %v5594, 7
    %v5596 = vsub.s32 5, %v5595
    %v5597 = vrot.slane %v5572, %v5596
    %v5598 = vlaneseq
    %v5599 = vshrl.u32 %v5598, 7
    %v5600 = vsub.s32 6, %v5599
    %v5601 = vrot.slane %v5572, %v5600
    %v5865 = vunpack.c.l.b16 %v5316
    %v5866 = vunpack.c.h.b16 %v5316
    %v5867 = vunpack.c.l.b16 %v5317
    %v5868 = vunpack.c.h.b16 %v5317
    %v5869 = vunpack.c.l.b16 %v5318
    %v5870 = vunpack.c.h.b16 %v5318
    %v5871 = vunpack.c.l.b16 %v5319
    %v5872 = vunpack.c.l.b16 %v5320
    %v5873 = vunpack.c.h.b16 %v5320
    %v5874 = vunpack.c.l.b16 %v5321
    %v5875 = vunpack.c.h.b16 %v5321
    %v5876 = vunpack.c.l.b16 %v5322
    %v5877 = vunpack.c.h.b16 %v5322
    %v5878 = vunpack.c.l.b16 %v5323
    %v5879 = vunpack.c.l.b16 %v5324
    %v5880 = vunpack.c.h.b16 %v5324
    %v5881 = vunpack.c.l.b16 %v5325
    %v5882 = vunpack.c.h.b16 %v5325
    %v5883 = vunpack.c.l.b16 %v5326
    %v5884 = vunpack.c.h.b16 %v5326
    %v5885 = vunpack.c.l.b16 %v5327
    %v5886 = vunpack.c.l.b16 %v5328
    %v5887 = vunpack.c.h.b16 %v5328
    %v5888 = vunpack.c.l.b16 %v5329
    %v5889 = vunpack.c.h.b16 %v5329
    %v5890 = vunpack.c.l.b16 %v5330
    %v5891 = vunpack.c.h.b16 %v5330
    %v5892 = vunpack.c.l.b16 %v5331
    %v5893 = vunpack.c.l.b16 %v5332
    %v5894 = vunpack.c.h.b16 %v5332
    %v5895 = vunpack.c.l.b16 %v5333
    %v5896 = vunpack.c.h.b16 %v5333
    %v5897 = vunpack.c.l.b16 %v5334
    %v5898 = vunpack.c.h.b16 %v5334
    %v5899 = vunpack.c.l.b16 %v5335
    %v5900 = vunpack.c.l.b16 %v5336
    %v5901 = vunpack.c.h.b16 %v5336
    %v5902 = vunpack.c.l.b16 %v5337
    %v5903 = vunpack.c.h.b16 %v5337
    %v5904 = vunpack.c.l.b16 %v5338
    %v5905 = vunpack.c.h.b16 %v5338
    %v5906 = vunpack.c.l.b16 %v5339
    %v5907 = vunpack.c.l.b16 %v5340
    %v5908 = vunpack.c.h.b16 %v5340
    %v5909 = vunpack.c.l.b16 %v5341
    %v5910 = vunpack.c.h.b16 %v5341
    %v5911 = vunpack.c.l.b16 %v5342
    %v5912 = vunpack.c.h.b16 %v5342
    %v5913 = vunpack.c.l.b16 %v5343
    %v5914 = vunpack.c.l.b16 %v5344
    %v5915 = vunpack.c.h.b16 %v5344
    %v5916 = vunpack.c.l.b16 %v5345
    %v5917 = vunpack.c.h.b16 %v5345
    %v5918 = vunpack.c.l.b16 %v5346
    %v5919 = vunpack.c.h.b16 %v5346
    %v5920 = vunpack.c.l.b16 %v5347
    %v5921 = vunpack.c.l.b16 %v5348
    %v5922 = vunpack.c.h.b16 %v5348
    %v5923 = vunpack.c.l.b16 %v5349
    %v5924 = vunpack.c.h.b16 %v5349
    %v5925 = vunpack.c.l.b16 %v5350
    %v5926 = vunpack.c.h.b16 %v5350
    %v5927 = vunpack.c.l.b16 %v5351
    %v5928 = vunpack.c.l.b16 %v5352
    %v5929 = vunpack.c.h.b16 %v5352
    %v5930 = vunpack.c.l.b16 %v5353
    %v5931 = vunpack.c.h.b16 %v5353
    %v5932 = vunpack.c.l.b16 %v5354
    %v5933 = vunpack.c.h.b16 %v5354
    %v5934 = vunpack.c.l.b16 %v5355
    %v5935 = vunpack.c.l.b16 %v5356
    %v5936 = vunpack.c.h.b16 %v5356
    %v5937 = vunpack.c.l.b16 %v5357
    %v5938 = vunpack.c.h.b16 %v5357
    %v5939 = vunpack.c.l.b16 %v5358
    %v5940 = vunpack.c.h.b16 %v5358
    %v5941 = vunpack.c.l.b16 %v5359
    %v5942 = vunpack.c.l.b16 %v5360
    %v5943 = vunpack.c.h.b16 %v5360
    %v5944 = vunpack.c.l.b16 %v5361
    %v5945 = vunpack.c.h.b16 %v5361
    %v5946 = vunpack.c.l.b16 %v5362
    %v5947 = vunpack.c.h.b16 %v5362
    %v5948 = vunpack.c.l.b16 %v5363
    %v5949 = vunpack.c.l.b16 %v5364
    %v5950 = vunpack.c.h.b16 %v5364
    %v5951 = vunpack.c.l.b16 %v5365
    %v5952 = vunpack.c.h.b16 %v5365
    %v5953 = vunpack.c.l.b16 %v5366
    %v5954 = vunpack.c.h.b16 %v5366
    %v5955 = vunpack.c.l.b16 %v5367
    %v5956 = vunpack.c.l.b16 %v5368
    %v5957 = vunpack.c.h.b16 %v5368
    %v5958 = vunpack.c.l.b16 %v5369
    %v5959 = vunpack.c.h.b16 %v5369
    %v5960 = vunpack.c.l.b16 %v5370
    %v5961 = vunpack.c.h.b16 %v5370
    %v5962 = vunpack.c.l.b16 %v5371
    %v5963 = vunpack.c.l.b16 %v5372
    %v5964 = vunpack.c.h.b16 %v5372
    %v5965 = vunpack.c.l.b16 %v5373
    %v5966 = vunpack.c.h.b16 %v5373
    %v5967 = vunpack.c.l.b16 %v5374
    %v5968 = vunpack.c.h.b16 %v5374
    %v5969 = vunpack.c.l.b16 %v5375
    %v5970 = vunpack.c.l.b16 %v5376
    %v5971 = vunpack.c.h.b16 %v5376
    %v5972 = vunpack.c.l.b16 %v5377
    %v5973 = vunpack.c.h.b16 %v5377
    %v5974 = vunpack.c.l.b16 %v5378
    %v5975 = vunpack.c.h.b16 %v5378
    %v5976 = vunpack.c.l.b16 %v5379
    %v5977 = vunpack.c.l.b16 %v5380
    %v5978 = vunpack.c.h.b16 %v5380
    %v5979 = vunpack.c.l.b16 %v5381
    %v5980 = vunpack.c.h.b16 %v5381
    %v5981 = vunpack.c.l.b16 %v5382
    %v5982 = vunpack.c.h.b16 %v5382
    %v5983 = vunpack.c.l.b16 %v5383
    %v5984 = vunpack.c.l.b16 %v5384
    %v5985 = vunpack.c.h.b16 %v5384
    %v5986 = vunpack.c.l.b16 %v5385
    %v5987 = vunpack.c.h.b16 %v5385
    %v5988 = vunpack.c.l.b16 %v5386
    %v5989 = vunpack.c.h.b16 %v5386
    %v5990 = vunpack.c.l.b16 %v5387
    %v5991 = vunpack.c.l.b16 %v5388
    %v5992 = vunpack.c.h.b16 %v5388
    %v5993 = vunpack.c.l.b16 %v5389
    %v5994 = vunpack.c.h.b16 %v5389
    %v5995 = vunpack.c.l.b16 %v5390
    %v5996 = vunpack.c.h.b16 %v5390
    %v5997 = vunpack.c.l.b16 %v5391
    %v5998 = vunpack.c.l.b16 %v5392
    %v5999 = vunpack.c.h.b16 %v5392
    %v6000 = vunpack.c.l.b16 %v5393
    %v6001 = vunpack.c.h.b16 %v5393
    %v6002 = vunpack.c.l.b16 %v5394
    %v6003 = vunpack.c.h.b16 %v5394
    %v6004 = vunpack.c.l.b16 %v5395
    %v6005 = vunpack.c.l.b16 %v5396
    %v6006 = vunpack.c.h.b16 %v5396
    %v6007 = vunpack.c.l.b16 %v5397
    %v6008 = vunpack.c.h.b16 %v5397
    %v6009 = vunpack.c.l.b16 %v5398
    %v6010 = vunpack.c.h.b16 %v5398
    %v6011 = vunpack.c.l.b16 %v5399
    %v6012 = vunpack.c.l.b16 %v5400
    %v6013 = vunpack.c.h.b16 %v5400
    %v6014 = vunpack.c.l.b16 %v5401
    %v6015 = vunpack.c.h.b16 %v5401
    %v6016 = vunpack.c.l.b16 %v5402
    %v6017 = vunpack.c.h.b16 %v5402
    %v6018 = vunpack.c.l.b16 %v5403
    %v6019 = vunpack.c.l.b16 %v5404
    %v6020 = vunpack.c.h.b16 %v5404
    %v6021 = vunpack.c.l.b16 %v5405
    %v6022 = vunpack.c.h.b16 %v5405
    %v6023 = vunpack.c.l.b16 %v5406
    %v6024 = vunpack.c.h.b16 %v5406
    %v6025 = vunpack.c.l.b16 %v5407
    %v6026 = vunpack.c.l.b16 %v5408
    %v6027 = vunpack.c.h.b16 %v5408
    %v6028 = vunpack.c.l.b16 %v5409
    %v6029 = vunpack.c.h.b16 %v5409
    %v6030 = vunpack.c.l.b16 %v5410
    %v6031 = vunpack.c.h.b16 %v5410
    %v6032 = vunpack.c.l.b16 %v5411
    %v6033 = vunpack.c.l.b16 %v5412
    %v6034 = vunpack.c.h.b16 %v5412
    %v6035 = vunpack.c.l.b16 %v5413
    %v6036 = vunpack.c.h.b16 %v5413
    %v6037 = vunpack.c.l.b16 %v5414
    %v6038 = vunpack.c.h.b16 %v5414
    %v6039 = vunpack.c.l.b16 %v5415
    %v6040 = vunpack.c.l.b16 %v5416
    %v6041 = vunpack.c.h.b16 %v5416
    %v6042 = vunpack.c.l.b16 %v5417
    %v6043 = vunpack.c.h.b16 %v5417
    %v6044 = vunpack.c.l.b16 %v5418
    %v6045 = vunpack.c.h.b16 %v5418
    %v6046 = vunpack.c.l.b16 %v5419
    %v6047 = vunpack.c.l.b16 %v5420
    %v6048 = vunpack.c.h.b16 %v5420
    %v6049 = vunpack.c.l.b16 %v5421
    %v6050 = vunpack.c.h.b16 %v5421
    %v6051 = vunpack.c.l.b16 %v5422
    %v6052 = vunpack.c.h.b16 %v5422
    %v6053 = vunpack.c.l.b16 %v5423
    %v6054 = vunpack.c.l.b16 %v5424
    %v6055 = vunpack.c.h.b16 %v5424
    %v6056 = vunpack.c.l.b16 %v5425
    %v6057 = vunpack.c.h.b16 %v5425
    %v6058 = vunpack.c.l.b16 %v5426
    %v6059 = vunpack.c.h.b16 %v5426
    %v6060 = vunpack.c.l.b16 %v5427
    %v6061 = vunpack.c.l.b16 %v5428
    %v6062 = vunpack.c.h.b16 %v5428
    %v6063 = vunpack.c.l.b16 %v5429
    %v6064 = vunpack.c.h.b16 %v5429
    %v6065 = vunpack.c.l.b16 %v5430
    %v6066 = vunpack.c.h.b16 %v5430
    %v6067 = vunpack.c.l.b16 %v5431
    %v6068 = vunpack.c.l.b16 %v5432
    %v6069 = vunpack.c.h.b16 %v5432
    %v6070 = vunpack.c.l.b16 %v5433
    %v6071 = vunpack.c.h.b16 %v5433
    %v6072 = vunpack.c.l.b16 %v5434
    %v6073 = vunpack.c.h.b16 %v5434
    %v6074 = vunpack.c.l.b16 %v5435
    %v6075 = vunpack.c.l.b16 %v5436
    %v6076 = vunpack.c.h.b16 %v5436
    %v6077 = vunpack.c.l.b16 %v5437
    %v6078 = vunpack.c.h.b16 %v5437
    %v6079 = vunpack.c.l.b16 %v5438
    %v6080 = vunpack.c.h.b16 %v5438
    %v6081 = vunpack.c.l.b16 %v5439
    %v6082 = vunpack.c.l.b16 %v5440
    %v6083 = vunpack.c.h.b16 %v5440
    %v6084 = vunpack.c.l.b16 %v5441
    %v6085 = vunpack.c.h.b16 %v5441
    %v6086 = vunpack.c.l.b16 %v5442
    %v6087 = vunpack.c.h.b16 %v5442
    %v6088 = vunpack.c.l.b16 %v5443
    %v6089 = vunpack.c.l.b16 %v5444
    %v6090 = vunpack.c.h.b16 %v5444
    %v6091 = vunpack.c.l.b16 %v5445
    %v6092 = vunpack.c.h.b16 %v5445
    %v6093 = vunpack.c.l.b16 %v5446
    %v6094 = vunpack.c.h.b16 %v5446
    %v6095 = vunpack.c.l.b16 %v5447
    %v6096 = vunpack.c.l.b16 %v5448
    %v6097 = vunpack.c.h.b16 %v5448
    %v6098 = vunpack.c.l.b16 %v5449
    %v6099 = vunpack.c.h.b16 %v5449
    %v6100 = vunpack.c.l.b16 %v5450
    %v6101 = vunpack.c.h.b16 %v5450
    %v6102 = vunpack.c.l.b16 %v5451
    %v6103 = vunpack.c.l.b16 %v5452
    %v6104 = vunpack.c.h.b16 %v5452
    %v6105 = vunpack.c.l.b16 %v5453
    %v6106 = vunpack.c.h.b16 %v5453
    %v6107 = vunpack.c.l.b16 %v5454
    %v6108 = vunpack.c.h.b16 %v5454
    %v6109 = vunpack.c.l.b16 %v5455
    %v6110 = vunpack.c.l.b16 %v5456
    %v6111 = vunpack.c.h.b16 %v5456
    %v6112 = vunpack.c.l.b16 %v5457
    %v6113 = vunpack.c.h.b16 %v5457
    %v6114 = vunpack.c.l.b16 %v5458
    %v6115 = vunpack.c.h.b16 %v5458
    %v6116 = vunpack.c.l.b16 %v5459
    %v6117 = vunpack.c.l.b16 %v5460
    %v6118 = vunpack.c.h.b16 %v5460
    %v6119 = vunpack.c.l.b16 %v5461
    %v6120 = vunpack.c.h.b16 %v5461
    %v6121 = vunpack.c.l.b16 %v5462
    %v6122 = vunpack.c.h.b16 %v5462
    %v6123 = vunpack.c.l.b16 %v5463
    %v6124 = vunpack.c.l.b16 %v5464
    %v6125 = vunpack.c.h.b16 %v5464
    %v6126 = vunpack.c.l.b16 %v5465
    %v6127 = vunpack.c.h.b16 %v5465
    %v6128 = vunpack.c.l.b16 %v5466
    %v6129 = vunpack.c.h.b16 %v5466
    %v6130 = vunpack.c.l.b16 %v5467
    %v6131 = vunpack.c.l.b16 %v5468
    %v6132 = vunpack.c.h.b16 %v5468
    %v6133 = vunpack.c.l.b16 %v5469
    %v6134 = vunpack.c.h.b16 %v5469
    %v6135 = vunpack.c.l.b16 %v5470
    %v6136 = vunpack.c.h.b16 %v5470
    %v6137 = vunpack.c.l.b16 %v5471
    %v6138 = vunpack.c.l.b16 %v5472
    %v6139 = vunpack.c.h.b16 %v5472
    %v6140 = vunpack.c.l.b16 %v5473
    %v6141 = vunpack.c.h.b16 %v5473
    %v6142 = vunpack.c.l.b16 %v5474
    %v6143 = vunpack.c.h.b16 %v5474
    %v6144 = vunpack.c.l.b16 %v5475
    %v6145 = vunpack.c.l.b16 %v5476
    %v6146 = vunpack.c.h.b16 %v5476
    %v6147 = vunpack.c.l.b16 %v5477
    %v6148 = vunpack.c.h.b16 %v5477
    %v6149 = vunpack.c.l.b16 %v5478
    %v6150 = vunpack.c.h.b16 %v5478
    %v6151 = vunpack.c.l.b16 %v5479
    %v6152 = vunpack.c.l.b16 %v5480
    %v6153 = vunpack.c.h.b16 %v5480
    %v6154 = vunpack.c.l.b16 %v5481
    %v6155 = vunpack.c.h.b16 %v5481
    %v6156 = vunpack.c.l.b16 %v5482
    %v6157 = vunpack.c.h.b16 %v5482
    %v6158 = vunpack.c.l.b16 %v5483
    %v6159 = vunpack.c.l.b16 %v5484
    %v6160 = vunpack.c.h.b16 %v5484
    %v6161 = vunpack.c.l.b16 %v5485
    %v6162 = vunpack.c.h.b16 %v5485
    %v6163 = vunpack.c.l.b16 %v5486
    %v6164 = vunpack.c.h.b16 %v5486
    %v6165 = vunpack.c.l.b16 %v5487
    %v6166 = vunpack.c.l.b16 %v5488
    %v6167 = vunpack.c.h.b16 %v5488
    %v6168 = vunpack.c.l.b16 %v5489
    %v6169 = vunpack.c.h.b16 %v5489
    %v6170 = vunpack.c.l.b16 %v5490
    %v6171 = vunpack.c.h.b16 %v5490
    %v6172 = vunpack.c.l.b16 %v5491
    %v6173 = vunpack.c.l.b16 %v5492
    %v6174 = vunpack.c.h.b16 %v5492
    %v6175 = vunpack.c.l.b16 %v5493
    %v6176 = vunpack.c.h.b16 %v5493
    %v6177 = vunpack.c.l.b16 %v5494
    %v6178 = vunpack.c.h.b16 %v5494
    %v6179 = vunpack.c.l.b16 %v5495
    %v6180 = vunpack.c.l.b16 %v5496
    %v6181 = vunpack.c.h.b16 %v5496
    %v6182 = vunpack.c.l.b16 %v5497
    %v6183 = vunpack.c.h.b16 %v5497
    %v6184 = vunpack.c.l.b16 %v5498
    %v6185 = vunpack.c.h.b16 %v5498
    %v6186 = vunpack.c.l.b16 %v5499
    %v6187 = vunpack.c.l.b16 %v5500
    %v6188 = vunpack.c.h.b16 %v5500
    %v6189 = vunpack.c.l.b16 %v5501
    %v6190 = vunpack.c.h.b16 %v5501
    %v6191 = vunpack.c.l.b16 %v5502
    %v6192 = vunpack.c.h.b16 %v5502
    %v6193 = vunpack.c.l.b16 %v5503
    %v6194 = vunpack.c.l.b16 %v5504
    %v6195 = vunpack.c.h.b16 %v5504
    %v6196 = vunpack.c.l.b16 %v5505
    %v6197 = vunpack.c.h.b16 %v5505
    %v6198 = vunpack.c.l.b16 %v5506
    %v6199 = vunpack.c.h.b16 %v5506
    %v6200 = vunpack.c.l.b16 %v5507
    %v6201 = vunpack.c.l.b16 %v5508
    %v6202 = vunpack.c.h.b16 %v5508
    %v6203 = vunpack.c.l.b16 %v5509
    %v6204 = vunpack.c.h.b16 %v5509
    %v6205 = vunpack.c.l.b16 %v5510
    %v6206 = vunpack.c.h.b16 %v5510
    %v6207 = vunpack.c.l.b16 %v5511
    %v6208 = vunpack.c.l.b16 %v5512
    %v6209 = vunpack.c.h.b16 %v5512
    %v6210 = vunpack.c.l.b16 %v5513
    %v6211 = vunpack.c.h.b16 %v5513
    %v6212 = vunpack.c.l.b16 %v5514
    %v6213 = vunpack.c.h.b16 %v5514
    %v6214 = vunpack.c.l.b16 %v5515
    %v6215 = vunpack.c.l.b16 %v5516
    %v6216 = vunpack.c.h.b16 %v5516
    %v6217 = vunpack.c.l.b16 %v5517
    %v6218 = vunpack.c.h.b16 %v5517
    %v6219 = vunpack.c.l.b16 %v5518
    %v6220 = vunpack.c.h.b16 %v5518
    %v6221 = vunpack.c.l.b16 %v5519
    %v6222 = vunpack.c.l.b16 %v5520
    %v6223 = vunpack.c.h.b16 %v5520
    %v6224 = vunpack.c.l.b16 %v5521
    %v6225 = vunpack.c.h.b16 %v5521
    %v6226 = vunpack.c.l.b16 %v5522
    %v6227 = vunpack.c.h.b16 %v5522
    %v6228 = vunpack.c.l.b16 %v5523
    %v6229 = vunpack.c.l.b16 %v5524
    %v6230 = vunpack.c.h.b16 %v5524
    %v6231 = vunpack.c.l.b16 %v5525
    %v6232 = vunpack.c.h.b16 %v5525
    %v6233 = vunpack.c.l.b16 %v5526
    %v6234 = vunpack.c.h.b16 %v5526
    %v6235 = vunpack.c.l.b16 %v5527
    %v6236 = vunpack.c.l.b16 %v5528
    %v6237 = vunpack.c.h.b16 %v5528
    %v6238 = vunpack.c.l.b16 %v5529
    %v6239 = vunpack.c.h.b16 %v5529
    %v6240 = vunpack.c.l.b16 %v5530
    %v6241 = vunpack.c.h.b16 %v5530
    %v6242 = vunpack.c.l.b16 %v5531
    %v6243 = vunpack.c.l.b16 %v5532
    %v6244 = vunpack.c.h.b16 %v5532
    %v6245 = vunpack.c.l.b16 %v5533
    %v6246 = vunpack.c.h.b16 %v5533
    %v6247 = vunpack.c.l.b16 %v5534
    %v6248 = vunpack.c.h.b16 %v5534
    %v6249 = vunpack.c.l.b16 %v5535
    %v6250 = vunpack.c.l.b16 %v5536
    %v6251 = vunpack.c.h.b16 %v5536
    %v6252 = vunpack.c.l.b16 %v5537
    %v6253 = vunpack.c.h.b16 %v5537
    %v6254 = vunpack.c.l.b16 %v5538
    %v6255 = vunpack.c.h.b16 %v5538
    %v6256 = vunpack.c.l.b16 %v5539
    %v6257 = vunpack.c.l.b16 %v5540
    %v6258 = vunpack.c.h.b16 %v5540
    %v6259 = vunpack.c.l.b16 %v5541
    %v6260 = vunpack.c.h.b16 %v5541
    %v6261 = vunpack.c.l.b16 %v5542
    %v6262 = vunpack.c.h.b16 %v5542
    %v6263 = vunpack.c.l.b16 %v5543
    %v6264 = vunpack.c.l.b16 %v5544
    %v6265 = vunpack.c.h.b16 %v5544
    %v6266 = vunpack.c.l.b16 %v5545
    %v6267 = vunpack.c.h.b16 %v5545
    %v6268 = vunpack.c.l.b16 %v5546
    %v6269 = vunpack.c.h.b16 %v5546
    %v6270 = vunpack.c.l.b16 %v5547
    %v6271 = vunpack.c.l.b16 %v5548
    %v6272 = vunpack.c.h.b16 %v5548
    %v6273 = vunpack.c.l.b16 %v5549
    %v6274 = vunpack.c.h.b16 %v5549
    %v6275 = vunpack.c.l.b16 %v5550
    %v6276 = vunpack.c.h.b16 %v5550
    %v6277 = vunpack.c.l.b16 %v5551
    %v6278 = vunpack.c.l.b16 %v5552
    %v6279 = vunpack.c.h.b16 %v5552
    %v6280 = vunpack.c.l.b16 %v5553
    %v6281 = vunpack.c.h.b16 %v5553
    %v6282 = vunpack.c.l.b16 %v5554
    %v6283 = vunpack.c.h.b16 %v5554
    %v6284 = vunpack.c.l.b16 %v5555
    %v6285 = vunpack.c.l.b16 %v5556
    %v6286 = vunpack.c.h.b16 %v5556
    %v6287 = vunpack.c.l.b16 %v5557
    %v6288 = vunpack.c.h.b16 %v5557
    %v6289 = vunpack.c.l.b16 %v5558
    %v6290 = vunpack.c.h.b16 %v5558
    %v6291 = vunpack.c.l.b16 %v5559
    %v6292 = vunpack.c.l.b16 %v5560
    %v6293 = vunpack.c.h.b16 %v5560
    %v6294 = vunpack.c.l.b16 %v5561
    %v6295 = vunpack.c.h.b16 %v5561
    %v6296 = vunpack.c.l.b16 %v5562
    %v6297 = vunpack.c.h.b16 %v5562
    %v6298 = vunpack.c.l.b16 %v5563
    %v6299 = vunpack.c.l.b16 %v5564
    %v6300 = vunpack.c.h.b16 %v5564
    %v6301 = vunpack.c.l.b16 %v5565
    %v6302 = vunpack.c.h.b16 %v5565
    %v6303 = vunpack.c.l.b16 %v5566
    %v6304 = vunpack.c.h.b16 %v5566
    %v6305 = vunpack.c.l.b16 %v5567
    %v6306 = vunpack.c.l.b16 %v5568
    %v6307 = vunpack.c.h.b16 %v5568
    %v6308 = vunpack.c.l.b16 %v5569
    %v6309 = vunpack.c.h.b16 %v5569
    %v6310 = vunpack.c.l.b16 %v5570
    %v6311 = vunpack.c.h.b16 %v5570
    %v6312 = vunpack.c.l.b16 %v5571
    %v6313 = vpack.c.b16 %v5872, %v5865
    %v6314 = vpack.c.b16 %v5873, %v5866
    %v6315 = vpack.c.b16 %v5874, %v5867
    %v6316 = vpack.c.b16 %v5875, %v5868
    %v6317 = vpack.c.b16 %v5876, %v5869
    %v6318 = vpack.c.b16 %v5877, %v5870
    %v6319 = vpack.c.b16 %v5878, %v5871
    %v6320 = vpack.c.b16 %v5886, %v5879
    %v6321 = vpack.c.b16 %v5887, %v5880
    %v6322 = vpack.c.b16 %v5888, %v5881
    %v6323 = vpack.c.b16 %v5889, %v5882
    %v6324 = vpack.c.b16 %v5890, %v5883
    %v6325 = vpack.c.b16 %v5891, %v5884
    %v6326 = vpack.c.b16 %v5892, %v5885
    %v6327 = vpack.c.b16 %v5900, %v5893
    %v6328 = vpack.c.b16 %v5901, %v5894
    %v6329 = vpack.c.b16 %v5902, %v5895
    %v6330 = vpack.c.b16 %v5903, %v5896
    %v6331 = vpack.c.b16 %v5904, %v5897
    %v6332 = vpack.c.b16 %v5905, %v5898
    %v6333 = vpack.c.b16 %v5906, %v5899
    %v6334 = vpack.c.b16 %v5914, %v5907
    %v6335 = vpack.c.b16 %v5915, %v5908
    %v6336 = vpack.c.b16 %v5916, %v5909
    %v6337 = vpack.c.b16 %v5917, %v5910
    %v6338 = vpack.c.b16 %v5918, %v5911
    %v6339 = vpack.c.b16 %v5919, %v5912
    %v6340 = vpack.c.b16 %v5920, %v5913
    %v6341 = vpack.c.b16 %v5928, %v5921
    %v6342 = vpack.c.b16 %v5929, %v5922
    %v6343 = vpack.c.b16 %v5930, %v5923
    %v6344 = vpack.c.b16 %v5931, %v5924
    %v6345 = vpack.c.b16 %v5932, %v5925
    %v6346 = vpack.c.b16 %v5933, %v5926
    %v6347 = vpack.c.b16 %v5934, %v5927
    %v6348 = vpack.c.b16 %v5942, %v5935
    %v6349 = vpack.c.b16 %v5943, %v5936
    %v6350 = vpack.c.b16 %v5944, %v5937
    %v6351 = vpack.c.b16 %v5945, %v5938
    %v6352 = vpack.c.b16 %v5946, %v5939
    %v6353 = vpack.c.b16 %v5947, %v5940
    %v6354 = vpack.c.b16 %v5948, %v5941
    %v6355 = vpack.c.b16 %v5956, %v5949
    %v6356 = vpack.c.b16 %v5957, %v5950
    %v6357 = vpack.c.b16 %v5958, %v5951
    %v6358 = vpack.c.b16 %v5959, %v5952
    %v6359 = vpack.c.b16 %v5960, %v5953
    %v6360 = vpack.c.b16 %v5961, %v5954
    %v6361 = vpack.c.b16 %v5962, %v5955
    %v6362 = vpack.c.b16 %v5970, %v5963
    %v6363 = vpack.c.b16 %v5971, %v5964
    %v6364 = vpack.c.b16 %v5972, %v5965
    %v6365 = vpack.c.b16 %v5973, %v5966
    %v6366 = vpack.c.b16 %v5974, %v5967
    %v6367 = vpack.c.b16 %v5975, %v5968
    %v6368 = vpack.c.b16 %v5976, %v5969
    %v6369 = vpack.c.b16 %v5984, %v5977
    %v6370 = vpack.c.b16 %v5985, %v5978
    %v6371 = vpack.c.b16 %v5986, %v5979
    %v6372 = vpack.c.b16 %v5987, %v5980
    %v6373 = vpack.c.b16 %v5988, %v5981
    %v6374 = vpack.c.b16 %v5989, %v5982
    %v6375 = vpack.c.b16 %v5990, %v5983
    %v6376 = vpack.c.b16 %v5998, %v5991
    %v6377 = vpack.c.b16 %v5999, %v5992
    %v6378 = vpack.c.b16 %v6000, %v5993
    %v6379 = vpack.c.b16 %v6001, %v5994
    %v6380 = vpack.c.b16 %v6002, %v5995
    %v6381 = vpack.c.b16 %v6003, %v5996
    %v6382 = vpack.c.b16 %v6004, %v5997
    %v6383 = vpack.c.b16 %v6012, %v6005
    %v6384 = vpack.c.b16 %v6013, %v6006
    %v6385 = vpack.c.b16 %v6014, %v6007
    %v6386 = vpack.c.b16 %v6015, %v6008
    %v6387 = vpack.c.b16 %v6016, %v6009
    %v6388 = vpack.c.b16 %v6017, %v6010
    %v6389 = vpack.c.b16 %v6018, %v6011
    %v6390 = vpack.c.b16 %v6026, %v6019
    %v6391 = vpack.c.b16 %v6027, %v6020
    %v6392 = vpack.c.b16 %v6028, %v6021
    %v6393 = vpack.c.b16 %v6029, %v6022
    %v6394 = vpack.c.b16 %v6030, %v6023
    %v6395 = vpack.c.b16 %v6031, %v6024
    %v6396 = vpack.c.b16 %v6032, %v6025
    %v6397 = vpack.c.b16 %v6040, %v6033
    %v6398 = vpack.c.b16 %v6041, %v6034
    %v6399 = vpack.c.b16 %v6042, %v6035
    %v6400 = vpack.c.b16 %v6043, %v6036
    %v6401 = vpack.c.b16 %v6044, %v6037
    %v6402 = vpack.c.b16 %v6045, %v6038
    %v6403 = vpack.c.b16 %v6046, %v6039
    %v6404 = vpack.c.b16 %v6054, %v6047
    %v6405 = vpack.c.b16 %v6055, %v6048
    %v6406 = vpack.c.b16 %v6056, %v6049
    %v6407 = vpack.c.b16 %v6057, %v6050
    %v6408 = vpack.c.b16 %v6058, %v6051
    %v6409 = vpack.c.b16 %v6059, %v6052
    %v6410 = vpack.c.b16 %v6060, %v6053
    %v6411 = vpack.c.b16 %v6068, %v6061
    %v6412 = vpack.c.b16 %v6069, %v6062
    %v6413 = vpack.c.b16 %v6070, %v6063
    %v6414 = vpack.c.b16 %v6071, %v6064
    %v6415 = vpack.c.b16 %v6072, %v6065
    %v6416 = vpack.c.b16 %v6073, %v6066
    %v6417 = vpack.c.b16 %v6074, %v6067
    %v6418 = vpack.c.b16 %v6082, %v6075
    %v6419 = vpack.c.b16 %v6083, %v6076
    %v6420 = vpack.c.b16 %v6084, %v6077
    %v6421 = vpack.c.b16 %v6085, %v6078
    %v6422 = vpack.c.b16 %v6086, %v6079
    %v6423 = vpack.c.b16 %v6087, %v6080
    %v6424 = vpack.c.b16 %v6088, %v6081
    %v6425 = vpack.c.b16 %v6096, %v6089
    %v6426 = vpack.c.b16 %v6097, %v6090
    %v6427 = vpack.c.b16 %v6098, %v6091
    %v6428 = vpack.c.b16 %v6099, %v6092
    %v6429 = vpack.c.b16 %v6100, %v6093
    %v6430 = vpack.c.b16 %v6101, %v6094
    %v6431 = vpack.c.b16 %v6102, %v6095
    %v6432 = vpack.c.b16 %v6110, %v6103
    %v6433 = vpack.c.b16 %v6111, %v6104
    %v6434 = vpack.c.b16 %v6112, %v6105
    %v6435 = vpack.c.b16 %v6113, %v6106
    %v6436 = vpack.c.b16 %v6114, %v6107
    %v6437 = vpack.c.b16 %v6115, %v6108
    %v6438 = vpack.c.b16 %v6116, %v6109
    %v6439 = vpack.c.b16 %v6124, %v6117
    %v6440 = vpack.c.b16 %v6125, %v6118
    %v6441 = vpack.c.b16 %v6126, %v6119
    %v6442 = vpack.c.b16 %v6127, %v6120
    %v6443 = vpack.c.b16 %v6128, %v6121
    %v6444 = vpack.c.b16 %v6129, %v6122
    %v6445 = vpack.c.b16 %v6130, %v6123
    %v6446 = vpack.c.b16 %v6138, %v6131
    %v6447 = vpack.c.b16 %v6139, %v6132
    %v6448 = vpack.c.b16 %v6140, %v6133
    %v6449 = vpack.c.b16 %v6141, %v6134
    %v6450 = vpack.c.b16 %v6142, %v6135
    %v6451 = vpack.c.b16 %v6143, %v6136
    %v6452 = vpack.c.b16 %v6144, %v6137
    %v6453 = vpack.c.b16 %v6152, %v6145
    %v6454 = vpack.c.b16 %v6153, %v6146
    %v6455 = vpack.c.b16 %v6154, %v6147
    %v6456 = vpack.c.b16 %v6155, %v6148
    %v6457 = vpack.c.b16 %v6156, %v6149
    %v6458 = vpack.c.b16 %v6157, %v6150
    %v6459 = vpack.c.b16 %v6158, %v6151
    %v6460 = vpack.c.b16 %v6166, %v6159
    %v6461 = vpack.c.b16 %v6167, %v6160
    %v6462 = vpack.c.b16 %v6168, %v6161
    %v6463 = vpack.c.b16 %v6169, %v6162
    %v6464 = vpack.c.b16 %v6170, %v6163
    %v6465 = vpack.c.b16 %v6171, %v6164
    %v6466 = vpack.c.b16 %v6172, %v6165
    %v6467 = vpack.c.b16 %v6180, %v6173
    %v6468 = vpack.c.b16 %v6181, %v6174
    %v6469 = vpack.c.b16 %v6182, %v6175
    %v6470 = vpack.c.b16 %v6183, %v6176
    %v6471 = vpack.c.b16 %v6184, %v6177
    %v6472 = vpack.c.b16 %v6185, %v6178
    %v6473 = vpack.c.b16 %v6186, %v6179
    %v6474 = vpack.c.b16 %v6194, %v6187
    %v6475 = vpack.c.b16 %v6195, %v6188
    %v6476 = vpack.c.b16 %v6196, %v6189
    %v6477 = vpack.c.b16 %v6197, %v6190
    %v6478 = vpack.c.b16 %v6198, %v6191
    %v6479 = vpack.c.b16 %v6199, %v6192
    %v6480 = vpack.c.b16 %v6200, %v6193
    %v6481 = vpack.c.b16 %v6208, %v6201
    %v6482 = vpack.c.b16 %v6209, %v6202
    %v6483 = vpack.c.b16 %v6210, %v6203
    %v6484 = vpack.c.b16 %v6211, %v6204
    %v6485 = vpack.c.b16 %v6212, %v6205
    %v6486 = vpack.c.b16 %v6213, %v6206
    %v6487 = vpack.c.b16 %v6214, %v6207
    %v6488 = vpack.c.b16 %v6222, %v6215
    %v6489 = vpack.c.b16 %v6223, %v6216
    %v6490 = vpack.c.b16 %v6224, %v6217
    %v6491 = vpack.c.b16 %v6225, %v6218
    %v6492 = vpack.c.b16 %v6226, %v6219
    %v6493 = vpack.c.b16 %v6227, %v6220
    %v6494 = vpack.c.b16 %v6228, %v6221
    %v6495 = vpack.c.b16 %v6236, %v6229
    %v6496 = vpack.c.b16 %v6237, %v6230
    %v6497 = vpack.c.b16 %v6238, %v6231
    %v6498 = vpack.c.b16 %v6239, %v6232
    %v6499 = vpack.c.b16 %v6240, %v6233
    %v6500 = vpack.c.b16 %v6241, %v6234
    %v6501 = vpack.c.b16 %v6242, %v6235
    %v6502 = vpack.c.b16 %v6250, %v6243
    %v6503 = vpack.c.b16 %v6251, %v6244
    %v6504 = vpack.c.b16 %v6252, %v6245
    %v6505 = vpack.c.b16 %v6253, %v6246
    %v6506 = vpack.c.b16 %v6254, %v6247
    %v6507 = vpack.c.b16 %v6255, %v6248
    %v6508 = vpack.c.b16 %v6256, %v6249
    %v6509 = vpack.c.b16 %v6264, %v6257
    %v6510 = vpack.c.b16 %v6265, %v6258
    %v6511 = vpack.c.b16 %v6266, %v6259
    %v6512 = vpack.c.b16 %v6267, %v6260
    %v6513 = vpack.c.b16 %v6268, %v6261
    %v6514 = vpack.c.b16 %v6269, %v6262
    %v6515 = vpack.c.b16 %v6270, %v6263
    %v6516 = vpack.c.b16 %v6278, %v6271
    %v6517 = vpack.c.b16 %v6279, %v6272
    %v6518 = vpack.c.b16 %v6280, %v6273
    %v6519 = vpack.c.b16 %v6281, %v6274
    %v6520 = vpack.c.b16 %v6282, %v6275
    %v6521 = vpack.c.b16 %v6283, %v6276
    %v6522 = vpack.c.b16 %v6284, %v6277
    %v6523 = vpack.c.b16 %v6292, %v6285
    %v6524 = vpack.c.b16 %v6293, %v6286
    %v6525 = vpack.c.b16 %v6294, %v6287
    %v6526 = vpack.c.b16 %v6295, %v6288
    %v6527 = vpack.c.b16 %v6296, %v6289
    %v6528 = vpack.c.b16 %v6297, %v6290
    %v6529 = vpack.c.b16 %v6298, %v6291
    %v6530 = vpack.c.b16 %v6306, %v6299
    %v6531 = vpack.c.b16 %v6307, %v6300
    %v6532 = vpack.c.b16 %v6308, %v6301
    %v6533 = vpack.c.b16 %v6309, %v6302
    %v6534 = vpack.c.b16 %v6310, %v6303
    %v6535 = vpack.c.b16 %v6311, %v6304
    %v6536 = vpack.c.b16 %v6312, %v6305
    %6761 = vmatprep.subr.bf16.mxu0 %v6363
    %6762 = vmatpush1.bf16.msra.mxu0 %v6362
    %6763 = vmatprep.subr.bf16.mxu0 %v6356
    %6764 = vmatpush1.bf16.msra.mxu0 %v6355
    %6765 = vmatprep.subr.bf16.mxu0 %v6349
    %6766 = vmatpush1.bf16.msra.mxu0 %v6348
    %6767 = vmatprep.subr.bf16.mxu0 %v6342
    %6768 = vmatpush1.bf16.msra.mxu0 %v6341
    %6769 = vmatprep.subr.bf16.mxu0 %v6335
    %6770 = vmatpush1.bf16.msra.mxu0 %v6334
    %6771 = vmatprep.subr.bf16.mxu0 %v6328
    %6772 = vmatpush1.bf16.msra.mxu0 %v6327
    %6773 = vmatprep.subr.bf16.mxu0 %v6321
    %6774 = vmatpush1.bf16.msra.mxu0 %v6320
    %6775 = vmatprep.subr.bf16.mxu0 %v6314
    %6776 = vmatpush1.bf16.msra.mxu0 %v6313
    %6777 = vmatprep.subr.bf16.mxu0 %v6419
    %6778 = vmatpush2.bf16.msra.mxu0 %v6418
    %6779 = vmatprep.subr.bf16.mxu0 %v6412
    %6780 = vmatpush2.bf16.msra.mxu0 %v6411
    %6781 = vmatprep.subr.bf16.mxu0 %v6405
    %6782 = vmatpush2.bf16.msra.mxu0 %v6404
    %6783 = vmatprep.subr.bf16.mxu0 %v6398
    %6784 = vmatpush2.bf16.msra.mxu0 %v6397
    %6785 = vmatprep.subr.bf16.mxu0 %v6391
    %6786 = vmatpush2.bf16.msra.mxu0 %v6390
    %6787 = vmatprep.subr.bf16.mxu0 %v6384
    %6788 = vmatpush2.bf16.msra.mxu0 %v6383
    %6789 = vmatprep.subr.bf16.mxu0 %v6377
    %6790 = vmatpush2.bf16.msra.mxu0 %v6376
    %6791 = vmatprep.subr.bf16.mxu0 %v6370
    %6792 = vmatpush2.bf16.msra.mxu0 %v6369
    %6793 = vmatprep.mubr.bf16.mxu0 %v5313
    %6794 = vmatmul.mubr.bf16.gmra.mxu0 %v5312
    %v6795 = vpop.f32.mrf.mxu0
    %v6796 = vadd.f32 %v5577, %v6795
    %v6797 = vpop.f32.mrf.mxu0
    %v6798 = vadd.f32 %v5581, %v6797
    %v6799 = vpop.f32.mrf.mxu0
    %v6800 = vpop.f32.mrf.mxu0
    %6801 = vdwg.mxu0
    %6802 = vmatprep.subr.bf16.mxu0 %v6475
    %6803 = vmatpush1.bf16.msra.mxu0 %v6474
    %6804 = vmatprep.subr.bf16.mxu0 %v6468
    %6805 = vmatpush1.bf16.msra.mxu0 %v6467
    %6806 = vmatprep.subr.bf16.mxu0 %v6461
    %6807 = vmatpush1.bf16.msra.mxu0 %v6460
    %6808 = vmatprep.subr.bf16.mxu0 %v6454
    %6809 = vmatpush1.bf16.msra.mxu0 %v6453
    %6810 = vmatprep.subr.bf16.mxu0 %v6447
    %6811 = vmatpush1.bf16.msra.mxu0 %v6446
    %6812 = vmatprep.subr.bf16.mxu0 %v6440
    %6813 = vmatpush1.bf16.msra.mxu0 %v6439
    %6814 = vmatprep.subr.bf16.mxu0 %v6433
    %6815 = vmatpush1.bf16.msra.mxu0 %v6432
    %6816 = vmatprep.subr.bf16.mxu0 %v6426
    %6817 = vmatpush1.bf16.msra.mxu0 %v6425
    %6818 = vmatprep.subr.bf16.mxu0 %v6531
    %6819 = vmatpush2.bf16.msra.mxu0 %v6530
    %6820 = vmatprep.subr.bf16.mxu0 %v6524
    %6821 = vmatpush2.bf16.msra.mxu0 %v6523
    %6822 = vmatprep.subr.bf16.mxu0 %v6517
    %6823 = vmatpush2.bf16.msra.mxu0 %v6516
    %6824 = vmatprep.subr.bf16.mxu0 %v6510
    %6825 = vmatpush2.bf16.msra.mxu0 %v6509
    %6826 = vmatprep.subr.bf16.mxu0 %v6503
    %6827 = vmatpush2.bf16.msra.mxu0 %v6502
    %6828 = vmatprep.subr.bf16.mxu0 %v6496
    %6829 = vmatpush2.bf16.msra.mxu0 %v6495
    %6830 = vmatprep.subr.bf16.mxu0 %v6489
    %6831 = vmatpush2.bf16.msra.mxu0 %v6488
    %6832 = vmatprep.subr.bf16.mxu0 %v6482
    %6833 = vmatpush2.bf16.msra.mxu0 %v6481
    %6834 = vmatprep.mubr.bf16.mxu0 %v5315
    %6835 = vmatmul.mubr.bf16.gmra.mxu0 %v5314
    %v6836 = vpop.f32.mrf.mxu0
    %v6837 = vadd.f32 %v6796, %v6836
    %v6838 = vpop.f32.mrf.mxu0
    %v6839 = vadd.f32 %v6798, %v6838
    %v6840 = vpop.f32.mrf.mxu0
    %v6841 = vpop.f32.mrf.mxu0
    %6842 = vdwg.mxu0
    %6843 = vmatprep.subr.bf16.mxu0 %v6365
    %6844 = vmatpush1.bf16.msra.mxu0 %v6364
    %6845 = vmatprep.subr.bf16.mxu0 %v6358
    %6846 = vmatpush1.bf16.msra.mxu0 %v6357
    %6847 = vmatprep.subr.bf16.mxu0 %v6351
    %6848 = vmatpush1.bf16.msra.mxu0 %v6350
    %6849 = vmatprep.subr.bf16.mxu0 %v6344
    %6850 = vmatpush1.bf16.msra.mxu0 %v6343
    %6851 = vmatprep.subr.bf16.mxu0 %v6337
    %6852 = vmatpush1.bf16.msra.mxu0 %v6336
    %6853 = vmatprep.subr.bf16.mxu0 %v6330
    %6854 = vmatpush1.bf16.msra.mxu0 %v6329
    %6855 = vmatprep.subr.bf16.mxu0 %v6323
    %6856 = vmatpush1.bf16.msra.mxu0 %v6322
    %6857 = vmatprep.subr.bf16.mxu0 %v6316
    %6858 = vmatpush1.bf16.msra.mxu0 %v6315
    %6859 = vmatprep.subr.bf16.mxu0 %v6421
    %6860 = vmatpush2.bf16.msra.mxu0 %v6420
    %6861 = vmatprep.subr.bf16.mxu0 %v6414
    %6862 = vmatpush2.bf16.msra.mxu0 %v6413
    %6863 = vmatprep.subr.bf16.mxu0 %v6407
    %6864 = vmatpush2.bf16.msra.mxu0 %v6406
    %6865 = vmatprep.subr.bf16.mxu0 %v6400
    %6866 = vmatpush2.bf16.msra.mxu0 %v6399
    %6867 = vmatprep.subr.bf16.mxu0 %v6393
    %6868 = vmatpush2.bf16.msra.mxu0 %v6392
    %6869 = vmatprep.subr.bf16.mxu0 %v6386
    %6870 = vmatpush2.bf16.msra.mxu0 %v6385
    %6871 = vmatprep.subr.bf16.mxu0 %v6379
    %6872 = vmatpush2.bf16.msra.mxu0 %v6378
    %6873 = vmatprep.subr.bf16.mxu0 %v6372
    %6874 = vmatpush2.bf16.msra.mxu0 %v6371
    %6875 = vmatprep.mubr.bf16.mxu0 %v5313
    %6876 = vmatmul.mubr.bf16.gmra.mxu0 %v5312
    %v6877 = vpop.f32.mrf.mxu0
    %v6878 = vadd.f32 %v5585, %v6877
    %v6879 = vpop.f32.mrf.mxu0
    %v6880 = vadd.f32 %v5589, %v6879
    %v6881 = vpop.f32.mrf.mxu0
    %v6882 = vpop.f32.mrf.mxu0
    %6883 = vdwg.mxu0
    %6884 = vmatprep.subr.bf16.mxu0 %v6477
    %6885 = vmatpush1.bf16.msra.mxu0 %v6476
    %6886 = vmatprep.subr.bf16.mxu0 %v6470
    %6887 = vmatpush1.bf16.msra.mxu0 %v6469
    %6888 = vmatprep.subr.bf16.mxu0 %v6463
    %6889 = vmatpush1.bf16.msra.mxu0 %v6462
    %6890 = vmatprep.subr.bf16.mxu0 %v6456
    %6891 = vmatpush1.bf16.msra.mxu0 %v6455
    %6892 = vmatprep.subr.bf16.mxu0 %v6449
    %6893 = vmatpush1.bf16.msra.mxu0 %v6448
    %6894 = vmatprep.subr.bf16.mxu0 %v6442
    %6895 = vmatpush1.bf16.msra.mxu0 %v6441
    %6896 = vmatprep.subr.bf16.mxu0 %v6435
    %6897 = vmatpush1.bf16.msra.mxu0 %v6434
    %6898 = vmatprep.subr.bf16.mxu0 %v6428
    %6899 = vmatpush1.bf16.msra.mxu0 %v6427
    %6900 = vmatprep.subr.bf16.mxu0 %v6533
    %6901 = vmatpush2.bf16.msra.mxu0 %v6532
    %6902 = vmatprep.subr.bf16.mxu0 %v6526
    %6903 = vmatpush2.bf16.msra.mxu0 %v6525
    %6904 = vmatprep.subr.bf16.mxu0 %v6519
    %6905 = vmatpush2.bf16.msra.mxu0 %v6518
    %6906 = vmatprep.subr.bf16.mxu0 %v6512
    %6907 = vmatpush2.bf16.msra.mxu0 %v6511
    %6908 = vmatprep.subr.bf16.mxu0 %v6505
    %6909 = vmatpush2.bf16.msra.mxu0 %v6504
    %6910 = vmatprep.subr.bf16.mxu0 %v6498
    %6911 = vmatpush2.bf16.msra.mxu0 %v6497
    %6912 = vmatprep.subr.bf16.mxu0 %v6491
    %6913 = vmatpush2.bf16.msra.mxu0 %v6490
    %6914 = vmatprep.subr.bf16.mxu0 %v6484
    %6915 = vmatpush2.bf16.msra.mxu0 %v6483
    %6916 = vmatprep.mubr.bf16.mxu0 %v5315
    %6917 = vmatmul.mubr.bf16.gmra.mxu0 %v5314
    %v6918 = vpop.f32.mrf.mxu0
    %v6919 = vadd.f32 %v6878, %v6918
    %v6920 = vpop.f32.mrf.mxu0
    %v6921 = vadd.f32 %v6880, %v6920
    %v6922 = vpop.f32.mrf.mxu0
    %v6923 = vpop.f32.mrf.mxu0
    %6924 = vdwg.mxu0
    %6925 = vmatprep.subr.bf16.mxu0 %v6367
    %6926 = vmatpush1.bf16.msra.mxu0 %v6366
    %6927 = vmatprep.subr.bf16.mxu0 %v6360
    %6928 = vmatpush1.bf16.msra.mxu0 %v6359
    %6929 = vmatprep.subr.bf16.mxu0 %v6353
    %6930 = vmatpush1.bf16.msra.mxu0 %v6352
    %6931 = vmatprep.subr.bf16.mxu0 %v6346
    %6932 = vmatpush1.bf16.msra.mxu0 %v6345
    %6933 = vmatprep.subr.bf16.mxu0 %v6339
    %6934 = vmatpush1.bf16.msra.mxu0 %v6338
    %6935 = vmatprep.subr.bf16.mxu0 %v6332
    %6936 = vmatpush1.bf16.msra.mxu0 %v6331
    %6937 = vmatprep.subr.bf16.mxu0 %v6325
    %6938 = vmatpush1.bf16.msra.mxu0 %v6324
    %6939 = vmatprep.subr.bf16.mxu0 %v6318
    %6940 = vmatpush1.bf16.msra.mxu0 %v6317
    %6941 = vmatprep.subr.bf16.mxu0 %v6423
    %6942 = vmatpush2.bf16.msra.mxu0 %v6422
    %6943 = vmatprep.subr.bf16.mxu0 %v6416
    %6944 = vmatpush2.bf16.msra.mxu0 %v6415
    %6945 = vmatprep.subr.bf16.mxu0 %v6409
    %6946 = vmatpush2.bf16.msra.mxu0 %v6408
    %6947 = vmatprep.subr.bf16.mxu0 %v6402
    %6948 = vmatpush2.bf16.msra.mxu0 %v6401
    %6949 = vmatprep.subr.bf16.mxu0 %v6395
    %6950 = vmatpush2.bf16.msra.mxu0 %v6394
    %6951 = vmatprep.subr.bf16.mxu0 %v6388
    %6952 = vmatpush2.bf16.msra.mxu0 %v6387
    %6953 = vmatprep.subr.bf16.mxu0 %v6381
    %6954 = vmatpush2.bf16.msra.mxu0 %v6380
    %6955 = vmatprep.subr.bf16.mxu0 %v6374
    %6956 = vmatpush2.bf16.msra.mxu0 %v6373
    %6957 = vmatprep.mubr.bf16.mxu0 %v5313
    %6958 = vmatmul.mubr.bf16.gmra.mxu0 %v5312
    %v6959 = vpop.f32.mrf.mxu0
    %v6960 = vadd.f32 %v5593, %v6959
    %v6961 = vpop.f32.mrf.mxu0
    %v6962 = vadd.f32 %v5597, %v6961
    %v6963 = vpop.f32.mrf.mxu0
    %v6964 = vpop.f32.mrf.mxu0
    %6965 = vdwg.mxu0
    %6966 = vmatprep.subr.bf16.mxu0 %v6479
    %6967 = vmatpush1.bf16.msra.mxu0 %v6478
    %6968 = vmatprep.subr.bf16.mxu0 %v6472
    %6969 = vmatpush1.bf16.msra.mxu0 %v6471
    %6970 = vmatprep.subr.bf16.mxu0 %v6465
    %6971 = vmatpush1.bf16.msra.mxu0 %v6464
    %6972 = vmatprep.subr.bf16.mxu0 %v6458
    %6973 = vmatpush1.bf16.msra.mxu0 %v6457
    %6974 = vmatprep.subr.bf16.mxu0 %v6451
    %6975 = vmatpush1.bf16.msra.mxu0 %v6450
    %6976 = vmatprep.subr.bf16.mxu0 %v6444
    %6977 = vmatpush1.bf16.msra.mxu0 %v6443
    %6978 = vmatprep.subr.bf16.mxu0 %v6437
    %6979 = vmatpush1.bf16.msra.mxu0 %v6436
    %6980 = vmatprep.subr.bf16.mxu0 %v6430
    %6981 = vmatpush1.bf16.msra.mxu0 %v6429
    %6982 = vmatprep.subr.bf16.mxu0 %v6535
    %6983 = vmatpush2.bf16.msra.mxu0 %v6534
    %6984 = vmatprep.subr.bf16.mxu0 %v6528
    %6985 = vmatpush2.bf16.msra.mxu0 %v6527
    %6986 = vmatprep.subr.bf16.mxu0 %v6521
    %6987 = vmatpush2.bf16.msra.mxu0 %v6520
    %6988 = vmatprep.subr.bf16.mxu0 %v6514
    %6989 = vmatpush2.bf16.msra.mxu0 %v6513
    %6990 = vmatprep.subr.bf16.mxu0 %v6507
    %6991 = vmatpush2.bf16.msra.mxu0 %v6506
    %6992 = vmatprep.subr.bf16.mxu0 %v6500
    %6993 = vmatpush2.bf16.msra.mxu0 %v6499
    %6994 = vmatprep.subr.bf16.mxu0 %v6493
    %6995 = vmatpush2.bf16.msra.mxu0 %v6492
    %6996 = vmatprep.subr.bf16.mxu0 %v6486
    %6997 = vmatpush2.bf16.msra.mxu0 %v6485
    %6998 = vmatprep.mubr.bf16.mxu0 %v5315
    %6999 = vmatmul.mubr.bf16.gmra.mxu0 %v5314
    %v7000 = vpop.f32.mrf.mxu0
    %v7001 = vadd.f32 %v6960, %v7000
    %v7002 = vpop.f32.mrf.mxu0
    %v7003 = vadd.f32 %v6962, %v7002
    %v7004 = vpop.f32.mrf.mxu0
    %v7005 = vpop.f32.mrf.mxu0
    %7006 = vdwg.mxu0
    %7007 = vmatprep.subr.bf16.mxu0 0
    %7008 = vmatpush1.bf16.msra.mxu0 %v6368
    %7009 = vmatprep.subr.bf16.mxu0 0
    %7010 = vmatpush1.bf16.msra.mxu0 %v6361
    %7011 = vmatprep.subr.bf16.mxu0 0
    %7012 = vmatpush1.bf16.msra.mxu0 %v6354
    %7013 = vmatprep.subr.bf16.mxu0 0
    %7014 = vmatpush1.bf16.msra.mxu0 %v6347
    %7015 = vmatprep.subr.bf16.mxu0 0
    %7016 = vmatpush1.bf16.msra.mxu0 %v6340
    %7017 = vmatprep.subr.bf16.mxu0 0
    %7018 = vmatpush1.bf16.msra.mxu0 %v6333
    %7019 = vmatprep.subr.bf16.mxu0 0
    %7020 = vmatpush1.bf16.msra.mxu0 %v6326
    %7021 = vmatprep.subr.bf16.mxu0 0
    %7022 = vmatpush1.bf16.msra.mxu0 %v6319
    %7023 = vmatprep.subr.bf16.mxu0 0
    %7024 = vmatpush2.bf16.msra.mxu0 %v6424
    %7025 = vmatprep.subr.bf16.mxu0 0
    %7026 = vmatpush2.bf16.msra.mxu0 %v6417
    %7027 = vmatprep.subr.bf16.mxu0 0
    %7028 = vmatpush2.bf16.msra.mxu0 %v6410
    %7029 = vmatprep.subr.bf16.mxu0 0
    %7030 = vmatpush2.bf16.msra.mxu0 %v6403
    %7031 = vmatprep.subr.bf16.mxu0 0
    %7032 = vmatpush2.bf16.msra.mxu0 %v6396
    %7033 = vmatprep.subr.bf16.mxu0 0
    %7034 = vmatpush2.bf16.msra.mxu0 %v6389
    %7035 = vmatprep.subr.bf16.mxu0 0
    %7036 = vmatpush2.bf16.msra.mxu0 %v6382
    %7037 = vmatprep.subr.bf16.mxu0 0
    %7038 = vmatpush2.bf16.msra.mxu0 %v6375
    %7039 = vmatprep.mubr.bf16.mxu0 %v5313
    %7040 = vmatmul.mubr.bf16.gmra.mxu0 %v5312
    %v7041 = vpop.f32.mrf.mxu0
    %v7042 = vadd.f32 %v5601, %v7041
    %v7043 = vpop.f32.mrf.mxu0
    %v7044 = vpop.f32.mrf.mxu0
    %v7045 = vpop.f32.mrf.mxu0
    %7046 = vdwg.mxu0
    %7047 = vmatprep.subr.bf16.mxu0 0
    %7048 = vmatpush1.bf16.msra.mxu0 %v6480
    %7049 = vmatprep.subr.bf16.mxu0 0
    %7050 = vmatpush1.bf16.msra.mxu0 %v6473
    %7051 = vmatprep.subr.bf16.mxu0 0
    %7052 = vmatpush1.bf16.msra.mxu0 %v6466
    %7053 = vmatprep.subr.bf16.mxu0 0
    %7054 = vmatpush1.bf16.msra.mxu0 %v6459
    %7055 = vmatprep.subr.bf16.mxu0 0
    %7056 = vmatpush1.bf16.msra.mxu0 %v6452
    %7057 = vmatprep.subr.bf16.mxu0 0
    %7058 = vmatpush1.bf16.msra.mxu0 %v6445
    %7059 = vmatprep.subr.bf16.mxu0 0
    %7060 = vmatpush1.bf16.msra.mxu0 %v6438
    %7061 = vmatprep.subr.bf16.mxu0 0
    %7062 = vmatpush1.bf16.msra.mxu0 %v6431
    %7063 = vmatprep.subr.bf16.mxu0 0
    %7064 = vmatpush2.bf16.msra.mxu0 %v6536
    %7065 = vmatprep.subr.bf16.mxu0 0
    %7066 = vmatpush2.bf16.msra.mxu0 %v6529
    %7067 = vmatprep.subr.bf16.mxu0 0
    %7068 = vmatpush2.bf16.msra.mxu0 %v6522
    %7069 = vmatprep.subr.bf16.mxu0 0
    %7070 = vmatpush2.bf16.msra.mxu0 %v6515
    %7071 = vmatprep.subr.bf16.mxu0 0
    %7072 = vmatpush2.bf16.msra.mxu0 %v6508
    %7073 = vmatprep.subr.bf16.mxu0 0
    %7074 = vmatpush2.bf16.msra.mxu0 %v6501
    %7075 = vmatprep.subr.bf16.mxu0 0
    %7076 = vmatpush2.bf16.msra.mxu0 %v6494
    %7077 = vmatprep.subr.bf16.mxu0 0
    %7078 = vmatpush2.bf16.msra.mxu0 %v6487
    %7079 = vmatprep.mubr.bf16.mxu0 %v5315
    %7080 = vmatmul.mubr.bf16.gmra.mxu0 %v5314
    %v7081 = vpop.f32.mrf.mxu0
    %v7082 = vadd.f32 %v7042, %v7081
    %v7083 = vpop.f32.mrf.mxu0
    %v7084 = vpop.f32.mrf.mxu0
    %v7085 = vpop.f32.mrf.mxu0
    %7086 = vdwg.mxu0
    %v7087 = vxor.u32 %v6837, 2147483648
    %v7088 = vxor.u32 %v6839, 2147483648
    %v7089 = vxor.u32 %v6919, 2147483648
    %v7090 = vxor.u32 %v6921, 2147483648
    %v7091 = vxor.u32 %v7001, 2147483648
    %v7092 = vxor.u32 %v7003, 2147483648
    %v7093 = vxor.u32 %v7082, 2147483648
    %v7094 = vmul.f32 %v7087, 1.442695
    %v7095 = vpow.pop %v7094
    %v7096 = vmul.f32 %v7088, 1.442695
    %v7097 = vpow.pop %v7096
    %v7098 = vmul.f32 %v7089, 1.442695
    %v7099 = vpow.pop %v7098
    %v7100 = vmul.f32 %v7090, 1.442695
    %v7101 = vpow.pop %v7100
    %v7102 = vmul.f32 %v7091, 1.442695
    %v7103 = vpow.pop %v7102
    %v7104 = vmul.f32 %v7092, 1.442695
    %v7105 = vpow.pop %v7104
    %v7106 = vmul.f32 %v7093, 1.442695
    %v7107 = vpow.pop %v7106
    %v7108 = vadd.f32 %v7095, 1.0
    %v7109 = vadd.f32 %v7097, 1.0
    %v7110 = vadd.f32 %v7099, 1.0
    %v7111 = vadd.f32 %v7101, 1.0
    %v7112 = vadd.f32 %v7103, 1.0
    %v7113 = vadd.f32 %v7105, 1.0
    %v7114 = vadd.f32 %v7107, 1.0
    %v7115 = vrcp.pop %v7108
    %v7116 = vmul.f32 1.0, %v7115
    %v7117 = vrcp.pop %v7109
    %v7118 = vmul.f32 1.0, %v7117
    %v7119 = vrcp.pop %v7110
    %v7120 = vmul.f32 1.0, %v7119
    %v7121 = vrcp.pop %v7111
    %v7122 = vmul.f32 1.0, %v7121
    %v7123 = vrcp.pop %v7112
    %v7124 = vmul.f32 1.0, %v7123
    %v7125 = vrcp.pop %v7113
    %v7126 = vmul.f32 1.0, %v7125
    %v7127 = vrcp.pop %v7114
    %v7128 = vmul.f32 1.0, %v7127
    %7129 = vst [vmem:[#allocation3] sm:$0xff] %v7116
    %7130 = vst [vmem:[#allocation3 + $0x8] sm:$0xff] %v7118
    %7131 = vst [vmem:[#allocation3 + $0x10] sm:$0xff] %v7120
    %7132 = vst [vmem:[#allocation3 + $0x18] sm:$0xff] %v7122
    %7133 = vst [vmem:[#allocation3 + $0x20] sm:$0xff] %v7124
    %7134 = vst [vmem:[#allocation3 + $0x28] sm:$0xff] %v7126
    %7135 = vst.msk [vmem:[#allocation3 + $0x30] sm:$0xff] %vm1268, %v7128
    // Predicated region
    $region62: #{vae_gumbel_forward.1} parent=1 // pred_check
      _
    $region63: #{vae_gumbel_forward.1} parent=1 // pred_check_branch
      %7137 = sbr.rel (0) target = $region65
    $region64: #{vae_gumbel_forward.1} parent=1 // pred_region
      %s7139 = ssub.s32 896, 896
      %7140 = vsyncadd [#allocation4], %s7139
      %s7142 = sshll.u32 [#allocation3], 4
      %s7143 = int_to_ptr.vmem [resolvable:$true] %s7142
      %7145 = dma.vmem_to_hbm [thread:$0]  %s7143, 896, %s15, [#allocation4]
    $region65: #{vae_gumbel_forward.1} parent=1 // pred_fallthru
      _
    // Predicated region
    $region66: #{vae_gumbel_forward.1} parent=1 // pred_check
      _
    $region67: #{vae_gumbel_forward.1} parent=1 // pred_check_branch
      %7147 = sbr.rel (0) target = $region69
    $region68: #{vae_gumbel_forward.1} parent=1 // pred_region
      _
    $region69: #{vae_gumbel_forward.1} parent=1 // pred_fallthru
      _
    // Predicated region
    $region70: #{vae_gumbel_forward.1} parent=1 // pred_check
      _
    $region71: #{vae_gumbel_forward.1} parent=1 // pred_check_branch
      %7149 = sbr.rel (0) target = $region73
    $region72: #{vae_gumbel_forward.1} parent=1 // pred_region
      %7150 = dma.done [#allocation4], 896
    $region73: #{vae_gumbel_forward.1} parent=1 // pred_fallthru
      _
    // Predicated region
    $region74: #{vae_gumbel_forward.1} parent=1 // pred_check
      _
    $region75: #{vae_gumbel_forward.1} parent=1 // pred_check_branch
      %7152 = sbr.rel (0) target = $region77
    $region76: #{vae_gumbel_forward.1} parent=1 // pred_region
      _
    $region77: #{vae_gumbel_forward.1} parent=1 // pred_fallthru
      _
    %7153 = vsyncpa [#allocation4], 1

</llo_original>
